<compile_context>
chip_gen: v5e
topology: v5e:2x2
jax: 0.10.0
libtpu: 0.0.40
codegen_flags: <defaults>
</compile_context>

<pallas_src>
import jax
import jax.numpy as jnp
from jax.experimental import pallas as pl
from jax.experimental.pallas import tpu as pltpu

EMBED = 2048
IN_DIM = EMBED * 3          # 6144
HID = 20
OUT_DIM = 1
BN_EPS = 1e-5


def _net_kernel(x_ref, w1_ref, b1_ref, w2_ref, b2_ref, w3_ref, b3_ref,
                w4_ref, b4_ref, o_ref):
    """Whole forward pass for one batch tile. All refs live in VMEM."""
    # Layer 1: the only big matmul (the HBM-bound hot path).
    # bf16 operands, f32 MXU accumulation.
    h = jnp.dot(x_ref[...], w1_ref[...], preferred_element_type=jnp.float32)
    h = jnp.maximum(h + b1_ref[...], 0.0)                       # (bm, 20) f32

    # Layers 2/3: BN affines are pre-folded into W/b on the host.
    h = jnp.maximum(
        jnp.dot(h, w2_ref[...], preferred_element_type=jnp.float32) + b2_ref[...], 0.0)
    h = jnp.maximum(
        jnp.dot(h, w3_ref[...], preferred_element_type=jnp.float32) + b3_ref[...], 0.0)

    # Output layer + sigmoid.
    logits = jnp.dot(h, w4_ref[...], preferred_element_type=jnp.float32) + b4_ref[...]
    o_ref[...] = 1.0 / (1.0 + jnp.exp(-logits))                 # (bm, 1)


def _round_up(n, m):
    return ((n + m - 1) // m) * m


def net_forward(x, p, *, bm=512):
    """x: (B, 6144) float32. p: folded params (see fold_params). Returns (B, 1) f32."""
    B, D = x.shape
    assert D == IN_DIM

    # Batch-tile size: multiple of 16 (bf16 sublane packing). Keep the grid at
    # >= 2 steps when the batch allows it, so both v7x TensorCores run.
    if B <= bm:
        bm_eff = _round_up(-(-B // 2), 16) if B >= 32 else _round_up(B, 16)
    else:
        bm_eff = _round_up(min(bm, B), 16)
    Bp = _round_up(B, bm_eff)
    grid = Bp // bm_eff

    # Stream x and W1 in bf16 (halves HBM traffic); everything else stays f32.
    xb = x.astype(jnp.bfloat16)
    if Bp != B:
        xb = jnp.pad(xb, ((0, Bp - B), (0, 0)))
    w1b = p["w1"].astype(jnp.bfloat16)

    full = lambda shape: pl.BlockSpec(shape, lambda i: (0, 0))
    in_specs = [
        pl.BlockSpec((bm_eff, IN_DIM), lambda i: (i, 0)),    # x tile (streamed)
        full((IN_DIM, HID)), full((1, HID)),                 # W1, b1
        full((HID, HID)),    full((1, HID)),                 # W2', b2'  (bn1 folded)
        full((HID, HID)),    full((1, HID)),                 # W3', b3'  (bn2 folded)
        full((HID, OUT_DIM)), full((1, OUT_DIM)),            # W4', b4'  (bn3 folded)
    ]

    # Double-buffered x tile + weights + slack; >=32 MiB (above v5e's 16 MiB
    # default scoped limit), capped at 56 MiB (safe inside v7x's 64 MiB VMEM).
    x_tile_bytes = bm_eff * IN_DIM * 2
    vmem_limit = int(min(max(2 * x_tile_bytes + (8 << 20), 32 << 20), 56 << 20))

    flops = 2 * Bp * (IN_DIM * HID + 2 * HID * HID + HID * OUT_DIM)
    bytes_accessed = (Bp * IN_DIM * 2 + IN_DIM * HID * 2
                      + 2 * HID * HID * 4 + 4 * HID * 4
                      + HID * OUT_DIM * 4 + Bp * OUT_DIM * 4)

    out = pl.pallas_call(
        _net_kernel,
        out_shape=jax.ShapeDtypeStruct((Bp, OUT_DIM), jnp.float32),
        grid_spec=pltpu.PrefetchScalarGridSpec(
            num_scalar_prefetch=0,
            grid=(grid,),
            in_specs=in_specs,
            out_specs=pl.BlockSpec((bm_eff, OUT_DIM), lambda i: (i, 0)),
        ),
        compiler_params=pltpu.CompilerParams(
            dimension_semantics=("parallel",),
            vmem_limit_bytes=vmem_limit,
        ),
        cost_estimate=pl.CostEstimate(
            flops=flops, transcendentals=Bp, bytes_accessed=bytes_accessed),
    )(xb, w1b, p["b1"], p["w2"], p["b2"], p["w3"], p["b3"], p["w4"], p["b4"])

    return out[:B]


# ----------------------------------------------------------------------------
# Parameters (raw PyTorch-style) + exact eval-mode BN fold.
# ----------------------------------------------------------------------------
def make_raw_params(key):
    """Deterministic synthetic parameters with the shapes implied by Net.__init__."""
    ks = jax.random.split(key, 20)

    def lin(kw, kb, fan_in, fan_out):
        # weight stored as (in, out) so the forward computes x @ W
        w = jax.random.normal(kw, (fan_in, fan_out), jnp.float32) / jnp.sqrt(fan_in)
        b = jax.random.normal(kb, (1, fan_out), jnp.float32) * 0.01
        return w, b

    def bn(kg, kb_, km, kv):
        gamma = 1.0 + 0.1 * jax.random.normal(kg, (HID,), jnp.float32)
        beta = 0.1 * jax.random.normal(kb_, (HID,), jnp.float32)
        mean = 0.1 * jax.random.normal(km, (HID,), jnp.float32)
        var = jax.random.uniform(kv, (HID,), jnp.float32, minval=0.5, maxval=1.5)
        return gamma, beta, mean, var

    w1, b1 = lin(ks[0], ks[1], IN_DIM, HID)
    w2, b2 = lin(ks[2], ks[3], HID, HID)
    w3, b3 = lin(ks[4], ks[5], HID, HID)
    w4, b4 = lin(ks[6], ks[7], HID, OUT_DIM)
    g1, be1, m1, v1 = bn(ks[8], ks[9], ks[10], ks[11])
    g2, be2, m2, v2 = bn(ks[12], ks[13], ks[14], ks[15])
    g3, be3, m3, v3 = bn(ks[16], ks[17], ks[18], ks[19])
    return dict(w1=w1, b1=b1, w2=w2, b2=b2, w3=w3, b3=b3, w4=w4, b4=b4,
                g1=g1, be1=be1, m1=m1, v1=v1,
                g2=g2, be2=be2, m2=m2, v2=v2,
                g3=g3, be3=be3, m3=m3, v3=v3)


def _fold_bn_into_linear(w, b, gamma, beta, mean, var, eps=BN_EPS):
    # ((h - mean)/sqrt(var+eps) * gamma + beta) @ W + b == h @ W' + b'
    scale = gamma / jnp.sqrt(var + eps)               # (HID,)
    shift = beta - mean * scale                       # (HID,)
    w_f = scale[:, None] * w
    b_f = b + shift[None, :] @ w
    return w_f, b_f


def fold_params(raw):
    w2f, b2f = _fold_bn_into_linear(raw["w2"], raw["b2"], raw["g1"], raw["be1"], raw["m1"], raw["v1"])
    w3f, b3f = _fold_bn_into_linear(raw["w3"], raw["b3"], raw["g2"], raw["be2"], raw["m2"], raw["v2"])
    w4f, b4f = _fold_bn_into_linear(raw["w4"], raw["b4"], raw["g3"], raw["be3"], raw["m3"], raw["v3"])
    return dict(w1=raw["w1"], b1=raw["b1"],
                w2=w2f, b2=b2f, w3=w3f, b3=b3f, w4=w4f, b4=b4f)


def net_forward_ref(x, raw, *, bf16_layer1):
    """Pure-JAX unfused reference (explicit eval-mode BatchNorm1d)."""
    if bf16_layer1:
        h = jnp.dot(x.astype(jnp.bfloat16), raw["w1"].astype(jnp.bfloat16),
                    preferred_element_type=jnp.float32)
    else:
        h = jnp.dot(x, raw["w1"])
    h = jnp.maximum(h + raw["b1"], 0.0)

    def bn(h, g, be, m, v):
        return (h - m) / jnp.sqrt(v + BN_EPS) * g + be

    h = jnp.maximum(bn(h, raw["g1"], raw["be1"], raw["m1"], raw["v1"]) @ raw["w2"] + raw["b2"], 0.0)
    h = jnp.maximum(bn(h, raw["g2"], raw["be2"], raw["m2"], raw["v2"]) @ raw["w3"] + raw["b3"], 0.0)
    logits = bn(h, raw["g3"], raw["be3"], raw["m3"], raw["v3"]) @ raw["w4"] + raw["b4"]
    return 1.0 / (1.0 + jnp.exp(-logits))


if __name__ == "__main__":
    key = jax.random.PRNGKey(0)
    k_x, k_x2, k_p = jax.random.split(key, 3)

    raw = make_raw_params(k_p)
    params = fold_params(raw)

    # --- aligned batch: 2 grid steps of 128 rows each ---
    B = 256
    x = jax.random.normal(k_x, (B, IN_DIM), jnp.float32)
    y = jax.block_until_ready(net_forward(x, params, bm=128))
    assert y.shape == (B, 1)

    y_ref_bf16 = net_forward_ref(x, raw, bf16_layer1=True)    # matches kernel precision
    y_ref_f32 = net_forward_ref(x, raw, bf16_layer1=False)    # full-f32 reference
    err_bf16 = float(jnp.max(jnp.abs(y - y_ref_bf16)))
    err_f32 = float(jnp.max(jnp.abs(y - y_ref_f32)))
    assert err_bf16 < 2e-3, f"mismatch vs bf16-matched ref: max abs err {err_bf16}"
    assert err_f32 < 3e-2, f"mismatch vs f32 ref: max abs err {err_f32}"

    # --- ragged batch: exercises zero-padding + remainder tiling ---
    B2 = 50
    x2 = jax.random.normal(k_x2, (B2, IN_DIM), jnp.float32)
    y2 = jax.block_until_ready(net_forward(x2, params))        # default bm=512
    assert y2.shape == (B2, 1)
    err2 = float(jnp.max(jnp.abs(y2 - net_forward_ref(x2, raw, bf16_layer1=True))))
    assert err2 < 2e-3, f"ragged-batch mismatch: max abs err {err2}"

    print("KERNEL_OK")
</pallas_src>

<mosaic_0001>
module attributes {stable_mosaic.version = 11 : i64} {
  func.func @_net_kernel(%arg0: i32, %arg1: memref<128x6144xbf16, #tpu.memory_space<vmem>>, %arg2: memref<6144x20xbf16, #tpu.memory_space<vmem>>, %arg3: memref<1x20xf32, #tpu.memory_space<vmem>>, %arg4: memref<20x20xf32, #tpu.memory_space<vmem>>, %arg5: memref<1x20xf32, #tpu.memory_space<vmem>>, %arg6: memref<20x20xf32, #tpu.memory_space<vmem>>, %arg7: memref<1x20xf32, #tpu.memory_space<vmem>>, %arg8: memref<20x1xf32, #tpu.memory_space<vmem>>, %arg9: memref<1x1xf32, #tpu.memory_space<vmem>>, %arg10: memref<128x1xf32, #tpu.memory_space<vmem>>) attributes {dimension_semantics = [#tpu.dimension_semantics<parallel>], iteration_bounds = array<i64: 2>, scalar_prefetch = 0 : i64, scratch_operands = 0 : i64, tpu.core_type = #tpu.core_type<tc>, window_params = [{transform_indices = @transform_0, window_bounds = array<i64: 128, 6144>}, {pipeline_mode = #tpu.pipeline_mode<synchronous>, transform_indices = @transform_1, window_bounds = array<i64: 6144, 20>}, {pipeline_mode = #tpu.pipeline_mode<synchronous>, transform_indices = @transform_2, window_bounds = array<i64: 1, 20>}, {pipeline_mode = #tpu.pipeline_mode<synchronous>, transform_indices = @transform_3, window_bounds = array<i64: 20, 20>}, {pipeline_mode = #tpu.pipeline_mode<synchronous>, transform_indices = @transform_4, window_bounds = array<i64: 1, 20>}, {pipeline_mode = #tpu.pipeline_mode<synchronous>, transform_indices = @transform_5, window_bounds = array<i64: 20, 20>}, {pipeline_mode = #tpu.pipeline_mode<synchronous>, transform_indices = @transform_6, window_bounds = array<i64: 1, 20>}, {pipeline_mode = #tpu.pipeline_mode<synchronous>, transform_indices = @transform_7, window_bounds = array<i64: 20, 1>}, {pipeline_mode = #tpu.pipeline_mode<synchronous>, transform_indices = @transform_8, window_bounds = array<i64: 1, 1>}, {transform_indices = @transform_9, window_bounds = array<i64: 128, 1>}]} {
    %c0 = arith.constant 0 : index
    %c0_0 = arith.constant 0 : index
    %0 = vector.load %arg1[%c0, %c0_0] : memref<128x6144xbf16, #tpu.memory_space<vmem>>, vector<128x6144xbf16>
    %c0_1 = arith.constant 0 : index
    %c0_2 = arith.constant 0 : index
    %1 = vector.load %arg2[%c0_1, %c0_2] : memref<6144x20xbf16, #tpu.memory_space<vmem>>, vector<6144x20xbf16>
    %cst = arith.constant dense<0.000000e+00> : vector<128x20xf32>
    %2 = tpu.matmul %0, %1, %cst {dimension_numbers = #tpu.dot_dimension_numbers<[1], [0], [0], [1], [0, 0, 1, 1], [], []>} : vector<128x6144xbf16>, vector<6144x20xbf16>, vector<128x20xf32> -> vector<128x20xf32>
    %c0_3 = arith.constant 0 : index
    %c0_4 = arith.constant 0 : index
    %3 = vector.load %arg3[%c0_3, %c0_4] : memref<1x20xf32, #tpu.memory_space<vmem>>, vector<1x20xf32>
    %4 = vector.broadcast %3 : vector<1x20xf32> to vector<128x20xf32>
    %5 = arith.addf %2, %4 : vector<128x20xf32>
    %cst_5 = arith.constant 0.000000e+00 : f32
    %6 = vector.broadcast %cst_5 : f32 to vector<128x20xf32>
    %7 = arith.maximumf %5, %6 : vector<128x20xf32>
    %c0_6 = arith.constant 0 : index
    %c0_7 = arith.constant 0 : index
    %8 = vector.load %arg4[%c0_6, %c0_7] : memref<20x20xf32, #tpu.memory_space<vmem>>, vector<20x20xf32>
    %cst_8 = arith.constant dense<0.000000e+00> : vector<128x20xf32>
    %9 = tpu.matmul %7, %8, %cst_8 {dimension_numbers = #tpu.dot_dimension_numbers<[1], [0], [0], [1], [0, 0, 1, 1], [], []>} : vector<128x20xf32>, vector<20x20xf32>, vector<128x20xf32> -> vector<128x20xf32>
    %c0_9 = arith.constant 0 : index
    %c0_10 = arith.constant 0 : index
    %10 = vector.load %arg5[%c0_9, %c0_10] : memref<1x20xf32, #tpu.memory_space<vmem>>, vector<1x20xf32>
    %11 = vector.broadcast %10 : vector<1x20xf32> to vector<128x20xf32>
    %12 = arith.addf %9, %11 : vector<128x20xf32>
    %cst_11 = arith.constant 0.000000e+00 : f32
    %13 = vector.broadcast %cst_11 : f32 to vector<128x20xf32>
    %14 = arith.maximumf %12, %13 : vector<128x20xf32>
    %c0_12 = arith.constant 0 : index
    %c0_13 = arith.constant 0 : index
    %15 = vector.load %arg6[%c0_12, %c0_13] : memref<20x20xf32, #tpu.memory_space<vmem>>, vector<20x20xf32>
    %cst_14 = arith.constant dense<0.000000e+00> : vector<128x20xf32>
    %16 = tpu.matmul %14, %15, %cst_14 {dimension_numbers = #tpu.dot_dimension_numbers<[1], [0], [0], [1], [0, 0, 1, 1], [], []>} : vector<128x20xf32>, vector<20x20xf32>, vector<128x20xf32> -> vector<128x20xf32>
    %c0_15 = arith.constant 0 : index
    %c0_16 = arith.constant 0 : index
    %17 = vector.load %arg7[%c0_15, %c0_16] : memref<1x20xf32, #tpu.memory_space<vmem>>, vector<1x20xf32>
    %18 = vector.broadcast %17 : vector<1x20xf32> to vector<128x20xf32>
    %19 = arith.addf %16, %18 : vector<128x20xf32>
    %cst_17 = arith.constant 0.000000e+00 : f32
    %20 = vector.broadcast %cst_17 : f32 to vector<128x20xf32>
    %21 = arith.maximumf %19, %20 : vector<128x20xf32>
    %c0_18 = arith.constant 0 : index
    %c0_19 = arith.constant 0 : index
    %22 = vector.load %arg8[%c0_18, %c0_19] : memref<20x1xf32, #tpu.memory_space<vmem>>, vector<20x1xf32>
    %cst_20 = arith.constant dense<0.000000e+00> : vector<128x1xf32>
    %23 = tpu.matmul %21, %22, %cst_20 {dimension_numbers = #tpu.dot_dimension_numbers<[1], [0], [0], [1], [0, 0, 1, 1], [], []>} : vector<128x20xf32>, vector<20x1xf32>, vector<128x1xf32> -> vector<128x1xf32>
    %c0_21 = arith.constant 0 : index
    %c0_22 = arith.constant 0 : index
    %24 = vector.load %arg9[%c0_21, %c0_22] : memref<1x1xf32, #tpu.memory_space<vmem>>, vector<1x1xf32>
    %25 = vector.broadcast %24 : vector<1x1xf32> to vector<128x1xf32>
    %26 = arith.addf %23, %25 : vector<128x1xf32>
    %cst_23 = arith.constant 0.000000e+00 : f32
    %27 = vector.broadcast %cst_23 : f32 to vector<128x1xf32>
    %28 = arith.subf %27, %26 : vector<128x1xf32>
    %29 = math.exp %28 : vector<128x1xf32>
    %cst_24 = arith.constant 1.000000e+00 : f32
    %30 = vector.broadcast %cst_24 : f32 to vector<128x1xf32>
    %31 = arith.addf %30, %29 : vector<128x1xf32>
    %cst_25 = arith.constant 1.000000e+00 : f32
    %32 = vector.broadcast %cst_25 : f32 to vector<128x1xf32>
    %33 = arith.divf %32, %31 : vector<128x1xf32>
    %c0_26 = arith.constant 0 : index
    %c0_27 = arith.constant 0 : index
    %34 = vector.load %arg10[%c0_26, %c0_27] : memref<128x1xf32, #tpu.memory_space<vmem>>, vector<128x1xf32>
    tpu.vector_store %arg10[%c0_26, %c0_27], %33 {strides = array<i32>} : memref<128x1xf32, #tpu.memory_space<vmem>>, vector<128x1xf32>,
    return
  }
  func.func @transform_0(%arg0: i32) -> (i32, i32) {
    %c0_i32 = arith.constant 0 : i32
    %c0_i32_0 = arith.constant 0 : i32
    return %arg0, %c0_i32 : i32, i32
  }
  func.func @transform_1(%arg0: i32) -> (i32, i32) {
    %c0_i32 = arith.constant 0 : i32
    %c0_i32_0 = arith.constant 0 : i32
    %c0_i32_1 = arith.constant 0 : i32
    return %c0_i32, %c0_i32_0 : i32, i32
  }
  func.func @transform_2(%arg0: i32) -> (i32, i32) {
    %c0_i32 = arith.constant 0 : i32
    %c0_i32_0 = arith.constant 0 : i32
    %c0_i32_1 = arith.constant 0 : i32
    return %c0_i32, %c0_i32_0 : i32, i32
  }
  func.func @transform_3(%arg0: i32) -> (i32, i32) {
    %c0_i32 = arith.constant 0 : i32
    %c0_i32_0 = arith.constant 0 : i32
    %c0_i32_1 = arith.constant 0 : i32
    return %c0_i32, %c0_i32_0 : i32, i32
  }
  func.func @transform_4(%arg0: i32) -> (i32, i32) {
    %c0_i32 = arith.constant 0 : i32
    %c0_i32_0 = arith.constant 0 : i32
    %c0_i32_1 = arith.constant 0 : i32
    return %c0_i32, %c0_i32_0 : i32, i32
  }
  func.func @transform_5(%arg0: i32) -> (i32, i32) {
    %c0_i32 = arith.constant 0 : i32
    %c0_i32_0 = arith.constant 0 : i32
    %c0_i32_1 = arith.constant 0 : i32
    return %c0_i32, %c0_i32_0 : i32, i32
  }
  func.func @transform_6(%arg0: i32) -> (i32, i32) {
    %c0_i32 = arith.constant 0 : i32
    %c0_i32_0 = arith.constant 0 : i32
    %c0_i32_1 = arith.constant 0 : i32
    return %c0_i32, %c0_i32_0 : i32, i32
  }
  func.func @transform_7(%arg0: i32) -> (i32, i32) {
    %c0_i32 = arith.constant 0 : i32
    %c0_i32_0 = arith.constant 0 : i32
    %c0_i32_1 = arith.constant 0 : i32
    return %c0_i32, %c0_i32_0 : i32, i32
  }
  func.func @transform_8(%arg0: i32) -> (i32, i32) {
    %c0_i32 = arith.constant 0 : i32
    %c0_i32_0 = arith.constant 0 : i32
    %c0_i32_1 = arith.constant 0 : i32
    return %c0_i32, %c0_i32_0 : i32, i32
  }
  func.func @transform_9(%arg0: i32) -> (i32, i32) {
    %c0_i32 = arith.constant 0 : i32
    %c0_i32_0 = arith.constant 0 : i32
    return %arg0, %c0_i32 : i32, i32
  }
}

</mosaic_0001>

<llo_original>
// kernel: tpu_custom_call.1
$region0: #{tpu_custom_call.1}
  #allocation0 [shape = 'u32[]', space=smem, size = 0x4, offset = 0x4, fixed_abs, tag = 'smem constant byte address 0x4 - core index']
  #allocation1 [shape = 'u32[72,128]{1,0:T(1,128)}', space=vmem, size = 0x9000, scoped, tag = 'internal scratch']
  #allocation2 [shape = 'f32[1,1]{1,0:T(1,128)S(1)}', space=vmem, size = 0x200, scoped, tag = 'scoped memory for tpu_custom_call.1']
  %s0 = inlined_call_operand.hbm [shape: bf16[256,6144], index: 0, kind: input, shape index: {}]
  %s1 = inlined_call_operand.vmem [shape: bf16[6144,20], index: 1, kind: input, shape index: {}]
  %s2 = inlined_call_operand.hbm [shape: f32[1,20], index: 2, kind: input, shape index: {}]
  %s3 = inlined_call_operand.hbm [shape: f32[20,20], index: 3, kind: input, shape index: {}]
  %s4 = inlined_call_operand.hbm [shape: f32[1,20], index: 4, kind: input, shape index: {}]
  %s5 = inlined_call_operand.hbm [shape: f32[20,20], index: 5, kind: input, shape index: {}]
  %s6 = inlined_call_operand.hbm [shape: f32[1,20], index: 6, kind: input, shape index: {}]
  %s7 = inlined_call_operand.vmem [shape: f32[20,1], index: 7, kind: input, shape index: {}]
  %s8 = inlined_call_operand.<no memory space> [shape: f32[1,1], index: 8, kind: input, shape index: {}]
  %s9 = inlined_call_operand.vmem [shape: f32[256,1], index: 9, kind: output, shape index: {}]
  %s10 = sld [smem:[#allocation0]]
  $region93: #{tpu_custom_call.1} parent=0
    _
  %s12 = ssub.s32 1, %s10
  %s13 = scalar_select 0, %s12, %s10
  %v14 = vstv %s8
  %15 = vst [vmem:[#allocation2] sm:$0x1] %v14
  $region1: #{tpu_custom_call.1} parent=0
    #allocation3 [shape = 'u8[3145728]{0}', space=vmem, size = 0x300000, scoped, tag = 'input window, operand 0']
    #allocation4 [shape = 's32[2]{0}', space=sflag, size = 0x8, scoped, tag = 'scoped memory for tpu_custom_call.1']
    #allocation5 [shape = 'u8[512]{0}', space=vmem, size = 0x400, scoped, tag = 'input window, operand 2, single buffered']
    #allocation6 [shape = 's32[1]{0}', space=sflag, size = 0x4, scoped, tag = 'scoped memory for tpu_custom_call.1']
    #allocation7 [shape = 'u8[12288]{0}', space=vmem, size = 0x3000, scoped, tag = 'input window, operand 3, single buffered']
    #allocation8 [shape = 'u8[512]{0}', space=vmem, size = 0x400, scoped, tag = 'input window, operand 4, single buffered']
    #allocation9 [shape = 's32[1]{0}', space=sflag, size = 0x4, scoped, tag = 'scoped memory for tpu_custom_call.1']
    #allocation10 [shape = 'u8[12288]{0}', space=vmem, size = 0x3000, scoped, tag = 'input window, operand 5, single buffered']
    #allocation11 [shape = 'u8[512]{0}', space=vmem, size = 0x400, scoped, tag = 'input window, operand 6, single buffered']
    #allocation12 [shape = 's32[1]{0}', space=sflag, size = 0x4, scoped, tag = 'scoped memory for tpu_custom_call.1']
    %16 = vsyncpa [#allocation4], 0
    %s17 = scalar_lea.sflag [#allocation4], 1
    %18 = vsyncpa %s17, 0
    %19 = vsyncpa [#allocation6], 0
    %20 = vsyncpa [#allocation9], 0
    %21 = vsyncpa [#allocation12], 0
    loop: start=0, step=1, limit=4
    $region2: #{tpu_custom_call.1} parent=1 // loop_pre_header
      _
    $region3: #{tpu_custom_call.1} parent=1 // loop_header
      %s23 = sphi 0, %s27
      %p24 = scmp.ge.s32.totalorder %s23, 4
      %s33 = sphi 0, %s35
      %s36 = sphi 0, %s33
      %s37 = sphi 0, %s36
      %s53 = sphi 0, %s37
      %s57 = sphi 0, %s57
      %s59 = sphi 0, %s57
      %s60 = sphi 0, %s59
      %s74 = sphi 0, %s60
      %s78 = sphi 0, %s78
      %s80 = sphi 0, %s78
      %s81 = sphi 0, %s80
      %s95 = sphi 0, %s81
      %s99 = sphi 0, %s99
      %s101 = sphi 0, %s99
      %s102 = sphi 0, %s101
      %s116 = sphi 0, %s102
      %s120 = sphi 0, %s120
      %s122 = sphi 0, %s120
      %s123 = sphi 0, %s122
      %s137 = sphi 0, %s123
      %s141 = sphi 0, %s141
      %s143 = sphi 0, %s141
      %s144 = sphi 0, %s143
      %s158 = sphi 0, %s144
      %s162 = sphi 0, %s162
      %s164 = sphi 0, %s162
      %s165 = sphi 0, %s164
      %s179 = sphi 0, %s165
      %s183 = sphi 0, %s183
      %s185 = sphi 0, %s183
      %s186 = sphi 0, %s185
      %s200 = sphi 0, %s186
      %s204 = sphi 0, %s204
      %s206 = sphi 0, %s204
      %s207 = sphi 0, %s206
      %s221 = sphi 0, %s207
      %s227 = sphi 0, %s229
      %s230 = sphi 0, %s227
      %s231 = sphi 0, %s230
      %s247 = sphi 0, %s231
    $region4: #{tpu_custom_call.1} parent=1 // loop_header_branch
      %26 = sbr.rel (%p24) target = $region8
    $region5: #{tpu_custom_call.1} parent=1 // loop_body
      %s28 = ssub.s32 %s23, 1
      %s29 = ssub.s32 %s23, 2
      %s30 = sadd.s32 %s23, 1
      %s31 = ssub.s32 %s23, %s30
      %p32 = scmp.eq.s32.totalorder %s31, 0
      %s34 = sadd.s32 %s33, 1
      %s35 = scalar_select %p32, %s33, %s34
      %p38 = pneg %p32
      %p39 = scmp.eq.s32.totalorder %s23, 1
      %p40 = por %p38, %p39
      %p41 = scmp.ne.s32.totalorder %s33, %s36
      %p42 = scmp.eq.s32.totalorder %s23, 0
      %p43 = por %p41, %p42
      %p44 = scmp.ne.s32.totalorder %s33, %s36
      %p45 = scmp.eq.s32.totalorder %s28, 1
      %p46 = por %p44, %p45
      %p47 = scmp.ne.s32.totalorder %s36, %s37
      %p48 = scmp.eq.s32.totalorder %s28, 0
      %p49 = por %p47, %p48
      %p50 = scmp.ne.s32.totalorder %s36, %s37
      %p51 = scmp.eq.s32.totalorder %s29, 1
      %p52 = por %p50, %p51
      %p54 = scmp.ne.s32.totalorder %s37, %s53
      %p55 = scmp.eq.s32.totalorder %s29, 0
      %p56 = por %p54, %p55
      %s58 = sadd.s32 %s57, 1
      %p61 = scmp.eq.s32.totalorder %s23, 1
      %p62 = scmp.ne.s32.totalorder %s57, %s59
      %p63 = scmp.eq.s32.totalorder %s23, 0
      %p64 = por %p62, %p63
      %p65 = scmp.ne.s32.totalorder %s57, %s59
      %p66 = scmp.eq.s32.totalorder %s28, 1
      %p67 = por %p65, %p66
      %p68 = scmp.ne.s32.totalorder %s59, %s60
      %p69 = scmp.eq.s32.totalorder %s28, 0
      %p70 = por %p68, %p69
      %p71 = scmp.ne.s32.totalorder %s59, %s60
      %p72 = scmp.eq.s32.totalorder %s29, 1
      %p73 = por %p71, %p72
      %p75 = scmp.ne.s32.totalorder %s60, %s74
      %p76 = scmp.eq.s32.totalorder %s29, 0
      %p77 = por %p75, %p76
      %s79 = sadd.s32 %s78, 1
      %p82 = scmp.eq.s32.totalorder %s23, 1
      %p83 = scmp.ne.s32.totalorder %s78, %s80
      %p84 = scmp.eq.s32.totalorder %s23, 0
      %p85 = por %p83, %p84
      %p86 = scmp.ne.s32.totalorder %s78, %s80
      %p87 = scmp.eq.s32.totalorder %s28, 1
      %p88 = por %p86, %p87
      %p89 = scmp.ne.s32.totalorder %s80, %s81
      %p90 = scmp.eq.s32.totalorder %s28, 0
      %p91 = por %p89, %p90
      %p92 = scmp.ne.s32.totalorder %s80, %s81
      %p93 = scmp.eq.s32.totalorder %s29, 1
      %p94 = por %p92, %p93
      %p96 = scmp.ne.s32.totalorder %s81, %s95
      %p97 = scmp.eq.s32.totalorder %s29, 0
      %p98 = por %p96, %p97
      %s100 = sadd.s32 %s99, 1
      %p103 = scmp.eq.s32.totalorder %s23, 1
      %p104 = scmp.ne.s32.totalorder %s99, %s101
      %p105 = scmp.eq.s32.totalorder %s23, 0
      %p106 = por %p104, %p105
      %p107 = scmp.ne.s32.totalorder %s99, %s101
      %p108 = scmp.eq.s32.totalorder %s28, 1
      %p109 = por %p107, %p108
      %p110 = scmp.ne.s32.totalorder %s101, %s102
      %p111 = scmp.eq.s32.totalorder %s28, 0
      %p112 = por %p110, %p111
      %p113 = scmp.ne.s32.totalorder %s101, %s102
      %p114 = scmp.eq.s32.totalorder %s29, 1
      %p115 = por %p113, %p114
      %p117 = scmp.ne.s32.totalorder %s102, %s116
      %p118 = scmp.eq.s32.totalorder %s29, 0
      %p119 = por %p117, %p118
      %s121 = sadd.s32 %s120, 1
      %p124 = scmp.eq.s32.totalorder %s23, 1
      %p125 = scmp.ne.s32.totalorder %s120, %s122
      %p126 = scmp.eq.s32.totalorder %s23, 0
      %p127 = por %p125, %p126
      %p128 = scmp.ne.s32.totalorder %s120, %s122
      %p129 = scmp.eq.s32.totalorder %s28, 1
      %p130 = por %p128, %p129
      %p131 = scmp.ne.s32.totalorder %s122, %s123
      %p132 = scmp.eq.s32.totalorder %s28, 0
      %p133 = por %p131, %p132
      %p134 = scmp.ne.s32.totalorder %s122, %s123
      %p135 = scmp.eq.s32.totalorder %s29, 1
      %p136 = por %p134, %p135
      %p138 = scmp.ne.s32.totalorder %s123, %s137
      %p139 = scmp.eq.s32.totalorder %s29, 0
      %p140 = por %p138, %p139
      %s142 = sadd.s32 %s141, 1
      %p145 = scmp.eq.s32.totalorder %s23, 1
      %p146 = scmp.ne.s32.totalorder %s141, %s143
      %p147 = scmp.eq.s32.totalorder %s23, 0
      %p148 = por %p146, %p147
      %p149 = scmp.ne.s32.totalorder %s141, %s143
      %p150 = scmp.eq.s32.totalorder %s28, 1
      %p151 = por %p149, %p150
      %p152 = scmp.ne.s32.totalorder %s143, %s144
      %p153 = scmp.eq.s32.totalorder %s28, 0
      %p154 = por %p152, %p153
      %p155 = scmp.ne.s32.totalorder %s143, %s144
      %p156 = scmp.eq.s32.totalorder %s29, 1
      %p157 = por %p155, %p156
      %p159 = scmp.ne.s32.totalorder %s144, %s158
      %p160 = scmp.eq.s32.totalorder %s29, 0
      %p161 = por %p159, %p160
      %s163 = sadd.s32 %s162, 1
      %p166 = scmp.eq.s32.totalorder %s23, 1
      %p167 = scmp.ne.s32.totalorder %s162, %s164
      %p168 = scmp.eq.s32.totalorder %s23, 0
      %p169 = por %p167, %p168
      %p170 = scmp.ne.s32.totalorder %s162, %s164
      %p171 = scmp.eq.s32.totalorder %s28, 1
      %p172 = por %p170, %p171
      %p173 = scmp.ne.s32.totalorder %s164, %s165
      %p174 = scmp.eq.s32.totalorder %s28, 0
      %p175 = por %p173, %p174
      %p176 = scmp.ne.s32.totalorder %s164, %s165
      %p177 = scmp.eq.s32.totalorder %s29, 1
      %p178 = por %p176, %p177
      %p180 = scmp.ne.s32.totalorder %s165, %s179
      %p181 = scmp.eq.s32.totalorder %s29, 0
      %p182 = por %p180, %p181
      %s184 = sadd.s32 %s183, 1
      %p187 = scmp.eq.s32.totalorder %s23, 1
      %p188 = scmp.ne.s32.totalorder %s183, %s185
      %p189 = scmp.eq.s32.totalorder %s23, 0
      %p190 = por %p188, %p189
      %p191 = scmp.ne.s32.totalorder %s183, %s185
      %p192 = scmp.eq.s32.totalorder %s28, 1
      %p193 = por %p191, %p192
      %p194 = scmp.ne.s32.totalorder %s185, %s186
      %p195 = scmp.eq.s32.totalorder %s28, 0
      %p196 = por %p194, %p195
      %p197 = scmp.ne.s32.totalorder %s185, %s186
      %p198 = scmp.eq.s32.totalorder %s29, 1
      %p199 = por %p197, %p198
      %p201 = scmp.ne.s32.totalorder %s186, %s200
      %p202 = scmp.eq.s32.totalorder %s29, 0
      %p203 = por %p201, %p202
      %s205 = sadd.s32 %s204, 1
      %p208 = scmp.eq.s32.totalorder %s23, 1
      %p209 = scmp.ne.s32.totalorder %s204, %s206
      %p210 = scmp.eq.s32.totalorder %s23, 0
      %p211 = por %p209, %p210
      %p212 = scmp.ne.s32.totalorder %s204, %s206
      %p213 = scmp.eq.s32.totalorder %s28, 1
      %p214 = por %p212, %p213
      %p215 = scmp.ne.s32.totalorder %s206, %s207
      %p216 = scmp.eq.s32.totalorder %s28, 0
      %p217 = por %p215, %p216
      %p218 = scmp.ne.s32.totalorder %s206, %s207
      %p219 = scmp.eq.s32.totalorder %s29, 1
      %p220 = por %p218, %p219
      %p222 = scmp.ne.s32.totalorder %s207, %s221
      %p223 = scmp.eq.s32.totalorder %s29, 0
      %p224 = por %p222, %p223
      %s225 = ssub.s32 %s23, %s30
      %p226 = scmp.eq.s32.totalorder %s225, 0
      %s228 = sadd.s32 %s227, 1
      %s229 = scalar_select %p226, %s227, %s228
      %p232 = pneg %p226
      %p233 = scmp.eq.s32.totalorder %s23, 1
      %p234 = por %p232, %p233
      %p235 = scmp.ne.s32.totalorder %s227, %s230
      %p236 = scmp.eq.s32.totalorder %s23, 0
      %p237 = por %p235, %p236
      %p238 = scmp.ne.s32.totalorder %s227, %s230
      %p239 = scmp.eq.s32.totalorder %s28, 1
      %p240 = por %p238, %p239
      %p241 = scmp.ne.s32.totalorder %s230, %s231
      %p242 = scmp.eq.s32.totalorder %s28, 0
      %p243 = por %p241, %p242
      %p244 = scmp.ne.s32.totalorder %s230, %s231
      %p245 = scmp.eq.s32.totalorder %s29, 1
      %p246 = por %p244, %p245
      %p248 = scmp.ne.s32.totalorder %s231, %s247
      %p249 = scmp.eq.s32.totalorder %s29, 0
      %p250 = por %p248, %p249
      %p251 = scmp.le.s32.totalorder 1, %s23
      %p252 = scmp.lt.s32.totalorder %s23, 3
      %p253 = pnand %p251, %p252
      %p254 = pneg %p253
      // Predicated region
      $region9: #{tpu_custom_call.1} parent=5 // pred_check
        _
      $region10: #{tpu_custom_call.1} parent=5 // pred_check_branch
        %256 = sbr.rel (%p253) target = $region12
      $region11: #{tpu_custom_call.1} parent=5 // pred_region
        %s257 = ssub.s32 %s23, 1
        // Predicated region
        $region13: #{tpu_custom_call.1} parent=11 // pred_check
          %p258 = pneg %p70
        $region14: #{tpu_custom_call.1} parent=11 // pred_check_branch
          %260 = sbr.rel (%p258) target = $region16
        $region15: #{tpu_custom_call.1} parent=11 // pred_region
          _
        $region16: #{tpu_custom_call.1} parent=11 // pred_fallthru
          _
        // Predicated region
        $region17: #{tpu_custom_call.1} parent=11 // pred_check
          %p261 = pneg %p91
        $region18: #{tpu_custom_call.1} parent=11 // pred_check_branch
          %263 = sbr.rel (%p261) target = $region20
        $region19: #{tpu_custom_call.1} parent=11 // pred_region
          %265 = vsyncadd [#allocation6], 0
          %s267 = sshll.u32 %s2, 4
          %s268 = int_to_ptr.hbm [resolvable:$true] %s267
          %s269 = sshll.u32 [#allocation5], 4
          %s270 = int_to_ptr.vmem [resolvable:$true] %s269
          %272 = dma.hbm_to_vmem [thread:$0]  %s268, 16, %s270, [#allocation6]
        $region20: #{tpu_custom_call.1} parent=11 // pred_fallthru
          _
        // Predicated region
        $region21: #{tpu_custom_call.1} parent=11 // pred_check
          %p273 = pneg %p112
        $region22: #{tpu_custom_call.1} parent=11 // pred_check_branch
          %275 = sbr.rel (%p273) target = $region24
        $region23: #{tpu_custom_call.1} parent=11 // pred_region
          %277 = vsyncadd [#allocation6], 0
          %s278 = sshll.u32 %s3, 4
          %s279 = int_to_ptr.hbm [resolvable:$true] %s278
          %s280 = sshll.u32 [#allocation7], 4
          %s281 = int_to_ptr.vmem [resolvable:$true] %s280
          %286 = dma.hbm_to_vmem [thread:$0]  %s279, 384, %s281, [#allocation6], 128, 128, 8
        $region24: #{tpu_custom_call.1} parent=11 // pred_fallthru
          _
        // Predicated region
        $region25: #{tpu_custom_call.1} parent=11 // pred_check
          %p287 = pneg %p133
        $region26: #{tpu_custom_call.1} parent=11 // pred_check_branch
          %289 = sbr.rel (%p287) target = $region28
        $region27: #{tpu_custom_call.1} parent=11 // pred_region
          %291 = vsyncadd [#allocation9], 0
          %s293 = sshll.u32 %s4, 4
          %s294 = int_to_ptr.hbm [resolvable:$true] %s293
          %s295 = sshll.u32 [#allocation8], 4
          %s296 = int_to_ptr.vmem [resolvable:$true] %s295
          %298 = dma.hbm_to_vmem [thread:$0]  %s294, 16, %s296, [#allocation9]
        $region28: #{tpu_custom_call.1} parent=11 // pred_fallthru
          _
        // Predicated region
        $region29: #{tpu_custom_call.1} parent=11 // pred_check
          %p299 = pneg %p154
        $region30: #{tpu_custom_call.1} parent=11 // pred_check_branch
          %301 = sbr.rel (%p299) target = $region32
        $region31: #{tpu_custom_call.1} parent=11 // pred_region
          %303 = vsyncadd [#allocation9], 0
          %s304 = sshll.u32 %s5, 4
          %s305 = int_to_ptr.hbm [resolvable:$true] %s304
          %s306 = sshll.u32 [#allocation10], 4
          %s307 = int_to_ptr.vmem [resolvable:$true] %s306
          %312 = dma.hbm_to_vmem [thread:$0]  %s305, 384, %s307, [#allocation9], 128, 128, 8
        $region32: #{tpu_custom_call.1} parent=11 // pred_fallthru
          _
        // Predicated region
        $region33: #{tpu_custom_call.1} parent=11 // pred_check
          %p313 = pneg %p175
        $region34: #{tpu_custom_call.1} parent=11 // pred_check_branch
          %315 = sbr.rel (%p313) target = $region36
        $region35: #{tpu_custom_call.1} parent=11 // pred_region
          %317 = vsyncadd [#allocation12], 0
          %s319 = sshll.u32 %s6, 4
          %s320 = int_to_ptr.hbm [resolvable:$true] %s319
          %s321 = sshll.u32 [#allocation11], 4
          %s322 = int_to_ptr.vmem [resolvable:$true] %s321
          %324 = dma.hbm_to_vmem [thread:$0]  %s320, 16, %s322, [#allocation12]
        $region36: #{tpu_custom_call.1} parent=11 // pred_fallthru
          _
        // Predicated region
        $region37: #{tpu_custom_call.1} parent=11 // pred_check
          %p325 = pneg %p196
        $region38: #{tpu_custom_call.1} parent=11 // pred_check_branch
          %327 = sbr.rel (%p325) target = $region40
        $region39: #{tpu_custom_call.1} parent=11 // pred_region
          _
        $region40: #{tpu_custom_call.1} parent=11 // pred_fallthru
          _
        // Predicated region
        $region41: #{tpu_custom_call.1} parent=11 // pred_check
          %p328 = pneg %p217
        $region42: #{tpu_custom_call.1} parent=11 // pred_check_branch
          %330 = sbr.rel (%p328) target = $region44
        $region43: #{tpu_custom_call.1} parent=11 // pred_region
          _
        $region44: #{tpu_custom_call.1} parent=11 // pred_fallthru
          _
      $region12: #{tpu_custom_call.1} parent=5 // pred_fallthru
        _
      %p331 = scmp.lt.s32.totalorder %s23, 2
      // Predicated region
      $region45: #{tpu_custom_call.1} parent=5 // pred_check
        %p332 = pneg %p331
      $region46: #{tpu_custom_call.1} parent=5 // pred_check_branch
        %334 = sbr.rel (%p332) target = $region48
      $region47: #{tpu_custom_call.1} parent=5 // pred_region
        // Predicated region
        $region49: #{tpu_custom_call.1} parent=47 // pred_check
          %p335 = pneg %p43
        $region50: #{tpu_custom_call.1} parent=47 // pred_check_branch
          %337 = sbr.rel (%p335) target = $region52
        $region51: #{tpu_custom_call.1} parent=47 // pred_region
          %s338 = sand.u32 %s33, 1
          %s339 = scalar_lea.sflag [#allocation4], %s338
          %s340 = sand.u32 %s33, 1
          %s341 = smul.addr %s340, 3072
          %s342 = scalar_lea.vmem [#allocation3], %s341
          %s343 = smul.u32 16, %s23
          %345 = vsyncadd %s339, 0
          %s346 = smul.addr %s343, 48
          %s347 = smul.addr %s346, 4
          %s348 = scalar_lea.hbm %s0, %s347
          %s349 = sshll.u32 %s348, 4
          %s350 = int_to_ptr.hbm [resolvable:$true] %s349
          %s351 = sshll.u32 %s342, 4
          %s352 = int_to_ptr.vmem [resolvable:$true] %s351
          %357 = dma.hbm_to_vmem [thread:$0]  %s350, 49152, %s352, %s339, 3072, 3072, 192
        $region52: #{tpu_custom_call.1} parent=47 // pred_fallthru
          _
      $region48: #{tpu_custom_call.1} parent=5 // pred_fallthru
        _
      %p358 = scmp.le.s32.totalorder 1, %s23
      %p359 = scmp.lt.s32.totalorder %s23, 3
      %p360 = pnand %p358, %p359
      %p361 = pneg %p360
      // Predicated region
      $region53: #{tpu_custom_call.1} parent=5 // pred_check
        _
      $region54: #{tpu_custom_call.1} parent=5 // pred_check_branch
        %363 = sbr.rel (%p360) target = $region56
      $region55: #{tpu_custom_call.1} parent=5 // pred_region
        %s364 = ssub.s32 %s23, 1
        %s365 = sand.u32 %s36, 1
        %s366 = scalar_lea.sflag [#allocation4], %s365
        %s367 = sand.u32 %s36, 1
        %s368 = smul.addr %s367, 3072
        %s369 = scalar_lea.vmem [#allocation3], %s368
        // Predicated region
        $region57: #{tpu_custom_call.1} parent=55 // pred_check
          %p370 = pneg %p49
        $region58: #{tpu_custom_call.1} parent=55 // pred_check_branch
          %372 = sbr.rel (%p370) target = $region60
        $region59: #{tpu_custom_call.1} parent=55 // pred_region
          %374 = dma.done %s366, 49152
        $region60: #{tpu_custom_call.1} parent=55 // pred_fallthru
          _
        // Predicated region
        $region61: #{tpu_custom_call.1} parent=55 // pred_check
          %p375 = pneg %p91
        $region62: #{tpu_custom_call.1} parent=55 // pred_check_branch
          %377 = sbr.rel (%p375) target = $region64
        $region63: #{tpu_custom_call.1} parent=55 // pred_region
          %379 = dma.done [#allocation6], 16
        $region64: #{tpu_custom_call.1} parent=55 // pred_fallthru
          _
        // Predicated region
        $region65: #{tpu_custom_call.1} parent=55 // pred_check
          %p380 = pneg %p112
        $region66: #{tpu_custom_call.1} parent=55 // pred_check_branch
          %382 = sbr.rel (%p380) target = $region68
        $region67: #{tpu_custom_call.1} parent=55 // pred_region
          %384 = dma.done [#allocation6], 384
        $region68: #{tpu_custom_call.1} parent=55 // pred_fallthru
          _
        // Predicated region
        $region69: #{tpu_custom_call.1} parent=55 // pred_check
          %p385 = pneg %p133
        $region70: #{tpu_custom_call.1} parent=55 // pred_check_branch
          %387 = sbr.rel (%p385) target = $region72
        $region71: #{tpu_custom_call.1} parent=55 // pred_region
          %389 = dma.done [#allocation9], 16
        $region72: #{tpu_custom_call.1} parent=55 // pred_fallthru
          _
        // Predicated region
        $region73: #{tpu_custom_call.1} parent=55 // pred_check
          %p390 = pneg %p154
        $region74: #{tpu_custom_call.1} parent=55 // pred_check_branch
          %392 = sbr.rel (%p390) target = $region76
        $region75: #{tpu_custom_call.1} parent=55 // pred_region
          %394 = dma.done [#allocation9], 384
        $region76: #{tpu_custom_call.1} parent=55 // pred_fallthru
          _
        // Predicated region
        $region77: #{tpu_custom_call.1} parent=55 // pred_check
          %p395 = pneg %p175
        $region78: #{tpu_custom_call.1} parent=55 // pred_check_branch
          %397 = sbr.rel (%p395) target = $region80
        $region79: #{tpu_custom_call.1} parent=55 // pred_region
          %399 = dma.done [#allocation12], 16
        $region80: #{tpu_custom_call.1} parent=55 // pred_fallthru
          _
        %s400 = sand.u32 %s36, 1
        %s401 = scalar_lea.sflag [#allocation4], %s400
        %s402 = sand.u32 %s36, 1
        %s403 = smul.addr %s402, 3072
        %s404 = scalar_lea.vmem [#allocation3], %s403
        %p405 = pneg %p49
        %p406 = pneg %p46
        %p407 = pneg %p70
        %p408 = pneg %p67
        %p409 = pneg %p91
        %p410 = pneg %p88
        %p411 = pneg %p112
        %p412 = pneg %p109
        %p413 = pneg %p133
        %p414 = pneg %p130
        %p415 = pneg %p154
        %p416 = pneg %p151
        %p417 = pneg %p175
        %p418 = pneg %p172
        %p419 = pneg %p196
        %p420 = pneg %p193
        %p421 = pneg %p217
        %p422 = pneg %p214
        %p423 = pneg %p243
        %p424 = pneg %p240
        %s425 = smul.u32 16, %s28
        %p426 = scmp.lt.s32.totalorder %s425, 31
        %s427 = scalar_select %p426, %s425, 31
        %s428 = smul.addr %s427, 8
        %s429 = scalar_lea.vmem %s9, %s428
        %s430 = smul.u32 16, %s28
        %s431 = smul.u32 16, %s28
        %p432 = scmp.lt.s32.totalorder %s431, 31
        %s433 = scalar_select %p432, %s431, 31
        %s434 = smul.addr %s433, 8
        %s435 = scalar_lea.vmem %s9, %s434
        %s436 = smul.u32 16, %s28
        %v437 = vld [vmem:[%s369] sm:$0xff]
        %v438 = vld [vmem:[%s369 + $0x8] sm:$0xff]
        %v439 = vld [vmem:[%s369 + $0x10] sm:$0xff]
        %v440 = vld [vmem:[%s369 + $0x18] sm:$0xff]
        %v441 = vld [vmem:[%s369 + $0x20] sm:$0xff]
        %v442 = vld [vmem:[%s369 + $0x28] sm:$0xff]
        %v443 = vld [vmem:[%s369 + $0x30] sm:$0xff]
        %v444 = vld [vmem:[%s369 + $0x38] sm:$0xff]
        %v445 = vld [vmem:[%s369 + $0x40] sm:$0xff]
        %v446 = vld [vmem:[%s369 + $0x48] sm:$0xff]
        %v447 = vld [vmem:[%s369 + $0x50] sm:$0xff]
        %v448 = vld [vmem:[%s369 + $0x58] sm:$0xff]
        %v449 = vld [vmem:[%s369 + $0x60] sm:$0xff]
        %v450 = vld [vmem:[%s369 + $0x68] sm:$0xff]
        %v451 = vld [vmem:[%s369 + $0x70] sm:$0xff]
        %v452 = vld [vmem:[%s369 + $0x78] sm:$0xff]
        %v453 = vld [vmem:[%s369 + $0x80] sm:$0xff]
        %v454 = vld [vmem:[%s369 + $0x88] sm:$0xff]
        %v455 = vld [vmem:[%s369 + $0x90] sm:$0xff]
        %v456 = vld [vmem:[%s369 + $0x98] sm:$0xff]
        %v457 = vld [vmem:[%s369 + $0xa0] sm:$0xff]
        %v458 = vld [vmem:[%s369 + $0xa8] sm:$0xff]
        %v459 = vld [vmem:[%s369 + $0xb0] sm:$0xff]
        %v460 = vld [vmem:[%s369 + $0xb8] sm:$0xff]
        %v461 = vld [vmem:[%s369 + $0xc0] sm:$0xff]
        %v462 = vld [vmem:[%s369 + $0xc8] sm:$0xff]
        %v463 = vld [vmem:[%s369 + $0xd0] sm:$0xff]
        %v464 = vld [vmem:[%s369 + $0xd8] sm:$0xff]
        %v465 = vld [vmem:[%s369 + $0xe0] sm:$0xff]
        %v466 = vld [vmem:[%s369 + $0xe8] sm:$0xff]
        %v467 = vld [vmem:[%s369 + $0xf0] sm:$0xff]
        %v468 = vld [vmem:[%s369 + $0xf8] sm:$0xff]
        %v469 = vld [vmem:[%s369 + $0x100] sm:$0xff]
        %v470 = vld [vmem:[%s369 + $0x108] sm:$0xff]
        %v471 = vld [vmem:[%s369 + $0x110] sm:$0xff]
        %v472 = vld [vmem:[%s369 + $0x118] sm:$0xff]
        %v473 = vld [vmem:[%s369 + $0x120] sm:$0xff]
        %v474 = vld [vmem:[%s369 + $0x128] sm:$0xff]
        %v475 = vld [vmem:[%s369 + $0x130] sm:$0xff]
        %v476 = vld [vmem:[%s369 + $0x138] sm:$0xff]
        %v477 = vld [vmem:[%s369 + $0x140] sm:$0xff]
        %v478 = vld [vmem:[%s369 + $0x148] sm:$0xff]
        %v479 = vld [vmem:[%s369 + $0x150] sm:$0xff]
        %v480 = vld [vmem:[%s369 + $0x158] sm:$0xff]
        %v481 = vld [vmem:[%s369 + $0x160] sm:$0xff]
        %v482 = vld [vmem:[%s369 + $0x168] sm:$0xff]
        %v483 = vld [vmem:[%s369 + $0x170] sm:$0xff]
        %v484 = vld [vmem:[%s369 + $0x178] sm:$0xff]
        %v485 = vld [vmem:[%s369 + $0x180] sm:$0xff]
        %v486 = vld [vmem:[%s369 + $0x188] sm:$0xff]
        %v487 = vld [vmem:[%s369 + $0x190] sm:$0xff]
        %v488 = vld [vmem:[%s369 + $0x198] sm:$0xff]
        %v489 = vld [vmem:[%s369 + $0x1a0] sm:$0xff]
        %v490 = vld [vmem:[%s369 + $0x1a8] sm:$0xff]
        %v491 = vld [vmem:[%s369 + $0x1b0] sm:$0xff]
        %v492 = vld [vmem:[%s369 + $0x1b8] sm:$0xff]
        %v493 = vld [vmem:[%s369 + $0x1c0] sm:$0xff]
        %v494 = vld [vmem:[%s369 + $0x1c8] sm:$0xff]
        %v495 = vld [vmem:[%s369 + $0x1d0] sm:$0xff]
        %v496 = vld [vmem:[%s369 + $0x1d8] sm:$0xff]
        %v497 = vld [vmem:[%s369 + $0x1e0] sm:$0xff]
        %v498 = vld [vmem:[%s369 + $0x1e8] sm:$0xff]
        %v499 = vld [vmem:[%s369 + $0x1f0] sm:$0xff]
        %v500 = vld [vmem:[%s369 + $0x1f8] sm:$0xff]
        %v501 = vld [vmem:[%s369 + $0x200] sm:$0xff]
        %v502 = vld [vmem:[%s369 + $0x208] sm:$0xff]
        %v503 = vld [vmem:[%s369 + $0x210] sm:$0xff]
        %v504 = vld [vmem:[%s369 + $0x218] sm:$0xff]
        %v505 = vld [vmem:[%s369 + $0x220] sm:$0xff]
        %v506 = vld [vmem:[%s369 + $0x228] sm:$0xff]
        %v507 = vld [vmem:[%s369 + $0x230] sm:$0xff]
        %v508 = vld [vmem:[%s369 + $0x238] sm:$0xff]
        %v509 = vld [vmem:[%s369 + $0x240] sm:$0xff]
        %v510 = vld [vmem:[%s369 + $0x248] sm:$0xff]
        %v511 = vld [vmem:[%s369 + $0x250] sm:$0xff]
        %v512 = vld [vmem:[%s369 + $0x258] sm:$0xff]
        %v513 = vld [vmem:[%s369 + $0x260] sm:$0xff]
        %v514 = vld [vmem:[%s369 + $0x268] sm:$0xff]
        %v515 = vld [vmem:[%s369 + $0x270] sm:$0xff]
        %v516 = vld [vmem:[%s369 + $0x278] sm:$0xff]
        %v517 = vld [vmem:[%s369 + $0x280] sm:$0xff]
        %v518 = vld [vmem:[%s369 + $0x288] sm:$0xff]
        %v519 = vld [vmem:[%s369 + $0x290] sm:$0xff]
        %v520 = vld [vmem:[%s369 + $0x298] sm:$0xff]
        %v521 = vld [vmem:[%s369 + $0x2a0] sm:$0xff]
        %v522 = vld [vmem:[%s369 + $0x2a8] sm:$0xff]
        %v523 = vld [vmem:[%s369 + $0x2b0] sm:$0xff]
        %v524 = vld [vmem:[%s369 + $0x2b8] sm:$0xff]
        %v525 = vld [vmem:[%s369 + $0x2c0] sm:$0xff]
        %v526 = vld [vmem:[%s369 + $0x2c8] sm:$0xff]
        %v527 = vld [vmem:[%s369 + $0x2d0] sm:$0xff]
        %v528 = vld [vmem:[%s369 + $0x2d8] sm:$0xff]
        %v529 = vld [vmem:[%s369 + $0x2e0] sm:$0xff]
        %v530 = vld [vmem:[%s369 + $0x2e8] sm:$0xff]
        %v531 = vld [vmem:[%s369 + $0x2f0] sm:$0xff]
        %v532 = vld [vmem:[%s369 + $0x2f8] sm:$0xff]
        %v533 = vld [vmem:[%s369 + $0x300] sm:$0xff]
        %v534 = vld [vmem:[%s369 + $0x308] sm:$0xff]
        %v535 = vld [vmem:[%s369 + $0x310] sm:$0xff]
        %v536 = vld [vmem:[%s369 + $0x318] sm:$0xff]
        %v537 = vld [vmem:[%s369 + $0x320] sm:$0xff]
        %v538 = vld [vmem:[%s369 + $0x328] sm:$0xff]
        %v539 = vld [vmem:[%s369 + $0x330] sm:$0xff]
        %v540 = vld [vmem:[%s369 + $0x338] sm:$0xff]
        %v541 = vld [vmem:[%s369 + $0x340] sm:$0xff]
        %v542 = vld [vmem:[%s369 + $0x348] sm:$0xff]
        %v543 = vld [vmem:[%s369 + $0x350] sm:$0xff]
        %v544 = vld [vmem:[%s369 + $0x358] sm:$0xff]
        %v545 = vld [vmem:[%s369 + $0x360] sm:$0xff]
        %v546 = vld [vmem:[%s369 + $0x368] sm:$0xff]
        %v547 = vld [vmem:[%s369 + $0x370] sm:$0xff]
        %v548 = vld [vmem:[%s369 + $0x378] sm:$0xff]
        %v549 = vld [vmem:[%s369 + $0x380] sm:$0xff]
        %v550 = vld [vmem:[%s369 + $0x388] sm:$0xff]
        %v551 = vld [vmem:[%s369 + $0x390] sm:$0xff]
        %v552 = vld [vmem:[%s369 + $0x398] sm:$0xff]
        %v553 = vld [vmem:[%s369 + $0x3a0] sm:$0xff]
        %v554 = vld [vmem:[%s369 + $0x3a8] sm:$0xff]
        %v555 = vld [vmem:[%s369 + $0x3b0] sm:$0xff]
        %v556 = vld [vmem:[%s369 + $0x3b8] sm:$0xff]
        %v557 = vld [vmem:[%s369 + $0x3c0] sm:$0xff]
        %v558 = vld [vmem:[%s369 + $0x3c8] sm:$0xff]
        %v559 = vld [vmem:[%s369 + $0x3d0] sm:$0xff]
        %v560 = vld [vmem:[%s369 + $0x3d8] sm:$0xff]
        %v561 = vld [vmem:[%s369 + $0x3e0] sm:$0xff]
        %v562 = vld [vmem:[%s369 + $0x3e8] sm:$0xff]
        %v563 = vld [vmem:[%s369 + $0x3f0] sm:$0xff]
        %v564 = vld [vmem:[%s369 + $0x3f8] sm:$0xff]
        %v565 = vld [vmem:[%s369 + $0x400] sm:$0xff]
        %v566 = vld [vmem:[%s369 + $0x408] sm:$0xff]
        %v567 = vld [vmem:[%s369 + $0x410] sm:$0xff]
        %v568 = vld [vmem:[%s369 + $0x418] sm:$0xff]
        %v569 = vld [vmem:[%s369 + $0x420] sm:$0xff]
        %v570 = vld [vmem:[%s369 + $0x428] sm:$0xff]
        %v571 = vld [vmem:[%s369 + $0x430] sm:$0xff]
        %v572 = vld [vmem:[%s369 + $0x438] sm:$0xff]
        %v573 = vld [vmem:[%s369 + $0x440] sm:$0xff]
        %v574 = vld [vmem:[%s369 + $0x448] sm:$0xff]
        %v575 = vld [vmem:[%s369 + $0x450] sm:$0xff]
        %v576 = vld [vmem:[%s369 + $0x458] sm:$0xff]
        %v577 = vld [vmem:[%s369 + $0x460] sm:$0xff]
        %v578 = vld [vmem:[%s369 + $0x468] sm:$0xff]
        %v579 = vld [vmem:[%s369 + $0x470] sm:$0xff]
        %v580 = vld [vmem:[%s369 + $0x478] sm:$0xff]
        %v581 = vld [vmem:[%s369 + $0x480] sm:$0xff]
        %v582 = vld [vmem:[%s369 + $0x488] sm:$0xff]
        %v583 = vld [vmem:[%s369 + $0x490] sm:$0xff]
        %v584 = vld [vmem:[%s369 + $0x498] sm:$0xff]
        %v585 = vld [vmem:[%s369 + $0x4a0] sm:$0xff]
        %v586 = vld [vmem:[%s369 + $0x4a8] sm:$0xff]
        %v587 = vld [vmem:[%s369 + $0x4b0] sm:$0xff]
        %v588 = vld [vmem:[%s369 + $0x4b8] sm:$0xff]
        %v589 = vld [vmem:[%s369 + $0x4c0] sm:$0xff]
        %v590 = vld [vmem:[%s369 + $0x4c8] sm:$0xff]
        %v591 = vld [vmem:[%s369 + $0x4d0] sm:$0xff]
        %v592 = vld [vmem:[%s369 + $0x4d8] sm:$0xff]
        %v593 = vld [vmem:[%s369 + $0x4e0] sm:$0xff]
        %v594 = vld [vmem:[%s369 + $0x4e8] sm:$0xff]
        %v595 = vld [vmem:[%s369 + $0x4f0] sm:$0xff]
        %v596 = vld [vmem:[%s369 + $0x4f8] sm:$0xff]
        %v597 = vld [vmem:[%s369 + $0x500] sm:$0xff]
        %v598 = vld [vmem:[%s369 + $0x508] sm:$0xff]
        %v599 = vld [vmem:[%s369 + $0x510] sm:$0xff]
        %v600 = vld [vmem:[%s369 + $0x518] sm:$0xff]
        %v601 = vld [vmem:[%s369 + $0x520] sm:$0xff]
        %v602 = vld [vmem:[%s369 + $0x528] sm:$0xff]
        %v603 = vld [vmem:[%s369 + $0x530] sm:$0xff]
        %v604 = vld [vmem:[%s369 + $0x538] sm:$0xff]
        %v605 = vld [vmem:[%s369 + $0x540] sm:$0xff]
        %v606 = vld [vmem:[%s369 + $0x548] sm:$0xff]
        %v607 = vld [vmem:[%s369 + $0x550] sm:$0xff]
        %v608 = vld [vmem:[%s369 + $0x558] sm:$0xff]
        %v609 = vld [vmem:[%s369 + $0x560] sm:$0xff]
        %v610 = vld [vmem:[%s369 + $0x568] sm:$0xff]
        %v611 = vld [vmem:[%s369 + $0x570] sm:$0xff]
        %v612 = vld [vmem:[%s369 + $0x578] sm:$0xff]
        %v613 = vld [vmem:[%s369 + $0x580] sm:$0xff]
        %v614 = vld [vmem:[%s369 + $0x588] sm:$0xff]
        %v615 = vld [vmem:[%s369 + $0x590] sm:$0xff]
        %v616 = vld [vmem:[%s369 + $0x598] sm:$0xff]
        %v617 = vld [vmem:[%s369 + $0x5a0] sm:$0xff]
        %v618 = vld [vmem:[%s369 + $0x5a8] sm:$0xff]
        %v619 = vld [vmem:[%s369 + $0x5b0] sm:$0xff]
        %v620 = vld [vmem:[%s369 + $0x5b8] sm:$0xff]
        %v621 = vld [vmem:[%s369 + $0x5c0] sm:$0xff]
        %v622 = vld [vmem:[%s369 + $0x5c8] sm:$0xff]
        %v623 = vld [vmem:[%s369 + $0x5d0] sm:$0xff]
        %v624 = vld [vmem:[%s369 + $0x5d8] sm:$0xff]
        %v625 = vld [vmem:[%s369 + $0x5e0] sm:$0xff]
        %v626 = vld [vmem:[%s369 + $0x5e8] sm:$0xff]
        %v627 = vld [vmem:[%s369 + $0x5f0] sm:$0xff]
        %v628 = vld [vmem:[%s369 + $0x5f8] sm:$0xff]
        %v629 = vld [vmem:[%s369 + $0x600] sm:$0xff]
        %v630 = vld [vmem:[%s369 + $0x608] sm:$0xff]
        %v631 = vld [vmem:[%s369 + $0x610] sm:$0xff]
        %v632 = vld [vmem:[%s369 + $0x618] sm:$0xff]
        %v633 = vld [vmem:[%s369 + $0x620] sm:$0xff]
        %v634 = vld [vmem:[%s369 + $0x628] sm:$0xff]
        %v635 = vld [vmem:[%s369 + $0x630] sm:$0xff]
        %v636 = vld [vmem:[%s369 + $0x638] sm:$0xff]
        %v637 = vld [vmem:[%s369 + $0x640] sm:$0xff]
        %v638 = vld [vmem:[%s369 + $0x648] sm:$0xff]
        %v639 = vld [vmem:[%s369 + $0x650] sm:$0xff]
        %v640 = vld [vmem:[%s369 + $0x658] sm:$0xff]
        %v641 = vld [vmem:[%s369 + $0x660] sm:$0xff]
        %v642 = vld [vmem:[%s369 + $0x668] sm:$0xff]
        %v643 = vld [vmem:[%s369 + $0x670] sm:$0xff]
        %v644 = vld [vmem:[%s369 + $0x678] sm:$0xff]
        %v645 = vld [vmem:[%s369 + $0x680] sm:$0xff]
        %v646 = vld [vmem:[%s369 + $0x688] sm:$0xff]
        %v647 = vld [vmem:[%s369 + $0x690] sm:$0xff]
        %v648 = vld [vmem:[%s369 + $0x698] sm:$0xff]
        %v649 = vld [vmem:[%s369 + $0x6a0] sm:$0xff]
        %v650 = vld [vmem:[%s369 + $0x6a8] sm:$0xff]
        %v651 = vld [vmem:[%s369 + $0x6b0] sm:$0xff]
        %v652 = vld [vmem:[%s369 + $0x6b8] sm:$0xff]
        %v653 = vld [vmem:[%s369 + $0x6c0] sm:$0xff]
        %v654 = vld [vmem:[%s369 + $0x6c8] sm:$0xff]
        %v655 = vld [vmem:[%s369 + $0x6d0] sm:$0xff]
        %v656 = vld [vmem:[%s369 + $0x6d8] sm:$0xff]
        %v657 = vld [vmem:[%s369 + $0x6e0] sm:$0xff]
        %v658 = vld [vmem:[%s369 + $0x6e8] sm:$0xff]
        %v659 = vld [vmem:[%s369 + $0x6f0] sm:$0xff]
        %v660 = vld [vmem:[%s369 + $0x6f8] sm:$0xff]
        %v661 = vld [vmem:[%s369 + $0x700] sm:$0xff]
        %v662 = vld [vmem:[%s369 + $0x708] sm:$0xff]
        %v663 = vld [vmem:[%s369 + $0x710] sm:$0xff]
        %v664 = vld [vmem:[%s369 + $0x718] sm:$0xff]
        %v665 = vld [vmem:[%s369 + $0x720] sm:$0xff]
        %v666 = vld [vmem:[%s369 + $0x728] sm:$0xff]
        %v667 = vld [vmem:[%s369 + $0x730] sm:$0xff]
        %v668 = vld [vmem:[%s369 + $0x738] sm:$0xff]
        %v669 = vld [vmem:[%s369 + $0x740] sm:$0xff]
        %v670 = vld [vmem:[%s369 + $0x748] sm:$0xff]
        %v671 = vld [vmem:[%s369 + $0x750] sm:$0xff]
        %v672 = vld [vmem:[%s369 + $0x758] sm:$0xff]
        %v673 = vld [vmem:[%s369 + $0x760] sm:$0xff]
        %v674 = vld [vmem:[%s369 + $0x768] sm:$0xff]
        %v675 = vld [vmem:[%s369 + $0x770] sm:$0xff]
        %v676 = vld [vmem:[%s369 + $0x778] sm:$0xff]
        %v677 = vld [vmem:[%s369 + $0x780] sm:$0xff]
        %v678 = vld [vmem:[%s369 + $0x788] sm:$0xff]
        %v679 = vld [vmem:[%s369 + $0x790] sm:$0xff]
        %v680 = vld [vmem:[%s369 + $0x798] sm:$0xff]
        %v681 = vld [vmem:[%s369 + $0x7a0] sm:$0xff]
        %v682 = vld [vmem:[%s369 + $0x7a8] sm:$0xff]
        %v683 = vld [vmem:[%s369 + $0x7b0] sm:$0xff]
        %v684 = vld [vmem:[%s369 + $0x7b8] sm:$0xff]
        %v685 = vld [vmem:[%s369 + $0x7c0] sm:$0xff]
        %v686 = vld [vmem:[%s369 + $0x7c8] sm:$0xff]
        %v687 = vld [vmem:[%s369 + $0x7d0] sm:$0xff]
        %v688 = vld [vmem:[%s369 + $0x7d8] sm:$0xff]
        %v689 = vld [vmem:[%s369 + $0x7e0] sm:$0xff]
        %v690 = vld [vmem:[%s369 + $0x7e8] sm:$0xff]
        %v691 = vld [vmem:[%s369 + $0x7f0] sm:$0xff]
        %v692 = vld [vmem:[%s369 + $0x7f8] sm:$0xff]
        %v693 = vld [vmem:[%s369 + $0x800] sm:$0xff]
        %v694 = vld [vmem:[%s369 + $0x808] sm:$0xff]
        %v695 = vld [vmem:[%s369 + $0x810] sm:$0xff]
        %v696 = vld [vmem:[%s369 + $0x818] sm:$0xff]
        %v697 = vld [vmem:[%s369 + $0x820] sm:$0xff]
        %v698 = vld [vmem:[%s369 + $0x828] sm:$0xff]
        %v699 = vld [vmem:[%s369 + $0x830] sm:$0xff]
        %v700 = vld [vmem:[%s369 + $0x838] sm:$0xff]
        %v701 = vld [vmem:[%s369 + $0x840] sm:$0xff]
        %v702 = vld [vmem:[%s369 + $0x848] sm:$0xff]
        %v703 = vld [vmem:[%s369 + $0x850] sm:$0xff]
        %v704 = vld [vmem:[%s369 + $0x858] sm:$0xff]
        %v705 = vld [vmem:[%s369 + $0x860] sm:$0xff]
        %v706 = vld [vmem:[%s369 + $0x868] sm:$0xff]
        %v707 = vld [vmem:[%s369 + $0x870] sm:$0xff]
        %v708 = vld [vmem:[%s369 + $0x878] sm:$0xff]
        %v709 = vld [vmem:[%s369 + $0x880] sm:$0xff]
        %v710 = vld [vmem:[%s369 + $0x888] sm:$0xff]
        %v711 = vld [vmem:[%s369 + $0x890] sm:$0xff]
        %v712 = vld [vmem:[%s369 + $0x898] sm:$0xff]
        %v713 = vld [vmem:[%s369 + $0x8a0] sm:$0xff]
        %v714 = vld [vmem:[%s369 + $0x8a8] sm:$0xff]
        %v715 = vld [vmem:[%s369 + $0x8b0] sm:$0xff]
        %v716 = vld [vmem:[%s369 + $0x8b8] sm:$0xff]
        %v717 = vld [vmem:[%s369 + $0x8c0] sm:$0xff]
        %v718 = vld [vmem:[%s369 + $0x8c8] sm:$0xff]
        %v719 = vld [vmem:[%s369 + $0x8d0] sm:$0xff]
        %v720 = vld [vmem:[%s369 + $0x8d8] sm:$0xff]
        %v721 = vld [vmem:[%s369 + $0x8e0] sm:$0xff]
        %v722 = vld [vmem:[%s369 + $0x8e8] sm:$0xff]
        %v723 = vld [vmem:[%s369 + $0x8f0] sm:$0xff]
        %v724 = vld [vmem:[%s369 + $0x8f8] sm:$0xff]
        %v725 = vld [vmem:[%s369 + $0x900] sm:$0xff]
        %v726 = vld [vmem:[%s369 + $0x908] sm:$0xff]
        %v727 = vld [vmem:[%s369 + $0x910] sm:$0xff]
        %v728 = vld [vmem:[%s369 + $0x918] sm:$0xff]
        %v729 = vld [vmem:[%s369 + $0x920] sm:$0xff]
        %v730 = vld [vmem:[%s369 + $0x928] sm:$0xff]
        %v731 = vld [vmem:[%s369 + $0x930] sm:$0xff]
        %v732 = vld [vmem:[%s369 + $0x938] sm:$0xff]
        %v733 = vld [vmem:[%s369 + $0x940] sm:$0xff]
        %v734 = vld [vmem:[%s369 + $0x948] sm:$0xff]
        %v735 = vld [vmem:[%s369 + $0x950] sm:$0xff]
        %v736 = vld [vmem:[%s369 + $0x958] sm:$0xff]
        %v737 = vld [vmem:[%s369 + $0x960] sm:$0xff]
        %v738 = vld [vmem:[%s369 + $0x968] sm:$0xff]
        %v739 = vld [vmem:[%s369 + $0x970] sm:$0xff]
        %v740 = vld [vmem:[%s369 + $0x978] sm:$0xff]
        %v741 = vld [vmem:[%s369 + $0x980] sm:$0xff]
        %v742 = vld [vmem:[%s369 + $0x988] sm:$0xff]
        %v743 = vld [vmem:[%s369 + $0x990] sm:$0xff]
        %v744 = vld [vmem:[%s369 + $0x998] sm:$0xff]
        %v745 = vld [vmem:[%s369 + $0x9a0] sm:$0xff]
        %v746 = vld [vmem:[%s369 + $0x9a8] sm:$0xff]
        %v747 = vld [vmem:[%s369 + $0x9b0] sm:$0xff]
        %v748 = vld [vmem:[%s369 + $0x9b8] sm:$0xff]
        %v749 = vld [vmem:[%s369 + $0x9c0] sm:$0xff]
        %v750 = vld [vmem:[%s369 + $0x9c8] sm:$0xff]
        %v751 = vld [vmem:[%s369 + $0x9d0] sm:$0xff]
        %v752 = vld [vmem:[%s369 + $0x9d8] sm:$0xff]
        %v753 = vld [vmem:[%s369 + $0x9e0] sm:$0xff]
        %v754 = vld [vmem:[%s369 + $0x9e8] sm:$0xff]
        %v755 = vld [vmem:[%s369 + $0x9f0] sm:$0xff]
        %v756 = vld [vmem:[%s369 + $0x9f8] sm:$0xff]
        %v757 = vld [vmem:[%s369 + $0xa00] sm:$0xff]
        %v758 = vld [vmem:[%s369 + $0xa08] sm:$0xff]
        %v759 = vld [vmem:[%s369 + $0xa10] sm:$0xff]
        %v760 = vld [vmem:[%s369 + $0xa18] sm:$0xff]
        %v761 = vld [vmem:[%s369 + $0xa20] sm:$0xff]
        %v762 = vld [vmem:[%s369 + $0xa28] sm:$0xff]
        %v763 = vld [vmem:[%s369 + $0xa30] sm:$0xff]
        %v764 = vld [vmem:[%s369 + $0xa38] sm:$0xff]
        %v765 = vld [vmem:[%s369 + $0xa40] sm:$0xff]
        %v766 = vld [vmem:[%s369 + $0xa48] sm:$0xff]
        %v767 = vld [vmem:[%s369 + $0xa50] sm:$0xff]
        %v768 = vld [vmem:[%s369 + $0xa58] sm:$0xff]
        %v769 = vld [vmem:[%s369 + $0xa60] sm:$0xff]
        %v770 = vld [vmem:[%s369 + $0xa68] sm:$0xff]
        %v771 = vld [vmem:[%s369 + $0xa70] sm:$0xff]
        %v772 = vld [vmem:[%s369 + $0xa78] sm:$0xff]
        %v773 = vld [vmem:[%s369 + $0xa80] sm:$0xff]
        %v774 = vld [vmem:[%s369 + $0xa88] sm:$0xff]
        %v775 = vld [vmem:[%s369 + $0xa90] sm:$0xff]
        %v776 = vld [vmem:[%s369 + $0xa98] sm:$0xff]
        %v777 = vld [vmem:[%s369 + $0xaa0] sm:$0xff]
        %v778 = vld [vmem:[%s369 + $0xaa8] sm:$0xff]
        %v779 = vld [vmem:[%s369 + $0xab0] sm:$0xff]
        %v780 = vld [vmem:[%s369 + $0xab8] sm:$0xff]
        %v781 = vld [vmem:[%s369 + $0xac0] sm:$0xff]
        %v782 = vld [vmem:[%s369 + $0xac8] sm:$0xff]
        %v783 = vld [vmem:[%s369 + $0xad0] sm:$0xff]
        %v784 = vld [vmem:[%s369 + $0xad8] sm:$0xff]
        %v785 = vld [vmem:[%s369 + $0xae0] sm:$0xff]
        %v786 = vld [vmem:[%s369 + $0xae8] sm:$0xff]
        %v787 = vld [vmem:[%s369 + $0xaf0] sm:$0xff]
        %v788 = vld [vmem:[%s369 + $0xaf8] sm:$0xff]
        %v789 = vld [vmem:[%s369 + $0xb00] sm:$0xff]
        %v790 = vld [vmem:[%s369 + $0xb08] sm:$0xff]
        %v791 = vld [vmem:[%s369 + $0xb10] sm:$0xff]
        %v792 = vld [vmem:[%s369 + $0xb18] sm:$0xff]
        %v793 = vld [vmem:[%s369 + $0xb20] sm:$0xff]
        %v794 = vld [vmem:[%s369 + $0xb28] sm:$0xff]
        %v795 = vld [vmem:[%s369 + $0xb30] sm:$0xff]
        %v796 = vld [vmem:[%s369 + $0xb38] sm:$0xff]
        %v797 = vld [vmem:[%s369 + $0xb40] sm:$0xff]
        %v798 = vld [vmem:[%s369 + $0xb48] sm:$0xff]
        %v799 = vld [vmem:[%s369 + $0xb50] sm:$0xff]
        %v800 = vld [vmem:[%s369 + $0xb58] sm:$0xff]
        %v801 = vld [vmem:[%s369 + $0xb60] sm:$0xff]
        %v802 = vld [vmem:[%s369 + $0xb68] sm:$0xff]
        %v803 = vld [vmem:[%s369 + $0xb70] sm:$0xff]
        %v804 = vld [vmem:[%s369 + $0xb78] sm:$0xff]
        %v805 = vld [vmem:[%s369 + $0xb80] sm:$0xff]
        %v806 = vld [vmem:[%s369 + $0xb88] sm:$0xff]
        %v807 = vld [vmem:[%s369 + $0xb90] sm:$0xff]
        %v808 = vld [vmem:[%s369 + $0xb98] sm:$0xff]
        %v809 = vld [vmem:[%s369 + $0xba0] sm:$0xff]
        %v810 = vld [vmem:[%s369 + $0xba8] sm:$0xff]
        %v811 = vld [vmem:[%s369 + $0xbb0] sm:$0xff]
        %v812 = vld [vmem:[%s369 + $0xbb8] sm:$0xff]
        %v813 = vld [vmem:[%s369 + $0xbc0] sm:$0xff]
        %v814 = vld [vmem:[%s369 + $0xbc8] sm:$0xff]
        %v815 = vld [vmem:[%s369 + $0xbd0] sm:$0xff]
        %v816 = vld [vmem:[%s369 + $0xbd8] sm:$0xff]
        %v817 = vld [vmem:[%s369 + $0xbe0] sm:$0xff]
        %v818 = vld [vmem:[%s369 + $0xbe8] sm:$0xff]
        %v819 = vld [vmem:[%s369 + $0xbf0] sm:$0xff]
        %v820 = vld [vmem:[%s369 + $0xbf8] sm:$0xff]
        %v821 = vld [vmem:[%s1] sm:$0xf]
        %v822 = vld [vmem:[%s1 + $0x4] sm:$0xf]
        %v823 = vld [vmem:[%s1 + $0x8] sm:$0xf]
        %v824 = vld [vmem:[%s1 + $0xc] sm:$0xf]
        %v825 = vld [vmem:[%s1 + $0x10] sm:$0xf]
        %v826 = vld [vmem:[%s1 + $0x14] sm:$0xf]
        %v827 = vld [vmem:[%s1 + $0x18] sm:$0xf]
        %v828 = vld [vmem:[%s1 + $0x1c] sm:$0xf]
        %v829 = vld [vmem:[%s1 + $0x20] sm:$0xf]
        %v830 = vld [vmem:[%s1 + $0x24] sm:$0xf]
        %v831 = vld [vmem:[%s1 + $0x28] sm:$0xf]
        %v832 = vld [vmem:[%s1 + $0x2c] sm:$0xf]
        %v833 = vld [vmem:[%s1 + $0x30] sm:$0xf]
        %v834 = vld [vmem:[%s1 + $0x34] sm:$0xf]
        %v835 = vld [vmem:[%s1 + $0x38] sm:$0xf]
        %v836 = vld [vmem:[%s1 + $0x3c] sm:$0xf]
        %v837 = vld [vmem:[%s1 + $0x40] sm:$0xf]
        %v838 = vld [vmem:[%s1 + $0x44] sm:$0xf]
        %v839 = vld [vmem:[%s1 + $0x48] sm:$0xf]
        %v840 = vld [vmem:[%s1 + $0x4c] sm:$0xf]
        %v841 = vld [vmem:[%s1 + $0x50] sm:$0xf]
        %v842 = vld [vmem:[%s1 + $0x54] sm:$0xf]
        %v843 = vld [vmem:[%s1 + $0x58] sm:$0xf]
        %v844 = vld [vmem:[%s1 + $0x5c] sm:$0xf]
        %v845 = vld [vmem:[%s1 + $0x60] sm:$0xf]
        %v846 = vld [vmem:[%s1 + $0x64] sm:$0xf]
        %v847 = vld [vmem:[%s1 + $0x68] sm:$0xf]
        %v848 = vld [vmem:[%s1 + $0x6c] sm:$0xf]
        %v849 = vld [vmem:[%s1 + $0x70] sm:$0xf]
        %v850 = vld [vmem:[%s1 + $0x74] sm:$0xf]
        %v851 = vld [vmem:[%s1 + $0x78] sm:$0xf]
        %v852 = vld [vmem:[%s1 + $0x7c] sm:$0xf]
        %v853 = vld [vmem:[%s1 + $0x80] sm:$0xf]
        %v854 = vld [vmem:[%s1 + $0x84] sm:$0xf]
        %v855 = vld [vmem:[%s1 + $0x88] sm:$0xf]
        %v856 = vld [vmem:[%s1 + $0x8c] sm:$0xf]
        %v857 = vld [vmem:[%s1 + $0x90] sm:$0xf]
        %v858 = vld [vmem:[%s1 + $0x94] sm:$0xf]
        %v859 = vld [vmem:[%s1 + $0x98] sm:$0xf]
        %v860 = vld [vmem:[%s1 + $0x9c] sm:$0xf]
        %v861 = vld [vmem:[%s1 + $0xa0] sm:$0xf]
        %v862 = vld [vmem:[%s1 + $0xa4] sm:$0xf]
        %v863 = vld [vmem:[%s1 + $0xa8] sm:$0xf]
        %v864 = vld [vmem:[%s1 + $0xac] sm:$0xf]
        %v865 = vld [vmem:[%s1 + $0xb0] sm:$0xf]
        %v866 = vld [vmem:[%s1 + $0xb4] sm:$0xf]
        %v867 = vld [vmem:[%s1 + $0xb8] sm:$0xf]
        %v868 = vld [vmem:[%s1 + $0xbc] sm:$0xf]
        %v869 = vld [vmem:[%s1 + $0xc0] sm:$0xf]
        %v870 = vld [vmem:[%s1 + $0xc4] sm:$0xf]
        %v871 = vld [vmem:[%s1 + $0xc8] sm:$0xf]
        %v872 = vld [vmem:[%s1 + $0xcc] sm:$0xf]
        %v873 = vld [vmem:[%s1 + $0xd0] sm:$0xf]
        %v874 = vld [vmem:[%s1 + $0xd4] sm:$0xf]
        %v875 = vld [vmem:[%s1 + $0xd8] sm:$0xf]
        %v876 = vld [vmem:[%s1 + $0xdc] sm:$0xf]
        %v877 = vld [vmem:[%s1 + $0xe0] sm:$0xf]
        %v878 = vld [vmem:[%s1 + $0xe4] sm:$0xf]
        %v879 = vld [vmem:[%s1 + $0xe8] sm:$0xf]
        %v880 = vld [vmem:[%s1 + $0xec] sm:$0xf]
        %v881 = vld [vmem:[%s1 + $0xf0] sm:$0xf]
        %v882 = vld [vmem:[%s1 + $0xf4] sm:$0xf]
        %v883 = vld [vmem:[%s1 + $0xf8] sm:$0xf]
        %v884 = vld [vmem:[%s1 + $0xfc] sm:$0xf]
        %v885 = vld [vmem:[%s1 + $0x100] sm:$0xf]
        %v886 = vld [vmem:[%s1 + $0x104] sm:$0xf]
        %v887 = vld [vmem:[%s1 + $0x108] sm:$0xf]
        %v888 = vld [vmem:[%s1 + $0x10c] sm:$0xf]
        %v889 = vld [vmem:[%s1 + $0x110] sm:$0xf]
        %v890 = vld [vmem:[%s1 + $0x114] sm:$0xf]
        %v891 = vld [vmem:[%s1 + $0x118] sm:$0xf]
        %v892 = vld [vmem:[%s1 + $0x11c] sm:$0xf]
        %v893 = vld [vmem:[%s1 + $0x120] sm:$0xf]
        %v894 = vld [vmem:[%s1 + $0x124] sm:$0xf]
        %v895 = vld [vmem:[%s1 + $0x128] sm:$0xf]
        %v896 = vld [vmem:[%s1 + $0x12c] sm:$0xf]
        %v897 = vld [vmem:[%s1 + $0x130] sm:$0xf]
        %v898 = vld [vmem:[%s1 + $0x134] sm:$0xf]
        %v899 = vld [vmem:[%s1 + $0x138] sm:$0xf]
        %v900 = vld [vmem:[%s1 + $0x13c] sm:$0xf]
        %v901 = vld [vmem:[%s1 + $0x140] sm:$0xf]
        %v902 = vld [vmem:[%s1 + $0x144] sm:$0xf]
        %v903 = vld [vmem:[%s1 + $0x148] sm:$0xf]
        %v904 = vld [vmem:[%s1 + $0x14c] sm:$0xf]
        %v905 = vld [vmem:[%s1 + $0x150] sm:$0xf]
        %v906 = vld [vmem:[%s1 + $0x154] sm:$0xf]
        %v907 = vld [vmem:[%s1 + $0x158] sm:$0xf]
        %v908 = vld [vmem:[%s1 + $0x15c] sm:$0xf]
        %v909 = vld [vmem:[%s1 + $0x160] sm:$0xf]
        %v910 = vld [vmem:[%s1 + $0x164] sm:$0xf]
        %v911 = vld [vmem:[%s1 + $0x168] sm:$0xf]
        %v912 = vld [vmem:[%s1 + $0x16c] sm:$0xf]
        %v913 = vld [vmem:[%s1 + $0x170] sm:$0xf]
        %v914 = vld [vmem:[%s1 + $0x174] sm:$0xf]
        %v915 = vld [vmem:[%s1 + $0x178] sm:$0xf]
        %v916 = vld [vmem:[%s1 + $0x17c] sm:$0xf]
        %v917 = vld [vmem:[%s1 + $0x180] sm:$0xf]
        %v918 = vld [vmem:[%s1 + $0x184] sm:$0xf]
        %v919 = vld [vmem:[%s1 + $0x188] sm:$0xf]
        %v920 = vld [vmem:[%s1 + $0x18c] sm:$0xf]
        %v921 = vld [vmem:[%s1 + $0x190] sm:$0xf]
        %v922 = vld [vmem:[%s1 + $0x194] sm:$0xf]
        %v923 = vld [vmem:[%s1 + $0x198] sm:$0xf]
        %v924 = vld [vmem:[%s1 + $0x19c] sm:$0xf]
        %v925 = vld [vmem:[%s1 + $0x1a0] sm:$0xf]
        %v926 = vld [vmem:[%s1 + $0x1a4] sm:$0xf]
        %v927 = vld [vmem:[%s1 + $0x1a8] sm:$0xf]
        %v928 = vld [vmem:[%s1 + $0x1ac] sm:$0xf]
        %v929 = vld [vmem:[%s1 + $0x1b0] sm:$0xf]
        %v930 = vld [vmem:[%s1 + $0x1b4] sm:$0xf]
        %v931 = vld [vmem:[%s1 + $0x1b8] sm:$0xf]
        %v932 = vld [vmem:[%s1 + $0x1bc] sm:$0xf]
        %v933 = vld [vmem:[%s1 + $0x1c0] sm:$0xf]
        %v934 = vld [vmem:[%s1 + $0x1c4] sm:$0xf]
        %v935 = vld [vmem:[%s1 + $0x1c8] sm:$0xf]
        %v936 = vld [vmem:[%s1 + $0x1cc] sm:$0xf]
        %v937 = vld [vmem:[%s1 + $0x1d0] sm:$0xf]
        %v938 = vld [vmem:[%s1 + $0x1d4] sm:$0xf]
        %v939 = vld [vmem:[%s1 + $0x1d8] sm:$0xf]
        %v940 = vld [vmem:[%s1 + $0x1dc] sm:$0xf]
        %v941 = vld [vmem:[%s1 + $0x1e0] sm:$0xf]
        %v942 = vld [vmem:[%s1 + $0x1e4] sm:$0xf]
        %v943 = vld [vmem:[%s1 + $0x1e8] sm:$0xf]
        %v944 = vld [vmem:[%s1 + $0x1ec] sm:$0xf]
        %v945 = vld [vmem:[%s1 + $0x1f0] sm:$0xf]
        %v946 = vld [vmem:[%s1 + $0x1f4] sm:$0xf]
        %v947 = vld [vmem:[%s1 + $0x1f8] sm:$0xf]
        %v948 = vld [vmem:[%s1 + $0x1fc] sm:$0xf]
        %v949 = vld [vmem:[%s1 + $0x200] sm:$0xf]
        %v950 = vld [vmem:[%s1 + $0x204] sm:$0xf]
        %v951 = vld [vmem:[%s1 + $0x208] sm:$0xf]
        %v952 = vld [vmem:[%s1 + $0x20c] sm:$0xf]
        %v953 = vld [vmem:[%s1 + $0x210] sm:$0xf]
        %v954 = vld [vmem:[%s1 + $0x214] sm:$0xf]
        %v955 = vld [vmem:[%s1 + $0x218] sm:$0xf]
        %v956 = vld [vmem:[%s1 + $0x21c] sm:$0xf]
        %v957 = vld [vmem:[%s1 + $0x220] sm:$0xf]
        %v958 = vld [vmem:[%s1 + $0x224] sm:$0xf]
        %v959 = vld [vmem:[%s1 + $0x228] sm:$0xf]
        %v960 = vld [vmem:[%s1 + $0x22c] sm:$0xf]
        %v961 = vld [vmem:[%s1 + $0x230] sm:$0xf]
        %v962 = vld [vmem:[%s1 + $0x234] sm:$0xf]
        %v963 = vld [vmem:[%s1 + $0x238] sm:$0xf]
        %v964 = vld [vmem:[%s1 + $0x23c] sm:$0xf]
        %v965 = vld [vmem:[%s1 + $0x240] sm:$0xf]
        %v966 = vld [vmem:[%s1 + $0x244] sm:$0xf]
        %v967 = vld [vmem:[%s1 + $0x248] sm:$0xf]
        %v968 = vld [vmem:[%s1 + $0x24c] sm:$0xf]
        %v969 = vld [vmem:[%s1 + $0x250] sm:$0xf]
        %v970 = vld [vmem:[%s1 + $0x254] sm:$0xf]
        %v971 = vld [vmem:[%s1 + $0x258] sm:$0xf]
        %v972 = vld [vmem:[%s1 + $0x25c] sm:$0xf]
        %v973 = vld [vmem:[%s1 + $0x260] sm:$0xf]
        %v974 = vld [vmem:[%s1 + $0x264] sm:$0xf]
        %v975 = vld [vmem:[%s1 + $0x268] sm:$0xf]
        %v976 = vld [vmem:[%s1 + $0x26c] sm:$0xf]
        %v977 = vld [vmem:[%s1 + $0x270] sm:$0xf]
        %v978 = vld [vmem:[%s1 + $0x274] sm:$0xf]
        %v979 = vld [vmem:[%s1 + $0x278] sm:$0xf]
        %v980 = vld [vmem:[%s1 + $0x27c] sm:$0xf]
        %v981 = vld [vmem:[%s1 + $0x280] sm:$0xf]
        %v982 = vld [vmem:[%s1 + $0x284] sm:$0xf]
        %v983 = vld [vmem:[%s1 + $0x288] sm:$0xf]
        %v984 = vld [vmem:[%s1 + $0x28c] sm:$0xf]
        %v985 = vld [vmem:[%s1 + $0x290] sm:$0xf]
        %v986 = vld [vmem:[%s1 + $0x294] sm:$0xf]
        %v987 = vld [vmem:[%s1 + $0x298] sm:$0xf]
        %v988 = vld [vmem:[%s1 + $0x29c] sm:$0xf]
        %v989 = vld [vmem:[%s1 + $0x2a0] sm:$0xf]
        %v990 = vld [vmem:[%s1 + $0x2a4] sm:$0xf]
        %v991 = vld [vmem:[%s1 + $0x2a8] sm:$0xf]
        %v992 = vld [vmem:[%s1 + $0x2ac] sm:$0xf]
        %v993 = vld [vmem:[%s1 + $0x2b0] sm:$0xf]
        %v994 = vld [vmem:[%s1 + $0x2b4] sm:$0xf]
        %v995 = vld [vmem:[%s1 + $0x2b8] sm:$0xf]
        %v996 = vld [vmem:[%s1 + $0x2bc] sm:$0xf]
        %v997 = vld [vmem:[%s1 + $0x2c0] sm:$0xf]
        %v998 = vld [vmem:[%s1 + $0x2c4] sm:$0xf]
        %v999 = vld [vmem:[%s1 + $0x2c8] sm:$0xf]
        %v1000 = vld [vmem:[%s1 + $0x2cc] sm:$0xf]
        %v1001 = vld [vmem:[%s1 + $0x2d0] sm:$0xf]
        %v1002 = vld [vmem:[%s1 + $0x2d4] sm:$0xf]
        %v1003 = vld [vmem:[%s1 + $0x2d8] sm:$0xf]
        %v1004 = vld [vmem:[%s1 + $0x2dc] sm:$0xf]
        %v1005 = vld [vmem:[%s1 + $0x2e0] sm:$0xf]
        %v1006 = vld [vmem:[%s1 + $0x2e4] sm:$0xf]
        %v1007 = vld [vmem:[%s1 + $0x2e8] sm:$0xf]
        %v1008 = vld [vmem:[%s1 + $0x2ec] sm:$0xf]
        %v1009 = vld [vmem:[%s1 + $0x2f0] sm:$0xf]
        %v1010 = vld [vmem:[%s1 + $0x2f4] sm:$0xf]
        %v1011 = vld [vmem:[%s1 + $0x2f8] sm:$0xf]
        %v1012 = vld [vmem:[%s1 + $0x2fc] sm:$0xf]
        %v1013 = vld [vmem:[%s1 + $0x300] sm:$0xf]
        %v1014 = vld [vmem:[%s1 + $0x304] sm:$0xf]
        %v1015 = vld [vmem:[%s1 + $0x308] sm:$0xf]
        %v1016 = vld [vmem:[%s1 + $0x30c] sm:$0xf]
        %v1017 = vld [vmem:[%s1 + $0x310] sm:$0xf]
        %v1018 = vld [vmem:[%s1 + $0x314] sm:$0xf]
        %v1019 = vld [vmem:[%s1 + $0x318] sm:$0xf]
        %v1020 = vld [vmem:[%s1 + $0x31c] sm:$0xf]
        %v1021 = vld [vmem:[%s1 + $0x320] sm:$0xf]
        %v1022 = vld [vmem:[%s1 + $0x324] sm:$0xf]
        %v1023 = vld [vmem:[%s1 + $0x328] sm:$0xf]
        %v1024 = vld [vmem:[%s1 + $0x32c] sm:$0xf]
        %v1025 = vld [vmem:[%s1 + $0x330] sm:$0xf]
        %v1026 = vld [vmem:[%s1 + $0x334] sm:$0xf]
        %v1027 = vld [vmem:[%s1 + $0x338] sm:$0xf]
        %v1028 = vld [vmem:[%s1 + $0x33c] sm:$0xf]
        %v1029 = vld [vmem:[%s1 + $0x340] sm:$0xf]
        %v1030 = vld [vmem:[%s1 + $0x344] sm:$0xf]
        %v1031 = vld [vmem:[%s1 + $0x348] sm:$0xf]
        %v1032 = vld [vmem:[%s1 + $0x34c] sm:$0xf]
        %v1033 = vld [vmem:[%s1 + $0x350] sm:$0xf]
        %v1034 = vld [vmem:[%s1 + $0x354] sm:$0xf]
        %v1035 = vld [vmem:[%s1 + $0x358] sm:$0xf]
        %v1036 = vld [vmem:[%s1 + $0x35c] sm:$0xf]
        %v1037 = vld [vmem:[%s1 + $0x360] sm:$0xf]
        %v1038 = vld [vmem:[%s1 + $0x364] sm:$0xf]
        %v1039 = vld [vmem:[%s1 + $0x368] sm:$0xf]
        %v1040 = vld [vmem:[%s1 + $0x36c] sm:$0xf]
        %v1041 = vld [vmem:[%s1 + $0x370] sm:$0xf]
        %v1042 = vld [vmem:[%s1 + $0x374] sm:$0xf]
        %v1043 = vld [vmem:[%s1 + $0x378] sm:$0xf]
        %v1044 = vld [vmem:[%s1 + $0x37c] sm:$0xf]
        %v1045 = vld [vmem:[%s1 + $0x380] sm:$0xf]
        %v1046 = vld [vmem:[%s1 + $0x384] sm:$0xf]
        %v1047 = vld [vmem:[%s1 + $0x388] sm:$0xf]
        %v1048 = vld [vmem:[%s1 + $0x38c] sm:$0xf]
        %v1049 = vld [vmem:[%s1 + $0x390] sm:$0xf]
        %v1050 = vld [vmem:[%s1 + $0x394] sm:$0xf]
        %v1051 = vld [vmem:[%s1 + $0x398] sm:$0xf]
        %v1052 = vld [vmem:[%s1 + $0x39c] sm:$0xf]
        %v1053 = vld [vmem:[%s1 + $0x3a0] sm:$0xf]
        %v1054 = vld [vmem:[%s1 + $0x3a4] sm:$0xf]
        %v1055 = vld [vmem:[%s1 + $0x3a8] sm:$0xf]
        %v1056 = vld [vmem:[%s1 + $0x3ac] sm:$0xf]
        %v1057 = vld [vmem:[%s1 + $0x3b0] sm:$0xf]
        %v1058 = vld [vmem:[%s1 + $0x3b4] sm:$0xf]
        %v1059 = vld [vmem:[%s1 + $0x3b8] sm:$0xf]
        %v1060 = vld [vmem:[%s1 + $0x3bc] sm:$0xf]
        %v1061 = vld [vmem:[%s1 + $0x3c0] sm:$0xf]
        %v1062 = vld [vmem:[%s1 + $0x3c4] sm:$0xf]
        %v1063 = vld [vmem:[%s1 + $0x3c8] sm:$0xf]
        %v1064 = vld [vmem:[%s1 + $0x3cc] sm:$0xf]
        %v1065 = vld [vmem:[%s1 + $0x3d0] sm:$0xf]
        %v1066 = vld [vmem:[%s1 + $0x3d4] sm:$0xf]
        %v1067 = vld [vmem:[%s1 + $0x3d8] sm:$0xf]
        %v1068 = vld [vmem:[%s1 + $0x3dc] sm:$0xf]
        %v1069 = vld [vmem:[%s1 + $0x3e0] sm:$0xf]
        %v1070 = vld [vmem:[%s1 + $0x3e4] sm:$0xf]
        %v1071 = vld [vmem:[%s1 + $0x3e8] sm:$0xf]
        %v1072 = vld [vmem:[%s1 + $0x3ec] sm:$0xf]
        %v1073 = vld [vmem:[%s1 + $0x3f0] sm:$0xf]
        %v1074 = vld [vmem:[%s1 + $0x3f4] sm:$0xf]
        %v1075 = vld [vmem:[%s1 + $0x3f8] sm:$0xf]
        %v1076 = vld [vmem:[%s1 + $0x3fc] sm:$0xf]
        %v1077 = vld [vmem:[%s1 + $0x400] sm:$0xf]
        %v1078 = vld [vmem:[%s1 + $0x404] sm:$0xf]
        %v1079 = vld [vmem:[%s1 + $0x408] sm:$0xf]
        %v1080 = vld [vmem:[%s1 + $0x40c] sm:$0xf]
        %v1081 = vld [vmem:[%s1 + $0x410] sm:$0xf]
        %v1082 = vld [vmem:[%s1 + $0x414] sm:$0xf]
        %v1083 = vld [vmem:[%s1 + $0x418] sm:$0xf]
        %v1084 = vld [vmem:[%s1 + $0x41c] sm:$0xf]
        %v1085 = vld [vmem:[%s1 + $0x420] sm:$0xf]
        %v1086 = vld [vmem:[%s1 + $0x424] sm:$0xf]
        %v1087 = vld [vmem:[%s1 + $0x428] sm:$0xf]
        %v1088 = vld [vmem:[%s1 + $0x42c] sm:$0xf]
        %v1089 = vld [vmem:[%s1 + $0x430] sm:$0xf]
        %v1090 = vld [vmem:[%s1 + $0x434] sm:$0xf]
        %v1091 = vld [vmem:[%s1 + $0x438] sm:$0xf]
        %v1092 = vld [vmem:[%s1 + $0x43c] sm:$0xf]
        %v1093 = vld [vmem:[%s1 + $0x440] sm:$0xf]
        %v1094 = vld [vmem:[%s1 + $0x444] sm:$0xf]
        %v1095 = vld [vmem:[%s1 + $0x448] sm:$0xf]
        %v1096 = vld [vmem:[%s1 + $0x44c] sm:$0xf]
        %v1097 = vld [vmem:[%s1 + $0x450] sm:$0xf]
        %v1098 = vld [vmem:[%s1 + $0x454] sm:$0xf]
        %v1099 = vld [vmem:[%s1 + $0x458] sm:$0xf]
        %v1100 = vld [vmem:[%s1 + $0x45c] sm:$0xf]
        %v1101 = vld [vmem:[%s1 + $0x460] sm:$0xf]
        %v1102 = vld [vmem:[%s1 + $0x464] sm:$0xf]
        %v1103 = vld [vmem:[%s1 + $0x468] sm:$0xf]
        %v1104 = vld [vmem:[%s1 + $0x46c] sm:$0xf]
        %v1105 = vld [vmem:[%s1 + $0x470] sm:$0xf]
        %v1106 = vld [vmem:[%s1 + $0x474] sm:$0xf]
        %v1107 = vld [vmem:[%s1 + $0x478] sm:$0xf]
        %v1108 = vld [vmem:[%s1 + $0x47c] sm:$0xf]
        %v1109 = vld [vmem:[%s1 + $0x480] sm:$0xf]
        %v1110 = vld [vmem:[%s1 + $0x484] sm:$0xf]
        %v1111 = vld [vmem:[%s1 + $0x488] sm:$0xf]
        %v1112 = vld [vmem:[%s1 + $0x48c] sm:$0xf]
        %v1113 = vld [vmem:[%s1 + $0x490] sm:$0xf]
        %v1114 = vld [vmem:[%s1 + $0x494] sm:$0xf]
        %v1115 = vld [vmem:[%s1 + $0x498] sm:$0xf]
        %v1116 = vld [vmem:[%s1 + $0x49c] sm:$0xf]
        %v1117 = vld [vmem:[%s1 + $0x4a0] sm:$0xf]
        %v1118 = vld [vmem:[%s1 + $0x4a4] sm:$0xf]
        %v1119 = vld [vmem:[%s1 + $0x4a8] sm:$0xf]
        %v1120 = vld [vmem:[%s1 + $0x4ac] sm:$0xf]
        %v1121 = vld [vmem:[%s1 + $0x4b0] sm:$0xf]
        %v1122 = vld [vmem:[%s1 + $0x4b4] sm:$0xf]
        %v1123 = vld [vmem:[%s1 + $0x4b8] sm:$0xf]
        %v1124 = vld [vmem:[%s1 + $0x4bc] sm:$0xf]
        %v1125 = vld [vmem:[%s1 + $0x4c0] sm:$0xf]
        %v1126 = vld [vmem:[%s1 + $0x4c4] sm:$0xf]
        %v1127 = vld [vmem:[%s1 + $0x4c8] sm:$0xf]
        %v1128 = vld [vmem:[%s1 + $0x4cc] sm:$0xf]
        %v1129 = vld [vmem:[%s1 + $0x4d0] sm:$0xf]
        %v1130 = vld [vmem:[%s1 + $0x4d4] sm:$0xf]
        %v1131 = vld [vmem:[%s1 + $0x4d8] sm:$0xf]
        %v1132 = vld [vmem:[%s1 + $0x4dc] sm:$0xf]
        %v1133 = vld [vmem:[%s1 + $0x4e0] sm:$0xf]
        %v1134 = vld [vmem:[%s1 + $0x4e4] sm:$0xf]
        %v1135 = vld [vmem:[%s1 + $0x4e8] sm:$0xf]
        %v1136 = vld [vmem:[%s1 + $0x4ec] sm:$0xf]
        %v1137 = vld [vmem:[%s1 + $0x4f0] sm:$0xf]
        %v1138 = vld [vmem:[%s1 + $0x4f4] sm:$0xf]
        %v1139 = vld [vmem:[%s1 + $0x4f8] sm:$0xf]
        %v1140 = vld [vmem:[%s1 + $0x4fc] sm:$0xf]
        %v1141 = vld [vmem:[%s1 + $0x500] sm:$0xf]
        %v1142 = vld [vmem:[%s1 + $0x504] sm:$0xf]
        %v1143 = vld [vmem:[%s1 + $0x508] sm:$0xf]
        %v1144 = vld [vmem:[%s1 + $0x50c] sm:$0xf]
        %v1145 = vld [vmem:[%s1 + $0x510] sm:$0xf]
        %v1146 = vld [vmem:[%s1 + $0x514] sm:$0xf]
        %v1147 = vld [vmem:[%s1 + $0x518] sm:$0xf]
        %v1148 = vld [vmem:[%s1 + $0x51c] sm:$0xf]
        %v1149 = vld [vmem:[%s1 + $0x520] sm:$0xf]
        %v1150 = vld [vmem:[%s1 + $0x524] sm:$0xf]
        %v1151 = vld [vmem:[%s1 + $0x528] sm:$0xf]
        %v1152 = vld [vmem:[%s1 + $0x52c] sm:$0xf]
        %v1153 = vld [vmem:[%s1 + $0x530] sm:$0xf]
        %v1154 = vld [vmem:[%s1 + $0x534] sm:$0xf]
        %v1155 = vld [vmem:[%s1 + $0x538] sm:$0xf]
        %v1156 = vld [vmem:[%s1 + $0x53c] sm:$0xf]
        %v1157 = vld [vmem:[%s1 + $0x540] sm:$0xf]
        %v1158 = vld [vmem:[%s1 + $0x544] sm:$0xf]
        %v1159 = vld [vmem:[%s1 + $0x548] sm:$0xf]
        %v1160 = vld [vmem:[%s1 + $0x54c] sm:$0xf]
        %v1161 = vld [vmem:[%s1 + $0x550] sm:$0xf]
        %v1162 = vld [vmem:[%s1 + $0x554] sm:$0xf]
        %v1163 = vld [vmem:[%s1 + $0x558] sm:$0xf]
        %v1164 = vld [vmem:[%s1 + $0x55c] sm:$0xf]
        %v1165 = vld [vmem:[%s1 + $0x560] sm:$0xf]
        %v1166 = vld [vmem:[%s1 + $0x564] sm:$0xf]
        %v1167 = vld [vmem:[%s1 + $0x568] sm:$0xf]
        %v1168 = vld [vmem:[%s1 + $0x56c] sm:$0xf]
        %v1169 = vld [vmem:[%s1 + $0x570] sm:$0xf]
        %v1170 = vld [vmem:[%s1 + $0x574] sm:$0xf]
        %v1171 = vld [vmem:[%s1 + $0x578] sm:$0xf]
        %v1172 = vld [vmem:[%s1 + $0x57c] sm:$0xf]
        %v1173 = vld [vmem:[%s1 + $0x580] sm:$0xf]
        %v1174 = vld [vmem:[%s1 + $0x584] sm:$0xf]
        %v1175 = vld [vmem:[%s1 + $0x588] sm:$0xf]
        %v1176 = vld [vmem:[%s1 + $0x58c] sm:$0xf]
        %v1177 = vld [vmem:[%s1 + $0x590] sm:$0xf]
        %v1178 = vld [vmem:[%s1 + $0x594] sm:$0xf]
        %v1179 = vld [vmem:[%s1 + $0x598] sm:$0xf]
        %v1180 = vld [vmem:[%s1 + $0x59c] sm:$0xf]
        %v1181 = vld [vmem:[%s1 + $0x5a0] sm:$0xf]
        %v1182 = vld [vmem:[%s1 + $0x5a4] sm:$0xf]
        %v1183 = vld [vmem:[%s1 + $0x5a8] sm:$0xf]
        %v1184 = vld [vmem:[%s1 + $0x5ac] sm:$0xf]
        %v1185 = vld [vmem:[%s1 + $0x5b0] sm:$0xf]
        %v1186 = vld [vmem:[%s1 + $0x5b4] sm:$0xf]
        %v1187 = vld [vmem:[%s1 + $0x5b8] sm:$0xf]
        %v1188 = vld [vmem:[%s1 + $0x5bc] sm:$0xf]
        %v1189 = vld [vmem:[%s1 + $0x5c0] sm:$0xf]
        %v1190 = vld [vmem:[%s1 + $0x5c4] sm:$0xf]
        %v1191 = vld [vmem:[%s1 + $0x5c8] sm:$0xf]
        %v1192 = vld [vmem:[%s1 + $0x5cc] sm:$0xf]
        %v1193 = vld [vmem:[%s1 + $0x5d0] sm:$0xf]
        %v1194 = vld [vmem:[%s1 + $0x5d4] sm:$0xf]
        %v1195 = vld [vmem:[%s1 + $0x5d8] sm:$0xf]
        %v1196 = vld [vmem:[%s1 + $0x5dc] sm:$0xf]
        %v1197 = vld [vmem:[%s1 + $0x5e0] sm:$0xf]
        %v1198 = vld [vmem:[%s1 + $0x5e4] sm:$0xf]
        %v1199 = vld [vmem:[%s1 + $0x5e8] sm:$0xf]
        %v1200 = vld [vmem:[%s1 + $0x5ec] sm:$0xf]
        %v1201 = vld [vmem:[%s1 + $0x5f0] sm:$0xf]
        %v1202 = vld [vmem:[%s1 + $0x5f4] sm:$0xf]
        %v1203 = vld [vmem:[%s1 + $0x5f8] sm:$0xf]
        %v1204 = vld [vmem:[%s1 + $0x5fc] sm:$0xf]
        %v1205 = vld [vmem:[%s1 + $0x600] sm:$0xf]
        %v1206 = vld [vmem:[%s1 + $0x604] sm:$0xf]
        %v1207 = vld [vmem:[%s1 + $0x608] sm:$0xf]
        %v1208 = vld [vmem:[%s1 + $0x60c] sm:$0xf]
        %v1209 = vld [vmem:[%s1 + $0x610] sm:$0xf]
        %v1210 = vld [vmem:[%s1 + $0x614] sm:$0xf]
        %v1211 = vld [vmem:[%s1 + $0x618] sm:$0xf]
        %v1212 = vld [vmem:[%s1 + $0x61c] sm:$0xf]
        %v1213 = vld [vmem:[%s1 + $0x620] sm:$0xf]
        %v1214 = vld [vmem:[%s1 + $0x624] sm:$0xf]
        %v1215 = vld [vmem:[%s1 + $0x628] sm:$0xf]
        %v1216 = vld [vmem:[%s1 + $0x62c] sm:$0xf]
        %v1217 = vld [vmem:[%s1 + $0x630] sm:$0xf]
        %v1218 = vld [vmem:[%s1 + $0x634] sm:$0xf]
        %v1219 = vld [vmem:[%s1 + $0x638] sm:$0xf]
        %v1220 = vld [vmem:[%s1 + $0x63c] sm:$0xf]
        %v1221 = vld [vmem:[%s1 + $0x640] sm:$0xf]
        %v1222 = vld [vmem:[%s1 + $0x644] sm:$0xf]
        %v1223 = vld [vmem:[%s1 + $0x648] sm:$0xf]
        %v1224 = vld [vmem:[%s1 + $0x64c] sm:$0xf]
        %v1225 = vld [vmem:[%s1 + $0x650] sm:$0xf]
        %v1226 = vld [vmem:[%s1 + $0x654] sm:$0xf]
        %v1227 = vld [vmem:[%s1 + $0x658] sm:$0xf]
        %v1228 = vld [vmem:[%s1 + $0x65c] sm:$0xf]
        %v1229 = vld [vmem:[%s1 + $0x660] sm:$0xf]
        %v1230 = vld [vmem:[%s1 + $0x664] sm:$0xf]
        %v1231 = vld [vmem:[%s1 + $0x668] sm:$0xf]
        %v1232 = vld [vmem:[%s1 + $0x66c] sm:$0xf]
        %v1233 = vld [vmem:[%s1 + $0x670] sm:$0xf]
        %v1234 = vld [vmem:[%s1 + $0x674] sm:$0xf]
        %v1235 = vld [vmem:[%s1 + $0x678] sm:$0xf]
        %v1236 = vld [vmem:[%s1 + $0x67c] sm:$0xf]
        %v1237 = vld [vmem:[%s1 + $0x680] sm:$0xf]
        %v1238 = vld [vmem:[%s1 + $0x684] sm:$0xf]
        %v1239 = vld [vmem:[%s1 + $0x688] sm:$0xf]
        %v1240 = vld [vmem:[%s1 + $0x68c] sm:$0xf]
        %v1241 = vld [vmem:[%s1 + $0x690] sm:$0xf]
        %v1242 = vld [vmem:[%s1 + $0x694] sm:$0xf]
        %v1243 = vld [vmem:[%s1 + $0x698] sm:$0xf]
        %v1244 = vld [vmem:[%s1 + $0x69c] sm:$0xf]
        %v1245 = vld [vmem:[%s1 + $0x6a0] sm:$0xf]
        %v1246 = vld [vmem:[%s1 + $0x6a4] sm:$0xf]
        %v1247 = vld [vmem:[%s1 + $0x6a8] sm:$0xf]
        %v1248 = vld [vmem:[%s1 + $0x6ac] sm:$0xf]
        %v1249 = vld [vmem:[%s1 + $0x6b0] sm:$0xf]
        %v1250 = vld [vmem:[%s1 + $0x6b4] sm:$0xf]
        %v1251 = vld [vmem:[%s1 + $0x6b8] sm:$0xf]
        %v1252 = vld [vmem:[%s1 + $0x6bc] sm:$0xf]
        %v1253 = vld [vmem:[%s1 + $0x6c0] sm:$0xf]
        %v1254 = vld [vmem:[%s1 + $0x6c4] sm:$0xf]
        %v1255 = vld [vmem:[%s1 + $0x6c8] sm:$0xf]
        %v1256 = vld [vmem:[%s1 + $0x6cc] sm:$0xf]
        %v1257 = vld [vmem:[%s1 + $0x6d0] sm:$0xf]
        %v1258 = vld [vmem:[%s1 + $0x6d4] sm:$0xf]
        %v1259 = vld [vmem:[%s1 + $0x6d8] sm:$0xf]
        %v1260 = vld [vmem:[%s1 + $0x6dc] sm:$0xf]
        %v1261 = vld [vmem:[%s1 + $0x6e0] sm:$0xf]
        %v1262 = vld [vmem:[%s1 + $0x6e4] sm:$0xf]
        %v1263 = vld [vmem:[%s1 + $0x6e8] sm:$0xf]
        %v1264 = vld [vmem:[%s1 + $0x6ec] sm:$0xf]
        %v1265 = vld [vmem:[%s1 + $0x6f0] sm:$0xf]
        %v1266 = vld [vmem:[%s1 + $0x6f4] sm:$0xf]
        %v1267 = vld [vmem:[%s1 + $0x6f8] sm:$0xf]
        %v1268 = vld [vmem:[%s1 + $0x6fc] sm:$0xf]
        %v1269 = vld [vmem:[%s1 + $0x700] sm:$0xf]
        %v1270 = vld [vmem:[%s1 + $0x704] sm:$0xf]
        %v1271 = vld [vmem:[%s1 + $0x708] sm:$0xf]
        %v1272 = vld [vmem:[%s1 + $0x70c] sm:$0xf]
        %v1273 = vld [vmem:[%s1 + $0x710] sm:$0xf]
        %v1274 = vld [vmem:[%s1 + $0x714] sm:$0xf]
        %v1275 = vld [vmem:[%s1 + $0x718] sm:$0xf]
        %v1276 = vld [vmem:[%s1 + $0x71c] sm:$0xf]
        %v1277 = vld [vmem:[%s1 + $0x720] sm:$0xf]
        %v1278 = vld [vmem:[%s1 + $0x724] sm:$0xf]
        %v1279 = vld [vmem:[%s1 + $0x728] sm:$0xf]
        %v1280 = vld [vmem:[%s1 + $0x72c] sm:$0xf]
        %v1281 = vld [vmem:[%s1 + $0x730] sm:$0xf]
        %v1282 = vld [vmem:[%s1 + $0x734] sm:$0xf]
        %v1283 = vld [vmem:[%s1 + $0x738] sm:$0xf]
        %v1284 = vld [vmem:[%s1 + $0x73c] sm:$0xf]
        %v1285 = vld [vmem:[%s1 + $0x740] sm:$0xf]
        %v1286 = vld [vmem:[%s1 + $0x744] sm:$0xf]
        %v1287 = vld [vmem:[%s1 + $0x748] sm:$0xf]
        %v1288 = vld [vmem:[%s1 + $0x74c] sm:$0xf]
        %v1289 = vld [vmem:[%s1 + $0x750] sm:$0xf]
        %v1290 = vld [vmem:[%s1 + $0x754] sm:$0xf]
        %v1291 = vld [vmem:[%s1 + $0x758] sm:$0xf]
        %v1292 = vld [vmem:[%s1 + $0x75c] sm:$0xf]
        %v1293 = vld [vmem:[%s1 + $0x760] sm:$0xf]
        %v1294 = vld [vmem:[%s1 + $0x764] sm:$0xf]
        %v1295 = vld [vmem:[%s1 + $0x768] sm:$0xf]
        %v1296 = vld [vmem:[%s1 + $0x76c] sm:$0xf]
        %v1297 = vld [vmem:[%s1 + $0x770] sm:$0xf]
        %v1298 = vld [vmem:[%s1 + $0x774] sm:$0xf]
        %v1299 = vld [vmem:[%s1 + $0x778] sm:$0xf]
        %v1300 = vld [vmem:[%s1 + $0x77c] sm:$0xf]
        %v1301 = vld [vmem:[%s1 + $0x780] sm:$0xf]
        %v1302 = vld [vmem:[%s1 + $0x784] sm:$0xf]
        %v1303 = vld [vmem:[%s1 + $0x788] sm:$0xf]
        %v1304 = vld [vmem:[%s1 + $0x78c] sm:$0xf]
        %v1305 = vld [vmem:[%s1 + $0x790] sm:$0xf]
        %v1306 = vld [vmem:[%s1 + $0x794] sm:$0xf]
        %v1307 = vld [vmem:[%s1 + $0x798] sm:$0xf]
        %v1308 = vld [vmem:[%s1 + $0x79c] sm:$0xf]
        %v1309 = vld [vmem:[%s1 + $0x7a0] sm:$0xf]
        %v1310 = vld [vmem:[%s1 + $0x7a4] sm:$0xf]
        %v1311 = vld [vmem:[%s1 + $0x7a8] sm:$0xf]
        %v1312 = vld [vmem:[%s1 + $0x7ac] sm:$0xf]
        %v1313 = vld [vmem:[%s1 + $0x7b0] sm:$0xf]
        %v1314 = vld [vmem:[%s1 + $0x7b4] sm:$0xf]
        %v1315 = vld [vmem:[%s1 + $0x7b8] sm:$0xf]
        %v1316 = vld [vmem:[%s1 + $0x7bc] sm:$0xf]
        %v1317 = vld [vmem:[%s1 + $0x7c0] sm:$0xf]
        %v1318 = vld [vmem:[%s1 + $0x7c4] sm:$0xf]
        %v1319 = vld [vmem:[%s1 + $0x7c8] sm:$0xf]
        %v1320 = vld [vmem:[%s1 + $0x7cc] sm:$0xf]
        %v1321 = vld [vmem:[%s1 + $0x7d0] sm:$0xf]
        %v1322 = vld [vmem:[%s1 + $0x7d4] sm:$0xf]
        %v1323 = vld [vmem:[%s1 + $0x7d8] sm:$0xf]
        %v1324 = vld [vmem:[%s1 + $0x7dc] sm:$0xf]
        %v1325 = vld [vmem:[%s1 + $0x7e0] sm:$0xf]
        %v1326 = vld [vmem:[%s1 + $0x7e4] sm:$0xf]
        %v1327 = vld [vmem:[%s1 + $0x7e8] sm:$0xf]
        %v1328 = vld [vmem:[%s1 + $0x7ec] sm:$0xf]
        %v1329 = vld [vmem:[%s1 + $0x7f0] sm:$0xf]
        %v1330 = vld [vmem:[%s1 + $0x7f4] sm:$0xf]
        %v1331 = vld [vmem:[%s1 + $0x7f8] sm:$0xf]
        %v1332 = vld [vmem:[%s1 + $0x7fc] sm:$0xf]
        %v1333 = vld [vmem:[%s1 + $0x800] sm:$0xf]
        %v1334 = vld [vmem:[%s1 + $0x804] sm:$0xf]
        %v1335 = vld [vmem:[%s1 + $0x808] sm:$0xf]
        %v1336 = vld [vmem:[%s1 + $0x80c] sm:$0xf]
        %v1337 = vld [vmem:[%s1 + $0x810] sm:$0xf]
        %v1338 = vld [vmem:[%s1 + $0x814] sm:$0xf]
        %v1339 = vld [vmem:[%s1 + $0x818] sm:$0xf]
        %v1340 = vld [vmem:[%s1 + $0x81c] sm:$0xf]
        %v1341 = vld [vmem:[%s1 + $0x820] sm:$0xf]
        %v1342 = vld [vmem:[%s1 + $0x824] sm:$0xf]
        %v1343 = vld [vmem:[%s1 + $0x828] sm:$0xf]
        %v1344 = vld [vmem:[%s1 + $0x82c] sm:$0xf]
        %v1345 = vld [vmem:[%s1 + $0x830] sm:$0xf]
        %v1346 = vld [vmem:[%s1 + $0x834] sm:$0xf]
        %v1347 = vld [vmem:[%s1 + $0x838] sm:$0xf]
        %v1348 = vld [vmem:[%s1 + $0x83c] sm:$0xf]
        %v1349 = vld [vmem:[%s1 + $0x840] sm:$0xf]
        %v1350 = vld [vmem:[%s1 + $0x844] sm:$0xf]
        %v1351 = vld [vmem:[%s1 + $0x848] sm:$0xf]
        %v1352 = vld [vmem:[%s1 + $0x84c] sm:$0xf]
        %v1353 = vld [vmem:[%s1 + $0x850] sm:$0xf]
        %v1354 = vld [vmem:[%s1 + $0x854] sm:$0xf]
        %v1355 = vld [vmem:[%s1 + $0x858] sm:$0xf]
        %v1356 = vld [vmem:[%s1 + $0x85c] sm:$0xf]
        %v1357 = vld [vmem:[%s1 + $0x860] sm:$0xf]
        %v1358 = vld [vmem:[%s1 + $0x864] sm:$0xf]
        %v1359 = vld [vmem:[%s1 + $0x868] sm:$0xf]
        %v1360 = vld [vmem:[%s1 + $0x86c] sm:$0xf]
        %v1361 = vld [vmem:[%s1 + $0x870] sm:$0xf]
        %v1362 = vld [vmem:[%s1 + $0x874] sm:$0xf]
        %v1363 = vld [vmem:[%s1 + $0x878] sm:$0xf]
        %v1364 = vld [vmem:[%s1 + $0x87c] sm:$0xf]
        %v1365 = vld [vmem:[%s1 + $0x880] sm:$0xf]
        %v1366 = vld [vmem:[%s1 + $0x884] sm:$0xf]
        %v1367 = vld [vmem:[%s1 + $0x888] sm:$0xf]
        %v1368 = vld [vmem:[%s1 + $0x88c] sm:$0xf]
        %v1369 = vld [vmem:[%s1 + $0x890] sm:$0xf]
        %v1370 = vld [vmem:[%s1 + $0x894] sm:$0xf]
        %v1371 = vld [vmem:[%s1 + $0x898] sm:$0xf]
        %v1372 = vld [vmem:[%s1 + $0x89c] sm:$0xf]
        %v1373 = vld [vmem:[%s1 + $0x8a0] sm:$0xf]
        %v1374 = vld [vmem:[%s1 + $0x8a4] sm:$0xf]
        %v1375 = vld [vmem:[%s1 + $0x8a8] sm:$0xf]
        %v1376 = vld [vmem:[%s1 + $0x8ac] sm:$0xf]
        %v1377 = vld [vmem:[%s1 + $0x8b0] sm:$0xf]
        %v1378 = vld [vmem:[%s1 + $0x8b4] sm:$0xf]
        %v1379 = vld [vmem:[%s1 + $0x8b8] sm:$0xf]
        %v1380 = vld [vmem:[%s1 + $0x8bc] sm:$0xf]
        %v1381 = vld [vmem:[%s1 + $0x8c0] sm:$0xf]
        %v1382 = vld [vmem:[%s1 + $0x8c4] sm:$0xf]
        %v1383 = vld [vmem:[%s1 + $0x8c8] sm:$0xf]
        %v1384 = vld [vmem:[%s1 + $0x8cc] sm:$0xf]
        %v1385 = vld [vmem:[%s1 + $0x8d0] sm:$0xf]
        %v1386 = vld [vmem:[%s1 + $0x8d4] sm:$0xf]
        %v1387 = vld [vmem:[%s1 + $0x8d8] sm:$0xf]
        %v1388 = vld [vmem:[%s1 + $0x8dc] sm:$0xf]
        %v1389 = vld [vmem:[%s1 + $0x8e0] sm:$0xf]
        %v1390 = vld [vmem:[%s1 + $0x8e4] sm:$0xf]
        %v1391 = vld [vmem:[%s1 + $0x8e8] sm:$0xf]
        %v1392 = vld [vmem:[%s1 + $0x8ec] sm:$0xf]
        %v1393 = vld [vmem:[%s1 + $0x8f0] sm:$0xf]
        %v1394 = vld [vmem:[%s1 + $0x8f4] sm:$0xf]
        %v1395 = vld [vmem:[%s1 + $0x8f8] sm:$0xf]
        %v1396 = vld [vmem:[%s1 + $0x8fc] sm:$0xf]
        %v1397 = vld [vmem:[%s1 + $0x900] sm:$0xf]
        %v1398 = vld [vmem:[%s1 + $0x904] sm:$0xf]
        %v1399 = vld [vmem:[%s1 + $0x908] sm:$0xf]
        %v1400 = vld [vmem:[%s1 + $0x90c] sm:$0xf]
        %v1401 = vld [vmem:[%s1 + $0x910] sm:$0xf]
        %v1402 = vld [vmem:[%s1 + $0x914] sm:$0xf]
        %v1403 = vld [vmem:[%s1 + $0x918] sm:$0xf]
        %v1404 = vld [vmem:[%s1 + $0x91c] sm:$0xf]
        %v1405 = vld [vmem:[%s1 + $0x920] sm:$0xf]
        %v1406 = vld [vmem:[%s1 + $0x924] sm:$0xf]
        %v1407 = vld [vmem:[%s1 + $0x928] sm:$0xf]
        %v1408 = vld [vmem:[%s1 + $0x92c] sm:$0xf]
        %v1409 = vld [vmem:[%s1 + $0x930] sm:$0xf]
        %v1410 = vld [vmem:[%s1 + $0x934] sm:$0xf]
        %v1411 = vld [vmem:[%s1 + $0x938] sm:$0xf]
        %v1412 = vld [vmem:[%s1 + $0x93c] sm:$0xf]
        %v1413 = vld [vmem:[%s1 + $0x940] sm:$0xf]
        %v1414 = vld [vmem:[%s1 + $0x944] sm:$0xf]
        %v1415 = vld [vmem:[%s1 + $0x948] sm:$0xf]
        %v1416 = vld [vmem:[%s1 + $0x94c] sm:$0xf]
        %v1417 = vld [vmem:[%s1 + $0x950] sm:$0xf]
        %v1418 = vld [vmem:[%s1 + $0x954] sm:$0xf]
        %v1419 = vld [vmem:[%s1 + $0x958] sm:$0xf]
        %v1420 = vld [vmem:[%s1 + $0x95c] sm:$0xf]
        %v1421 = vld [vmem:[%s1 + $0x960] sm:$0xf]
        %v1422 = vld [vmem:[%s1 + $0x964] sm:$0xf]
        %v1423 = vld [vmem:[%s1 + $0x968] sm:$0xf]
        %v1424 = vld [vmem:[%s1 + $0x96c] sm:$0xf]
        %v1425 = vld [vmem:[%s1 + $0x970] sm:$0xf]
        %v1426 = vld [vmem:[%s1 + $0x974] sm:$0xf]
        %v1427 = vld [vmem:[%s1 + $0x978] sm:$0xf]
        %v1428 = vld [vmem:[%s1 + $0x97c] sm:$0xf]
        %v1429 = vld [vmem:[%s1 + $0x980] sm:$0xf]
        %v1430 = vld [vmem:[%s1 + $0x984] sm:$0xf]
        %v1431 = vld [vmem:[%s1 + $0x988] sm:$0xf]
        %v1432 = vld [vmem:[%s1 + $0x98c] sm:$0xf]
        %v1433 = vld [vmem:[%s1 + $0x990] sm:$0xf]
        %v1434 = vld [vmem:[%s1 + $0x994] sm:$0xf]
        %v1435 = vld [vmem:[%s1 + $0x998] sm:$0xf]
        %v1436 = vld [vmem:[%s1 + $0x99c] sm:$0xf]
        %v1437 = vld [vmem:[%s1 + $0x9a0] sm:$0xf]
        %v1438 = vld [vmem:[%s1 + $0x9a4] sm:$0xf]
        %v1439 = vld [vmem:[%s1 + $0x9a8] sm:$0xf]
        %v1440 = vld [vmem:[%s1 + $0x9ac] sm:$0xf]
        %v1441 = vld [vmem:[%s1 + $0x9b0] sm:$0xf]
        %v1442 = vld [vmem:[%s1 + $0x9b4] sm:$0xf]
        %v1443 = vld [vmem:[%s1 + $0x9b8] sm:$0xf]
        %v1444 = vld [vmem:[%s1 + $0x9bc] sm:$0xf]
        %v1445 = vld [vmem:[%s1 + $0x9c0] sm:$0xf]
        %v1446 = vld [vmem:[%s1 + $0x9c4] sm:$0xf]
        %v1447 = vld [vmem:[%s1 + $0x9c8] sm:$0xf]
        %v1448 = vld [vmem:[%s1 + $0x9cc] sm:$0xf]
        %v1449 = vld [vmem:[%s1 + $0x9d0] sm:$0xf]
        %v1450 = vld [vmem:[%s1 + $0x9d4] sm:$0xf]
        %v1451 = vld [vmem:[%s1 + $0x9d8] sm:$0xf]
        %v1452 = vld [vmem:[%s1 + $0x9dc] sm:$0xf]
        %v1453 = vld [vmem:[%s1 + $0x9e0] sm:$0xf]
        %v1454 = vld [vmem:[%s1 + $0x9e4] sm:$0xf]
        %v1455 = vld [vmem:[%s1 + $0x9e8] sm:$0xf]
        %v1456 = vld [vmem:[%s1 + $0x9ec] sm:$0xf]
        %v1457 = vld [vmem:[%s1 + $0x9f0] sm:$0xf]
        %v1458 = vld [vmem:[%s1 + $0x9f4] sm:$0xf]
        %v1459 = vld [vmem:[%s1 + $0x9f8] sm:$0xf]
        %v1460 = vld [vmem:[%s1 + $0x9fc] sm:$0xf]
        %v1461 = vld [vmem:[%s1 + $0xa00] sm:$0xf]
        %v1462 = vld [vmem:[%s1 + $0xa04] sm:$0xf]
        %v1463 = vld [vmem:[%s1 + $0xa08] sm:$0xf]
        %v1464 = vld [vmem:[%s1 + $0xa0c] sm:$0xf]
        %v1465 = vld [vmem:[%s1 + $0xa10] sm:$0xf]
        %v1466 = vld [vmem:[%s1 + $0xa14] sm:$0xf]
        %v1467 = vld [vmem:[%s1 + $0xa18] sm:$0xf]
        %v1468 = vld [vmem:[%s1 + $0xa1c] sm:$0xf]
        %v1469 = vld [vmem:[%s1 + $0xa20] sm:$0xf]
        %v1470 = vld [vmem:[%s1 + $0xa24] sm:$0xf]
        %v1471 = vld [vmem:[%s1 + $0xa28] sm:$0xf]
        %v1472 = vld [vmem:[%s1 + $0xa2c] sm:$0xf]
        %v1473 = vld [vmem:[%s1 + $0xa30] sm:$0xf]
        %v1474 = vld [vmem:[%s1 + $0xa34] sm:$0xf]
        %v1475 = vld [vmem:[%s1 + $0xa38] sm:$0xf]
        %v1476 = vld [vmem:[%s1 + $0xa3c] sm:$0xf]
        %v1477 = vld [vmem:[%s1 + $0xa40] sm:$0xf]
        %v1478 = vld [vmem:[%s1 + $0xa44] sm:$0xf]
        %v1479 = vld [vmem:[%s1 + $0xa48] sm:$0xf]
        %v1480 = vld [vmem:[%s1 + $0xa4c] sm:$0xf]
        %v1481 = vld [vmem:[%s1 + $0xa50] sm:$0xf]
        %v1482 = vld [vmem:[%s1 + $0xa54] sm:$0xf]
        %v1483 = vld [vmem:[%s1 + $0xa58] sm:$0xf]
        %v1484 = vld [vmem:[%s1 + $0xa5c] sm:$0xf]
        %v1485 = vld [vmem:[%s1 + $0xa60] sm:$0xf]
        %v1486 = vld [vmem:[%s1 + $0xa64] sm:$0xf]
        %v1487 = vld [vmem:[%s1 + $0xa68] sm:$0xf]
        %v1488 = vld [vmem:[%s1 + $0xa6c] sm:$0xf]
        %v1489 = vld [vmem:[%s1 + $0xa70] sm:$0xf]
        %v1490 = vld [vmem:[%s1 + $0xa74] sm:$0xf]
        %v1491 = vld [vmem:[%s1 + $0xa78] sm:$0xf]
        %v1492 = vld [vmem:[%s1 + $0xa7c] sm:$0xf]
        %v1493 = vld [vmem:[%s1 + $0xa80] sm:$0xf]
        %v1494 = vld [vmem:[%s1 + $0xa84] sm:$0xf]
        %v1495 = vld [vmem:[%s1 + $0xa88] sm:$0xf]
        %v1496 = vld [vmem:[%s1 + $0xa8c] sm:$0xf]
        %v1497 = vld [vmem:[%s1 + $0xa90] sm:$0xf]
        %v1498 = vld [vmem:[%s1 + $0xa94] sm:$0xf]
        %v1499 = vld [vmem:[%s1 + $0xa98] sm:$0xf]
        %v1500 = vld [vmem:[%s1 + $0xa9c] sm:$0xf]
        %v1501 = vld [vmem:[%s1 + $0xaa0] sm:$0xf]
        %v1502 = vld [vmem:[%s1 + $0xaa4] sm:$0xf]
        %v1503 = vld [vmem:[%s1 + $0xaa8] sm:$0xf]
        %v1504 = vld [vmem:[%s1 + $0xaac] sm:$0xf]
        %v1505 = vld [vmem:[%s1 + $0xab0] sm:$0xf]
        %v1506 = vld [vmem:[%s1 + $0xab4] sm:$0xf]
        %v1507 = vld [vmem:[%s1 + $0xab8] sm:$0xf]
        %v1508 = vld [vmem:[%s1 + $0xabc] sm:$0xf]
        %v1509 = vld [vmem:[%s1 + $0xac0] sm:$0xf]
        %v1510 = vld [vmem:[%s1 + $0xac4] sm:$0xf]
        %v1511 = vld [vmem:[%s1 + $0xac8] sm:$0xf]
        %v1512 = vld [vmem:[%s1 + $0xacc] sm:$0xf]
        %v1513 = vld [vmem:[%s1 + $0xad0] sm:$0xf]
        %v1514 = vld [vmem:[%s1 + $0xad4] sm:$0xf]
        %v1515 = vld [vmem:[%s1 + $0xad8] sm:$0xf]
        %v1516 = vld [vmem:[%s1 + $0xadc] sm:$0xf]
        %v1517 = vld [vmem:[%s1 + $0xae0] sm:$0xf]
        %v1518 = vld [vmem:[%s1 + $0xae4] sm:$0xf]
        %v1519 = vld [vmem:[%s1 + $0xae8] sm:$0xf]
        %v1520 = vld [vmem:[%s1 + $0xaec] sm:$0xf]
        %v1521 = vld [vmem:[%s1 + $0xaf0] sm:$0xf]
        %v1522 = vld [vmem:[%s1 + $0xaf4] sm:$0xf]
        %v1523 = vld [vmem:[%s1 + $0xaf8] sm:$0xf]
        %v1524 = vld [vmem:[%s1 + $0xafc] sm:$0xf]
        %v1525 = vld [vmem:[%s1 + $0xb00] sm:$0xf]
        %v1526 = vld [vmem:[%s1 + $0xb04] sm:$0xf]
        %v1527 = vld [vmem:[%s1 + $0xb08] sm:$0xf]
        %v1528 = vld [vmem:[%s1 + $0xb0c] sm:$0xf]
        %v1529 = vld [vmem:[%s1 + $0xb10] sm:$0xf]
        %v1530 = vld [vmem:[%s1 + $0xb14] sm:$0xf]
        %v1531 = vld [vmem:[%s1 + $0xb18] sm:$0xf]
        %v1532 = vld [vmem:[%s1 + $0xb1c] sm:$0xf]
        %v1533 = vld [vmem:[%s1 + $0xb20] sm:$0xf]
        %v1534 = vld [vmem:[%s1 + $0xb24] sm:$0xf]
        %v1535 = vld [vmem:[%s1 + $0xb28] sm:$0xf]
        %v1536 = vld [vmem:[%s1 + $0xb2c] sm:$0xf]
        %v1537 = vld [vmem:[%s1 + $0xb30] sm:$0xf]
        %v1538 = vld [vmem:[%s1 + $0xb34] sm:$0xf]
        %v1539 = vld [vmem:[%s1 + $0xb38] sm:$0xf]
        %v1540 = vld [vmem:[%s1 + $0xb3c] sm:$0xf]
        %v1541 = vld [vmem:[%s1 + $0xb40] sm:$0xf]
        %v1542 = vld [vmem:[%s1 + $0xb44] sm:$0xf]
        %v1543 = vld [vmem:[%s1 + $0xb48] sm:$0xf]
        %v1544 = vld [vmem:[%s1 + $0xb4c] sm:$0xf]
        %v1545 = vld [vmem:[%s1 + $0xb50] sm:$0xf]
        %v1546 = vld [vmem:[%s1 + $0xb54] sm:$0xf]
        %v1547 = vld [vmem:[%s1 + $0xb58] sm:$0xf]
        %v1548 = vld [vmem:[%s1 + $0xb5c] sm:$0xf]
        %v1549 = vld [vmem:[%s1 + $0xb60] sm:$0xf]
        %v1550 = vld [vmem:[%s1 + $0xb64] sm:$0xf]
        %v1551 = vld [vmem:[%s1 + $0xb68] sm:$0xf]
        %v1552 = vld [vmem:[%s1 + $0xb6c] sm:$0xf]
        %v1553 = vld [vmem:[%s1 + $0xb70] sm:$0xf]
        %v1554 = vld [vmem:[%s1 + $0xb74] sm:$0xf]
        %v1555 = vld [vmem:[%s1 + $0xb78] sm:$0xf]
        %v1556 = vld [vmem:[%s1 + $0xb7c] sm:$0xf]
        %v1557 = vld [vmem:[%s1 + $0xb80] sm:$0xf]
        %v1558 = vld [vmem:[%s1 + $0xb84] sm:$0xf]
        %v1559 = vld [vmem:[%s1 + $0xb88] sm:$0xf]
        %v1560 = vld [vmem:[%s1 + $0xb8c] sm:$0xf]
        %v1561 = vld [vmem:[%s1 + $0xb90] sm:$0xf]
        %v1562 = vld [vmem:[%s1 + $0xb94] sm:$0xf]
        %v1563 = vld [vmem:[%s1 + $0xb98] sm:$0xf]
        %v1564 = vld [vmem:[%s1 + $0xb9c] sm:$0xf]
        %v1565 = vld [vmem:[%s1 + $0xba0] sm:$0xf]
        %v1566 = vld [vmem:[%s1 + $0xba4] sm:$0xf]
        %v1567 = vld [vmem:[%s1 + $0xba8] sm:$0xf]
        %v1568 = vld [vmem:[%s1 + $0xbac] sm:$0xf]
        %v1569 = vld [vmem:[%s1 + $0xbb0] sm:$0xf]
        %v1570 = vld [vmem:[%s1 + $0xbb4] sm:$0xf]
        %v1571 = vld [vmem:[%s1 + $0xbb8] sm:$0xf]
        %v1572 = vld [vmem:[%s1 + $0xbbc] sm:$0xf]
        %v1573 = vld [vmem:[%s1 + $0xbc0] sm:$0xf]
        %v1574 = vld [vmem:[%s1 + $0xbc4] sm:$0xf]
        %v1575 = vld [vmem:[%s1 + $0xbc8] sm:$0xf]
        %v1576 = vld [vmem:[%s1 + $0xbcc] sm:$0xf]
        %v1577 = vld [vmem:[%s1 + $0xbd0] sm:$0xf]
        %v1578 = vld [vmem:[%s1 + $0xbd4] sm:$0xf]
        %v1579 = vld [vmem:[%s1 + $0xbd8] sm:$0xf]
        %v1580 = vld [vmem:[%s1 + $0xbdc] sm:$0xf]
        %v1581 = vld [vmem:[%s1 + $0xbe0] sm:$0xf]
        %v1582 = vld [vmem:[%s1 + $0xbe4] sm:$0xf]
        %v1583 = vld [vmem:[%s1 + $0xbe8] sm:$0xf]
        %v1584 = vld [vmem:[%s1 + $0xbec] sm:$0xf]
        %v1585 = vld [vmem:[%s1 + $0xbf0] sm:$0xf]
        %v1586 = vld [vmem:[%s1 + $0xbf4] sm:$0xf]
        %v1587 = vld [vmem:[%s1 + $0xbf8] sm:$0xf]
        %v1588 = vld [vmem:[%s1 + $0xbfc] sm:$0xf]
        %v1589 = vld [vmem:[#allocation5] sm:$0x1]
        %v1591 = vperm.slane %v1589, 0
        %v1977 = vunpack.c.l.b16 %v437
        %v1978 = vunpack.c.h.b16 %v437
        %v1979 = vunpack.c.l.b16 %v438
        %v1980 = vunpack.c.h.b16 %v438
        %v1981 = vunpack.c.l.b16 %v439
        %v1982 = vunpack.c.h.b16 %v439
        %v1983 = vunpack.c.l.b16 %v440
        %v1984 = vunpack.c.h.b16 %v440
        %v1985 = vunpack.c.l.b16 %v441
        %v1986 = vunpack.c.h.b16 %v441
        %v1987 = vunpack.c.l.b16 %v442
        %v1988 = vunpack.c.h.b16 %v442
        %v1989 = vunpack.c.l.b16 %v443
        %v1990 = vunpack.c.h.b16 %v443
        %v1991 = vunpack.c.l.b16 %v444
        %v1992 = vunpack.c.h.b16 %v444
        %v1993 = vunpack.c.l.b16 %v445
        %v1994 = vunpack.c.h.b16 %v445
        %v1995 = vunpack.c.l.b16 %v446
        %v1996 = vunpack.c.h.b16 %v446
        %v1997 = vunpack.c.l.b16 %v447
        %v1998 = vunpack.c.h.b16 %v447
        %v1999 = vunpack.c.l.b16 %v448
        %v2000 = vunpack.c.h.b16 %v448
        %v2001 = vunpack.c.l.b16 %v449
        %v2002 = vunpack.c.h.b16 %v449
        %v2003 = vunpack.c.l.b16 %v450
        %v2004 = vunpack.c.h.b16 %v450
        %v2005 = vunpack.c.l.b16 %v451
        %v2006 = vunpack.c.h.b16 %v451
        %v2007 = vunpack.c.l.b16 %v452
        %v2008 = vunpack.c.h.b16 %v452
        %v2009 = vunpack.c.l.b16 %v453
        %v2010 = vunpack.c.h.b16 %v453
        %v2011 = vunpack.c.l.b16 %v454
        %v2012 = vunpack.c.h.b16 %v454
        %v2013 = vunpack.c.l.b16 %v455
        %v2014 = vunpack.c.h.b16 %v455
        %v2015 = vunpack.c.l.b16 %v456
        %v2016 = vunpack.c.h.b16 %v456
        %v2017 = vunpack.c.l.b16 %v457
        %v2018 = vunpack.c.h.b16 %v457
        %v2019 = vunpack.c.l.b16 %v458
        %v2020 = vunpack.c.h.b16 %v458
        %v2021 = vunpack.c.l.b16 %v459
        %v2022 = vunpack.c.h.b16 %v459
        %v2023 = vunpack.c.l.b16 %v460
        %v2024 = vunpack.c.h.b16 %v460
        %v2025 = vunpack.c.l.b16 %v461
        %v2026 = vunpack.c.h.b16 %v461
        %v2027 = vunpack.c.l.b16 %v462
        %v2028 = vunpack.c.h.b16 %v462
        %v2029 = vunpack.c.l.b16 %v463
        %v2030 = vunpack.c.h.b16 %v463
        %v2031 = vunpack.c.l.b16 %v464
        %v2032 = vunpack.c.h.b16 %v464
        %v2033 = vunpack.c.l.b16 %v465
        %v2034 = vunpack.c.h.b16 %v465
        %v2035 = vunpack.c.l.b16 %v466
        %v2036 = vunpack.c.h.b16 %v466
        %v2037 = vunpack.c.l.b16 %v467
        %v2038 = vunpack.c.h.b16 %v467
        %v2039 = vunpack.c.l.b16 %v468
        %v2040 = vunpack.c.h.b16 %v468
        %v2041 = vunpack.c.l.b16 %v469
        %v2042 = vunpack.c.h.b16 %v469
        %v2043 = vunpack.c.l.b16 %v470
        %v2044 = vunpack.c.h.b16 %v470
        %v2045 = vunpack.c.l.b16 %v471
        %v2046 = vunpack.c.h.b16 %v471
        %v2047 = vunpack.c.l.b16 %v472
        %v2048 = vunpack.c.h.b16 %v472
        %v2049 = vunpack.c.l.b16 %v473
        %v2050 = vunpack.c.h.b16 %v473
        %v2051 = vunpack.c.l.b16 %v474
        %v2052 = vunpack.c.h.b16 %v474
        %v2053 = vunpack.c.l.b16 %v475
        %v2054 = vunpack.c.h.b16 %v475
        %v2055 = vunpack.c.l.b16 %v476
        %v2056 = vunpack.c.h.b16 %v476
        %v2057 = vunpack.c.l.b16 %v477
        %v2058 = vunpack.c.h.b16 %v477
        %v2059 = vunpack.c.l.b16 %v478
        %v2060 = vunpack.c.h.b16 %v478
        %v2061 = vunpack.c.l.b16 %v479
        %v2062 = vunpack.c.h.b16 %v479
        %v2063 = vunpack.c.l.b16 %v480
        %v2064 = vunpack.c.h.b16 %v480
        %v2065 = vunpack.c.l.b16 %v481
        %v2066 = vunpack.c.h.b16 %v481
        %v2067 = vunpack.c.l.b16 %v482
        %v2068 = vunpack.c.h.b16 %v482
        %v2069 = vunpack.c.l.b16 %v483
        %v2070 = vunpack.c.h.b16 %v483
        %v2071 = vunpack.c.l.b16 %v484
        %v2072 = vunpack.c.h.b16 %v484
        %v2073 = vunpack.c.l.b16 %v485
        %v2074 = vunpack.c.h.b16 %v485
        %v2075 = vunpack.c.l.b16 %v486
        %v2076 = vunpack.c.h.b16 %v486
        %v2077 = vunpack.c.l.b16 %v487
        %v2078 = vunpack.c.h.b16 %v487
        %v2079 = vunpack.c.l.b16 %v488
        %v2080 = vunpack.c.h.b16 %v488
        %v2081 = vunpack.c.l.b16 %v489
        %v2082 = vunpack.c.h.b16 %v489
        %v2083 = vunpack.c.l.b16 %v490
        %v2084 = vunpack.c.h.b16 %v490
        %v2085 = vunpack.c.l.b16 %v491
        %v2086 = vunpack.c.h.b16 %v491
        %v2087 = vunpack.c.l.b16 %v492
        %v2088 = vunpack.c.h.b16 %v492
        %v2089 = vunpack.c.l.b16 %v493
        %v2090 = vunpack.c.h.b16 %v493
        %v2091 = vunpack.c.l.b16 %v494
        %v2092 = vunpack.c.h.b16 %v494
        %v2093 = vunpack.c.l.b16 %v495
        %v2094 = vunpack.c.h.b16 %v495
        %v2095 = vunpack.c.l.b16 %v496
        %v2096 = vunpack.c.h.b16 %v496
        %v2097 = vunpack.c.l.b16 %v497
        %v2098 = vunpack.c.h.b16 %v497
        %v2099 = vunpack.c.l.b16 %v498
        %v2100 = vunpack.c.h.b16 %v498
        %v2101 = vunpack.c.l.b16 %v499
        %v2102 = vunpack.c.h.b16 %v499
        %v2103 = vunpack.c.l.b16 %v500
        %v2104 = vunpack.c.h.b16 %v500
        %v2105 = vunpack.c.l.b16 %v501
        %v2106 = vunpack.c.h.b16 %v501
        %v2107 = vunpack.c.l.b16 %v502
        %v2108 = vunpack.c.h.b16 %v502
        %v2109 = vunpack.c.l.b16 %v503
        %v2110 = vunpack.c.h.b16 %v503
        %v2111 = vunpack.c.l.b16 %v504
        %v2112 = vunpack.c.h.b16 %v504
        %v2113 = vunpack.c.l.b16 %v505
        %v2114 = vunpack.c.h.b16 %v505
        %v2115 = vunpack.c.l.b16 %v506
        %v2116 = vunpack.c.h.b16 %v506
        %v2117 = vunpack.c.l.b16 %v507
        %v2118 = vunpack.c.h.b16 %v507
        %v2119 = vunpack.c.l.b16 %v508
        %v2120 = vunpack.c.h.b16 %v508
        %v2121 = vunpack.c.l.b16 %v509
        %v2122 = vunpack.c.h.b16 %v509
        %v2123 = vunpack.c.l.b16 %v510
        %v2124 = vunpack.c.h.b16 %v510
        %v2125 = vunpack.c.l.b16 %v511
        %v2126 = vunpack.c.h.b16 %v511
        %v2127 = vunpack.c.l.b16 %v512
        %v2128 = vunpack.c.h.b16 %v512
        %v2129 = vunpack.c.l.b16 %v513
        %v2130 = vunpack.c.h.b16 %v513
        %v2131 = vunpack.c.l.b16 %v514
        %v2132 = vunpack.c.h.b16 %v514
        %v2133 = vunpack.c.l.b16 %v515
        %v2134 = vunpack.c.h.b16 %v515
        %v2135 = vunpack.c.l.b16 %v516
        %v2136 = vunpack.c.h.b16 %v516
        %v2137 = vunpack.c.l.b16 %v517
        %v2138 = vunpack.c.h.b16 %v517
        %v2139 = vunpack.c.l.b16 %v518
        %v2140 = vunpack.c.h.b16 %v518
        %v2141 = vunpack.c.l.b16 %v519
        %v2142 = vunpack.c.h.b16 %v519
        %v2143 = vunpack.c.l.b16 %v520
        %v2144 = vunpack.c.h.b16 %v520
        %v2145 = vunpack.c.l.b16 %v521
        %v2146 = vunpack.c.h.b16 %v521
        %v2147 = vunpack.c.l.b16 %v522
        %v2148 = vunpack.c.h.b16 %v522
        %v2149 = vunpack.c.l.b16 %v523
        %v2150 = vunpack.c.h.b16 %v523
        %v2151 = vunpack.c.l.b16 %v524
        %v2152 = vunpack.c.h.b16 %v524
        %v2153 = vunpack.c.l.b16 %v525
        %v2154 = vunpack.c.h.b16 %v525
        %v2155 = vunpack.c.l.b16 %v526
        %v2156 = vunpack.c.h.b16 %v526
        %v2157 = vunpack.c.l.b16 %v527
        %v2158 = vunpack.c.h.b16 %v527
        %v2159 = vunpack.c.l.b16 %v528
        %v2160 = vunpack.c.h.b16 %v528
        %v2161 = vunpack.c.l.b16 %v529
        %v2162 = vunpack.c.h.b16 %v529
        %v2163 = vunpack.c.l.b16 %v530
        %v2164 = vunpack.c.h.b16 %v530
        %v2165 = vunpack.c.l.b16 %v531
        %v2166 = vunpack.c.h.b16 %v531
        %v2167 = vunpack.c.l.b16 %v532
        %v2168 = vunpack.c.h.b16 %v532
        %v2169 = vunpack.c.l.b16 %v533
        %v2170 = vunpack.c.h.b16 %v533
        %v2171 = vunpack.c.l.b16 %v534
        %v2172 = vunpack.c.h.b16 %v534
        %v2173 = vunpack.c.l.b16 %v535
        %v2174 = vunpack.c.h.b16 %v535
        %v2175 = vunpack.c.l.b16 %v536
        %v2176 = vunpack.c.h.b16 %v536
        %v2177 = vunpack.c.l.b16 %v537
        %v2178 = vunpack.c.h.b16 %v537
        %v2179 = vunpack.c.l.b16 %v538
        %v2180 = vunpack.c.h.b16 %v538
        %v2181 = vunpack.c.l.b16 %v539
        %v2182 = vunpack.c.h.b16 %v539
        %v2183 = vunpack.c.l.b16 %v540
        %v2184 = vunpack.c.h.b16 %v540
        %v2185 = vunpack.c.l.b16 %v541
        %v2186 = vunpack.c.h.b16 %v541
        %v2187 = vunpack.c.l.b16 %v542
        %v2188 = vunpack.c.h.b16 %v542
        %v2189 = vunpack.c.l.b16 %v543
        %v2190 = vunpack.c.h.b16 %v543
        %v2191 = vunpack.c.l.b16 %v544
        %v2192 = vunpack.c.h.b16 %v544
        %v2193 = vunpack.c.l.b16 %v545
        %v2194 = vunpack.c.h.b16 %v545
        %v2195 = vunpack.c.l.b16 %v546
        %v2196 = vunpack.c.h.b16 %v546
        %v2197 = vunpack.c.l.b16 %v547
        %v2198 = vunpack.c.h.b16 %v547
        %v2199 = vunpack.c.l.b16 %v548
        %v2200 = vunpack.c.h.b16 %v548
        %v2201 = vunpack.c.l.b16 %v549
        %v2202 = vunpack.c.h.b16 %v549
        %v2203 = vunpack.c.l.b16 %v550
        %v2204 = vunpack.c.h.b16 %v550
        %v2205 = vunpack.c.l.b16 %v551
        %v2206 = vunpack.c.h.b16 %v551
        %v2207 = vunpack.c.l.b16 %v552
        %v2208 = vunpack.c.h.b16 %v552
        %v2209 = vunpack.c.l.b16 %v553
        %v2210 = vunpack.c.h.b16 %v553
        %v2211 = vunpack.c.l.b16 %v554
        %v2212 = vunpack.c.h.b16 %v554
        %v2213 = vunpack.c.l.b16 %v555
        %v2214 = vunpack.c.h.b16 %v555
        %v2215 = vunpack.c.l.b16 %v556
        %v2216 = vunpack.c.h.b16 %v556
        %v2217 = vunpack.c.l.b16 %v557
        %v2218 = vunpack.c.h.b16 %v557
        %v2219 = vunpack.c.l.b16 %v558
        %v2220 = vunpack.c.h.b16 %v558
        %v2221 = vunpack.c.l.b16 %v559
        %v2222 = vunpack.c.h.b16 %v559
        %v2223 = vunpack.c.l.b16 %v560
        %v2224 = vunpack.c.h.b16 %v560
        %v2225 = vunpack.c.l.b16 %v561
        %v2226 = vunpack.c.h.b16 %v561
        %v2227 = vunpack.c.l.b16 %v562
        %v2228 = vunpack.c.h.b16 %v562
        %v2229 = vunpack.c.l.b16 %v563
        %v2230 = vunpack.c.h.b16 %v563
        %v2231 = vunpack.c.l.b16 %v564
        %v2232 = vunpack.c.h.b16 %v564
        %v2233 = vunpack.c.l.b16 %v565
        %v2234 = vunpack.c.h.b16 %v565
        %v2235 = vunpack.c.l.b16 %v566
        %v2236 = vunpack.c.h.b16 %v566
        %v2237 = vunpack.c.l.b16 %v567
        %v2238 = vunpack.c.h.b16 %v567
        %v2239 = vunpack.c.l.b16 %v568
        %v2240 = vunpack.c.h.b16 %v568
        %v2241 = vunpack.c.l.b16 %v569
        %v2242 = vunpack.c.h.b16 %v569
        %v2243 = vunpack.c.l.b16 %v570
        %v2244 = vunpack.c.h.b16 %v570
        %v2245 = vunpack.c.l.b16 %v571
        %v2246 = vunpack.c.h.b16 %v571
        %v2247 = vunpack.c.l.b16 %v572
        %v2248 = vunpack.c.h.b16 %v572
        %v2249 = vunpack.c.l.b16 %v573
        %v2250 = vunpack.c.h.b16 %v573
        %v2251 = vunpack.c.l.b16 %v574
        %v2252 = vunpack.c.h.b16 %v574
        %v2253 = vunpack.c.l.b16 %v575
        %v2254 = vunpack.c.h.b16 %v575
        %v2255 = vunpack.c.l.b16 %v576
        %v2256 = vunpack.c.h.b16 %v576
        %v2257 = vunpack.c.l.b16 %v577
        %v2258 = vunpack.c.h.b16 %v577
        %v2259 = vunpack.c.l.b16 %v578
        %v2260 = vunpack.c.h.b16 %v578
        %v2261 = vunpack.c.l.b16 %v579
        %v2262 = vunpack.c.h.b16 %v579
        %v2263 = vunpack.c.l.b16 %v580
        %v2264 = vunpack.c.h.b16 %v580
        %v2265 = vunpack.c.l.b16 %v581
        %v2266 = vunpack.c.h.b16 %v581
        %v2267 = vunpack.c.l.b16 %v582
        %v2268 = vunpack.c.h.b16 %v582
        %v2269 = vunpack.c.l.b16 %v583
        %v2270 = vunpack.c.h.b16 %v583
        %v2271 = vunpack.c.l.b16 %v584
        %v2272 = vunpack.c.h.b16 %v584
        %v2273 = vunpack.c.l.b16 %v585
        %v2274 = vunpack.c.h.b16 %v585
        %v2275 = vunpack.c.l.b16 %v586
        %v2276 = vunpack.c.h.b16 %v586
        %v2277 = vunpack.c.l.b16 %v587
        %v2278 = vunpack.c.h.b16 %v587
        %v2279 = vunpack.c.l.b16 %v588
        %v2280 = vunpack.c.h.b16 %v588
        %v2281 = vunpack.c.l.b16 %v589
        %v2282 = vunpack.c.h.b16 %v589
        %v2283 = vunpack.c.l.b16 %v590
        %v2284 = vunpack.c.h.b16 %v590
        %v2285 = vunpack.c.l.b16 %v591
        %v2286 = vunpack.c.h.b16 %v591
        %v2287 = vunpack.c.l.b16 %v592
        %v2288 = vunpack.c.h.b16 %v592
        %v2289 = vunpack.c.l.b16 %v593
        %v2290 = vunpack.c.h.b16 %v593
        %v2291 = vunpack.c.l.b16 %v594
        %v2292 = vunpack.c.h.b16 %v594
        %v2293 = vunpack.c.l.b16 %v595
        %v2294 = vunpack.c.h.b16 %v595
        %v2295 = vunpack.c.l.b16 %v596
        %v2296 = vunpack.c.h.b16 %v596
        %v2297 = vunpack.c.l.b16 %v597
        %v2298 = vunpack.c.h.b16 %v597
        %v2299 = vunpack.c.l.b16 %v598
        %v2300 = vunpack.c.h.b16 %v598
        %v2301 = vunpack.c.l.b16 %v599
        %v2302 = vunpack.c.h.b16 %v599
        %v2303 = vunpack.c.l.b16 %v600
        %v2304 = vunpack.c.h.b16 %v600
        %v2305 = vunpack.c.l.b16 %v601
        %v2306 = vunpack.c.h.b16 %v601
        %v2307 = vunpack.c.l.b16 %v602
        %v2308 = vunpack.c.h.b16 %v602
        %v2309 = vunpack.c.l.b16 %v603
        %v2310 = vunpack.c.h.b16 %v603
        %v2311 = vunpack.c.l.b16 %v604
        %v2312 = vunpack.c.h.b16 %v604
        %v2313 = vunpack.c.l.b16 %v605
        %v2314 = vunpack.c.h.b16 %v605
        %v2315 = vunpack.c.l.b16 %v606
        %v2316 = vunpack.c.h.b16 %v606
        %v2317 = vunpack.c.l.b16 %v607
        %v2318 = vunpack.c.h.b16 %v607
        %v2319 = vunpack.c.l.b16 %v608
        %v2320 = vunpack.c.h.b16 %v608
        %v2321 = vunpack.c.l.b16 %v609
        %v2322 = vunpack.c.h.b16 %v609
        %v2323 = vunpack.c.l.b16 %v610
        %v2324 = vunpack.c.h.b16 %v610
        %v2325 = vunpack.c.l.b16 %v611
        %v2326 = vunpack.c.h.b16 %v611
        %v2327 = vunpack.c.l.b16 %v612
        %v2328 = vunpack.c.h.b16 %v612
        %v2329 = vunpack.c.l.b16 %v613
        %v2330 = vunpack.c.h.b16 %v613
        %v2331 = vunpack.c.l.b16 %v614
        %v2332 = vunpack.c.h.b16 %v614
        %v2333 = vunpack.c.l.b16 %v615
        %v2334 = vunpack.c.h.b16 %v615
        %v2335 = vunpack.c.l.b16 %v616
        %v2336 = vunpack.c.h.b16 %v616
        %v2337 = vunpack.c.l.b16 %v617
        %v2338 = vunpack.c.h.b16 %v617
        %v2339 = vunpack.c.l.b16 %v618
        %v2340 = vunpack.c.h.b16 %v618
        %v2341 = vunpack.c.l.b16 %v619
        %v2342 = vunpack.c.h.b16 %v619
        %v2343 = vunpack.c.l.b16 %v620
        %v2344 = vunpack.c.h.b16 %v620
        %v2345 = vunpack.c.l.b16 %v621
        %v2346 = vunpack.c.h.b16 %v621
        %v2347 = vunpack.c.l.b16 %v622
        %v2348 = vunpack.c.h.b16 %v622
        %v2349 = vunpack.c.l.b16 %v623
        %v2350 = vunpack.c.h.b16 %v623
        %v2351 = vunpack.c.l.b16 %v624
        %v2352 = vunpack.c.h.b16 %v624
        %v2353 = vunpack.c.l.b16 %v625
        %v2354 = vunpack.c.h.b16 %v625
        %v2355 = vunpack.c.l.b16 %v626
        %v2356 = vunpack.c.h.b16 %v626
        %v2357 = vunpack.c.l.b16 %v627
        %v2358 = vunpack.c.h.b16 %v627
        %v2359 = vunpack.c.l.b16 %v628
        %v2360 = vunpack.c.h.b16 %v628
        %v2361 = vunpack.c.l.b16 %v629
        %v2362 = vunpack.c.h.b16 %v629
        %v2363 = vunpack.c.l.b16 %v630
        %v2364 = vunpack.c.h.b16 %v630
        %v2365 = vunpack.c.l.b16 %v631
        %v2366 = vunpack.c.h.b16 %v631
        %v2367 = vunpack.c.l.b16 %v632
        %v2368 = vunpack.c.h.b16 %v632
        %v2369 = vunpack.c.l.b16 %v633
        %v2370 = vunpack.c.h.b16 %v633
        %v2371 = vunpack.c.l.b16 %v634
        %v2372 = vunpack.c.h.b16 %v634
        %v2373 = vunpack.c.l.b16 %v635
        %v2374 = vunpack.c.h.b16 %v635
        %v2375 = vunpack.c.l.b16 %v636
        %v2376 = vunpack.c.h.b16 %v636
        %v2377 = vunpack.c.l.b16 %v637
        %v2378 = vunpack.c.h.b16 %v637
        %v2379 = vunpack.c.l.b16 %v638
        %v2380 = vunpack.c.h.b16 %v638
        %v2381 = vunpack.c.l.b16 %v639
        %v2382 = vunpack.c.h.b16 %v639
        %v2383 = vunpack.c.l.b16 %v640
        %v2384 = vunpack.c.h.b16 %v640
        %v2385 = vunpack.c.l.b16 %v641
        %v2386 = vunpack.c.h.b16 %v641
        %v2387 = vunpack.c.l.b16 %v642
        %v2388 = vunpack.c.h.b16 %v642
        %v2389 = vunpack.c.l.b16 %v643
        %v2390 = vunpack.c.h.b16 %v643
        %v2391 = vunpack.c.l.b16 %v644
        %v2392 = vunpack.c.h.b16 %v644
        %v2393 = vunpack.c.l.b16 %v645
        %v2394 = vunpack.c.h.b16 %v645
        %v2395 = vunpack.c.l.b16 %v646
        %v2396 = vunpack.c.h.b16 %v646
        %v2397 = vunpack.c.l.b16 %v647
        %v2398 = vunpack.c.h.b16 %v647
        %v2399 = vunpack.c.l.b16 %v648
        %v2400 = vunpack.c.h.b16 %v648
        %v2401 = vunpack.c.l.b16 %v649
        %v2402 = vunpack.c.h.b16 %v649
        %v2403 = vunpack.c.l.b16 %v650
        %v2404 = vunpack.c.h.b16 %v650
        %v2405 = vunpack.c.l.b16 %v651
        %v2406 = vunpack.c.h.b16 %v651
        %v2407 = vunpack.c.l.b16 %v652
        %v2408 = vunpack.c.h.b16 %v652
        %v2409 = vunpack.c.l.b16 %v653
        %v2410 = vunpack.c.h.b16 %v653
        %v2411 = vunpack.c.l.b16 %v654
        %v2412 = vunpack.c.h.b16 %v654
        %v2413 = vunpack.c.l.b16 %v655
        %v2414 = vunpack.c.h.b16 %v655
        %v2415 = vunpack.c.l.b16 %v656
        %v2416 = vunpack.c.h.b16 %v656
        %v2417 = vunpack.c.l.b16 %v657
        %v2418 = vunpack.c.h.b16 %v657
        %v2419 = vunpack.c.l.b16 %v658
        %v2420 = vunpack.c.h.b16 %v658
        %v2421 = vunpack.c.l.b16 %v659
        %v2422 = vunpack.c.h.b16 %v659
        %v2423 = vunpack.c.l.b16 %v660
        %v2424 = vunpack.c.h.b16 %v660
        %v2425 = vunpack.c.l.b16 %v661
        %v2426 = vunpack.c.h.b16 %v661
        %v2427 = vunpack.c.l.b16 %v662
        %v2428 = vunpack.c.h.b16 %v662
        %v2429 = vunpack.c.l.b16 %v663
        %v2430 = vunpack.c.h.b16 %v663
        %v2431 = vunpack.c.l.b16 %v664
        %v2432 = vunpack.c.h.b16 %v664
        %v2433 = vunpack.c.l.b16 %v665
        %v2434 = vunpack.c.h.b16 %v665
        %v2435 = vunpack.c.l.b16 %v666
        %v2436 = vunpack.c.h.b16 %v666
        %v2437 = vunpack.c.l.b16 %v667
        %v2438 = vunpack.c.h.b16 %v667
        %v2439 = vunpack.c.l.b16 %v668
        %v2440 = vunpack.c.h.b16 %v668
        %v2441 = vunpack.c.l.b16 %v669
        %v2442 = vunpack.c.h.b16 %v669
        %v2443 = vunpack.c.l.b16 %v670
        %v2444 = vunpack.c.h.b16 %v670
        %v2445 = vunpack.c.l.b16 %v671
        %v2446 = vunpack.c.h.b16 %v671
        %v2447 = vunpack.c.l.b16 %v672
        %v2448 = vunpack.c.h.b16 %v672
        %v2449 = vunpack.c.l.b16 %v673
        %v2450 = vunpack.c.h.b16 %v673
        %v2451 = vunpack.c.l.b16 %v674
        %v2452 = vunpack.c.h.b16 %v674
        %v2453 = vunpack.c.l.b16 %v675
        %v2454 = vunpack.c.h.b16 %v675
        %v2455 = vunpack.c.l.b16 %v676
        %v2456 = vunpack.c.h.b16 %v676
        %v2457 = vunpack.c.l.b16 %v677
        %v2458 = vunpack.c.h.b16 %v677
        %v2459 = vunpack.c.l.b16 %v678
        %v2460 = vunpack.c.h.b16 %v678
        %v2461 = vunpack.c.l.b16 %v679
        %v2462 = vunpack.c.h.b16 %v679
        %v2463 = vunpack.c.l.b16 %v680
        %v2464 = vunpack.c.h.b16 %v680
        %v2465 = vunpack.c.l.b16 %v681
        %v2466 = vunpack.c.h.b16 %v681
        %v2467 = vunpack.c.l.b16 %v682
        %v2468 = vunpack.c.h.b16 %v682
        %v2469 = vunpack.c.l.b16 %v683
        %v2470 = vunpack.c.h.b16 %v683
        %v2471 = vunpack.c.l.b16 %v684
        %v2472 = vunpack.c.h.b16 %v684
        %v2473 = vunpack.c.l.b16 %v685
        %v2474 = vunpack.c.h.b16 %v685
        %v2475 = vunpack.c.l.b16 %v686
        %v2476 = vunpack.c.h.b16 %v686
        %v2477 = vunpack.c.l.b16 %v687
        %v2478 = vunpack.c.h.b16 %v687
        %v2479 = vunpack.c.l.b16 %v688
        %v2480 = vunpack.c.h.b16 %v688
        %v2481 = vunpack.c.l.b16 %v689
        %v2482 = vunpack.c.h.b16 %v689
        %v2483 = vunpack.c.l.b16 %v690
        %v2484 = vunpack.c.h.b16 %v690
        %v2485 = vunpack.c.l.b16 %v691
        %v2486 = vunpack.c.h.b16 %v691
        %v2487 = vunpack.c.l.b16 %v692
        %v2488 = vunpack.c.h.b16 %v692
        %v2489 = vunpack.c.l.b16 %v693
        %v2490 = vunpack.c.h.b16 %v693
        %v2491 = vunpack.c.l.b16 %v694
        %v2492 = vunpack.c.h.b16 %v694
        %v2493 = vunpack.c.l.b16 %v695
        %v2494 = vunpack.c.h.b16 %v695
        %v2495 = vunpack.c.l.b16 %v696
        %v2496 = vunpack.c.h.b16 %v696
        %v2497 = vunpack.c.l.b16 %v697
        %v2498 = vunpack.c.h.b16 %v697
        %v2499 = vunpack.c.l.b16 %v698
        %v2500 = vunpack.c.h.b16 %v698
        %v2501 = vunpack.c.l.b16 %v699
        %v2502 = vunpack.c.h.b16 %v699
        %v2503 = vunpack.c.l.b16 %v700
        %v2504 = vunpack.c.h.b16 %v700
        %v2505 = vunpack.c.l.b16 %v701
        %v2506 = vunpack.c.h.b16 %v701
        %v2507 = vunpack.c.l.b16 %v702
        %v2508 = vunpack.c.h.b16 %v702
        %v2509 = vunpack.c.l.b16 %v703
        %v2510 = vunpack.c.h.b16 %v703
        %v2511 = vunpack.c.l.b16 %v704
        %v2512 = vunpack.c.h.b16 %v704
        %v2513 = vunpack.c.l.b16 %v705
        %v2514 = vunpack.c.h.b16 %v705
        %v2515 = vunpack.c.l.b16 %v706
        %v2516 = vunpack.c.h.b16 %v706
        %v2517 = vunpack.c.l.b16 %v707
        %v2518 = vunpack.c.h.b16 %v707
        %v2519 = vunpack.c.l.b16 %v708
        %v2520 = vunpack.c.h.b16 %v708
        %v2521 = vunpack.c.l.b16 %v709
        %v2522 = vunpack.c.h.b16 %v709
        %v2523 = vunpack.c.l.b16 %v710
        %v2524 = vunpack.c.h.b16 %v710
        %v2525 = vunpack.c.l.b16 %v711
        %v2526 = vunpack.c.h.b16 %v711
        %v2527 = vunpack.c.l.b16 %v712
        %v2528 = vunpack.c.h.b16 %v712
        %v2529 = vunpack.c.l.b16 %v713
        %v2530 = vunpack.c.h.b16 %v713
        %v2531 = vunpack.c.l.b16 %v714
        %v2532 = vunpack.c.h.b16 %v714
        %v2533 = vunpack.c.l.b16 %v715
        %v2534 = vunpack.c.h.b16 %v715
        %v2535 = vunpack.c.l.b16 %v716
        %v2536 = vunpack.c.h.b16 %v716
        %v2537 = vunpack.c.l.b16 %v717
        %v2538 = vunpack.c.h.b16 %v717
        %v2539 = vunpack.c.l.b16 %v718
        %v2540 = vunpack.c.h.b16 %v718
        %v2541 = vunpack.c.l.b16 %v719
        %v2542 = vunpack.c.h.b16 %v719
        %v2543 = vunpack.c.l.b16 %v720
        %v2544 = vunpack.c.h.b16 %v720
        %v2545 = vunpack.c.l.b16 %v721
        %v2546 = vunpack.c.h.b16 %v721
        %v2547 = vunpack.c.l.b16 %v722
        %v2548 = vunpack.c.h.b16 %v722
        %v2549 = vunpack.c.l.b16 %v723
        %v2550 = vunpack.c.h.b16 %v723
        %v2551 = vunpack.c.l.b16 %v724
        %v2552 = vunpack.c.h.b16 %v724
        %v2553 = vunpack.c.l.b16 %v725
        %v2554 = vunpack.c.h.b16 %v725
        %v2555 = vunpack.c.l.b16 %v726
        %v2556 = vunpack.c.h.b16 %v726
        %v2557 = vunpack.c.l.b16 %v727
        %v2558 = vunpack.c.h.b16 %v727
        %v2559 = vunpack.c.l.b16 %v728
        %v2560 = vunpack.c.h.b16 %v728
        %v2561 = vunpack.c.l.b16 %v729
        %v2562 = vunpack.c.h.b16 %v729
        %v2563 = vunpack.c.l.b16 %v730
        %v2564 = vunpack.c.h.b16 %v730
        %v2565 = vunpack.c.l.b16 %v731
        %v2566 = vunpack.c.h.b16 %v731
        %v2567 = vunpack.c.l.b16 %v732
        %v2568 = vunpack.c.h.b16 %v732
        %v2569 = vunpack.c.l.b16 %v733
        %v2570 = vunpack.c.h.b16 %v733
        %v2571 = vunpack.c.l.b16 %v734
        %v2572 = vunpack.c.h.b16 %v734
        %v2573 = vunpack.c.l.b16 %v735
        %v2574 = vunpack.c.h.b16 %v735
        %v2575 = vunpack.c.l.b16 %v736
        %v2576 = vunpack.c.h.b16 %v736
        %v2577 = vunpack.c.l.b16 %v737
        %v2578 = vunpack.c.h.b16 %v737
        %v2579 = vunpack.c.l.b16 %v738
        %v2580 = vunpack.c.h.b16 %v738
        %v2581 = vunpack.c.l.b16 %v739
        %v2582 = vunpack.c.h.b16 %v739
        %v2583 = vunpack.c.l.b16 %v740
        %v2584 = vunpack.c.h.b16 %v740
        %v2585 = vunpack.c.l.b16 %v741
        %v2586 = vunpack.c.h.b16 %v741
        %v2587 = vunpack.c.l.b16 %v742
        %v2588 = vunpack.c.h.b16 %v742
        %v2589 = vunpack.c.l.b16 %v743
        %v2590 = vunpack.c.h.b16 %v743
        %v2591 = vunpack.c.l.b16 %v744
        %v2592 = vunpack.c.h.b16 %v744
        %v2593 = vunpack.c.l.b16 %v745
        %v2594 = vunpack.c.h.b16 %v745
        %v2595 = vunpack.c.l.b16 %v746
        %v2596 = vunpack.c.h.b16 %v746
        %v2597 = vunpack.c.l.b16 %v747
        %v2598 = vunpack.c.h.b16 %v747
        %v2599 = vunpack.c.l.b16 %v748
        %v2600 = vunpack.c.h.b16 %v748
        %v2601 = vunpack.c.l.b16 %v749
        %v2602 = vunpack.c.h.b16 %v749
        %v2603 = vunpack.c.l.b16 %v750
        %v2604 = vunpack.c.h.b16 %v750
        %v2605 = vunpack.c.l.b16 %v751
        %v2606 = vunpack.c.h.b16 %v751
        %v2607 = vunpack.c.l.b16 %v752
        %v2608 = vunpack.c.h.b16 %v752
        %v2609 = vunpack.c.l.b16 %v753
        %v2610 = vunpack.c.h.b16 %v753
        %v2611 = vunpack.c.l.b16 %v754
        %v2612 = vunpack.c.h.b16 %v754
        %v2613 = vunpack.c.l.b16 %v755
        %v2614 = vunpack.c.h.b16 %v755
        %v2615 = vunpack.c.l.b16 %v756
        %v2616 = vunpack.c.h.b16 %v756
        %v2617 = vunpack.c.l.b16 %v757
        %v2618 = vunpack.c.h.b16 %v757
        %v2619 = vunpack.c.l.b16 %v758
        %v2620 = vunpack.c.h.b16 %v758
        %v2621 = vunpack.c.l.b16 %v759
        %v2622 = vunpack.c.h.b16 %v759
        %v2623 = vunpack.c.l.b16 %v760
        %v2624 = vunpack.c.h.b16 %v760
        %v2625 = vunpack.c.l.b16 %v761
        %v2626 = vunpack.c.h.b16 %v761
        %v2627 = vunpack.c.l.b16 %v762
        %v2628 = vunpack.c.h.b16 %v762
        %v2629 = vunpack.c.l.b16 %v763
        %v2630 = vunpack.c.h.b16 %v763
        %v2631 = vunpack.c.l.b16 %v764
        %v2632 = vunpack.c.h.b16 %v764
        %v2633 = vunpack.c.l.b16 %v765
        %v2634 = vunpack.c.h.b16 %v765
        %v2635 = vunpack.c.l.b16 %v766
        %v2636 = vunpack.c.h.b16 %v766
        %v2637 = vunpack.c.l.b16 %v767
        %v2638 = vunpack.c.h.b16 %v767
        %v2639 = vunpack.c.l.b16 %v768
        %v2640 = vunpack.c.h.b16 %v768
        %v2641 = vunpack.c.l.b16 %v769
        %v2642 = vunpack.c.h.b16 %v769
        %v2643 = vunpack.c.l.b16 %v770
        %v2644 = vunpack.c.h.b16 %v770
        %v2645 = vunpack.c.l.b16 %v771
        %v2646 = vunpack.c.h.b16 %v771
        %v2647 = vunpack.c.l.b16 %v772
        %v2648 = vunpack.c.h.b16 %v772
        %v2649 = vunpack.c.l.b16 %v773
        %v2650 = vunpack.c.h.b16 %v773
        %v2651 = vunpack.c.l.b16 %v774
        %v2652 = vunpack.c.h.b16 %v774
        %v2653 = vunpack.c.l.b16 %v775
        %v2654 = vunpack.c.h.b16 %v775
        %v2655 = vunpack.c.l.b16 %v776
        %v2656 = vunpack.c.h.b16 %v776
        %v2657 = vunpack.c.l.b16 %v777
        %v2658 = vunpack.c.h.b16 %v777
        %v2659 = vunpack.c.l.b16 %v778
        %v2660 = vunpack.c.h.b16 %v778
        %v2661 = vunpack.c.l.b16 %v779
        %v2662 = vunpack.c.h.b16 %v779
        %v2663 = vunpack.c.l.b16 %v780
        %v2664 = vunpack.c.h.b16 %v780
        %v2665 = vunpack.c.l.b16 %v781
        %v2666 = vunpack.c.h.b16 %v781
        %v2667 = vunpack.c.l.b16 %v782
        %v2668 = vunpack.c.h.b16 %v782
        %v2669 = vunpack.c.l.b16 %v783
        %v2670 = vunpack.c.h.b16 %v783
        %v2671 = vunpack.c.l.b16 %v784
        %v2672 = vunpack.c.h.b16 %v784
        %v2673 = vunpack.c.l.b16 %v785
        %v2674 = vunpack.c.h.b16 %v785
        %v2675 = vunpack.c.l.b16 %v786
        %v2676 = vunpack.c.h.b16 %v786
        %v2677 = vunpack.c.l.b16 %v787
        %v2678 = vunpack.c.h.b16 %v787
        %v2679 = vunpack.c.l.b16 %v788
        %v2680 = vunpack.c.h.b16 %v788
        %v2681 = vunpack.c.l.b16 %v789
        %v2682 = vunpack.c.h.b16 %v789
        %v2683 = vunpack.c.l.b16 %v790
        %v2684 = vunpack.c.h.b16 %v790
        %v2685 = vunpack.c.l.b16 %v791
        %v2686 = vunpack.c.h.b16 %v791
        %v2687 = vunpack.c.l.b16 %v792
        %v2688 = vunpack.c.h.b16 %v792
        %v2689 = vunpack.c.l.b16 %v793
        %v2690 = vunpack.c.h.b16 %v793
        %v2691 = vunpack.c.l.b16 %v794
        %v2692 = vunpack.c.h.b16 %v794
        %v2693 = vunpack.c.l.b16 %v795
        %v2694 = vunpack.c.h.b16 %v795
        %v2695 = vunpack.c.l.b16 %v796
        %v2696 = vunpack.c.h.b16 %v796
        %v2697 = vunpack.c.l.b16 %v797
        %v2698 = vunpack.c.h.b16 %v797
        %v2699 = vunpack.c.l.b16 %v798
        %v2700 = vunpack.c.h.b16 %v798
        %v2701 = vunpack.c.l.b16 %v799
        %v2702 = vunpack.c.h.b16 %v799
        %v2703 = vunpack.c.l.b16 %v800
        %v2704 = vunpack.c.h.b16 %v800
        %v2705 = vunpack.c.l.b16 %v801
        %v2706 = vunpack.c.h.b16 %v801
        %v2707 = vunpack.c.l.b16 %v802
        %v2708 = vunpack.c.h.b16 %v802
        %v2709 = vunpack.c.l.b16 %v803
        %v2710 = vunpack.c.h.b16 %v803
        %v2711 = vunpack.c.l.b16 %v804
        %v2712 = vunpack.c.h.b16 %v804
        %v2713 = vunpack.c.l.b16 %v805
        %v2714 = vunpack.c.h.b16 %v805
        %v2715 = vunpack.c.l.b16 %v806
        %v2716 = vunpack.c.h.b16 %v806
        %v2717 = vunpack.c.l.b16 %v807
        %v2718 = vunpack.c.h.b16 %v807
        %v2719 = vunpack.c.l.b16 %v808
        %v2720 = vunpack.c.h.b16 %v808
        %v2721 = vunpack.c.l.b16 %v809
        %v2722 = vunpack.c.h.b16 %v809
        %v2723 = vunpack.c.l.b16 %v810
        %v2724 = vunpack.c.h.b16 %v810
        %v2725 = vunpack.c.l.b16 %v811
        %v2726 = vunpack.c.h.b16 %v811
        %v2727 = vunpack.c.l.b16 %v812
        %v2728 = vunpack.c.h.b16 %v812
        %v2729 = vunpack.c.l.b16 %v813
        %v2730 = vunpack.c.h.b16 %v813
        %v2731 = vunpack.c.l.b16 %v814
        %v2732 = vunpack.c.h.b16 %v814
        %v2733 = vunpack.c.l.b16 %v815
        %v2734 = vunpack.c.h.b16 %v815
        %v2735 = vunpack.c.l.b16 %v816
        %v2736 = vunpack.c.h.b16 %v816
        %v2737 = vunpack.c.l.b16 %v817
        %v2738 = vunpack.c.h.b16 %v817
        %v2739 = vunpack.c.l.b16 %v818
        %v2740 = vunpack.c.h.b16 %v818
        %v2741 = vunpack.c.l.b16 %v819
        %v2742 = vunpack.c.h.b16 %v819
        %v2743 = vunpack.c.l.b16 %v820
        %v2744 = vunpack.c.h.b16 %v820
        %v2745 = vpack.c.b16 %v2025, %v1977
        %v2746 = vpack.c.b16 %v2026, %v1978
        %v2747 = vpack.c.b16 %v2027, %v1979
        %v2748 = vpack.c.b16 %v2028, %v1980
        %v2749 = vpack.c.b16 %v2029, %v1981
        %v2750 = vpack.c.b16 %v2030, %v1982
        %v2751 = vpack.c.b16 %v2031, %v1983
        %v2752 = vpack.c.b16 %v2032, %v1984
        %v2753 = vpack.c.b16 %v2033, %v1985
        %v2754 = vpack.c.b16 %v2034, %v1986
        %v2755 = vpack.c.b16 %v2035, %v1987
        %v2756 = vpack.c.b16 %v2036, %v1988
        %v2757 = vpack.c.b16 %v2037, %v1989
        %v2758 = vpack.c.b16 %v2038, %v1990
        %v2759 = vpack.c.b16 %v2039, %v1991
        %v2760 = vpack.c.b16 %v2040, %v1992
        %v2761 = vpack.c.b16 %v2041, %v1993
        %v2762 = vpack.c.b16 %v2042, %v1994
        %v2763 = vpack.c.b16 %v2043, %v1995
        %v2764 = vpack.c.b16 %v2044, %v1996
        %v2765 = vpack.c.b16 %v2045, %v1997
        %v2766 = vpack.c.b16 %v2046, %v1998
        %v2767 = vpack.c.b16 %v2047, %v1999
        %v2768 = vpack.c.b16 %v2048, %v2000
        %v2769 = vpack.c.b16 %v2049, %v2001
        %v2770 = vpack.c.b16 %v2050, %v2002
        %v2771 = vpack.c.b16 %v2051, %v2003
        %v2772 = vpack.c.b16 %v2052, %v2004
        %v2773 = vpack.c.b16 %v2053, %v2005
        %v2774 = vpack.c.b16 %v2054, %v2006
        %v2775 = vpack.c.b16 %v2055, %v2007
        %v2776 = vpack.c.b16 %v2056, %v2008
        %v2777 = vpack.c.b16 %v2057, %v2009
        %v2778 = vpack.c.b16 %v2058, %v2010
        %v2779 = vpack.c.b16 %v2059, %v2011
        %v2780 = vpack.c.b16 %v2060, %v2012
        %v2781 = vpack.c.b16 %v2061, %v2013
        %v2782 = vpack.c.b16 %v2062, %v2014
        %v2783 = vpack.c.b16 %v2063, %v2015
        %v2784 = vpack.c.b16 %v2064, %v2016
        %v2785 = vpack.c.b16 %v2065, %v2017
        %v2786 = vpack.c.b16 %v2066, %v2018
        %v2787 = vpack.c.b16 %v2067, %v2019
        %v2788 = vpack.c.b16 %v2068, %v2020
        %v2789 = vpack.c.b16 %v2069, %v2021
        %v2790 = vpack.c.b16 %v2070, %v2022
        %v2791 = vpack.c.b16 %v2071, %v2023
        %v2792 = vpack.c.b16 %v2072, %v2024
        %v2793 = vpack.c.b16 %v2121, %v2073
        %v2794 = vpack.c.b16 %v2122, %v2074
        %v2795 = vpack.c.b16 %v2123, %v2075
        %v2796 = vpack.c.b16 %v2124, %v2076
        %v2797 = vpack.c.b16 %v2125, %v2077
        %v2798 = vpack.c.b16 %v2126, %v2078
        %v2799 = vpack.c.b16 %v2127, %v2079
        %v2800 = vpack.c.b16 %v2128, %v2080
        %v2801 = vpack.c.b16 %v2129, %v2081
        %v2802 = vpack.c.b16 %v2130, %v2082
        %v2803 = vpack.c.b16 %v2131, %v2083
        %v2804 = vpack.c.b16 %v2132, %v2084
        %v2805 = vpack.c.b16 %v2133, %v2085
        %v2806 = vpack.c.b16 %v2134, %v2086
        %v2807 = vpack.c.b16 %v2135, %v2087
        %v2808 = vpack.c.b16 %v2136, %v2088
        %v2809 = vpack.c.b16 %v2137, %v2089
        %v2810 = vpack.c.b16 %v2138, %v2090
        %v2811 = vpack.c.b16 %v2139, %v2091
        %v2812 = vpack.c.b16 %v2140, %v2092
        %v2813 = vpack.c.b16 %v2141, %v2093
        %v2814 = vpack.c.b16 %v2142, %v2094
        %v2815 = vpack.c.b16 %v2143, %v2095
        %v2816 = vpack.c.b16 %v2144, %v2096
        %v2817 = vpack.c.b16 %v2145, %v2097
        %v2818 = vpack.c.b16 %v2146, %v2098
        %v2819 = vpack.c.b16 %v2147, %v2099
        %v2820 = vpack.c.b16 %v2148, %v2100
        %v2821 = vpack.c.b16 %v2149, %v2101
        %v2822 = vpack.c.b16 %v2150, %v2102
        %v2823 = vpack.c.b16 %v2151, %v2103
        %v2824 = vpack.c.b16 %v2152, %v2104
        %v2825 = vpack.c.b16 %v2153, %v2105
        %v2826 = vpack.c.b16 %v2154, %v2106
        %v2827 = vpack.c.b16 %v2155, %v2107
        %v2828 = vpack.c.b16 %v2156, %v2108
        %v2829 = vpack.c.b16 %v2157, %v2109
        %v2830 = vpack.c.b16 %v2158, %v2110
        %v2831 = vpack.c.b16 %v2159, %v2111
        %v2832 = vpack.c.b16 %v2160, %v2112
        %v2833 = vpack.c.b16 %v2161, %v2113
        %v2834 = vpack.c.b16 %v2162, %v2114
        %v2835 = vpack.c.b16 %v2163, %v2115
        %v2836 = vpack.c.b16 %v2164, %v2116
        %v2837 = vpack.c.b16 %v2165, %v2117
        %v2838 = vpack.c.b16 %v2166, %v2118
        %v2839 = vpack.c.b16 %v2167, %v2119
        %v2840 = vpack.c.b16 %v2168, %v2120
        %v2841 = vpack.c.b16 %v2217, %v2169
        %v2842 = vpack.c.b16 %v2218, %v2170
        %v2843 = vpack.c.b16 %v2219, %v2171
        %v2844 = vpack.c.b16 %v2220, %v2172
        %v2845 = vpack.c.b16 %v2221, %v2173
        %v2846 = vpack.c.b16 %v2222, %v2174
        %v2847 = vpack.c.b16 %v2223, %v2175
        %v2848 = vpack.c.b16 %v2224, %v2176
        %v2849 = vpack.c.b16 %v2225, %v2177
        %v2850 = vpack.c.b16 %v2226, %v2178
        %v2851 = vpack.c.b16 %v2227, %v2179
        %v2852 = vpack.c.b16 %v2228, %v2180
        %v2853 = vpack.c.b16 %v2229, %v2181
        %v2854 = vpack.c.b16 %v2230, %v2182
        %v2855 = vpack.c.b16 %v2231, %v2183
        %v2856 = vpack.c.b16 %v2232, %v2184
        %v2857 = vpack.c.b16 %v2233, %v2185
        %v2858 = vpack.c.b16 %v2234, %v2186
        %v2859 = vpack.c.b16 %v2235, %v2187
        %v2860 = vpack.c.b16 %v2236, %v2188
        %v2861 = vpack.c.b16 %v2237, %v2189
        %v2862 = vpack.c.b16 %v2238, %v2190
        %v2863 = vpack.c.b16 %v2239, %v2191
        %v2864 = vpack.c.b16 %v2240, %v2192
        %v2865 = vpack.c.b16 %v2241, %v2193
        %v2866 = vpack.c.b16 %v2242, %v2194
        %v2867 = vpack.c.b16 %v2243, %v2195
        %v2868 = vpack.c.b16 %v2244, %v2196
        %v2869 = vpack.c.b16 %v2245, %v2197
        %v2870 = vpack.c.b16 %v2246, %v2198
        %v2871 = vpack.c.b16 %v2247, %v2199
        %v2872 = vpack.c.b16 %v2248, %v2200
        %v2873 = vpack.c.b16 %v2249, %v2201
        %v2874 = vpack.c.b16 %v2250, %v2202
        %v2875 = vpack.c.b16 %v2251, %v2203
        %v2876 = vpack.c.b16 %v2252, %v2204
        %v2877 = vpack.c.b16 %v2253, %v2205
        %v2878 = vpack.c.b16 %v2254, %v2206
        %v2879 = vpack.c.b16 %v2255, %v2207
        %v2880 = vpack.c.b16 %v2256, %v2208
        %v2881 = vpack.c.b16 %v2257, %v2209
        %v2882 = vpack.c.b16 %v2258, %v2210
        %v2883 = vpack.c.b16 %v2259, %v2211
        %v2884 = vpack.c.b16 %v2260, %v2212
        %v2885 = vpack.c.b16 %v2261, %v2213
        %v2886 = vpack.c.b16 %v2262, %v2214
        %v2887 = vpack.c.b16 %v2263, %v2215
        %v2888 = vpack.c.b16 %v2264, %v2216
        %v2889 = vpack.c.b16 %v2313, %v2265
        %v2890 = vpack.c.b16 %v2314, %v2266
        %v2891 = vpack.c.b16 %v2315, %v2267
        %v2892 = vpack.c.b16 %v2316, %v2268
        %v2893 = vpack.c.b16 %v2317, %v2269
        %v2894 = vpack.c.b16 %v2318, %v2270
        %v2895 = vpack.c.b16 %v2319, %v2271
        %v2896 = vpack.c.b16 %v2320, %v2272
        %v2897 = vpack.c.b16 %v2321, %v2273
        %v2898 = vpack.c.b16 %v2322, %v2274
        %v2899 = vpack.c.b16 %v2323, %v2275
        %v2900 = vpack.c.b16 %v2324, %v2276
        %v2901 = vpack.c.b16 %v2325, %v2277
        %v2902 = vpack.c.b16 %v2326, %v2278
        %v2903 = vpack.c.b16 %v2327, %v2279
        %v2904 = vpack.c.b16 %v2328, %v2280
        %v2905 = vpack.c.b16 %v2329, %v2281
        %v2906 = vpack.c.b16 %v2330, %v2282
        %v2907 = vpack.c.b16 %v2331, %v2283
        %v2908 = vpack.c.b16 %v2332, %v2284
        %v2909 = vpack.c.b16 %v2333, %v2285
        %v2910 = vpack.c.b16 %v2334, %v2286
        %v2911 = vpack.c.b16 %v2335, %v2287
        %v2912 = vpack.c.b16 %v2336, %v2288
        %v2913 = vpack.c.b16 %v2337, %v2289
        %v2914 = vpack.c.b16 %v2338, %v2290
        %v2915 = vpack.c.b16 %v2339, %v2291
        %v2916 = vpack.c.b16 %v2340, %v2292
        %v2917 = vpack.c.b16 %v2341, %v2293
        %v2918 = vpack.c.b16 %v2342, %v2294
        %v2919 = vpack.c.b16 %v2343, %v2295
        %v2920 = vpack.c.b16 %v2344, %v2296
        %v2921 = vpack.c.b16 %v2345, %v2297
        %v2922 = vpack.c.b16 %v2346, %v2298
        %v2923 = vpack.c.b16 %v2347, %v2299
        %v2924 = vpack.c.b16 %v2348, %v2300
        %v2925 = vpack.c.b16 %v2349, %v2301
        %v2926 = vpack.c.b16 %v2350, %v2302
        %v2927 = vpack.c.b16 %v2351, %v2303
        %v2928 = vpack.c.b16 %v2352, %v2304
        %v2929 = vpack.c.b16 %v2353, %v2305
        %v2930 = vpack.c.b16 %v2354, %v2306
        %v2931 = vpack.c.b16 %v2355, %v2307
        %v2932 = vpack.c.b16 %v2356, %v2308
        %v2933 = vpack.c.b16 %v2357, %v2309
        %v2934 = vpack.c.b16 %v2358, %v2310
        %v2935 = vpack.c.b16 %v2359, %v2311
        %v2936 = vpack.c.b16 %v2360, %v2312
        %v2937 = vpack.c.b16 %v2409, %v2361
        %v2938 = vpack.c.b16 %v2410, %v2362
        %v2939 = vpack.c.b16 %v2411, %v2363
        %v2940 = vpack.c.b16 %v2412, %v2364
        %v2941 = vpack.c.b16 %v2413, %v2365
        %v2942 = vpack.c.b16 %v2414, %v2366
        %v2943 = vpack.c.b16 %v2415, %v2367
        %v2944 = vpack.c.b16 %v2416, %v2368
        %v2945 = vpack.c.b16 %v2417, %v2369
        %v2946 = vpack.c.b16 %v2418, %v2370
        %v2947 = vpack.c.b16 %v2419, %v2371
        %v2948 = vpack.c.b16 %v2420, %v2372
        %v2949 = vpack.c.b16 %v2421, %v2373
        %v2950 = vpack.c.b16 %v2422, %v2374
        %v2951 = vpack.c.b16 %v2423, %v2375
        %v2952 = vpack.c.b16 %v2424, %v2376
        %v2953 = vpack.c.b16 %v2425, %v2377
        %v2954 = vpack.c.b16 %v2426, %v2378
        %v2955 = vpack.c.b16 %v2427, %v2379
        %v2956 = vpack.c.b16 %v2428, %v2380
        %v2957 = vpack.c.b16 %v2429, %v2381
        %v2958 = vpack.c.b16 %v2430, %v2382
        %v2959 = vpack.c.b16 %v2431, %v2383
        %v2960 = vpack.c.b16 %v2432, %v2384
        %v2961 = vpack.c.b16 %v2433, %v2385
        %v2962 = vpack.c.b16 %v2434, %v2386
        %v2963 = vpack.c.b16 %v2435, %v2387
        %v2964 = vpack.c.b16 %v2436, %v2388
        %v2965 = vpack.c.b16 %v2437, %v2389
        %v2966 = vpack.c.b16 %v2438, %v2390
        %v2967 = vpack.c.b16 %v2439, %v2391
        %v2968 = vpack.c.b16 %v2440, %v2392
        %v2969 = vpack.c.b16 %v2441, %v2393
        %v2970 = vpack.c.b16 %v2442, %v2394
        %v2971 = vpack.c.b16 %v2443, %v2395
        %v2972 = vpack.c.b16 %v2444, %v2396
        %v2973 = vpack.c.b16 %v2445, %v2397
        %v2974 = vpack.c.b16 %v2446, %v2398
        %v2975 = vpack.c.b16 %v2447, %v2399
        %v2976 = vpack.c.b16 %v2448, %v2400
        %v2977 = vpack.c.b16 %v2449, %v2401
        %v2978 = vpack.c.b16 %v2450, %v2402
        %v2979 = vpack.c.b16 %v2451, %v2403
        %v2980 = vpack.c.b16 %v2452, %v2404
        %v2981 = vpack.c.b16 %v2453, %v2405
        %v2982 = vpack.c.b16 %v2454, %v2406
        %v2983 = vpack.c.b16 %v2455, %v2407
        %v2984 = vpack.c.b16 %v2456, %v2408
        %v2985 = vpack.c.b16 %v2505, %v2457
        %v2986 = vpack.c.b16 %v2506, %v2458
        %v2987 = vpack.c.b16 %v2507, %v2459
        %v2988 = vpack.c.b16 %v2508, %v2460
        %v2989 = vpack.c.b16 %v2509, %v2461
        %v2990 = vpack.c.b16 %v2510, %v2462
        %v2991 = vpack.c.b16 %v2511, %v2463
        %v2992 = vpack.c.b16 %v2512, %v2464
        %v2993 = vpack.c.b16 %v2513, %v2465
        %v2994 = vpack.c.b16 %v2514, %v2466
        %v2995 = vpack.c.b16 %v2515, %v2467
        %v2996 = vpack.c.b16 %v2516, %v2468
        %v2997 = vpack.c.b16 %v2517, %v2469
        %v2998 = vpack.c.b16 %v2518, %v2470
        %v2999 = vpack.c.b16 %v2519, %v2471
        %v3000 = vpack.c.b16 %v2520, %v2472
        %v3001 = vpack.c.b16 %v2521, %v2473
        %v3002 = vpack.c.b16 %v2522, %v2474
        %v3003 = vpack.c.b16 %v2523, %v2475
        %v3004 = vpack.c.b16 %v2524, %v2476
        %v3005 = vpack.c.b16 %v2525, %v2477
        %v3006 = vpack.c.b16 %v2526, %v2478
        %v3007 = vpack.c.b16 %v2527, %v2479
        %v3008 = vpack.c.b16 %v2528, %v2480
        %v3009 = vpack.c.b16 %v2529, %v2481
        %v3010 = vpack.c.b16 %v2530, %v2482
        %v3011 = vpack.c.b16 %v2531, %v2483
        %v3012 = vpack.c.b16 %v2532, %v2484
        %v3013 = vpack.c.b16 %v2533, %v2485
        %v3014 = vpack.c.b16 %v2534, %v2486
        %v3015 = vpack.c.b16 %v2535, %v2487
        %v3016 = vpack.c.b16 %v2536, %v2488
        %v3017 = vpack.c.b16 %v2537, %v2489
        %v3018 = vpack.c.b16 %v2538, %v2490
        %v3019 = vpack.c.b16 %v2539, %v2491
        %v3020 = vpack.c.b16 %v2540, %v2492
        %v3021 = vpack.c.b16 %v2541, %v2493
        %v3022 = vpack.c.b16 %v2542, %v2494
        %v3023 = vpack.c.b16 %v2543, %v2495
        %v3024 = vpack.c.b16 %v2544, %v2496
        %v3025 = vpack.c.b16 %v2545, %v2497
        %v3026 = vpack.c.b16 %v2546, %v2498
        %v3027 = vpack.c.b16 %v2547, %v2499
        %v3028 = vpack.c.b16 %v2548, %v2500
        %v3029 = vpack.c.b16 %v2549, %v2501
        %v3030 = vpack.c.b16 %v2550, %v2502
        %v3031 = vpack.c.b16 %v2551, %v2503
        %v3032 = vpack.c.b16 %v2552, %v2504
        %v3033 = vpack.c.b16 %v2601, %v2553
        %v3034 = vpack.c.b16 %v2602, %v2554
        %v3035 = vpack.c.b16 %v2603, %v2555
        %v3036 = vpack.c.b16 %v2604, %v2556
        %v3037 = vpack.c.b16 %v2605, %v2557
        %v3038 = vpack.c.b16 %v2606, %v2558
        %v3039 = vpack.c.b16 %v2607, %v2559
        %v3040 = vpack.c.b16 %v2608, %v2560
        %v3041 = vpack.c.b16 %v2609, %v2561
        %v3042 = vpack.c.b16 %v2610, %v2562
        %v3043 = vpack.c.b16 %v2611, %v2563
        %v3044 = vpack.c.b16 %v2612, %v2564
        %v3045 = vpack.c.b16 %v2613, %v2565
        %v3046 = vpack.c.b16 %v2614, %v2566
        %v3047 = vpack.c.b16 %v2615, %v2567
        %v3048 = vpack.c.b16 %v2616, %v2568
        %v3049 = vpack.c.b16 %v2617, %v2569
        %v3050 = vpack.c.b16 %v2618, %v2570
        %v3051 = vpack.c.b16 %v2619, %v2571
        %v3052 = vpack.c.b16 %v2620, %v2572
        %v3053 = vpack.c.b16 %v2621, %v2573
        %v3054 = vpack.c.b16 %v2622, %v2574
        %v3055 = vpack.c.b16 %v2623, %v2575
        %v3056 = vpack.c.b16 %v2624, %v2576
        %v3057 = vpack.c.b16 %v2625, %v2577
        %v3058 = vpack.c.b16 %v2626, %v2578
        %v3059 = vpack.c.b16 %v2627, %v2579
        %v3060 = vpack.c.b16 %v2628, %v2580
        %v3061 = vpack.c.b16 %v2629, %v2581
        %v3062 = vpack.c.b16 %v2630, %v2582
        %v3063 = vpack.c.b16 %v2631, %v2583
        %v3064 = vpack.c.b16 %v2632, %v2584
        %v3065 = vpack.c.b16 %v2633, %v2585
        %v3066 = vpack.c.b16 %v2634, %v2586
        %v3067 = vpack.c.b16 %v2635, %v2587
        %v3068 = vpack.c.b16 %v2636, %v2588
        %v3069 = vpack.c.b16 %v2637, %v2589
        %v3070 = vpack.c.b16 %v2638, %v2590
        %v3071 = vpack.c.b16 %v2639, %v2591
        %v3072 = vpack.c.b16 %v2640, %v2592
        %v3073 = vpack.c.b16 %v2641, %v2593
        %v3074 = vpack.c.b16 %v2642, %v2594
        %v3075 = vpack.c.b16 %v2643, %v2595
        %v3076 = vpack.c.b16 %v2644, %v2596
        %v3077 = vpack.c.b16 %v2645, %v2597
        %v3078 = vpack.c.b16 %v2646, %v2598
        %v3079 = vpack.c.b16 %v2647, %v2599
        %v3080 = vpack.c.b16 %v2648, %v2600
        %v3081 = vpack.c.b16 %v2697, %v2649
        %v3082 = vpack.c.b16 %v2698, %v2650
        %v3083 = vpack.c.b16 %v2699, %v2651
        %v3084 = vpack.c.b16 %v2700, %v2652
        %v3085 = vpack.c.b16 %v2701, %v2653
        %v3086 = vpack.c.b16 %v2702, %v2654
        %v3087 = vpack.c.b16 %v2703, %v2655
        %v3088 = vpack.c.b16 %v2704, %v2656
        %v3089 = vpack.c.b16 %v2705, %v2657
        %v3090 = vpack.c.b16 %v2706, %v2658
        %v3091 = vpack.c.b16 %v2707, %v2659
        %v3092 = vpack.c.b16 %v2708, %v2660
        %v3093 = vpack.c.b16 %v2709, %v2661
        %v3094 = vpack.c.b16 %v2710, %v2662
        %v3095 = vpack.c.b16 %v2711, %v2663
        %v3096 = vpack.c.b16 %v2712, %v2664
        %v3097 = vpack.c.b16 %v2713, %v2665
        %v3098 = vpack.c.b16 %v2714, %v2666
        %v3099 = vpack.c.b16 %v2715, %v2667
        %v3100 = vpack.c.b16 %v2716, %v2668
        %v3101 = vpack.c.b16 %v2717, %v2669
        %v3102 = vpack.c.b16 %v2718, %v2670
        %v3103 = vpack.c.b16 %v2719, %v2671
        %v3104 = vpack.c.b16 %v2720, %v2672
        %v3105 = vpack.c.b16 %v2721, %v2673
        %v3106 = vpack.c.b16 %v2722, %v2674
        %v3107 = vpack.c.b16 %v2723, %v2675
        %v3108 = vpack.c.b16 %v2724, %v2676
        %v3109 = vpack.c.b16 %v2725, %v2677
        %v3110 = vpack.c.b16 %v2726, %v2678
        %v3111 = vpack.c.b16 %v2727, %v2679
        %v3112 = vpack.c.b16 %v2728, %v2680
        %v3113 = vpack.c.b16 %v2729, %v2681
        %v3114 = vpack.c.b16 %v2730, %v2682
        %v3115 = vpack.c.b16 %v2731, %v2683
        %v3116 = vpack.c.b16 %v2732, %v2684
        %v3117 = vpack.c.b16 %v2733, %v2685
        %v3118 = vpack.c.b16 %v2734, %v2686
        %v3119 = vpack.c.b16 %v2735, %v2687
        %v3120 = vpack.c.b16 %v2736, %v2688
        %v3121 = vpack.c.b16 %v2737, %v2689
        %v3122 = vpack.c.b16 %v2738, %v2690
        %v3123 = vpack.c.b16 %v2739, %v2691
        %v3124 = vpack.c.b16 %v2740, %v2692
        %v3125 = vpack.c.b16 %v2741, %v2693
        %v3126 = vpack.c.b16 %v2742, %v2694
        %v3127 = vpack.c.b16 %v2743, %v2695
        %v3128 = vpack.c.b16 %v2744, %v2696
        %v4281 = vunpack.c.l.b16 %v821
        %v4282 = vunpack.c.l.b16 %v822
        %v4283 = vunpack.c.l.b16 %v823
        %v4284 = vunpack.c.l.b16 %v824
        %v4285 = vunpack.c.l.b16 %v825
        %v4286 = vunpack.c.l.b16 %v826
        %v4287 = vunpack.c.l.b16 %v827
        %v4288 = vunpack.c.l.b16 %v828
        %v4289 = vunpack.c.l.b16 %v829
        %v4290 = vunpack.c.l.b16 %v830
        %v4291 = vunpack.c.l.b16 %v831
        %v4292 = vunpack.c.l.b16 %v832
        %v4293 = vunpack.c.l.b16 %v833
        %v4294 = vunpack.c.l.b16 %v834
        %v4295 = vunpack.c.l.b16 %v835
        %v4296 = vunpack.c.l.b16 %v836
        %v4297 = vunpack.c.l.b16 %v837
        %v4298 = vunpack.c.l.b16 %v838
        %v4299 = vunpack.c.l.b16 %v839
        %v4300 = vunpack.c.l.b16 %v840
        %v4301 = vunpack.c.l.b16 %v841
        %v4302 = vunpack.c.l.b16 %v842
        %v4303 = vunpack.c.l.b16 %v843
        %v4304 = vunpack.c.l.b16 %v844
        %v4305 = vunpack.c.l.b16 %v845
        %v4306 = vunpack.c.l.b16 %v846
        %v4307 = vunpack.c.l.b16 %v847
        %v4308 = vunpack.c.l.b16 %v848
        %v4309 = vunpack.c.l.b16 %v849
        %v4310 = vunpack.c.l.b16 %v850
        %v4311 = vunpack.c.l.b16 %v851
        %v4312 = vunpack.c.l.b16 %v852
        %v4313 = vunpack.c.l.b16 %v853
        %v4314 = vunpack.c.l.b16 %v854
        %v4315 = vunpack.c.l.b16 %v855
        %v4316 = vunpack.c.l.b16 %v856
        %v4317 = vunpack.c.l.b16 %v857
        %v4318 = vunpack.c.l.b16 %v858
        %v4319 = vunpack.c.l.b16 %v859
        %v4320 = vunpack.c.l.b16 %v860
        %v4321 = vunpack.c.l.b16 %v861
        %v4322 = vunpack.c.l.b16 %v862
        %v4323 = vunpack.c.l.b16 %v863
        %v4324 = vunpack.c.l.b16 %v864
        %v4325 = vunpack.c.l.b16 %v865
        %v4326 = vunpack.c.l.b16 %v866
        %v4327 = vunpack.c.l.b16 %v867
        %v4328 = vunpack.c.l.b16 %v868
        %v4329 = vunpack.c.l.b16 %v869
        %v4330 = vunpack.c.l.b16 %v870
        %v4331 = vunpack.c.l.b16 %v871
        %v4332 = vunpack.c.l.b16 %v872
        %v4333 = vunpack.c.l.b16 %v873
        %v4334 = vunpack.c.l.b16 %v874
        %v4335 = vunpack.c.l.b16 %v875
        %v4336 = vunpack.c.l.b16 %v876
        %v4337 = vunpack.c.l.b16 %v877
        %v4338 = vunpack.c.l.b16 %v878
        %v4339 = vunpack.c.l.b16 %v879
        %v4340 = vunpack.c.l.b16 %v880
        %v4341 = vunpack.c.l.b16 %v881
        %v4342 = vunpack.c.l.b16 %v882
        %v4343 = vunpack.c.l.b16 %v883
        %v4344 = vunpack.c.l.b16 %v884
        %v4345 = vunpack.c.l.b16 %v885
        %v4346 = vunpack.c.l.b16 %v886
        %v4347 = vunpack.c.l.b16 %v887
        %v4348 = vunpack.c.l.b16 %v888
        %v4349 = vunpack.c.l.b16 %v889
        %v4350 = vunpack.c.l.b16 %v890
        %v4351 = vunpack.c.l.b16 %v891
        %v4352 = vunpack.c.l.b16 %v892
        %v4353 = vunpack.c.l.b16 %v893
        %v4354 = vunpack.c.l.b16 %v894
        %v4355 = vunpack.c.l.b16 %v895
        %v4356 = vunpack.c.l.b16 %v896
        %v4357 = vunpack.c.l.b16 %v897
        %v4358 = vunpack.c.l.b16 %v898
        %v4359 = vunpack.c.l.b16 %v899
        %v4360 = vunpack.c.l.b16 %v900
        %v4361 = vunpack.c.l.b16 %v901
        %v4362 = vunpack.c.l.b16 %v902
        %v4363 = vunpack.c.l.b16 %v903
        %v4364 = vunpack.c.l.b16 %v904
        %v4365 = vunpack.c.l.b16 %v905
        %v4366 = vunpack.c.l.b16 %v906
        %v4367 = vunpack.c.l.b16 %v907
        %v4368 = vunpack.c.l.b16 %v908
        %v4369 = vunpack.c.l.b16 %v909
        %v4370 = vunpack.c.l.b16 %v910
        %v4371 = vunpack.c.l.b16 %v911
        %v4372 = vunpack.c.l.b16 %v912
        %v4373 = vunpack.c.l.b16 %v913
        %v4374 = vunpack.c.l.b16 %v914
        %v4375 = vunpack.c.l.b16 %v915
        %v4376 = vunpack.c.l.b16 %v916
        %v4377 = vunpack.c.l.b16 %v917
        %v4378 = vunpack.c.l.b16 %v918
        %v4379 = vunpack.c.l.b16 %v919
        %v4380 = vunpack.c.l.b16 %v920
        %v4381 = vunpack.c.l.b16 %v921
        %v4382 = vunpack.c.l.b16 %v922
        %v4383 = vunpack.c.l.b16 %v923
        %v4384 = vunpack.c.l.b16 %v924
        %v4385 = vunpack.c.l.b16 %v925
        %v4386 = vunpack.c.l.b16 %v926
        %v4387 = vunpack.c.l.b16 %v927
        %v4388 = vunpack.c.l.b16 %v928
        %v4389 = vunpack.c.l.b16 %v929
        %v4390 = vunpack.c.l.b16 %v930
        %v4391 = vunpack.c.l.b16 %v931
        %v4392 = vunpack.c.l.b16 %v932
        %v4393 = vunpack.c.l.b16 %v933
        %v4394 = vunpack.c.l.b16 %v934
        %v4395 = vunpack.c.l.b16 %v935
        %v4396 = vunpack.c.l.b16 %v936
        %v4397 = vunpack.c.l.b16 %v937
        %v4398 = vunpack.c.l.b16 %v938
        %v4399 = vunpack.c.l.b16 %v939
        %v4400 = vunpack.c.l.b16 %v940
        %v4401 = vunpack.c.l.b16 %v941
        %v4402 = vunpack.c.l.b16 %v942
        %v4403 = vunpack.c.l.b16 %v943
        %v4404 = vunpack.c.l.b16 %v944
        %v4405 = vunpack.c.l.b16 %v945
        %v4406 = vunpack.c.l.b16 %v946
        %v4407 = vunpack.c.l.b16 %v947
        %v4408 = vunpack.c.l.b16 %v948
        %v4409 = vunpack.c.l.b16 %v949
        %v4410 = vunpack.c.l.b16 %v950
        %v4411 = vunpack.c.l.b16 %v951
        %v4412 = vunpack.c.l.b16 %v952
        %v4413 = vunpack.c.l.b16 %v953
        %v4414 = vunpack.c.l.b16 %v954
        %v4415 = vunpack.c.l.b16 %v955
        %v4416 = vunpack.c.l.b16 %v956
        %v4417 = vunpack.c.l.b16 %v957
        %v4418 = vunpack.c.l.b16 %v958
        %v4419 = vunpack.c.l.b16 %v959
        %v4420 = vunpack.c.l.b16 %v960
        %v4421 = vunpack.c.l.b16 %v961
        %v4422 = vunpack.c.l.b16 %v962
        %v4423 = vunpack.c.l.b16 %v963
        %v4424 = vunpack.c.l.b16 %v964
        %v4425 = vunpack.c.l.b16 %v965
        %v4426 = vunpack.c.l.b16 %v966
        %v4427 = vunpack.c.l.b16 %v967
        %v4428 = vunpack.c.l.b16 %v968
        %v4429 = vunpack.c.l.b16 %v969
        %v4430 = vunpack.c.l.b16 %v970
        %v4431 = vunpack.c.l.b16 %v971
        %v4432 = vunpack.c.l.b16 %v972
        %v4433 = vunpack.c.l.b16 %v973
        %v4434 = vunpack.c.l.b16 %v974
        %v4435 = vunpack.c.l.b16 %v975
        %v4436 = vunpack.c.l.b16 %v976
        %v4437 = vunpack.c.l.b16 %v977
        %v4438 = vunpack.c.l.b16 %v978
        %v4439 = vunpack.c.l.b16 %v979
        %v4440 = vunpack.c.l.b16 %v980
        %v4441 = vunpack.c.l.b16 %v981
        %v4442 = vunpack.c.l.b16 %v982
        %v4443 = vunpack.c.l.b16 %v983
        %v4444 = vunpack.c.l.b16 %v984
        %v4445 = vunpack.c.l.b16 %v985
        %v4446 = vunpack.c.l.b16 %v986
        %v4447 = vunpack.c.l.b16 %v987
        %v4448 = vunpack.c.l.b16 %v988
        %v4449 = vunpack.c.l.b16 %v989
        %v4450 = vunpack.c.l.b16 %v990
        %v4451 = vunpack.c.l.b16 %v991
        %v4452 = vunpack.c.l.b16 %v992
        %v4453 = vunpack.c.l.b16 %v993
        %v4454 = vunpack.c.l.b16 %v994
        %v4455 = vunpack.c.l.b16 %v995
        %v4456 = vunpack.c.l.b16 %v996
        %v4457 = vunpack.c.l.b16 %v997
        %v4458 = vunpack.c.l.b16 %v998
        %v4459 = vunpack.c.l.b16 %v999
        %v4460 = vunpack.c.l.b16 %v1000
        %v4461 = vunpack.c.l.b16 %v1001
        %v4462 = vunpack.c.l.b16 %v1002
        %v4463 = vunpack.c.l.b16 %v1003
        %v4464 = vunpack.c.l.b16 %v1004
        %v4465 = vunpack.c.l.b16 %v1005
        %v4466 = vunpack.c.l.b16 %v1006
        %v4467 = vunpack.c.l.b16 %v1007
        %v4468 = vunpack.c.l.b16 %v1008
        %v4469 = vunpack.c.l.b16 %v1009
        %v4470 = vunpack.c.l.b16 %v1010
        %v4471 = vunpack.c.l.b16 %v1011
        %v4472 = vunpack.c.l.b16 %v1012
        %v4473 = vunpack.c.l.b16 %v1013
        %v4474 = vunpack.c.l.b16 %v1014
        %v4475 = vunpack.c.l.b16 %v1015
        %v4476 = vunpack.c.l.b16 %v1016
        %v4477 = vunpack.c.l.b16 %v1017
        %v4478 = vunpack.c.l.b16 %v1018
        %v4479 = vunpack.c.l.b16 %v1019
        %v4480 = vunpack.c.l.b16 %v1020
        %v4481 = vunpack.c.l.b16 %v1021
        %v4482 = vunpack.c.l.b16 %v1022
        %v4483 = vunpack.c.l.b16 %v1023
        %v4484 = vunpack.c.l.b16 %v1024
        %v4485 = vunpack.c.l.b16 %v1025
        %v4486 = vunpack.c.l.b16 %v1026
        %v4487 = vunpack.c.l.b16 %v1027
        %v4488 = vunpack.c.l.b16 %v1028
        %v4489 = vunpack.c.l.b16 %v1029
        %v4490 = vunpack.c.l.b16 %v1030
        %v4491 = vunpack.c.l.b16 %v1031
        %v4492 = vunpack.c.l.b16 %v1032
        %v4493 = vunpack.c.l.b16 %v1033
        %v4494 = vunpack.c.l.b16 %v1034
        %v4495 = vunpack.c.l.b16 %v1035
        %v4496 = vunpack.c.l.b16 %v1036
        %v4497 = vunpack.c.l.b16 %v1037
        %v4498 = vunpack.c.l.b16 %v1038
        %v4499 = vunpack.c.l.b16 %v1039
        %v4500 = vunpack.c.l.b16 %v1040
        %v4501 = vunpack.c.l.b16 %v1041
        %v4502 = vunpack.c.l.b16 %v1042
        %v4503 = vunpack.c.l.b16 %v1043
        %v4504 = vunpack.c.l.b16 %v1044
        %v4505 = vunpack.c.l.b16 %v1045
        %v4506 = vunpack.c.l.b16 %v1046
        %v4507 = vunpack.c.l.b16 %v1047
        %v4508 = vunpack.c.l.b16 %v1048
        %v4509 = vunpack.c.l.b16 %v1049
        %v4510 = vunpack.c.l.b16 %v1050
        %v4511 = vunpack.c.l.b16 %v1051
        %v4512 = vunpack.c.l.b16 %v1052
        %v4513 = vunpack.c.l.b16 %v1053
        %v4514 = vunpack.c.l.b16 %v1054
        %v4515 = vunpack.c.l.b16 %v1055
        %v4516 = vunpack.c.l.b16 %v1056
        %v4517 = vunpack.c.l.b16 %v1057
        %v4518 = vunpack.c.l.b16 %v1058
        %v4519 = vunpack.c.l.b16 %v1059
        %v4520 = vunpack.c.l.b16 %v1060
        %v4521 = vunpack.c.l.b16 %v1061
        %v4522 = vunpack.c.l.b16 %v1062
        %v4523 = vunpack.c.l.b16 %v1063
        %v4524 = vunpack.c.l.b16 %v1064
        %v4525 = vunpack.c.l.b16 %v1065
        %v4526 = vunpack.c.l.b16 %v1066
        %v4527 = vunpack.c.l.b16 %v1067
        %v4528 = vunpack.c.l.b16 %v1068
        %v4529 = vunpack.c.l.b16 %v1069
        %v4530 = vunpack.c.l.b16 %v1070
        %v4531 = vunpack.c.l.b16 %v1071
        %v4532 = vunpack.c.l.b16 %v1072
        %v4533 = vunpack.c.l.b16 %v1073
        %v4534 = vunpack.c.l.b16 %v1074
        %v4535 = vunpack.c.l.b16 %v1075
        %v4536 = vunpack.c.l.b16 %v1076
        %v4537 = vunpack.c.l.b16 %v1077
        %v4538 = vunpack.c.l.b16 %v1078
        %v4539 = vunpack.c.l.b16 %v1079
        %v4540 = vunpack.c.l.b16 %v1080
        %v4541 = vunpack.c.l.b16 %v1081
        %v4542 = vunpack.c.l.b16 %v1082
        %v4543 = vunpack.c.l.b16 %v1083
        %v4544 = vunpack.c.l.b16 %v1084
        %v4545 = vunpack.c.l.b16 %v1085
        %v4546 = vunpack.c.l.b16 %v1086
        %v4547 = vunpack.c.l.b16 %v1087
        %v4548 = vunpack.c.l.b16 %v1088
        %v4549 = vunpack.c.l.b16 %v1089
        %v4550 = vunpack.c.l.b16 %v1090
        %v4551 = vunpack.c.l.b16 %v1091
        %v4552 = vunpack.c.l.b16 %v1092
        %v4553 = vunpack.c.l.b16 %v1093
        %v4554 = vunpack.c.l.b16 %v1094
        %v4555 = vunpack.c.l.b16 %v1095
        %v4556 = vunpack.c.l.b16 %v1096
        %v4557 = vunpack.c.l.b16 %v1097
        %v4558 = vunpack.c.l.b16 %v1098
        %v4559 = vunpack.c.l.b16 %v1099
        %v4560 = vunpack.c.l.b16 %v1100
        %v4561 = vunpack.c.l.b16 %v1101
        %v4562 = vunpack.c.l.b16 %v1102
        %v4563 = vunpack.c.l.b16 %v1103
        %v4564 = vunpack.c.l.b16 %v1104
        %v4565 = vunpack.c.l.b16 %v1105
        %v4566 = vunpack.c.l.b16 %v1106
        %v4567 = vunpack.c.l.b16 %v1107
        %v4568 = vunpack.c.l.b16 %v1108
        %v4569 = vunpack.c.l.b16 %v1109
        %v4570 = vunpack.c.l.b16 %v1110
        %v4571 = vunpack.c.l.b16 %v1111
        %v4572 = vunpack.c.l.b16 %v1112
        %v4573 = vunpack.c.l.b16 %v1113
        %v4574 = vunpack.c.l.b16 %v1114
        %v4575 = vunpack.c.l.b16 %v1115
        %v4576 = vunpack.c.l.b16 %v1116
        %v4577 = vunpack.c.l.b16 %v1117
        %v4578 = vunpack.c.l.b16 %v1118
        %v4579 = vunpack.c.l.b16 %v1119
        %v4580 = vunpack.c.l.b16 %v1120
        %v4581 = vunpack.c.l.b16 %v1121
        %v4582 = vunpack.c.l.b16 %v1122
        %v4583 = vunpack.c.l.b16 %v1123
        %v4584 = vunpack.c.l.b16 %v1124
        %v4585 = vunpack.c.l.b16 %v1125
        %v4586 = vunpack.c.l.b16 %v1126
        %v4587 = vunpack.c.l.b16 %v1127
        %v4588 = vunpack.c.l.b16 %v1128
        %v4589 = vunpack.c.l.b16 %v1129
        %v4590 = vunpack.c.l.b16 %v1130
        %v4591 = vunpack.c.l.b16 %v1131
        %v4592 = vunpack.c.l.b16 %v1132
        %v4593 = vunpack.c.l.b16 %v1133
        %v4594 = vunpack.c.l.b16 %v1134
        %v4595 = vunpack.c.l.b16 %v1135
        %v4596 = vunpack.c.l.b16 %v1136
        %v4597 = vunpack.c.l.b16 %v1137
        %v4598 = vunpack.c.l.b16 %v1138
        %v4599 = vunpack.c.l.b16 %v1139
        %v4600 = vunpack.c.l.b16 %v1140
        %v4601 = vunpack.c.l.b16 %v1141
        %v4602 = vunpack.c.l.b16 %v1142
        %v4603 = vunpack.c.l.b16 %v1143
        %v4604 = vunpack.c.l.b16 %v1144
        %v4605 = vunpack.c.l.b16 %v1145
        %v4606 = vunpack.c.l.b16 %v1146
        %v4607 = vunpack.c.l.b16 %v1147
        %v4608 = vunpack.c.l.b16 %v1148
        %v4609 = vunpack.c.l.b16 %v1149
        %v4610 = vunpack.c.l.b16 %v1150
        %v4611 = vunpack.c.l.b16 %v1151
        %v4612 = vunpack.c.l.b16 %v1152
        %v4613 = vunpack.c.l.b16 %v1153
        %v4614 = vunpack.c.l.b16 %v1154
        %v4615 = vunpack.c.l.b16 %v1155
        %v4616 = vunpack.c.l.b16 %v1156
        %v4617 = vunpack.c.l.b16 %v1157
        %v4618 = vunpack.c.l.b16 %v1158
        %v4619 = vunpack.c.l.b16 %v1159
        %v4620 = vunpack.c.l.b16 %v1160
        %v4621 = vunpack.c.l.b16 %v1161
        %v4622 = vunpack.c.l.b16 %v1162
        %v4623 = vunpack.c.l.b16 %v1163
        %v4624 = vunpack.c.l.b16 %v1164
        %v4625 = vunpack.c.l.b16 %v1165
        %v4626 = vunpack.c.l.b16 %v1166
        %v4627 = vunpack.c.l.b16 %v1167
        %v4628 = vunpack.c.l.b16 %v1168
        %v4629 = vunpack.c.l.b16 %v1169
        %v4630 = vunpack.c.l.b16 %v1170
        %v4631 = vunpack.c.l.b16 %v1171
        %v4632 = vunpack.c.l.b16 %v1172
        %v4633 = vunpack.c.l.b16 %v1173
        %v4634 = vunpack.c.l.b16 %v1174
        %v4635 = vunpack.c.l.b16 %v1175
        %v4636 = vunpack.c.l.b16 %v1176
        %v4637 = vunpack.c.l.b16 %v1177
        %v4638 = vunpack.c.l.b16 %v1178
        %v4639 = vunpack.c.l.b16 %v1179
        %v4640 = vunpack.c.l.b16 %v1180
        %v4641 = vunpack.c.l.b16 %v1181
        %v4642 = vunpack.c.l.b16 %v1182
        %v4643 = vunpack.c.l.b16 %v1183
        %v4644 = vunpack.c.l.b16 %v1184
        %v4645 = vunpack.c.l.b16 %v1185
        %v4646 = vunpack.c.l.b16 %v1186
        %v4647 = vunpack.c.l.b16 %v1187
        %v4648 = vunpack.c.l.b16 %v1188
        %v4649 = vunpack.c.l.b16 %v1189
        %v4650 = vunpack.c.l.b16 %v1190
        %v4651 = vunpack.c.l.b16 %v1191
        %v4652 = vunpack.c.l.b16 %v1192
        %v4653 = vunpack.c.l.b16 %v1193
        %v4654 = vunpack.c.l.b16 %v1194
        %v4655 = vunpack.c.l.b16 %v1195
        %v4656 = vunpack.c.l.b16 %v1196
        %v4657 = vunpack.c.l.b16 %v1197
        %v4658 = vunpack.c.l.b16 %v1198
        %v4659 = vunpack.c.l.b16 %v1199
        %v4660 = vunpack.c.l.b16 %v1200
        %v4661 = vunpack.c.l.b16 %v1201
        %v4662 = vunpack.c.l.b16 %v1202
        %v4663 = vunpack.c.l.b16 %v1203
        %v4664 = vunpack.c.l.b16 %v1204
        %v4665 = vunpack.c.l.b16 %v1205
        %v4666 = vunpack.c.l.b16 %v1206
        %v4667 = vunpack.c.l.b16 %v1207
        %v4668 = vunpack.c.l.b16 %v1208
        %v4669 = vunpack.c.l.b16 %v1209
        %v4670 = vunpack.c.l.b16 %v1210
        %v4671 = vunpack.c.l.b16 %v1211
        %v4672 = vunpack.c.l.b16 %v1212
        %v4673 = vunpack.c.l.b16 %v1213
        %v4674 = vunpack.c.l.b16 %v1214
        %v4675 = vunpack.c.l.b16 %v1215
        %v4676 = vunpack.c.l.b16 %v1216
        %v4677 = vunpack.c.l.b16 %v1217
        %v4678 = vunpack.c.l.b16 %v1218
        %v4679 = vunpack.c.l.b16 %v1219
        %v4680 = vunpack.c.l.b16 %v1220
        %v4681 = vunpack.c.l.b16 %v1221
        %v4682 = vunpack.c.l.b16 %v1222
        %v4683 = vunpack.c.l.b16 %v1223
        %v4684 = vunpack.c.l.b16 %v1224
        %v4685 = vunpack.c.l.b16 %v1225
        %v4686 = vunpack.c.l.b16 %v1226
        %v4687 = vunpack.c.l.b16 %v1227
        %v4688 = vunpack.c.l.b16 %v1228
        %v4689 = vunpack.c.l.b16 %v1229
        %v4690 = vunpack.c.l.b16 %v1230
        %v4691 = vunpack.c.l.b16 %v1231
        %v4692 = vunpack.c.l.b16 %v1232
        %v4693 = vunpack.c.l.b16 %v1233
        %v4694 = vunpack.c.l.b16 %v1234
        %v4695 = vunpack.c.l.b16 %v1235
        %v4696 = vunpack.c.l.b16 %v1236
        %v4697 = vunpack.c.l.b16 %v1237
        %v4698 = vunpack.c.l.b16 %v1238
        %v4699 = vunpack.c.l.b16 %v1239
        %v4700 = vunpack.c.l.b16 %v1240
        %v4701 = vunpack.c.l.b16 %v1241
        %v4702 = vunpack.c.l.b16 %v1242
        %v4703 = vunpack.c.l.b16 %v1243
        %v4704 = vunpack.c.l.b16 %v1244
        %v4705 = vunpack.c.l.b16 %v1245
        %v4706 = vunpack.c.l.b16 %v1246
        %v4707 = vunpack.c.l.b16 %v1247
        %v4708 = vunpack.c.l.b16 %v1248
        %v4709 = vunpack.c.l.b16 %v1249
        %v4710 = vunpack.c.l.b16 %v1250
        %v4711 = vunpack.c.l.b16 %v1251
        %v4712 = vunpack.c.l.b16 %v1252
        %v4713 = vunpack.c.l.b16 %v1253
        %v4714 = vunpack.c.l.b16 %v1254
        %v4715 = vunpack.c.l.b16 %v1255
        %v4716 = vunpack.c.l.b16 %v1256
        %v4717 = vunpack.c.l.b16 %v1257
        %v4718 = vunpack.c.l.b16 %v1258
        %v4719 = vunpack.c.l.b16 %v1259
        %v4720 = vunpack.c.l.b16 %v1260
        %v4721 = vunpack.c.l.b16 %v1261
        %v4722 = vunpack.c.l.b16 %v1262
        %v4723 = vunpack.c.l.b16 %v1263
        %v4724 = vunpack.c.l.b16 %v1264
        %v4725 = vunpack.c.l.b16 %v1265
        %v4726 = vunpack.c.l.b16 %v1266
        %v4727 = vunpack.c.l.b16 %v1267
        %v4728 = vunpack.c.l.b16 %v1268
        %v4729 = vunpack.c.l.b16 %v1269
        %v4730 = vunpack.c.l.b16 %v1270
        %v4731 = vunpack.c.l.b16 %v1271
        %v4732 = vunpack.c.l.b16 %v1272
        %v4733 = vunpack.c.l.b16 %v1273
        %v4734 = vunpack.c.l.b16 %v1274
        %v4735 = vunpack.c.l.b16 %v1275
        %v4736 = vunpack.c.l.b16 %v1276
        %v4737 = vunpack.c.l.b16 %v1277
        %v4738 = vunpack.c.l.b16 %v1278
        %v4739 = vunpack.c.l.b16 %v1279
        %v4740 = vunpack.c.l.b16 %v1280
        %v4741 = vunpack.c.l.b16 %v1281
        %v4742 = vunpack.c.l.b16 %v1282
        %v4743 = vunpack.c.l.b16 %v1283
        %v4744 = vunpack.c.l.b16 %v1284
        %v4745 = vunpack.c.l.b16 %v1285
        %v4746 = vunpack.c.l.b16 %v1286
        %v4747 = vunpack.c.l.b16 %v1287
        %v4748 = vunpack.c.l.b16 %v1288
        %v4749 = vunpack.c.l.b16 %v1289
        %v4750 = vunpack.c.l.b16 %v1290
        %v4751 = vunpack.c.l.b16 %v1291
        %v4752 = vunpack.c.l.b16 %v1292
        %v4753 = vunpack.c.l.b16 %v1293
        %v4754 = vunpack.c.l.b16 %v1294
        %v4755 = vunpack.c.l.b16 %v1295
        %v4756 = vunpack.c.l.b16 %v1296
        %v4757 = vunpack.c.l.b16 %v1297
        %v4758 = vunpack.c.l.b16 %v1298
        %v4759 = vunpack.c.l.b16 %v1299
        %v4760 = vunpack.c.l.b16 %v1300
        %v4761 = vunpack.c.l.b16 %v1301
        %v4762 = vunpack.c.l.b16 %v1302
        %v4763 = vunpack.c.l.b16 %v1303
        %v4764 = vunpack.c.l.b16 %v1304
        %v4765 = vunpack.c.l.b16 %v1305
        %v4766 = vunpack.c.l.b16 %v1306
        %v4767 = vunpack.c.l.b16 %v1307
        %v4768 = vunpack.c.l.b16 %v1308
        %v4769 = vunpack.c.l.b16 %v1309
        %v4770 = vunpack.c.l.b16 %v1310
        %v4771 = vunpack.c.l.b16 %v1311
        %v4772 = vunpack.c.l.b16 %v1312
        %v4773 = vunpack.c.l.b16 %v1313
        %v4774 = vunpack.c.l.b16 %v1314
        %v4775 = vunpack.c.l.b16 %v1315
        %v4776 = vunpack.c.l.b16 %v1316
        %v4777 = vunpack.c.l.b16 %v1317
        %v4778 = vunpack.c.l.b16 %v1318
        %v4779 = vunpack.c.l.b16 %v1319
        %v4780 = vunpack.c.l.b16 %v1320
        %v4781 = vunpack.c.l.b16 %v1321
        %v4782 = vunpack.c.l.b16 %v1322
        %v4783 = vunpack.c.l.b16 %v1323
        %v4784 = vunpack.c.l.b16 %v1324
        %v4785 = vunpack.c.l.b16 %v1325
        %v4786 = vunpack.c.l.b16 %v1326
        %v4787 = vunpack.c.l.b16 %v1327
        %v4788 = vunpack.c.l.b16 %v1328
        %v4789 = vunpack.c.l.b16 %v1329
        %v4790 = vunpack.c.l.b16 %v1330
        %v4791 = vunpack.c.l.b16 %v1331
        %v4792 = vunpack.c.l.b16 %v1332
        %v4793 = vunpack.c.l.b16 %v1333
        %v4794 = vunpack.c.l.b16 %v1334
        %v4795 = vunpack.c.l.b16 %v1335
        %v4796 = vunpack.c.l.b16 %v1336
        %v4797 = vunpack.c.l.b16 %v1337
        %v4798 = vunpack.c.l.b16 %v1338
        %v4799 = vunpack.c.l.b16 %v1339
        %v4800 = vunpack.c.l.b16 %v1340
        %v4801 = vunpack.c.l.b16 %v1341
        %v4802 = vunpack.c.l.b16 %v1342
        %v4803 = vunpack.c.l.b16 %v1343
        %v4804 = vunpack.c.l.b16 %v1344
        %v4805 = vunpack.c.l.b16 %v1345
        %v4806 = vunpack.c.l.b16 %v1346
        %v4807 = vunpack.c.l.b16 %v1347
        %v4808 = vunpack.c.l.b16 %v1348
        %v4809 = vunpack.c.l.b16 %v1349
        %v4810 = vunpack.c.l.b16 %v1350
        %v4811 = vunpack.c.l.b16 %v1351
        %v4812 = vunpack.c.l.b16 %v1352
        %v4813 = vunpack.c.l.b16 %v1353
        %v4814 = vunpack.c.l.b16 %v1354
        %v4815 = vunpack.c.l.b16 %v1355
        %v4816 = vunpack.c.l.b16 %v1356
        %v4817 = vunpack.c.l.b16 %v1357
        %v4818 = vunpack.c.l.b16 %v1358
        %v4819 = vunpack.c.l.b16 %v1359
        %v4820 = vunpack.c.l.b16 %v1360
        %v4821 = vunpack.c.l.b16 %v1361
        %v4822 = vunpack.c.l.b16 %v1362
        %v4823 = vunpack.c.l.b16 %v1363
        %v4824 = vunpack.c.l.b16 %v1364
        %v4825 = vunpack.c.l.b16 %v1365
        %v4826 = vunpack.c.l.b16 %v1366
        %v4827 = vunpack.c.l.b16 %v1367
        %v4828 = vunpack.c.l.b16 %v1368
        %v4829 = vunpack.c.l.b16 %v1369
        %v4830 = vunpack.c.l.b16 %v1370
        %v4831 = vunpack.c.l.b16 %v1371
        %v4832 = vunpack.c.l.b16 %v1372
        %v4833 = vunpack.c.l.b16 %v1373
        %v4834 = vunpack.c.l.b16 %v1374
        %v4835 = vunpack.c.l.b16 %v1375
        %v4836 = vunpack.c.l.b16 %v1376
        %v4837 = vunpack.c.l.b16 %v1377
        %v4838 = vunpack.c.l.b16 %v1378
        %v4839 = vunpack.c.l.b16 %v1379
        %v4840 = vunpack.c.l.b16 %v1380
        %v4841 = vunpack.c.l.b16 %v1381
        %v4842 = vunpack.c.l.b16 %v1382
        %v4843 = vunpack.c.l.b16 %v1383
        %v4844 = vunpack.c.l.b16 %v1384
        %v4845 = vunpack.c.l.b16 %v1385
        %v4846 = vunpack.c.l.b16 %v1386
        %v4847 = vunpack.c.l.b16 %v1387
        %v4848 = vunpack.c.l.b16 %v1388
        %v4849 = vunpack.c.l.b16 %v1389
        %v4850 = vunpack.c.l.b16 %v1390
        %v4851 = vunpack.c.l.b16 %v1391
        %v4852 = vunpack.c.l.b16 %v1392
        %v4853 = vunpack.c.l.b16 %v1393
        %v4854 = vunpack.c.l.b16 %v1394
        %v4855 = vunpack.c.l.b16 %v1395
        %v4856 = vunpack.c.l.b16 %v1396
        %v4857 = vunpack.c.l.b16 %v1397
        %v4858 = vunpack.c.l.b16 %v1398
        %v4859 = vunpack.c.l.b16 %v1399
        %v4860 = vunpack.c.l.b16 %v1400
        %v4861 = vunpack.c.l.b16 %v1401
        %v4862 = vunpack.c.l.b16 %v1402
        %v4863 = vunpack.c.l.b16 %v1403
        %v4864 = vunpack.c.l.b16 %v1404
        %v4865 = vunpack.c.l.b16 %v1405
        %v4866 = vunpack.c.l.b16 %v1406
        %v4867 = vunpack.c.l.b16 %v1407
        %v4868 = vunpack.c.l.b16 %v1408
        %v4869 = vunpack.c.l.b16 %v1409
        %v4870 = vunpack.c.l.b16 %v1410
        %v4871 = vunpack.c.l.b16 %v1411
        %v4872 = vunpack.c.l.b16 %v1412
        %v4873 = vunpack.c.l.b16 %v1413
        %v4874 = vunpack.c.l.b16 %v1414
        %v4875 = vunpack.c.l.b16 %v1415
        %v4876 = vunpack.c.l.b16 %v1416
        %v4877 = vunpack.c.l.b16 %v1417
        %v4878 = vunpack.c.l.b16 %v1418
        %v4879 = vunpack.c.l.b16 %v1419
        %v4880 = vunpack.c.l.b16 %v1420
        %v4881 = vunpack.c.l.b16 %v1421
        %v4882 = vunpack.c.l.b16 %v1422
        %v4883 = vunpack.c.l.b16 %v1423
        %v4884 = vunpack.c.l.b16 %v1424
        %v4885 = vunpack.c.l.b16 %v1425
        %v4886 = vunpack.c.l.b16 %v1426
        %v4887 = vunpack.c.l.b16 %v1427
        %v4888 = vunpack.c.l.b16 %v1428
        %v4889 = vunpack.c.l.b16 %v1429
        %v4890 = vunpack.c.l.b16 %v1430
        %v4891 = vunpack.c.l.b16 %v1431
        %v4892 = vunpack.c.l.b16 %v1432
        %v4893 = vunpack.c.l.b16 %v1433
        %v4894 = vunpack.c.l.b16 %v1434
        %v4895 = vunpack.c.l.b16 %v1435
        %v4896 = vunpack.c.l.b16 %v1436
        %v4897 = vunpack.c.l.b16 %v1437
        %v4898 = vunpack.c.l.b16 %v1438
        %v4899 = vunpack.c.l.b16 %v1439
        %v4900 = vunpack.c.l.b16 %v1440
        %v4901 = vunpack.c.l.b16 %v1441
        %v4902 = vunpack.c.l.b16 %v1442
        %v4903 = vunpack.c.l.b16 %v1443
        %v4904 = vunpack.c.l.b16 %v1444
        %v4905 = vunpack.c.l.b16 %v1445
        %v4906 = vunpack.c.l.b16 %v1446
        %v4907 = vunpack.c.l.b16 %v1447
        %v4908 = vunpack.c.l.b16 %v1448
        %v4909 = vunpack.c.l.b16 %v1449
        %v4910 = vunpack.c.l.b16 %v1450
        %v4911 = vunpack.c.l.b16 %v1451
        %v4912 = vunpack.c.l.b16 %v1452
        %v4913 = vunpack.c.l.b16 %v1453
        %v4914 = vunpack.c.l.b16 %v1454
        %v4915 = vunpack.c.l.b16 %v1455
        %v4916 = vunpack.c.l.b16 %v1456
        %v4917 = vunpack.c.l.b16 %v1457
        %v4918 = vunpack.c.l.b16 %v1458
        %v4919 = vunpack.c.l.b16 %v1459
        %v4920 = vunpack.c.l.b16 %v1460
        %v4921 = vunpack.c.l.b16 %v1461
        %v4922 = vunpack.c.l.b16 %v1462
        %v4923 = vunpack.c.l.b16 %v1463
        %v4924 = vunpack.c.l.b16 %v1464
        %v4925 = vunpack.c.l.b16 %v1465
        %v4926 = vunpack.c.l.b16 %v1466
        %v4927 = vunpack.c.l.b16 %v1467
        %v4928 = vunpack.c.l.b16 %v1468
        %v4929 = vunpack.c.l.b16 %v1469
        %v4930 = vunpack.c.l.b16 %v1470
        %v4931 = vunpack.c.l.b16 %v1471
        %v4932 = vunpack.c.l.b16 %v1472
        %v4933 = vunpack.c.l.b16 %v1473
        %v4934 = vunpack.c.l.b16 %v1474
        %v4935 = vunpack.c.l.b16 %v1475
        %v4936 = vunpack.c.l.b16 %v1476
        %v4937 = vunpack.c.l.b16 %v1477
        %v4938 = vunpack.c.l.b16 %v1478
        %v4939 = vunpack.c.l.b16 %v1479
        %v4940 = vunpack.c.l.b16 %v1480
        %v4941 = vunpack.c.l.b16 %v1481
        %v4942 = vunpack.c.l.b16 %v1482
        %v4943 = vunpack.c.l.b16 %v1483
        %v4944 = vunpack.c.l.b16 %v1484
        %v4945 = vunpack.c.l.b16 %v1485
        %v4946 = vunpack.c.l.b16 %v1486
        %v4947 = vunpack.c.l.b16 %v1487
        %v4948 = vunpack.c.l.b16 %v1488
        %v4949 = vunpack.c.l.b16 %v1489
        %v4950 = vunpack.c.l.b16 %v1490
        %v4951 = vunpack.c.l.b16 %v1491
        %v4952 = vunpack.c.l.b16 %v1492
        %v4953 = vunpack.c.l.b16 %v1493
        %v4954 = vunpack.c.l.b16 %v1494
        %v4955 = vunpack.c.l.b16 %v1495
        %v4956 = vunpack.c.l.b16 %v1496
        %v4957 = vunpack.c.l.b16 %v1497
        %v4958 = vunpack.c.l.b16 %v1498
        %v4959 = vunpack.c.l.b16 %v1499
        %v4960 = vunpack.c.l.b16 %v1500
        %v4961 = vunpack.c.l.b16 %v1501
        %v4962 = vunpack.c.l.b16 %v1502
        %v4963 = vunpack.c.l.b16 %v1503
        %v4964 = vunpack.c.l.b16 %v1504
        %v4965 = vunpack.c.l.b16 %v1505
        %v4966 = vunpack.c.l.b16 %v1506
        %v4967 = vunpack.c.l.b16 %v1507
        %v4968 = vunpack.c.l.b16 %v1508
        %v4969 = vunpack.c.l.b16 %v1509
        %v4970 = vunpack.c.l.b16 %v1510
        %v4971 = vunpack.c.l.b16 %v1511
        %v4972 = vunpack.c.l.b16 %v1512
        %v4973 = vunpack.c.l.b16 %v1513
        %v4974 = vunpack.c.l.b16 %v1514
        %v4975 = vunpack.c.l.b16 %v1515
        %v4976 = vunpack.c.l.b16 %v1516
        %v4977 = vunpack.c.l.b16 %v1517
        %v4978 = vunpack.c.l.b16 %v1518
        %v4979 = vunpack.c.l.b16 %v1519
        %v4980 = vunpack.c.l.b16 %v1520
        %v4981 = vunpack.c.l.b16 %v1521
        %v4982 = vunpack.c.l.b16 %v1522
        %v4983 = vunpack.c.l.b16 %v1523
        %v4984 = vunpack.c.l.b16 %v1524
        %v4985 = vunpack.c.l.b16 %v1525
        %v4986 = vunpack.c.l.b16 %v1526
        %v4987 = vunpack.c.l.b16 %v1527
        %v4988 = vunpack.c.l.b16 %v1528
        %v4989 = vunpack.c.l.b16 %v1529
        %v4990 = vunpack.c.l.b16 %v1530
        %v4991 = vunpack.c.l.b16 %v1531
        %v4992 = vunpack.c.l.b16 %v1532
        %v4993 = vunpack.c.l.b16 %v1533
        %v4994 = vunpack.c.l.b16 %v1534
        %v4995 = vunpack.c.l.b16 %v1535
        %v4996 = vunpack.c.l.b16 %v1536
        %v4997 = vunpack.c.l.b16 %v1537
        %v4998 = vunpack.c.l.b16 %v1538
        %v4999 = vunpack.c.l.b16 %v1539
        %v5000 = vunpack.c.l.b16 %v1540
        %v5001 = vunpack.c.l.b16 %v1541
        %v5002 = vunpack.c.l.b16 %v1542
        %v5003 = vunpack.c.l.b16 %v1543
        %v5004 = vunpack.c.l.b16 %v1544
        %v5005 = vunpack.c.l.b16 %v1545
        %v5006 = vunpack.c.l.b16 %v1546
        %v5007 = vunpack.c.l.b16 %v1547
        %v5008 = vunpack.c.l.b16 %v1548
        %v5009 = vunpack.c.l.b16 %v1549
        %v5010 = vunpack.c.l.b16 %v1550
        %v5011 = vunpack.c.l.b16 %v1551
        %v5012 = vunpack.c.l.b16 %v1552
        %v5013 = vunpack.c.l.b16 %v1553
        %v5014 = vunpack.c.l.b16 %v1554
        %v5015 = vunpack.c.l.b16 %v1555
        %v5016 = vunpack.c.l.b16 %v1556
        %v5017 = vunpack.c.l.b16 %v1557
        %v5018 = vunpack.c.l.b16 %v1558
        %v5019 = vunpack.c.l.b16 %v1559
        %v5020 = vunpack.c.l.b16 %v1560
        %v5021 = vunpack.c.l.b16 %v1561
        %v5022 = vunpack.c.l.b16 %v1562
        %v5023 = vunpack.c.l.b16 %v1563
        %v5024 = vunpack.c.l.b16 %v1564
        %v5025 = vunpack.c.l.b16 %v1565
        %v5026 = vunpack.c.l.b16 %v1566
        %v5027 = vunpack.c.l.b16 %v1567
        %v5028 = vunpack.c.l.b16 %v1568
        %v5029 = vunpack.c.l.b16 %v1569
        %v5030 = vunpack.c.l.b16 %v1570
        %v5031 = vunpack.c.l.b16 %v1571
        %v5032 = vunpack.c.l.b16 %v1572
        %v5033 = vunpack.c.l.b16 %v1573
        %v5034 = vunpack.c.l.b16 %v1574
        %v5035 = vunpack.c.l.b16 %v1575
        %v5036 = vunpack.c.l.b16 %v1576
        %v5037 = vunpack.c.l.b16 %v1577
        %v5038 = vunpack.c.l.b16 %v1578
        %v5039 = vunpack.c.l.b16 %v1579
        %v5040 = vunpack.c.l.b16 %v1580
        %v5041 = vunpack.c.l.b16 %v1581
        %v5042 = vunpack.c.l.b16 %v1582
        %v5043 = vunpack.c.l.b16 %v1583
        %v5044 = vunpack.c.l.b16 %v1584
        %v5045 = vunpack.c.l.b16 %v1585
        %v5046 = vunpack.c.l.b16 %v1586
        %v5047 = vunpack.c.l.b16 %v1587
        %v5048 = vunpack.c.l.b16 %v1588
        %v5049 = vpack.c.b16 %v4282, %v4281
        %v5050 = vpack.c.b16 %v4284, %v4283
        %v5051 = vpack.c.b16 %v4286, %v4285
        %v5052 = vpack.c.b16 %v4288, %v4287
        %v5053 = vpack.c.b16 %v4290, %v4289
        %v5054 = vpack.c.b16 %v4292, %v4291
        %v5055 = vpack.c.b16 %v4294, %v4293
        %v5056 = vpack.c.b16 %v4296, %v4295
        %v5057 = vpack.c.b16 %v4298, %v4297
        %v5058 = vpack.c.b16 %v4300, %v4299
        %v5059 = vpack.c.b16 %v4302, %v4301
        %v5060 = vpack.c.b16 %v4304, %v4303
        %v5061 = vpack.c.b16 %v4306, %v4305
        %v5062 = vpack.c.b16 %v4308, %v4307
        %v5063 = vpack.c.b16 %v4310, %v4309
        %v5064 = vpack.c.b16 %v4312, %v4311
        %v5065 = vpack.c.b16 %v4314, %v4313
        %v5066 = vpack.c.b16 %v4316, %v4315
        %v5067 = vpack.c.b16 %v4318, %v4317
        %v5068 = vpack.c.b16 %v4320, %v4319
        %v5069 = vpack.c.b16 %v4322, %v4321
        %v5070 = vpack.c.b16 %v4324, %v4323
        %v5071 = vpack.c.b16 %v4326, %v4325
        %v5072 = vpack.c.b16 %v4328, %v4327
        %v5073 = vpack.c.b16 %v4330, %v4329
        %v5074 = vpack.c.b16 %v4332, %v4331
        %v5075 = vpack.c.b16 %v4334, %v4333
        %v5076 = vpack.c.b16 %v4336, %v4335
        %v5077 = vpack.c.b16 %v4338, %v4337
        %v5078 = vpack.c.b16 %v4340, %v4339
        %v5079 = vpack.c.b16 %v4342, %v4341
        %v5080 = vpack.c.b16 %v4344, %v4343
        %v5081 = vpack.c.b16 %v4346, %v4345
        %v5082 = vpack.c.b16 %v4348, %v4347
        %v5083 = vpack.c.b16 %v4350, %v4349
        %v5084 = vpack.c.b16 %v4352, %v4351
        %v5085 = vpack.c.b16 %v4354, %v4353
        %v5086 = vpack.c.b16 %v4356, %v4355
        %v5087 = vpack.c.b16 %v4358, %v4357
        %v5088 = vpack.c.b16 %v4360, %v4359
        %v5089 = vpack.c.b16 %v4362, %v4361
        %v5090 = vpack.c.b16 %v4364, %v4363
        %v5091 = vpack.c.b16 %v4366, %v4365
        %v5092 = vpack.c.b16 %v4368, %v4367
        %v5093 = vpack.c.b16 %v4370, %v4369
        %v5094 = vpack.c.b16 %v4372, %v4371
        %v5095 = vpack.c.b16 %v4374, %v4373
        %v5096 = vpack.c.b16 %v4376, %v4375
        %v5097 = vpack.c.b16 %v4378, %v4377
        %v5098 = vpack.c.b16 %v4380, %v4379
        %v5099 = vpack.c.b16 %v4382, %v4381
        %v5100 = vpack.c.b16 %v4384, %v4383
        %v5101 = vpack.c.b16 %v4386, %v4385
        %v5102 = vpack.c.b16 %v4388, %v4387
        %v5103 = vpack.c.b16 %v4390, %v4389
        %v5104 = vpack.c.b16 %v4392, %v4391
        %v5105 = vpack.c.b16 %v4394, %v4393
        %v5106 = vpack.c.b16 %v4396, %v4395
        %v5107 = vpack.c.b16 %v4398, %v4397
        %v5108 = vpack.c.b16 %v4400, %v4399
        %v5109 = vpack.c.b16 %v4402, %v4401
        %v5110 = vpack.c.b16 %v4404, %v4403
        %v5111 = vpack.c.b16 %v4406, %v4405
        %v5112 = vpack.c.b16 %v4408, %v4407
        %v5113 = vpack.c.b16 %v4410, %v4409
        %v5114 = vpack.c.b16 %v4412, %v4411
        %v5115 = vpack.c.b16 %v4414, %v4413
        %v5116 = vpack.c.b16 %v4416, %v4415
        %v5117 = vpack.c.b16 %v4418, %v4417
        %v5118 = vpack.c.b16 %v4420, %v4419
        %v5119 = vpack.c.b16 %v4422, %v4421
        %v5120 = vpack.c.b16 %v4424, %v4423
        %v5121 = vpack.c.b16 %v4426, %v4425
        %v5122 = vpack.c.b16 %v4428, %v4427
        %v5123 = vpack.c.b16 %v4430, %v4429
        %v5124 = vpack.c.b16 %v4432, %v4431
        %v5125 = vpack.c.b16 %v4434, %v4433
        %v5126 = vpack.c.b16 %v4436, %v4435
        %v5127 = vpack.c.b16 %v4438, %v4437
        %v5128 = vpack.c.b16 %v4440, %v4439
        %v5129 = vpack.c.b16 %v4442, %v4441
        %v5130 = vpack.c.b16 %v4444, %v4443
        %v5131 = vpack.c.b16 %v4446, %v4445
        %v5132 = vpack.c.b16 %v4448, %v4447
        %v5133 = vpack.c.b16 %v4450, %v4449
        %v5134 = vpack.c.b16 %v4452, %v4451
        %v5135 = vpack.c.b16 %v4454, %v4453
        %v5136 = vpack.c.b16 %v4456, %v4455
        %v5137 = vpack.c.b16 %v4458, %v4457
        %v5138 = vpack.c.b16 %v4460, %v4459
        %v5139 = vpack.c.b16 %v4462, %v4461
        %v5140 = vpack.c.b16 %v4464, %v4463
        %v5141 = vpack.c.b16 %v4466, %v4465
        %v5142 = vpack.c.b16 %v4468, %v4467
        %v5143 = vpack.c.b16 %v4470, %v4469
        %v5144 = vpack.c.b16 %v4472, %v4471
        %v5145 = vpack.c.b16 %v4474, %v4473
        %v5146 = vpack.c.b16 %v4476, %v4475
        %v5147 = vpack.c.b16 %v4478, %v4477
        %v5148 = vpack.c.b16 %v4480, %v4479
        %v5149 = vpack.c.b16 %v4482, %v4481
        %v5150 = vpack.c.b16 %v4484, %v4483
        %v5151 = vpack.c.b16 %v4486, %v4485
        %v5152 = vpack.c.b16 %v4488, %v4487
        %v5153 = vpack.c.b16 %v4490, %v4489
        %v5154 = vpack.c.b16 %v4492, %v4491
        %v5155 = vpack.c.b16 %v4494, %v4493
        %v5156 = vpack.c.b16 %v4496, %v4495
        %v5157 = vpack.c.b16 %v4498, %v4497
        %v5158 = vpack.c.b16 %v4500, %v4499
        %v5159 = vpack.c.b16 %v4502, %v4501
        %v5160 = vpack.c.b16 %v4504, %v4503
        %v5161 = vpack.c.b16 %v4506, %v4505
        %v5162 = vpack.c.b16 %v4508, %v4507
        %v5163 = vpack.c.b16 %v4510, %v4509
        %v5164 = vpack.c.b16 %v4512, %v4511
        %v5165 = vpack.c.b16 %v4514, %v4513
        %v5166 = vpack.c.b16 %v4516, %v4515
        %v5167 = vpack.c.b16 %v4518, %v4517
        %v5168 = vpack.c.b16 %v4520, %v4519
        %v5169 = vpack.c.b16 %v4522, %v4521
        %v5170 = vpack.c.b16 %v4524, %v4523
        %v5171 = vpack.c.b16 %v4526, %v4525
        %v5172 = vpack.c.b16 %v4528, %v4527
        %v5173 = vpack.c.b16 %v4530, %v4529
        %v5174 = vpack.c.b16 %v4532, %v4531
        %v5175 = vpack.c.b16 %v4534, %v4533
        %v5176 = vpack.c.b16 %v4536, %v4535
        %v5177 = vpack.c.b16 %v4538, %v4537
        %v5178 = vpack.c.b16 %v4540, %v4539
        %v5179 = vpack.c.b16 %v4542, %v4541
        %v5180 = vpack.c.b16 %v4544, %v4543
        %v5181 = vpack.c.b16 %v4546, %v4545
        %v5182 = vpack.c.b16 %v4548, %v4547
        %v5183 = vpack.c.b16 %v4550, %v4549
        %v5184 = vpack.c.b16 %v4552, %v4551
        %v5185 = vpack.c.b16 %v4554, %v4553
        %v5186 = vpack.c.b16 %v4556, %v4555
        %v5187 = vpack.c.b16 %v4558, %v4557
        %v5188 = vpack.c.b16 %v4560, %v4559
        %v5189 = vpack.c.b16 %v4562, %v4561
        %v5190 = vpack.c.b16 %v4564, %v4563
        %v5191 = vpack.c.b16 %v4566, %v4565
        %v5192 = vpack.c.b16 %v4568, %v4567
        %v5193 = vpack.c.b16 %v4570, %v4569
        %v5194 = vpack.c.b16 %v4572, %v4571
        %v5195 = vpack.c.b16 %v4574, %v4573
        %v5196 = vpack.c.b16 %v4576, %v4575
        %v5197 = vpack.c.b16 %v4578, %v4577
        %v5198 = vpack.c.b16 %v4580, %v4579
        %v5199 = vpack.c.b16 %v4582, %v4581
        %v5200 = vpack.c.b16 %v4584, %v4583
        %v5201 = vpack.c.b16 %v4586, %v4585
        %v5202 = vpack.c.b16 %v4588, %v4587
        %v5203 = vpack.c.b16 %v4590, %v4589
        %v5204 = vpack.c.b16 %v4592, %v4591
        %v5205 = vpack.c.b16 %v4594, %v4593
        %v5206 = vpack.c.b16 %v4596, %v4595
        %v5207 = vpack.c.b16 %v4598, %v4597
        %v5208 = vpack.c.b16 %v4600, %v4599
        %v5209 = vpack.c.b16 %v4602, %v4601
        %v5210 = vpack.c.b16 %v4604, %v4603
        %v5211 = vpack.c.b16 %v4606, %v4605
        %v5212 = vpack.c.b16 %v4608, %v4607
        %v5213 = vpack.c.b16 %v4610, %v4609
        %v5214 = vpack.c.b16 %v4612, %v4611
        %v5215 = vpack.c.b16 %v4614, %v4613
        %v5216 = vpack.c.b16 %v4616, %v4615
        %v5217 = vpack.c.b16 %v4618, %v4617
        %v5218 = vpack.c.b16 %v4620, %v4619
        %v5219 = vpack.c.b16 %v4622, %v4621
        %v5220 = vpack.c.b16 %v4624, %v4623
        %v5221 = vpack.c.b16 %v4626, %v4625
        %v5222 = vpack.c.b16 %v4628, %v4627
        %v5223 = vpack.c.b16 %v4630, %v4629
        %v5224 = vpack.c.b16 %v4632, %v4631
        %v5225 = vpack.c.b16 %v4634, %v4633
        %v5226 = vpack.c.b16 %v4636, %v4635
        %v5227 = vpack.c.b16 %v4638, %v4637
        %v5228 = vpack.c.b16 %v4640, %v4639
        %v5229 = vpack.c.b16 %v4642, %v4641
        %v5230 = vpack.c.b16 %v4644, %v4643
        %v5231 = vpack.c.b16 %v4646, %v4645
        %v5232 = vpack.c.b16 %v4648, %v4647
        %v5233 = vpack.c.b16 %v4650, %v4649
        %v5234 = vpack.c.b16 %v4652, %v4651
        %v5235 = vpack.c.b16 %v4654, %v4653
        %v5236 = vpack.c.b16 %v4656, %v4655
        %v5237 = vpack.c.b16 %v4658, %v4657
        %v5238 = vpack.c.b16 %v4660, %v4659
        %v5239 = vpack.c.b16 %v4662, %v4661
        %v5240 = vpack.c.b16 %v4664, %v4663
        %v5241 = vpack.c.b16 %v4666, %v4665
        %v5242 = vpack.c.b16 %v4668, %v4667
        %v5243 = vpack.c.b16 %v4670, %v4669
        %v5244 = vpack.c.b16 %v4672, %v4671
        %v5245 = vpack.c.b16 %v4674, %v4673
        %v5246 = vpack.c.b16 %v4676, %v4675
        %v5247 = vpack.c.b16 %v4678, %v4677
        %v5248 = vpack.c.b16 %v4680, %v4679
        %v5249 = vpack.c.b16 %v4682, %v4681
        %v5250 = vpack.c.b16 %v4684, %v4683
        %v5251 = vpack.c.b16 %v4686, %v4685
        %v5252 = vpack.c.b16 %v4688, %v4687
        %v5253 = vpack.c.b16 %v4690, %v4689
        %v5254 = vpack.c.b16 %v4692, %v4691
        %v5255 = vpack.c.b16 %v4694, %v4693
        %v5256 = vpack.c.b16 %v4696, %v4695
        %v5257 = vpack.c.b16 %v4698, %v4697
        %v5258 = vpack.c.b16 %v4700, %v4699
        %v5259 = vpack.c.b16 %v4702, %v4701
        %v5260 = vpack.c.b16 %v4704, %v4703
        %v5261 = vpack.c.b16 %v4706, %v4705
        %v5262 = vpack.c.b16 %v4708, %v4707
        %v5263 = vpack.c.b16 %v4710, %v4709
        %v5264 = vpack.c.b16 %v4712, %v4711
        %v5265 = vpack.c.b16 %v4714, %v4713
        %v5266 = vpack.c.b16 %v4716, %v4715
        %v5267 = vpack.c.b16 %v4718, %v4717
        %v5268 = vpack.c.b16 %v4720, %v4719
        %v5269 = vpack.c.b16 %v4722, %v4721
        %v5270 = vpack.c.b16 %v4724, %v4723
        %v5271 = vpack.c.b16 %v4726, %v4725
        %v5272 = vpack.c.b16 %v4728, %v4727
        %v5273 = vpack.c.b16 %v4730, %v4729
        %v5274 = vpack.c.b16 %v4732, %v4731
        %v5275 = vpack.c.b16 %v4734, %v4733
        %v5276 = vpack.c.b16 %v4736, %v4735
        %v5277 = vpack.c.b16 %v4738, %v4737
        %v5278 = vpack.c.b16 %v4740, %v4739
        %v5279 = vpack.c.b16 %v4742, %v4741
        %v5280 = vpack.c.b16 %v4744, %v4743
        %v5281 = vpack.c.b16 %v4746, %v4745
        %v5282 = vpack.c.b16 %v4748, %v4747
        %v5283 = vpack.c.b16 %v4750, %v4749
        %v5284 = vpack.c.b16 %v4752, %v4751
        %v5285 = vpack.c.b16 %v4754, %v4753
        %v5286 = vpack.c.b16 %v4756, %v4755
        %v5287 = vpack.c.b16 %v4758, %v4757
        %v5288 = vpack.c.b16 %v4760, %v4759
        %v5289 = vpack.c.b16 %v4762, %v4761
        %v5290 = vpack.c.b16 %v4764, %v4763
        %v5291 = vpack.c.b16 %v4766, %v4765
        %v5292 = vpack.c.b16 %v4768, %v4767
        %v5293 = vpack.c.b16 %v4770, %v4769
        %v5294 = vpack.c.b16 %v4772, %v4771
        %v5295 = vpack.c.b16 %v4774, %v4773
        %v5296 = vpack.c.b16 %v4776, %v4775
        %v5297 = vpack.c.b16 %v4778, %v4777
        %v5298 = vpack.c.b16 %v4780, %v4779
        %v5299 = vpack.c.b16 %v4782, %v4781
        %v5300 = vpack.c.b16 %v4784, %v4783
        %v5301 = vpack.c.b16 %v4786, %v4785
        %v5302 = vpack.c.b16 %v4788, %v4787
        %v5303 = vpack.c.b16 %v4790, %v4789
        %v5304 = vpack.c.b16 %v4792, %v4791
        %v5305 = vpack.c.b16 %v4794, %v4793
        %v5306 = vpack.c.b16 %v4796, %v4795
        %v5307 = vpack.c.b16 %v4798, %v4797
        %v5308 = vpack.c.b16 %v4800, %v4799
        %v5309 = vpack.c.b16 %v4802, %v4801
        %v5310 = vpack.c.b16 %v4804, %v4803
        %v5311 = vpack.c.b16 %v4806, %v4805
        %v5312 = vpack.c.b16 %v4808, %v4807
        %v5313 = vpack.c.b16 %v4810, %v4809
        %v5314 = vpack.c.b16 %v4812, %v4811
        %v5315 = vpack.c.b16 %v4814, %v4813
        %v5316 = vpack.c.b16 %v4816, %v4815
        %v5317 = vpack.c.b16 %v4818, %v4817
        %v5318 = vpack.c.b16 %v4820, %v4819
        %v5319 = vpack.c.b16 %v4822, %v4821
        %v5320 = vpack.c.b16 %v4824, %v4823
        %v5321 = vpack.c.b16 %v4826, %v4825
        %v5322 = vpack.c.b16 %v4828, %v4827
        %v5323 = vpack.c.b16 %v4830, %v4829
        %v5324 = vpack.c.b16 %v4832, %v4831
        %v5325 = vpack.c.b16 %v4834, %v4833
        %v5326 = vpack.c.b16 %v4836, %v4835
        %v5327 = vpack.c.b16 %v4838, %v4837
        %v5328 = vpack.c.b16 %v4840, %v4839
        %v5329 = vpack.c.b16 %v4842, %v4841
        %v5330 = vpack.c.b16 %v4844, %v4843
        %v5331 = vpack.c.b16 %v4846, %v4845
        %v5332 = vpack.c.b16 %v4848, %v4847
        %v5333 = vpack.c.b16 %v4850, %v4849
        %v5334 = vpack.c.b16 %v4852, %v4851
        %v5335 = vpack.c.b16 %v4854, %v4853
        %v5336 = vpack.c.b16 %v4856, %v4855
        %v5337 = vpack.c.b16 %v4858, %v4857
        %v5338 = vpack.c.b16 %v4860, %v4859
        %v5339 = vpack.c.b16 %v4862, %v4861
        %v5340 = vpack.c.b16 %v4864, %v4863
        %v5341 = vpack.c.b16 %v4866, %v4865
        %v5342 = vpack.c.b16 %v4868, %v4867
        %v5343 = vpack.c.b16 %v4870, %v4869
        %v5344 = vpack.c.b16 %v4872, %v4871
        %v5345 = vpack.c.b16 %v4874, %v4873
        %v5346 = vpack.c.b16 %v4876, %v4875
        %v5347 = vpack.c.b16 %v4878, %v4877
        %v5348 = vpack.c.b16 %v4880, %v4879
        %v5349 = vpack.c.b16 %v4882, %v4881
        %v5350 = vpack.c.b16 %v4884, %v4883
        %v5351 = vpack.c.b16 %v4886, %v4885
        %v5352 = vpack.c.b16 %v4888, %v4887
        %v5353 = vpack.c.b16 %v4890, %v4889
        %v5354 = vpack.c.b16 %v4892, %v4891
        %v5355 = vpack.c.b16 %v4894, %v4893
        %v5356 = vpack.c.b16 %v4896, %v4895
        %v5357 = vpack.c.b16 %v4898, %v4897
        %v5358 = vpack.c.b16 %v4900, %v4899
        %v5359 = vpack.c.b16 %v4902, %v4901
        %v5360 = vpack.c.b16 %v4904, %v4903
        %v5361 = vpack.c.b16 %v4906, %v4905
        %v5362 = vpack.c.b16 %v4908, %v4907
        %v5363 = vpack.c.b16 %v4910, %v4909
        %v5364 = vpack.c.b16 %v4912, %v4911
        %v5365 = vpack.c.b16 %v4914, %v4913
        %v5366 = vpack.c.b16 %v4916, %v4915
        %v5367 = vpack.c.b16 %v4918, %v4917
        %v5368 = vpack.c.b16 %v4920, %v4919
        %v5369 = vpack.c.b16 %v4922, %v4921
        %v5370 = vpack.c.b16 %v4924, %v4923
        %v5371 = vpack.c.b16 %v4926, %v4925
        %v5372 = vpack.c.b16 %v4928, %v4927
        %v5373 = vpack.c.b16 %v4930, %v4929
        %v5374 = vpack.c.b16 %v4932, %v4931
        %v5375 = vpack.c.b16 %v4934, %v4933
        %v5376 = vpack.c.b16 %v4936, %v4935
        %v5377 = vpack.c.b16 %v4938, %v4937
        %v5378 = vpack.c.b16 %v4940, %v4939
        %v5379 = vpack.c.b16 %v4942, %v4941
        %v5380 = vpack.c.b16 %v4944, %v4943
        %v5381 = vpack.c.b16 %v4946, %v4945
        %v5382 = vpack.c.b16 %v4948, %v4947
        %v5383 = vpack.c.b16 %v4950, %v4949
        %v5384 = vpack.c.b16 %v4952, %v4951
        %v5385 = vpack.c.b16 %v4954, %v4953
        %v5386 = vpack.c.b16 %v4956, %v4955
        %v5387 = vpack.c.b16 %v4958, %v4957
        %v5388 = vpack.c.b16 %v4960, %v4959
        %v5389 = vpack.c.b16 %v4962, %v4961
        %v5390 = vpack.c.b16 %v4964, %v4963
        %v5391 = vpack.c.b16 %v4966, %v4965
        %v5392 = vpack.c.b16 %v4968, %v4967
        %v5393 = vpack.c.b16 %v4970, %v4969
        %v5394 = vpack.c.b16 %v4972, %v4971
        %v5395 = vpack.c.b16 %v4974, %v4973
        %v5396 = vpack.c.b16 %v4976, %v4975
        %v5397 = vpack.c.b16 %v4978, %v4977
        %v5398 = vpack.c.b16 %v4980, %v4979
        %v5399 = vpack.c.b16 %v4982, %v4981
        %v5400 = vpack.c.b16 %v4984, %v4983
        %v5401 = vpack.c.b16 %v4986, %v4985
        %v5402 = vpack.c.b16 %v4988, %v4987
        %v5403 = vpack.c.b16 %v4990, %v4989
        %v5404 = vpack.c.b16 %v4992, %v4991
        %v5405 = vpack.c.b16 %v4994, %v4993
        %v5406 = vpack.c.b16 %v4996, %v4995
        %v5407 = vpack.c.b16 %v4998, %v4997
        %v5408 = vpack.c.b16 %v5000, %v4999
        %v5409 = vpack.c.b16 %v5002, %v5001
        %v5410 = vpack.c.b16 %v5004, %v5003
        %v5411 = vpack.c.b16 %v5006, %v5005
        %v5412 = vpack.c.b16 %v5008, %v5007
        %v5413 = vpack.c.b16 %v5010, %v5009
        %v5414 = vpack.c.b16 %v5012, %v5011
        %v5415 = vpack.c.b16 %v5014, %v5013
        %v5416 = vpack.c.b16 %v5016, %v5015
        %v5417 = vpack.c.b16 %v5018, %v5017
        %v5418 = vpack.c.b16 %v5020, %v5019
        %v5419 = vpack.c.b16 %v5022, %v5021
        %v5420 = vpack.c.b16 %v5024, %v5023
        %v5421 = vpack.c.b16 %v5026, %v5025
        %v5422 = vpack.c.b16 %v5028, %v5027
        %v5423 = vpack.c.b16 %v5030, %v5029
        %v5424 = vpack.c.b16 %v5032, %v5031
        %v5425 = vpack.c.b16 %v5034, %v5033
        %v5426 = vpack.c.b16 %v5036, %v5035
        %v5427 = vpack.c.b16 %v5038, %v5037
        %v5428 = vpack.c.b16 %v5040, %v5039
        %v5429 = vpack.c.b16 %v5042, %v5041
        %v5430 = vpack.c.b16 %v5044, %v5043
        %v5431 = vpack.c.b16 %v5046, %v5045
        %v5432 = vpack.c.b16 %v5048, %v5047
        %5817 = vmatpush.bf16.msra.mxu0 %v5056
        %5818 = vmatpush.bf16.msra.mxu0 %v5055
        %5819 = vmatpush.bf16.msra.mxu0 %v5054
        %5820 = vmatpush.bf16.msra.mxu0 %v5053
        %5821 = vmatpush.bf16.msra.mxu0 %v5052
        %5822 = vmatpush.bf16.msra.mxu0 %v5051
        %5823 = vmatpush.bf16.msra.mxu0 %v5050
        %5824 = vmatpush.bf16.msra.mxu0 %v5049
        %5825 = vmatmul.bf16.gmra.mxu0 %v2745
        %v5826 = vpop.f32.mrf.mxu0
        %v5827 = vadd.f32 %v1591, %v5826
        %v5828 = vpop.f32.mrf.mxu0
        %v5829 = vadd.f32 %v1591, %v5828
        %5830 = vmatmul.bf16.gmra.mxu0 %v2793
        %v5831 = vpop.f32.mrf.mxu0
        %v5832 = vadd.f32 %v1591, %v5831
        %v5833 = vpop.f32.mrf.mxu0
        %v5834 = vadd.f32 %v1591, %v5833
        %5835 = vmatmul.bf16.gmra.mxu0 %v2841
        %v5836 = vpop.f32.mrf.mxu0
        %v5837 = vadd.f32 %v1591, %v5836
        %v5838 = vpop.f32.mrf.mxu0
        %v5839 = vadd.f32 %v1591, %v5838
        %5840 = vmatmul.bf16.gmra.mxu0 %v2889
        %v5841 = vpop.f32.mrf.mxu0
        %v5842 = vadd.f32 %v1591, %v5841
        %v5843 = vpop.f32.mrf.mxu0
        %v5844 = vadd.f32 %v1591, %v5843
        %5845 = vmatmul.bf16.gmra.mxu0 %v2937
        %v5846 = vpop.f32.mrf.mxu0
        %v5847 = vadd.f32 %v1591, %v5846
        %v5848 = vpop.f32.mrf.mxu0
        %v5849 = vadd.f32 %v1591, %v5848
        %5850 = vmatmul.bf16.gmra.mxu0 %v2985
        %v5851 = vpop.f32.mrf.mxu0
        %v5852 = vadd.f32 %v1591, %v5851
        %v5853 = vpop.f32.mrf.mxu0
        %v5854 = vadd.f32 %v1591, %v5853
        %5855 = vmatmul.bf16.gmra.mxu0 %v3033
        %v5856 = vpop.f32.mrf.mxu0
        %v5857 = vadd.f32 %v1591, %v5856
        %v5858 = vpop.f32.mrf.mxu0
        %v5859 = vadd.f32 %v1591, %v5858
        %5860 = vmatmul.bf16.gmra.mxu0 %v3081
        %v5861 = vpop.f32.mrf.mxu0
        %v5862 = vadd.f32 %v1591, %v5861
        %v5863 = vpop.f32.mrf.mxu0
        %v5864 = vadd.f32 %v1591, %v5863
        %5865 = vdwg.mxu0
        %5866 = vmatpush.bf16.msra.mxu0 %v5064
        %5867 = vmatpush.bf16.msra.mxu0 %v5063
        %5868 = vmatpush.bf16.msra.mxu0 %v5062
        %5869 = vmatpush.bf16.msra.mxu0 %v5061
        %5870 = vmatpush.bf16.msra.mxu0 %v5060
        %5871 = vmatpush.bf16.msra.mxu0 %v5059
        %5872 = vmatpush.bf16.msra.mxu0 %v5058
        %5873 = vmatpush.bf16.msra.mxu0 %v5057
        %5874 = vmatmul.bf16.gmra.mxu0 %v2746
        %v5875 = vpop.f32.mrf.mxu0
        %v5876 = vadd.f32 %v5827, %v5875
        %v5877 = vpop.f32.mrf.mxu0
        %v5878 = vadd.f32 %v5829, %v5877
        %5879 = vmatmul.bf16.gmra.mxu0 %v2794
        %v5880 = vpop.f32.mrf.mxu0
        %v5881 = vadd.f32 %v5832, %v5880
        %v5882 = vpop.f32.mrf.mxu0
        %v5883 = vadd.f32 %v5834, %v5882
        %5884 = vmatmul.bf16.gmra.mxu0 %v2842
        %v5885 = vpop.f32.mrf.mxu0
        %v5886 = vadd.f32 %v5837, %v5885
        %v5887 = vpop.f32.mrf.mxu0
        %v5888 = vadd.f32 %v5839, %v5887
        %5889 = vmatmul.bf16.gmra.mxu0 %v2890
        %v5890 = vpop.f32.mrf.mxu0
        %v5891 = vadd.f32 %v5842, %v5890
        %v5892 = vpop.f32.mrf.mxu0
        %v5893 = vadd.f32 %v5844, %v5892
        %5894 = vmatmul.bf16.gmra.mxu0 %v2938
        %v5895 = vpop.f32.mrf.mxu0
        %v5896 = vadd.f32 %v5847, %v5895
        %v5897 = vpop.f32.mrf.mxu0
        %v5898 = vadd.f32 %v5849, %v5897
        %5899 = vmatmul.bf16.gmra.mxu0 %v2986
        %v5900 = vpop.f32.mrf.mxu0
        %v5901 = vadd.f32 %v5852, %v5900
        %v5902 = vpop.f32.mrf.mxu0
        %v5903 = vadd.f32 %v5854, %v5902
        %5904 = vmatmul.bf16.gmra.mxu0 %v3034
        %v5905 = vpop.f32.mrf.mxu0
        %v5906 = vadd.f32 %v5857, %v5905
        %v5907 = vpop.f32.mrf.mxu0
        %v5908 = vadd.f32 %v5859, %v5907
        %5909 = vmatmul.bf16.gmra.mxu0 %v3082
        %v5910 = vpop.f32.mrf.mxu0
        %v5911 = vadd.f32 %v5862, %v5910
        %v5912 = vpop.f32.mrf.mxu0
        %v5913 = vadd.f32 %v5864, %v5912
        %5914 = vdwg.mxu0
        %5915 = vmatpush.bf16.msra.mxu0 %v5072
        %5916 = vmatpush.bf16.msra.mxu0 %v5071
        %5917 = vmatpush.bf16.msra.mxu0 %v5070
        %5918 = vmatpush.bf16.msra.mxu0 %v5069
        %5919 = vmatpush.bf16.msra.mxu0 %v5068
        %5920 = vmatpush.bf16.msra.mxu0 %v5067
        %5921 = vmatpush.bf16.msra.mxu0 %v5066
        %5922 = vmatpush.bf16.msra.mxu0 %v5065
        %5923 = vmatmul.bf16.gmra.mxu0 %v2747
        %v5924 = vpop.f32.mrf.mxu0
        %v5925 = vadd.f32 %v5876, %v5924
        %v5926 = vpop.f32.mrf.mxu0
        %v5927 = vadd.f32 %v5878, %v5926
        %5928 = vmatmul.bf16.gmra.mxu0 %v2795
        %v5929 = vpop.f32.mrf.mxu0
        %v5930 = vadd.f32 %v5881, %v5929
        %v5931 = vpop.f32.mrf.mxu0
        %v5932 = vadd.f32 %v5883, %v5931
        %5933 = vmatmul.bf16.gmra.mxu0 %v2843
        %v5934 = vpop.f32.mrf.mxu0
        %v5935 = vadd.f32 %v5886, %v5934
        %v5936 = vpop.f32.mrf.mxu0
        %v5937 = vadd.f32 %v5888, %v5936
        %5938 = vmatmul.bf16.gmra.mxu0 %v2891
        %v5939 = vpop.f32.mrf.mxu0
        %v5940 = vadd.f32 %v5891, %v5939
        %v5941 = vpop.f32.mrf.mxu0
        %v5942 = vadd.f32 %v5893, %v5941
        %5943 = vmatmul.bf16.gmra.mxu0 %v2939
        %v5944 = vpop.f32.mrf.mxu0
        %v5945 = vadd.f32 %v5896, %v5944
        %v5946 = vpop.f32.mrf.mxu0
        %v5947 = vadd.f32 %v5898, %v5946
        %5948 = vmatmul.bf16.gmra.mxu0 %v2987
        %v5949 = vpop.f32.mrf.mxu0
        %v5950 = vadd.f32 %v5901, %v5949
        %v5951 = vpop.f32.mrf.mxu0
        %v5952 = vadd.f32 %v5903, %v5951
        %5953 = vmatmul.bf16.gmra.mxu0 %v3035
        %v5954 = vpop.f32.mrf.mxu0
        %v5955 = vadd.f32 %v5906, %v5954
        %v5956 = vpop.f32.mrf.mxu0
        %v5957 = vadd.f32 %v5908, %v5956
        %5958 = vmatmul.bf16.gmra.mxu0 %v3083
        %v5959 = vpop.f32.mrf.mxu0
        %v5960 = vadd.f32 %v5911, %v5959
        %v5961 = vpop.f32.mrf.mxu0
        %v5962 = vadd.f32 %v5913, %v5961
        %5963 = vdwg.mxu0
        %5964 = vmatpush.bf16.msra.mxu0 %v5080
        %5965 = vmatpush.bf16.msra.mxu0 %v5079
        %5966 = vmatpush.bf16.msra.mxu0 %v5078
        %5967 = vmatpush.bf16.msra.mxu0 %v5077
        %5968 = vmatpush.bf16.msra.mxu0 %v5076
        %5969 = vmatpush.bf16.msra.mxu0 %v5075
        %5970 = vmatpush.bf16.msra.mxu0 %v5074
        %5971 = vmatpush.bf16.msra.mxu0 %v5073
        %5972 = vmatmul.bf16.gmra.mxu0 %v2748
        %v5973 = vpop.f32.mrf.mxu0
        %v5974 = vadd.f32 %v5925, %v5973
        %v5975 = vpop.f32.mrf.mxu0
        %v5976 = vadd.f32 %v5927, %v5975
        %5977 = vmatmul.bf16.gmra.mxu0 %v2796
        %v5978 = vpop.f32.mrf.mxu0
        %v5979 = vadd.f32 %v5930, %v5978
        %v5980 = vpop.f32.mrf.mxu0
        %v5981 = vadd.f32 %v5932, %v5980
        %5982 = vmatmul.bf16.gmra.mxu0 %v2844
        %v5983 = vpop.f32.mrf.mxu0
        %v5984 = vadd.f32 %v5935, %v5983
        %v5985 = vpop.f32.mrf.mxu0
        %v5986 = vadd.f32 %v5937, %v5985
        %5987 = vmatmul.bf16.gmra.mxu0 %v2892
        %v5988 = vpop.f32.mrf.mxu0
        %v5989 = vadd.f32 %v5940, %v5988
        %v5990 = vpop.f32.mrf.mxu0
        %v5991 = vadd.f32 %v5942, %v5990
        %5992 = vmatmul.bf16.gmra.mxu0 %v2940
        %v5993 = vpop.f32.mrf.mxu0
        %v5994 = vadd.f32 %v5945, %v5993
        %v5995 = vpop.f32.mrf.mxu0
        %v5996 = vadd.f32 %v5947, %v5995
        %5997 = vmatmul.bf16.gmra.mxu0 %v2988
        %v5998 = vpop.f32.mrf.mxu0
        %v5999 = vadd.f32 %v5950, %v5998
        %v6000 = vpop.f32.mrf.mxu0
        %v6001 = vadd.f32 %v5952, %v6000
        %6002 = vmatmul.bf16.gmra.mxu0 %v3036
        %v6003 = vpop.f32.mrf.mxu0
        %v6004 = vadd.f32 %v5955, %v6003
        %v6005 = vpop.f32.mrf.mxu0
        %v6006 = vadd.f32 %v5957, %v6005
        %6007 = vmatmul.bf16.gmra.mxu0 %v3084
        %v6008 = vpop.f32.mrf.mxu0
        %v6009 = vadd.f32 %v5960, %v6008
        %v6010 = vpop.f32.mrf.mxu0
        %v6011 = vadd.f32 %v5962, %v6010
        %6012 = vdwg.mxu0
        %6013 = vmatpush.bf16.msra.mxu0 %v5088
        %6014 = vmatpush.bf16.msra.mxu0 %v5087
        %6015 = vmatpush.bf16.msra.mxu0 %v5086
        %6016 = vmatpush.bf16.msra.mxu0 %v5085
        %6017 = vmatpush.bf16.msra.mxu0 %v5084
        %6018 = vmatpush.bf16.msra.mxu0 %v5083
        %6019 = vmatpush.bf16.msra.mxu0 %v5082
        %6020 = vmatpush.bf16.msra.mxu0 %v5081
        %6021 = vmatmul.bf16.gmra.mxu0 %v2749
        %v6022 = vpop.f32.mrf.mxu0
        %v6023 = vadd.f32 %v5974, %v6022
        %v6024 = vpop.f32.mrf.mxu0
        %v6025 = vadd.f32 %v5976, %v6024
        %6026 = vmatmul.bf16.gmra.mxu0 %v2797
        %v6027 = vpop.f32.mrf.mxu0
        %v6028 = vadd.f32 %v5979, %v6027
        %v6029 = vpop.f32.mrf.mxu0
        %v6030 = vadd.f32 %v5981, %v6029
        %6031 = vmatmul.bf16.gmra.mxu0 %v2845
        %v6032 = vpop.f32.mrf.mxu0
        %v6033 = vadd.f32 %v5984, %v6032
        %v6034 = vpop.f32.mrf.mxu0
        %v6035 = vadd.f32 %v5986, %v6034
        %6036 = vmatmul.bf16.gmra.mxu0 %v2893
        %v6037 = vpop.f32.mrf.mxu0
        %v6038 = vadd.f32 %v5989, %v6037
        %v6039 = vpop.f32.mrf.mxu0
        %v6040 = vadd.f32 %v5991, %v6039
        %6041 = vmatmul.bf16.gmra.mxu0 %v2941
        %v6042 = vpop.f32.mrf.mxu0
        %v6043 = vadd.f32 %v5994, %v6042
        %v6044 = vpop.f32.mrf.mxu0
        %v6045 = vadd.f32 %v5996, %v6044
        %6046 = vmatmul.bf16.gmra.mxu0 %v2989
        %v6047 = vpop.f32.mrf.mxu0
        %v6048 = vadd.f32 %v5999, %v6047
        %v6049 = vpop.f32.mrf.mxu0
        %v6050 = vadd.f32 %v6001, %v6049
        %6051 = vmatmul.bf16.gmra.mxu0 %v3037
        %v6052 = vpop.f32.mrf.mxu0
        %v6053 = vadd.f32 %v6004, %v6052
        %v6054 = vpop.f32.mrf.mxu0
        %v6055 = vadd.f32 %v6006, %v6054
        %6056 = vmatmul.bf16.gmra.mxu0 %v3085
        %v6057 = vpop.f32.mrf.mxu0
        %v6058 = vadd.f32 %v6009, %v6057
        %v6059 = vpop.f32.mrf.mxu0
        %v6060 = vadd.f32 %v6011, %v6059
        %6061 = vdwg.mxu0
        %6062 = vmatpush.bf16.msra.mxu0 %v5096
        %6063 = vmatpush.bf16.msra.mxu0 %v5095
        %6064 = vmatpush.bf16.msra.mxu0 %v5094
        %6065 = vmatpush.bf16.msra.mxu0 %v5093
        %6066 = vmatpush.bf16.msra.mxu0 %v5092
        %6067 = vmatpush.bf16.msra.mxu0 %v5091
        %6068 = vmatpush.bf16.msra.mxu0 %v5090
        %6069 = vmatpush.bf16.msra.mxu0 %v5089
        %6070 = vmatmul.bf16.gmra.mxu0 %v2750
        %v6071 = vpop.f32.mrf.mxu0
        %v6072 = vadd.f32 %v6023, %v6071
        %v6073 = vpop.f32.mrf.mxu0
        %v6074 = vadd.f32 %v6025, %v6073
        %6075 = vmatmul.bf16.gmra.mxu0 %v2798
        %v6076 = vpop.f32.mrf.mxu0
        %v6077 = vadd.f32 %v6028, %v6076
        %v6078 = vpop.f32.mrf.mxu0
        %v6079 = vadd.f32 %v6030, %v6078
        %6080 = vmatmul.bf16.gmra.mxu0 %v2846
        %v6081 = vpop.f32.mrf.mxu0
        %v6082 = vadd.f32 %v6033, %v6081
        %v6083 = vpop.f32.mrf.mxu0
        %v6084 = vadd.f32 %v6035, %v6083
        %6085 = vmatmul.bf16.gmra.mxu0 %v2894
        %v6086 = vpop.f32.mrf.mxu0
        %v6087 = vadd.f32 %v6038, %v6086
        %v6088 = vpop.f32.mrf.mxu0
        %v6089 = vadd.f32 %v6040, %v6088
        %6090 = vmatmul.bf16.gmra.mxu0 %v2942
        %v6091 = vpop.f32.mrf.mxu0
        %v6092 = vadd.f32 %v6043, %v6091
        %v6093 = vpop.f32.mrf.mxu0
        %v6094 = vadd.f32 %v6045, %v6093
        %6095 = vmatmul.bf16.gmra.mxu0 %v2990
        %v6096 = vpop.f32.mrf.mxu0
        %v6097 = vadd.f32 %v6048, %v6096
        %v6098 = vpop.f32.mrf.mxu0
        %v6099 = vadd.f32 %v6050, %v6098
        %6100 = vmatmul.bf16.gmra.mxu0 %v3038
        %v6101 = vpop.f32.mrf.mxu0
        %v6102 = vadd.f32 %v6053, %v6101
        %v6103 = vpop.f32.mrf.mxu0
        %v6104 = vadd.f32 %v6055, %v6103
        %6105 = vmatmul.bf16.gmra.mxu0 %v3086
        %v6106 = vpop.f32.mrf.mxu0
        %v6107 = vadd.f32 %v6058, %v6106
        %v6108 = vpop.f32.mrf.mxu0
        %v6109 = vadd.f32 %v6060, %v6108
        %6110 = vdwg.mxu0
        %6111 = vmatpush.bf16.msra.mxu0 %v5104
        %6112 = vmatpush.bf16.msra.mxu0 %v5103
        %6113 = vmatpush.bf16.msra.mxu0 %v5102
        %6114 = vmatpush.bf16.msra.mxu0 %v5101
        %6115 = vmatpush.bf16.msra.mxu0 %v5100
        %6116 = vmatpush.bf16.msra.mxu0 %v5099
        %6117 = vmatpush.bf16.msra.mxu0 %v5098
        %6118 = vmatpush.bf16.msra.mxu0 %v5097
        %6119 = vmatmul.bf16.gmra.mxu0 %v2751
        %v6120 = vpop.f32.mrf.mxu0
        %v6121 = vadd.f32 %v6072, %v6120
        %v6122 = vpop.f32.mrf.mxu0
        %v6123 = vadd.f32 %v6074, %v6122
        %6124 = vmatmul.bf16.gmra.mxu0 %v2799
        %v6125 = vpop.f32.mrf.mxu0
        %v6126 = vadd.f32 %v6077, %v6125
        %v6127 = vpop.f32.mrf.mxu0
        %v6128 = vadd.f32 %v6079, %v6127
        %6129 = vmatmul.bf16.gmra.mxu0 %v2847
        %v6130 = vpop.f32.mrf.mxu0
        %v6131 = vadd.f32 %v6082, %v6130
        %v6132 = vpop.f32.mrf.mxu0
        %v6133 = vadd.f32 %v6084, %v6132
        %6134 = vmatmul.bf16.gmra.mxu0 %v2895
        %v6135 = vpop.f32.mrf.mxu0
        %v6136 = vadd.f32 %v6087, %v6135
        %v6137 = vpop.f32.mrf.mxu0
        %v6138 = vadd.f32 %v6089, %v6137
        %6139 = vmatmul.bf16.gmra.mxu0 %v2943
        %v6140 = vpop.f32.mrf.mxu0
        %v6141 = vadd.f32 %v6092, %v6140
        %v6142 = vpop.f32.mrf.mxu0
        %v6143 = vadd.f32 %v6094, %v6142
        %6144 = vmatmul.bf16.gmra.mxu0 %v2991
        %v6145 = vpop.f32.mrf.mxu0
        %v6146 = vadd.f32 %v6097, %v6145
        %v6147 = vpop.f32.mrf.mxu0
        %v6148 = vadd.f32 %v6099, %v6147
        %6149 = vmatmul.bf16.gmra.mxu0 %v3039
        %v6150 = vpop.f32.mrf.mxu0
        %v6151 = vadd.f32 %v6102, %v6150
        %v6152 = vpop.f32.mrf.mxu0
        %v6153 = vadd.f32 %v6104, %v6152
        %6154 = vmatmul.bf16.gmra.mxu0 %v3087
        %v6155 = vpop.f32.mrf.mxu0
        %v6156 = vadd.f32 %v6107, %v6155
        %v6157 = vpop.f32.mrf.mxu0
        %v6158 = vadd.f32 %v6109, %v6157
        %6159 = vdwg.mxu0
        %6160 = vmatpush.bf16.msra.mxu0 %v5112
        %6161 = vmatpush.bf16.msra.mxu0 %v5111
        %6162 = vmatpush.bf16.msra.mxu0 %v5110
        %6163 = vmatpush.bf16.msra.mxu0 %v5109
        %6164 = vmatpush.bf16.msra.mxu0 %v5108
        %6165 = vmatpush.bf16.msra.mxu0 %v5107
        %6166 = vmatpush.bf16.msra.mxu0 %v5106
        %6167 = vmatpush.bf16.msra.mxu0 %v5105
        %6168 = vmatmul.bf16.gmra.mxu0 %v2752
        %v6169 = vpop.f32.mrf.mxu0
        %v6170 = vadd.f32 %v6121, %v6169
        %v6171 = vpop.f32.mrf.mxu0
        %v6172 = vadd.f32 %v6123, %v6171
        %6173 = vmatmul.bf16.gmra.mxu0 %v2800
        %v6174 = vpop.f32.mrf.mxu0
        %v6175 = vadd.f32 %v6126, %v6174
        %v6176 = vpop.f32.mrf.mxu0
        %v6177 = vadd.f32 %v6128, %v6176
        %6178 = vmatmul.bf16.gmra.mxu0 %v2848
        %v6179 = vpop.f32.mrf.mxu0
        %v6180 = vadd.f32 %v6131, %v6179
        %v6181 = vpop.f32.mrf.mxu0
        %v6182 = vadd.f32 %v6133, %v6181
        %6183 = vmatmul.bf16.gmra.mxu0 %v2896
        %v6184 = vpop.f32.mrf.mxu0
        %v6185 = vadd.f32 %v6136, %v6184
        %v6186 = vpop.f32.mrf.mxu0
        %v6187 = vadd.f32 %v6138, %v6186
        %6188 = vmatmul.bf16.gmra.mxu0 %v2944
        %v6189 = vpop.f32.mrf.mxu0
        %v6190 = vadd.f32 %v6141, %v6189
        %v6191 = vpop.f32.mrf.mxu0
        %v6192 = vadd.f32 %v6143, %v6191
        %6193 = vmatmul.bf16.gmra.mxu0 %v2992
        %v6194 = vpop.f32.mrf.mxu0
        %v6195 = vadd.f32 %v6146, %v6194
        %v6196 = vpop.f32.mrf.mxu0
        %v6197 = vadd.f32 %v6148, %v6196
        %6198 = vmatmul.bf16.gmra.mxu0 %v3040
        %v6199 = vpop.f32.mrf.mxu0
        %v6200 = vadd.f32 %v6151, %v6199
        %v6201 = vpop.f32.mrf.mxu0
        %v6202 = vadd.f32 %v6153, %v6201
        %6203 = vmatmul.bf16.gmra.mxu0 %v3088
        %v6204 = vpop.f32.mrf.mxu0
        %v6205 = vadd.f32 %v6156, %v6204
        %v6206 = vpop.f32.mrf.mxu0
        %v6207 = vadd.f32 %v6158, %v6206
        %6208 = vdwg.mxu0
        %6209 = vmatpush.bf16.msra.mxu0 %v5120
        %6210 = vmatpush.bf16.msra.mxu0 %v5119
        %6211 = vmatpush.bf16.msra.mxu0 %v5118
        %6212 = vmatpush.bf16.msra.mxu0 %v5117
        %6213 = vmatpush.bf16.msra.mxu0 %v5116
        %6214 = vmatpush.bf16.msra.mxu0 %v5115
        %6215 = vmatpush.bf16.msra.mxu0 %v5114
        %6216 = vmatpush.bf16.msra.mxu0 %v5113
        %6217 = vmatmul.bf16.gmra.mxu0 %v2753
        %v6218 = vpop.f32.mrf.mxu0
        %v6219 = vadd.f32 %v6170, %v6218
        %v6220 = vpop.f32.mrf.mxu0
        %v6221 = vadd.f32 %v6172, %v6220
        %6222 = vmatmul.bf16.gmra.mxu0 %v2801
        %v6223 = vpop.f32.mrf.mxu0
        %v6224 = vadd.f32 %v6175, %v6223
        %v6225 = vpop.f32.mrf.mxu0
        %v6226 = vadd.f32 %v6177, %v6225
        %6227 = vmatmul.bf16.gmra.mxu0 %v2849
        %v6228 = vpop.f32.mrf.mxu0
        %v6229 = vadd.f32 %v6180, %v6228
        %v6230 = vpop.f32.mrf.mxu0
        %v6231 = vadd.f32 %v6182, %v6230
        %6232 = vmatmul.bf16.gmra.mxu0 %v2897
        %v6233 = vpop.f32.mrf.mxu0
        %v6234 = vadd.f32 %v6185, %v6233
        %v6235 = vpop.f32.mrf.mxu0
        %v6236 = vadd.f32 %v6187, %v6235
        %6237 = vmatmul.bf16.gmra.mxu0 %v2945
        %v6238 = vpop.f32.mrf.mxu0
        %v6239 = vadd.f32 %v6190, %v6238
        %v6240 = vpop.f32.mrf.mxu0
        %v6241 = vadd.f32 %v6192, %v6240
        %6242 = vmatmul.bf16.gmra.mxu0 %v2993
        %v6243 = vpop.f32.mrf.mxu0
        %v6244 = vadd.f32 %v6195, %v6243
        %v6245 = vpop.f32.mrf.mxu0
        %v6246 = vadd.f32 %v6197, %v6245
        %6247 = vmatmul.bf16.gmra.mxu0 %v3041
        %v6248 = vpop.f32.mrf.mxu0
        %v6249 = vadd.f32 %v6200, %v6248
        %v6250 = vpop.f32.mrf.mxu0
        %v6251 = vadd.f32 %v6202, %v6250
        %6252 = vmatmul.bf16.gmra.mxu0 %v3089
        %v6253 = vpop.f32.mrf.mxu0
        %v6254 = vadd.f32 %v6205, %v6253
        %v6255 = vpop.f32.mrf.mxu0
        %v6256 = vadd.f32 %v6207, %v6255
        %6257 = vdwg.mxu0
        %6258 = vmatpush.bf16.msra.mxu0 %v5128
        %6259 = vmatpush.bf16.msra.mxu0 %v5127
        %6260 = vmatpush.bf16.msra.mxu0 %v5126
        %6261 = vmatpush.bf16.msra.mxu0 %v5125
        %6262 = vmatpush.bf16.msra.mxu0 %v5124
        %6263 = vmatpush.bf16.msra.mxu0 %v5123
        %6264 = vmatpush.bf16.msra.mxu0 %v5122
        %6265 = vmatpush.bf16.msra.mxu0 %v5121
        %6266 = vmatmul.bf16.gmra.mxu0 %v2754
        %v6267 = vpop.f32.mrf.mxu0
        %v6268 = vadd.f32 %v6219, %v6267
        %v6269 = vpop.f32.mrf.mxu0
        %v6270 = vadd.f32 %v6221, %v6269
        %6271 = vmatmul.bf16.gmra.mxu0 %v2802
        %v6272 = vpop.f32.mrf.mxu0
        %v6273 = vadd.f32 %v6224, %v6272
        %v6274 = vpop.f32.mrf.mxu0
        %v6275 = vadd.f32 %v6226, %v6274
        %6276 = vmatmul.bf16.gmra.mxu0 %v2850
        %v6277 = vpop.f32.mrf.mxu0
        %v6278 = vadd.f32 %v6229, %v6277
        %v6279 = vpop.f32.mrf.mxu0
        %v6280 = vadd.f32 %v6231, %v6279
        %6281 = vmatmul.bf16.gmra.mxu0 %v2898
        %v6282 = vpop.f32.mrf.mxu0
        %v6283 = vadd.f32 %v6234, %v6282
        %v6284 = vpop.f32.mrf.mxu0
        %v6285 = vadd.f32 %v6236, %v6284
        %6286 = vmatmul.bf16.gmra.mxu0 %v2946
        %v6287 = vpop.f32.mrf.mxu0
        %v6288 = vadd.f32 %v6239, %v6287
        %v6289 = vpop.f32.mrf.mxu0
        %v6290 = vadd.f32 %v6241, %v6289
        %6291 = vmatmul.bf16.gmra.mxu0 %v2994
        %v6292 = vpop.f32.mrf.mxu0
        %v6293 = vadd.f32 %v6244, %v6292
        %v6294 = vpop.f32.mrf.mxu0
        %v6295 = vadd.f32 %v6246, %v6294
        %6296 = vmatmul.bf16.gmra.mxu0 %v3042
        %v6297 = vpop.f32.mrf.mxu0
        %v6298 = vadd.f32 %v6249, %v6297
        %v6299 = vpop.f32.mrf.mxu0
        %v6300 = vadd.f32 %v6251, %v6299
        %6301 = vmatmul.bf16.gmra.mxu0 %v3090
        %v6302 = vpop.f32.mrf.mxu0
        %v6303 = vadd.f32 %v6254, %v6302
        %v6304 = vpop.f32.mrf.mxu0
        %v6305 = vadd.f32 %v6256, %v6304
        %6306 = vdwg.mxu0
        %6307 = vmatpush.bf16.msra.mxu0 %v5136
        %6308 = vmatpush.bf16.msra.mxu0 %v5135
        %6309 = vmatpush.bf16.msra.mxu0 %v5134
        %6310 = vmatpush.bf16.msra.mxu0 %v5133
        %6311 = vmatpush.bf16.msra.mxu0 %v5132
        %6312 = vmatpush.bf16.msra.mxu0 %v5131
        %6313 = vmatpush.bf16.msra.mxu0 %v5130
        %6314 = vmatpush.bf16.msra.mxu0 %v5129
        %6315 = vmatmul.bf16.gmra.mxu0 %v2755
        %v6316 = vpop.f32.mrf.mxu0
        %v6317 = vadd.f32 %v6268, %v6316
        %v6318 = vpop.f32.mrf.mxu0
        %v6319 = vadd.f32 %v6270, %v6318
        %6320 = vmatmul.bf16.gmra.mxu0 %v2803
        %v6321 = vpop.f32.mrf.mxu0
        %v6322 = vadd.f32 %v6273, %v6321
        %v6323 = vpop.f32.mrf.mxu0
        %v6324 = vadd.f32 %v6275, %v6323
        %6325 = vmatmul.bf16.gmra.mxu0 %v2851
        %v6326 = vpop.f32.mrf.mxu0
        %v6327 = vadd.f32 %v6278, %v6326
        %v6328 = vpop.f32.mrf.mxu0
        %v6329 = vadd.f32 %v6280, %v6328
        %6330 = vmatmul.bf16.gmra.mxu0 %v2899
        %v6331 = vpop.f32.mrf.mxu0
        %v6332 = vadd.f32 %v6283, %v6331
        %v6333 = vpop.f32.mrf.mxu0
        %v6334 = vadd.f32 %v6285, %v6333
        %6335 = vmatmul.bf16.gmra.mxu0 %v2947
        %v6336 = vpop.f32.mrf.mxu0
        %v6337 = vadd.f32 %v6288, %v6336
        %v6338 = vpop.f32.mrf.mxu0
        %v6339 = vadd.f32 %v6290, %v6338
        %6340 = vmatmul.bf16.gmra.mxu0 %v2995
        %v6341 = vpop.f32.mrf.mxu0
        %v6342 = vadd.f32 %v6293, %v6341
        %v6343 = vpop.f32.mrf.mxu0
        %v6344 = vadd.f32 %v6295, %v6343
        %6345 = vmatmul.bf16.gmra.mxu0 %v3043
        %v6346 = vpop.f32.mrf.mxu0
        %v6347 = vadd.f32 %v6298, %v6346
        %v6348 = vpop.f32.mrf.mxu0
        %v6349 = vadd.f32 %v6300, %v6348
        %6350 = vmatmul.bf16.gmra.mxu0 %v3091
        %v6351 = vpop.f32.mrf.mxu0
        %v6352 = vadd.f32 %v6303, %v6351
        %v6353 = vpop.f32.mrf.mxu0
        %v6354 = vadd.f32 %v6305, %v6353
        %6355 = vdwg.mxu0
        %6356 = vmatpush.bf16.msra.mxu0 %v5144
        %6357 = vmatpush.bf16.msra.mxu0 %v5143
        %6358 = vmatpush.bf16.msra.mxu0 %v5142
        %6359 = vmatpush.bf16.msra.mxu0 %v5141
        %6360 = vmatpush.bf16.msra.mxu0 %v5140
        %6361 = vmatpush.bf16.msra.mxu0 %v5139
        %6362 = vmatpush.bf16.msra.mxu0 %v5138
        %6363 = vmatpush.bf16.msra.mxu0 %v5137
        %6364 = vmatmul.bf16.gmra.mxu0 %v2756
        %v6365 = vpop.f32.mrf.mxu0
        %v6366 = vadd.f32 %v6317, %v6365
        %v6367 = vpop.f32.mrf.mxu0
        %v6368 = vadd.f32 %v6319, %v6367
        %6369 = vmatmul.bf16.gmra.mxu0 %v2804
        %v6370 = vpop.f32.mrf.mxu0
        %v6371 = vadd.f32 %v6322, %v6370
        %v6372 = vpop.f32.mrf.mxu0
        %v6373 = vadd.f32 %v6324, %v6372
        %6374 = vmatmul.bf16.gmra.mxu0 %v2852
        %v6375 = vpop.f32.mrf.mxu0
        %v6376 = vadd.f32 %v6327, %v6375
        %v6377 = vpop.f32.mrf.mxu0
        %v6378 = vadd.f32 %v6329, %v6377
        %6379 = vmatmul.bf16.gmra.mxu0 %v2900
        %v6380 = vpop.f32.mrf.mxu0
        %v6381 = vadd.f32 %v6332, %v6380
        %v6382 = vpop.f32.mrf.mxu0
        %v6383 = vadd.f32 %v6334, %v6382
        %6384 = vmatmul.bf16.gmra.mxu0 %v2948
        %v6385 = vpop.f32.mrf.mxu0
        %v6386 = vadd.f32 %v6337, %v6385
        %v6387 = vpop.f32.mrf.mxu0
        %v6388 = vadd.f32 %v6339, %v6387
        %6389 = vmatmul.bf16.gmra.mxu0 %v2996
        %v6390 = vpop.f32.mrf.mxu0
        %v6391 = vadd.f32 %v6342, %v6390
        %v6392 = vpop.f32.mrf.mxu0
        %v6393 = vadd.f32 %v6344, %v6392
        %6394 = vmatmul.bf16.gmra.mxu0 %v3044
        %v6395 = vpop.f32.mrf.mxu0
        %v6396 = vadd.f32 %v6347, %v6395
        %v6397 = vpop.f32.mrf.mxu0
        %v6398 = vadd.f32 %v6349, %v6397
        %6399 = vmatmul.bf16.gmra.mxu0 %v3092
        %v6400 = vpop.f32.mrf.mxu0
        %v6401 = vadd.f32 %v6352, %v6400
        %v6402 = vpop.f32.mrf.mxu0
        %v6403 = vadd.f32 %v6354, %v6402
        %6404 = vdwg.mxu0
        %6405 = vmatpush.bf16.msra.mxu0 %v5152
        %6406 = vmatpush.bf16.msra.mxu0 %v5151
        %6407 = vmatpush.bf16.msra.mxu0 %v5150
        %6408 = vmatpush.bf16.msra.mxu0 %v5149
        %6409 = vmatpush.bf16.msra.mxu0 %v5148
        %6410 = vmatpush.bf16.msra.mxu0 %v5147
        %6411 = vmatpush.bf16.msra.mxu0 %v5146
        %6412 = vmatpush.bf16.msra.mxu0 %v5145
        %6413 = vmatmul.bf16.gmra.mxu0 %v2757
        %v6414 = vpop.f32.mrf.mxu0
        %v6415 = vadd.f32 %v6366, %v6414
        %v6416 = vpop.f32.mrf.mxu0
        %v6417 = vadd.f32 %v6368, %v6416
        %6418 = vmatmul.bf16.gmra.mxu0 %v2805
        %v6419 = vpop.f32.mrf.mxu0
        %v6420 = vadd.f32 %v6371, %v6419
        %v6421 = vpop.f32.mrf.mxu0
        %v6422 = vadd.f32 %v6373, %v6421
        %6423 = vmatmul.bf16.gmra.mxu0 %v2853
        %v6424 = vpop.f32.mrf.mxu0
        %v6425 = vadd.f32 %v6376, %v6424
        %v6426 = vpop.f32.mrf.mxu0
        %v6427 = vadd.f32 %v6378, %v6426
        %6428 = vmatmul.bf16.gmra.mxu0 %v2901
        %v6429 = vpop.f32.mrf.mxu0
        %v6430 = vadd.f32 %v6381, %v6429
        %v6431 = vpop.f32.mrf.mxu0
        %v6432 = vadd.f32 %v6383, %v6431
        %6433 = vmatmul.bf16.gmra.mxu0 %v2949
        %v6434 = vpop.f32.mrf.mxu0
        %v6435 = vadd.f32 %v6386, %v6434
        %v6436 = vpop.f32.mrf.mxu0
        %v6437 = vadd.f32 %v6388, %v6436
        %6438 = vmatmul.bf16.gmra.mxu0 %v2997
        %v6439 = vpop.f32.mrf.mxu0
        %v6440 = vadd.f32 %v6391, %v6439
        %v6441 = vpop.f32.mrf.mxu0
        %v6442 = vadd.f32 %v6393, %v6441
        %6443 = vmatmul.bf16.gmra.mxu0 %v3045
        %v6444 = vpop.f32.mrf.mxu0
        %v6445 = vadd.f32 %v6396, %v6444
        %v6446 = vpop.f32.mrf.mxu0
        %v6447 = vadd.f32 %v6398, %v6446
        %6448 = vmatmul.bf16.gmra.mxu0 %v3093
        %v6449 = vpop.f32.mrf.mxu0
        %v6450 = vadd.f32 %v6401, %v6449
        %v6451 = vpop.f32.mrf.mxu0
        %v6452 = vadd.f32 %v6403, %v6451
        %6453 = vdwg.mxu0
        %6454 = vmatpush.bf16.msra.mxu0 %v5160
        %6455 = vmatpush.bf16.msra.mxu0 %v5159
        %6456 = vmatpush.bf16.msra.mxu0 %v5158
        %6457 = vmatpush.bf16.msra.mxu0 %v5157
        %6458 = vmatpush.bf16.msra.mxu0 %v5156
        %6459 = vmatpush.bf16.msra.mxu0 %v5155
        %6460 = vmatpush.bf16.msra.mxu0 %v5154
        %6461 = vmatpush.bf16.msra.mxu0 %v5153
        %6462 = vmatmul.bf16.gmra.mxu0 %v2758
        %v6463 = vpop.f32.mrf.mxu0
        %v6464 = vadd.f32 %v6415, %v6463
        %v6465 = vpop.f32.mrf.mxu0
        %v6466 = vadd.f32 %v6417, %v6465
        %6467 = vmatmul.bf16.gmra.mxu0 %v2806
        %v6468 = vpop.f32.mrf.mxu0
        %v6469 = vadd.f32 %v6420, %v6468
        %v6470 = vpop.f32.mrf.mxu0
        %v6471 = vadd.f32 %v6422, %v6470
        %6472 = vmatmul.bf16.gmra.mxu0 %v2854
        %v6473 = vpop.f32.mrf.mxu0
        %v6474 = vadd.f32 %v6425, %v6473
        %v6475 = vpop.f32.mrf.mxu0
        %v6476 = vadd.f32 %v6427, %v6475
        %6477 = vmatmul.bf16.gmra.mxu0 %v2902
        %v6478 = vpop.f32.mrf.mxu0
        %v6479 = vadd.f32 %v6430, %v6478
        %v6480 = vpop.f32.mrf.mxu0
        %v6481 = vadd.f32 %v6432, %v6480
        %6482 = vmatmul.bf16.gmra.mxu0 %v2950
        %v6483 = vpop.f32.mrf.mxu0
        %v6484 = vadd.f32 %v6435, %v6483
        %v6485 = vpop.f32.mrf.mxu0
        %v6486 = vadd.f32 %v6437, %v6485
        %6487 = vmatmul.bf16.gmra.mxu0 %v2998
        %v6488 = vpop.f32.mrf.mxu0
        %v6489 = vadd.f32 %v6440, %v6488
        %v6490 = vpop.f32.mrf.mxu0
        %v6491 = vadd.f32 %v6442, %v6490
        %6492 = vmatmul.bf16.gmra.mxu0 %v3046
        %v6493 = vpop.f32.mrf.mxu0
        %v6494 = vadd.f32 %v6445, %v6493
        %v6495 = vpop.f32.mrf.mxu0
        %v6496 = vadd.f32 %v6447, %v6495
        %6497 = vmatmul.bf16.gmra.mxu0 %v3094
        %v6498 = vpop.f32.mrf.mxu0
        %v6499 = vadd.f32 %v6450, %v6498
        %v6500 = vpop.f32.mrf.mxu0
        %v6501 = vadd.f32 %v6452, %v6500
        %6502 = vdwg.mxu0
        %6503 = vmatpush.bf16.msra.mxu0 %v5168
        %6504 = vmatpush.bf16.msra.mxu0 %v5167
        %6505 = vmatpush.bf16.msra.mxu0 %v5166
        %6506 = vmatpush.bf16.msra.mxu0 %v5165
        %6507 = vmatpush.bf16.msra.mxu0 %v5164
        %6508 = vmatpush.bf16.msra.mxu0 %v5163
        %6509 = vmatpush.bf16.msra.mxu0 %v5162
        %6510 = vmatpush.bf16.msra.mxu0 %v5161
        %6511 = vmatmul.bf16.gmra.mxu0 %v2759
        %v6512 = vpop.f32.mrf.mxu0
        %v6513 = vadd.f32 %v6464, %v6512
        %v6514 = vpop.f32.mrf.mxu0
        %v6515 = vadd.f32 %v6466, %v6514
        %6516 = vmatmul.bf16.gmra.mxu0 %v2807
        %v6517 = vpop.f32.mrf.mxu0
        %v6518 = vadd.f32 %v6469, %v6517
        %v6519 = vpop.f32.mrf.mxu0
        %v6520 = vadd.f32 %v6471, %v6519
        %6521 = vmatmul.bf16.gmra.mxu0 %v2855
        %v6522 = vpop.f32.mrf.mxu0
        %v6523 = vadd.f32 %v6474, %v6522
        %v6524 = vpop.f32.mrf.mxu0
        %v6525 = vadd.f32 %v6476, %v6524
        %6526 = vmatmul.bf16.gmra.mxu0 %v2903
        %v6527 = vpop.f32.mrf.mxu0
        %v6528 = vadd.f32 %v6479, %v6527
        %v6529 = vpop.f32.mrf.mxu0
        %v6530 = vadd.f32 %v6481, %v6529
        %6531 = vmatmul.bf16.gmra.mxu0 %v2951
        %v6532 = vpop.f32.mrf.mxu0
        %v6533 = vadd.f32 %v6484, %v6532
        %v6534 = vpop.f32.mrf.mxu0
        %v6535 = vadd.f32 %v6486, %v6534
        %6536 = vmatmul.bf16.gmra.mxu0 %v2999
        %v6537 = vpop.f32.mrf.mxu0
        %v6538 = vadd.f32 %v6489, %v6537
        %v6539 = vpop.f32.mrf.mxu0
        %v6540 = vadd.f32 %v6491, %v6539
        %6541 = vmatmul.bf16.gmra.mxu0 %v3047
        %v6542 = vpop.f32.mrf.mxu0
        %v6543 = vadd.f32 %v6494, %v6542
        %v6544 = vpop.f32.mrf.mxu0
        %v6545 = vadd.f32 %v6496, %v6544
        %6546 = vmatmul.bf16.gmra.mxu0 %v3095
        %v6547 = vpop.f32.mrf.mxu0
        %v6548 = vadd.f32 %v6499, %v6547
        %v6549 = vpop.f32.mrf.mxu0
        %v6550 = vadd.f32 %v6501, %v6549
        %6551 = vdwg.mxu0
        %6552 = vmatpush.bf16.msra.mxu0 %v5176
        %6553 = vmatpush.bf16.msra.mxu0 %v5175
        %6554 = vmatpush.bf16.msra.mxu0 %v5174
        %6555 = vmatpush.bf16.msra.mxu0 %v5173
        %6556 = vmatpush.bf16.msra.mxu0 %v5172
        %6557 = vmatpush.bf16.msra.mxu0 %v5171
        %6558 = vmatpush.bf16.msra.mxu0 %v5170
        %6559 = vmatpush.bf16.msra.mxu0 %v5169
        %6560 = vmatmul.bf16.gmra.mxu0 %v2760
        %v6561 = vpop.f32.mrf.mxu0
        %v6562 = vadd.f32 %v6513, %v6561
        %v6563 = vpop.f32.mrf.mxu0
        %v6564 = vadd.f32 %v6515, %v6563
        %6565 = vmatmul.bf16.gmra.mxu0 %v2808
        %v6566 = vpop.f32.mrf.mxu0
        %v6567 = vadd.f32 %v6518, %v6566
        %v6568 = vpop.f32.mrf.mxu0
        %v6569 = vadd.f32 %v6520, %v6568
        %6570 = vmatmul.bf16.gmra.mxu0 %v2856
        %v6571 = vpop.f32.mrf.mxu0
        %v6572 = vadd.f32 %v6523, %v6571
        %v6573 = vpop.f32.mrf.mxu0
        %v6574 = vadd.f32 %v6525, %v6573
        %6575 = vmatmul.bf16.gmra.mxu0 %v2904
        %v6576 = vpop.f32.mrf.mxu0
        %v6577 = vadd.f32 %v6528, %v6576
        %v6578 = vpop.f32.mrf.mxu0
        %v6579 = vadd.f32 %v6530, %v6578
        %6580 = vmatmul.bf16.gmra.mxu0 %v2952
        %v6581 = vpop.f32.mrf.mxu0
        %v6582 = vadd.f32 %v6533, %v6581
        %v6583 = vpop.f32.mrf.mxu0
        %v6584 = vadd.f32 %v6535, %v6583
        %6585 = vmatmul.bf16.gmra.mxu0 %v3000
        %v6586 = vpop.f32.mrf.mxu0
        %v6587 = vadd.f32 %v6538, %v6586
        %v6588 = vpop.f32.mrf.mxu0
        %v6589 = vadd.f32 %v6540, %v6588
        %6590 = vmatmul.bf16.gmra.mxu0 %v3048
        %v6591 = vpop.f32.mrf.mxu0
        %v6592 = vadd.f32 %v6543, %v6591
        %v6593 = vpop.f32.mrf.mxu0
        %v6594 = vadd.f32 %v6545, %v6593
        %6595 = vmatmul.bf16.gmra.mxu0 %v3096
        %v6596 = vpop.f32.mrf.mxu0
        %v6597 = vadd.f32 %v6548, %v6596
        %v6598 = vpop.f32.mrf.mxu0
        %v6599 = vadd.f32 %v6550, %v6598
        %6600 = vdwg.mxu0
        %6601 = vmatpush.bf16.msra.mxu0 %v5184
        %6602 = vmatpush.bf16.msra.mxu0 %v5183
        %6603 = vmatpush.bf16.msra.mxu0 %v5182
        %6604 = vmatpush.bf16.msra.mxu0 %v5181
        %6605 = vmatpush.bf16.msra.mxu0 %v5180
        %6606 = vmatpush.bf16.msra.mxu0 %v5179
        %6607 = vmatpush.bf16.msra.mxu0 %v5178
        %6608 = vmatpush.bf16.msra.mxu0 %v5177
        %6609 = vmatmul.bf16.gmra.mxu0 %v2761
        %v6610 = vpop.f32.mrf.mxu0
        %v6611 = vadd.f32 %v6562, %v6610
        %v6612 = vpop.f32.mrf.mxu0
        %v6613 = vadd.f32 %v6564, %v6612
        %6614 = vmatmul.bf16.gmra.mxu0 %v2809
        %v6615 = vpop.f32.mrf.mxu0
        %v6616 = vadd.f32 %v6567, %v6615
        %v6617 = vpop.f32.mrf.mxu0
        %v6618 = vadd.f32 %v6569, %v6617
        %6619 = vmatmul.bf16.gmra.mxu0 %v2857
        %v6620 = vpop.f32.mrf.mxu0
        %v6621 = vadd.f32 %v6572, %v6620
        %v6622 = vpop.f32.mrf.mxu0
        %v6623 = vadd.f32 %v6574, %v6622
        %6624 = vmatmul.bf16.gmra.mxu0 %v2905
        %v6625 = vpop.f32.mrf.mxu0
        %v6626 = vadd.f32 %v6577, %v6625
        %v6627 = vpop.f32.mrf.mxu0
        %v6628 = vadd.f32 %v6579, %v6627
        %6629 = vmatmul.bf16.gmra.mxu0 %v2953
        %v6630 = vpop.f32.mrf.mxu0
        %v6631 = vadd.f32 %v6582, %v6630
        %v6632 = vpop.f32.mrf.mxu0
        %v6633 = vadd.f32 %v6584, %v6632
        %6634 = vmatmul.bf16.gmra.mxu0 %v3001
        %v6635 = vpop.f32.mrf.mxu0
        %v6636 = vadd.f32 %v6587, %v6635
        %v6637 = vpop.f32.mrf.mxu0
        %v6638 = vadd.f32 %v6589, %v6637
        %6639 = vmatmul.bf16.gmra.mxu0 %v3049
        %v6640 = vpop.f32.mrf.mxu0
        %v6641 = vadd.f32 %v6592, %v6640
        %v6642 = vpop.f32.mrf.mxu0
        %v6643 = vadd.f32 %v6594, %v6642
        %6644 = vmatmul.bf16.gmra.mxu0 %v3097
        %v6645 = vpop.f32.mrf.mxu0
        %v6646 = vadd.f32 %v6597, %v6645
        %v6647 = vpop.f32.mrf.mxu0
        %v6648 = vadd.f32 %v6599, %v6647
        %6649 = vdwg.mxu0
        %6650 = vmatpush.bf16.msra.mxu0 %v5192
        %6651 = vmatpush.bf16.msra.mxu0 %v5191
        %6652 = vmatpush.bf16.msra.mxu0 %v5190
        %6653 = vmatpush.bf16.msra.mxu0 %v5189
        %6654 = vmatpush.bf16.msra.mxu0 %v5188
        %6655 = vmatpush.bf16.msra.mxu0 %v5187
        %6656 = vmatpush.bf16.msra.mxu0 %v5186
        %6657 = vmatpush.bf16.msra.mxu0 %v5185
        %6658 = vmatmul.bf16.gmra.mxu0 %v2762
        %v6659 = vpop.f32.mrf.mxu0
        %v6660 = vadd.f32 %v6611, %v6659
        %v6661 = vpop.f32.mrf.mxu0
        %v6662 = vadd.f32 %v6613, %v6661
        %6663 = vmatmul.bf16.gmra.mxu0 %v2810
        %v6664 = vpop.f32.mrf.mxu0
        %v6665 = vadd.f32 %v6616, %v6664
        %v6666 = vpop.f32.mrf.mxu0
        %v6667 = vadd.f32 %v6618, %v6666
        %6668 = vmatmul.bf16.gmra.mxu0 %v2858
        %v6669 = vpop.f32.mrf.mxu0
        %v6670 = vadd.f32 %v6621, %v6669
        %v6671 = vpop.f32.mrf.mxu0
        %v6672 = vadd.f32 %v6623, %v6671
        %6673 = vmatmul.bf16.gmra.mxu0 %v2906
        %v6674 = vpop.f32.mrf.mxu0
        %v6675 = vadd.f32 %v6626, %v6674
        %v6676 = vpop.f32.mrf.mxu0
        %v6677 = vadd.f32 %v6628, %v6676
        %6678 = vmatmul.bf16.gmra.mxu0 %v2954
        %v6679 = vpop.f32.mrf.mxu0
        %v6680 = vadd.f32 %v6631, %v6679
        %v6681 = vpop.f32.mrf.mxu0
        %v6682 = vadd.f32 %v6633, %v6681
        %6683 = vmatmul.bf16.gmra.mxu0 %v3002
        %v6684 = vpop.f32.mrf.mxu0
        %v6685 = vadd.f32 %v6636, %v6684
        %v6686 = vpop.f32.mrf.mxu0
        %v6687 = vadd.f32 %v6638, %v6686
        %6688 = vmatmul.bf16.gmra.mxu0 %v3050
        %v6689 = vpop.f32.mrf.mxu0
        %v6690 = vadd.f32 %v6641, %v6689
        %v6691 = vpop.f32.mrf.mxu0
        %v6692 = vadd.f32 %v6643, %v6691
        %6693 = vmatmul.bf16.gmra.mxu0 %v3098
        %v6694 = vpop.f32.mrf.mxu0
        %v6695 = vadd.f32 %v6646, %v6694
        %v6696 = vpop.f32.mrf.mxu0
        %v6697 = vadd.f32 %v6648, %v6696
        %6698 = vdwg.mxu0
        %6699 = vmatpush.bf16.msra.mxu0 %v5200
        %6700 = vmatpush.bf16.msra.mxu0 %v5199
        %6701 = vmatpush.bf16.msra.mxu0 %v5198
        %6702 = vmatpush.bf16.msra.mxu0 %v5197
        %6703 = vmatpush.bf16.msra.mxu0 %v5196
        %6704 = vmatpush.bf16.msra.mxu0 %v5195
        %6705 = vmatpush.bf16.msra.mxu0 %v5194
        %6706 = vmatpush.bf16.msra.mxu0 %v5193
        %6707 = vmatmul.bf16.gmra.mxu0 %v2763
        %v6708 = vpop.f32.mrf.mxu0
        %v6709 = vadd.f32 %v6660, %v6708
        %v6710 = vpop.f32.mrf.mxu0
        %v6711 = vadd.f32 %v6662, %v6710
        %6712 = vmatmul.bf16.gmra.mxu0 %v2811
        %v6713 = vpop.f32.mrf.mxu0
        %v6714 = vadd.f32 %v6665, %v6713
        %v6715 = vpop.f32.mrf.mxu0
        %v6716 = vadd.f32 %v6667, %v6715
        %6717 = vmatmul.bf16.gmra.mxu0 %v2859
        %v6718 = vpop.f32.mrf.mxu0
        %v6719 = vadd.f32 %v6670, %v6718
        %v6720 = vpop.f32.mrf.mxu0
        %v6721 = vadd.f32 %v6672, %v6720
        %6722 = vmatmul.bf16.gmra.mxu0 %v2907
        %v6723 = vpop.f32.mrf.mxu0
        %v6724 = vadd.f32 %v6675, %v6723
        %v6725 = vpop.f32.mrf.mxu0
        %v6726 = vadd.f32 %v6677, %v6725
        %6727 = vmatmul.bf16.gmra.mxu0 %v2955
        %v6728 = vpop.f32.mrf.mxu0
        %v6729 = vadd.f32 %v6680, %v6728
        %v6730 = vpop.f32.mrf.mxu0
        %v6731 = vadd.f32 %v6682, %v6730
        %6732 = vmatmul.bf16.gmra.mxu0 %v3003
        %v6733 = vpop.f32.mrf.mxu0
        %v6734 = vadd.f32 %v6685, %v6733
        %v6735 = vpop.f32.mrf.mxu0
        %v6736 = vadd.f32 %v6687, %v6735
        %6737 = vmatmul.bf16.gmra.mxu0 %v3051
        %v6738 = vpop.f32.mrf.mxu0
        %v6739 = vadd.f32 %v6690, %v6738
        %v6740 = vpop.f32.mrf.mxu0
        %v6741 = vadd.f32 %v6692, %v6740
        %6742 = vmatmul.bf16.gmra.mxu0 %v3099
        %v6743 = vpop.f32.mrf.mxu0
        %v6744 = vadd.f32 %v6695, %v6743
        %v6745 = vpop.f32.mrf.mxu0
        %v6746 = vadd.f32 %v6697, %v6745
        %6747 = vdwg.mxu0
        %6748 = vmatpush.bf16.msra.mxu0 %v5208
        %6749 = vmatpush.bf16.msra.mxu0 %v5207
        %6750 = vmatpush.bf16.msra.mxu0 %v5206
        %6751 = vmatpush.bf16.msra.mxu0 %v5205
        %6752 = vmatpush.bf16.msra.mxu0 %v5204
        %6753 = vmatpush.bf16.msra.mxu0 %v5203
        %6754 = vmatpush.bf16.msra.mxu0 %v5202
        %6755 = vmatpush.bf16.msra.mxu0 %v5201
        %6756 = vmatmul.bf16.gmra.mxu0 %v2764
        %v6757 = vpop.f32.mrf.mxu0
        %v6758 = vadd.f32 %v6709, %v6757
        %v6759 = vpop.f32.mrf.mxu0
        %v6760 = vadd.f32 %v6711, %v6759
        %6761 = vmatmul.bf16.gmra.mxu0 %v2812
        %v6762 = vpop.f32.mrf.mxu0
        %v6763 = vadd.f32 %v6714, %v6762
        %v6764 = vpop.f32.mrf.mxu0
        %v6765 = vadd.f32 %v6716, %v6764
        %6766 = vmatmul.bf16.gmra.mxu0 %v2860
        %v6767 = vpop.f32.mrf.mxu0
        %v6768 = vadd.f32 %v6719, %v6767
        %v6769 = vpop.f32.mrf.mxu0
        %v6770 = vadd.f32 %v6721, %v6769
        %6771 = vmatmul.bf16.gmra.mxu0 %v2908
        %v6772 = vpop.f32.mrf.mxu0
        %v6773 = vadd.f32 %v6724, %v6772
        %v6774 = vpop.f32.mrf.mxu0
        %v6775 = vadd.f32 %v6726, %v6774
        %6776 = vmatmul.bf16.gmra.mxu0 %v2956
        %v6777 = vpop.f32.mrf.mxu0
        %v6778 = vadd.f32 %v6729, %v6777
        %v6779 = vpop.f32.mrf.mxu0
        %v6780 = vadd.f32 %v6731, %v6779
        %6781 = vmatmul.bf16.gmra.mxu0 %v3004
        %v6782 = vpop.f32.mrf.mxu0
        %v6783 = vadd.f32 %v6734, %v6782
        %v6784 = vpop.f32.mrf.mxu0
        %v6785 = vadd.f32 %v6736, %v6784
        %6786 = vmatmul.bf16.gmra.mxu0 %v3052
        %v6787 = vpop.f32.mrf.mxu0
        %v6788 = vadd.f32 %v6739, %v6787
        %v6789 = vpop.f32.mrf.mxu0
        %v6790 = vadd.f32 %v6741, %v6789
        %6791 = vmatmul.bf16.gmra.mxu0 %v3100
        %v6792 = vpop.f32.mrf.mxu0
        %v6793 = vadd.f32 %v6744, %v6792
        %v6794 = vpop.f32.mrf.mxu0
        %v6795 = vadd.f32 %v6746, %v6794
        %6796 = vdwg.mxu0
        %6797 = vmatpush.bf16.msra.mxu0 %v5216
        %6798 = vmatpush.bf16.msra.mxu0 %v5215
        %6799 = vmatpush.bf16.msra.mxu0 %v5214
        %6800 = vmatpush.bf16.msra.mxu0 %v5213
        %6801 = vmatpush.bf16.msra.mxu0 %v5212
        %6802 = vmatpush.bf16.msra.mxu0 %v5211
        %6803 = vmatpush.bf16.msra.mxu0 %v5210
        %6804 = vmatpush.bf16.msra.mxu0 %v5209
        %6805 = vmatmul.bf16.gmra.mxu0 %v2765
        %v6806 = vpop.f32.mrf.mxu0
        %v6807 = vadd.f32 %v6758, %v6806
        %v6808 = vpop.f32.mrf.mxu0
        %v6809 = vadd.f32 %v6760, %v6808
        %6810 = vmatmul.bf16.gmra.mxu0 %v2813
        %v6811 = vpop.f32.mrf.mxu0
        %v6812 = vadd.f32 %v6763, %v6811
        %v6813 = vpop.f32.mrf.mxu0
        %v6814 = vadd.f32 %v6765, %v6813
        %6815 = vmatmul.bf16.gmra.mxu0 %v2861
        %v6816 = vpop.f32.mrf.mxu0
        %v6817 = vadd.f32 %v6768, %v6816
        %v6818 = vpop.f32.mrf.mxu0
        %v6819 = vadd.f32 %v6770, %v6818
        %6820 = vmatmul.bf16.gmra.mxu0 %v2909
        %v6821 = vpop.f32.mrf.mxu0
        %v6822 = vadd.f32 %v6773, %v6821
        %v6823 = vpop.f32.mrf.mxu0
        %v6824 = vadd.f32 %v6775, %v6823
        %6825 = vmatmul.bf16.gmra.mxu0 %v2957
        %v6826 = vpop.f32.mrf.mxu0
        %v6827 = vadd.f32 %v6778, %v6826
        %v6828 = vpop.f32.mrf.mxu0
        %v6829 = vadd.f32 %v6780, %v6828
        %6830 = vmatmul.bf16.gmra.mxu0 %v3005
        %v6831 = vpop.f32.mrf.mxu0
        %v6832 = vadd.f32 %v6783, %v6831
        %v6833 = vpop.f32.mrf.mxu0
        %v6834 = vadd.f32 %v6785, %v6833
        %6835 = vmatmul.bf16.gmra.mxu0 %v3053
        %v6836 = vpop.f32.mrf.mxu0
        %v6837 = vadd.f32 %v6788, %v6836
        %v6838 = vpop.f32.mrf.mxu0
        %v6839 = vadd.f32 %v6790, %v6838
        %6840 = vmatmul.bf16.gmra.mxu0 %v3101
        %v6841 = vpop.f32.mrf.mxu0
        %v6842 = vadd.f32 %v6793, %v6841
        %v6843 = vpop.f32.mrf.mxu0
        %v6844 = vadd.f32 %v6795, %v6843
        %6845 = vdwg.mxu0
        %6846 = vmatpush.bf16.msra.mxu0 %v5224
        %6847 = vmatpush.bf16.msra.mxu0 %v5223
        %6848 = vmatpush.bf16.msra.mxu0 %v5222
        %6849 = vmatpush.bf16.msra.mxu0 %v5221
        %6850 = vmatpush.bf16.msra.mxu0 %v5220
        %6851 = vmatpush.bf16.msra.mxu0 %v5219
        %6852 = vmatpush.bf16.msra.mxu0 %v5218
        %6853 = vmatpush.bf16.msra.mxu0 %v5217
        %6854 = vmatmul.bf16.gmra.mxu0 %v2766
        %v6855 = vpop.f32.mrf.mxu0
        %v6856 = vadd.f32 %v6807, %v6855
        %v6857 = vpop.f32.mrf.mxu0
        %v6858 = vadd.f32 %v6809, %v6857
        %6859 = vmatmul.bf16.gmra.mxu0 %v2814
        %v6860 = vpop.f32.mrf.mxu0
        %v6861 = vadd.f32 %v6812, %v6860
        %v6862 = vpop.f32.mrf.mxu0
        %v6863 = vadd.f32 %v6814, %v6862
        %6864 = vmatmul.bf16.gmra.mxu0 %v2862
        %v6865 = vpop.f32.mrf.mxu0
        %v6866 = vadd.f32 %v6817, %v6865
        %v6867 = vpop.f32.mrf.mxu0
        %v6868 = vadd.f32 %v6819, %v6867
        %6869 = vmatmul.bf16.gmra.mxu0 %v2910
        %v6870 = vpop.f32.mrf.mxu0
        %v6871 = vadd.f32 %v6822, %v6870
        %v6872 = vpop.f32.mrf.mxu0
        %v6873 = vadd.f32 %v6824, %v6872
        %6874 = vmatmul.bf16.gmra.mxu0 %v2958
        %v6875 = vpop.f32.mrf.mxu0
        %v6876 = vadd.f32 %v6827, %v6875
        %v6877 = vpop.f32.mrf.mxu0
        %v6878 = vadd.f32 %v6829, %v6877
        %6879 = vmatmul.bf16.gmra.mxu0 %v3006
        %v6880 = vpop.f32.mrf.mxu0
        %v6881 = vadd.f32 %v6832, %v6880
        %v6882 = vpop.f32.mrf.mxu0
        %v6883 = vadd.f32 %v6834, %v6882
        %6884 = vmatmul.bf16.gmra.mxu0 %v3054
        %v6885 = vpop.f32.mrf.mxu0
        %v6886 = vadd.f32 %v6837, %v6885
        %v6887 = vpop.f32.mrf.mxu0
        %v6888 = vadd.f32 %v6839, %v6887
        %6889 = vmatmul.bf16.gmra.mxu0 %v3102
        %v6890 = vpop.f32.mrf.mxu0
        %v6891 = vadd.f32 %v6842, %v6890
        %v6892 = vpop.f32.mrf.mxu0
        %v6893 = vadd.f32 %v6844, %v6892
        %6894 = vdwg.mxu0
        %6895 = vmatpush.bf16.msra.mxu0 %v5232
        %6896 = vmatpush.bf16.msra.mxu0 %v5231
        %6897 = vmatpush.bf16.msra.mxu0 %v5230
        %6898 = vmatpush.bf16.msra.mxu0 %v5229
        %6899 = vmatpush.bf16.msra.mxu0 %v5228
        %6900 = vmatpush.bf16.msra.mxu0 %v5227
        %6901 = vmatpush.bf16.msra.mxu0 %v5226
        %6902 = vmatpush.bf16.msra.mxu0 %v5225
        %6903 = vmatmul.bf16.gmra.mxu0 %v2767
        %v6904 = vpop.f32.mrf.mxu0
        %v6905 = vadd.f32 %v6856, %v6904
        %v6906 = vpop.f32.mrf.mxu0
        %v6907 = vadd.f32 %v6858, %v6906
        %6908 = vmatmul.bf16.gmra.mxu0 %v2815
        %v6909 = vpop.f32.mrf.mxu0
        %v6910 = vadd.f32 %v6861, %v6909
        %v6911 = vpop.f32.mrf.mxu0
        %v6912 = vadd.f32 %v6863, %v6911
        %6913 = vmatmul.bf16.gmra.mxu0 %v2863
        %v6914 = vpop.f32.mrf.mxu0
        %v6915 = vadd.f32 %v6866, %v6914
        %v6916 = vpop.f32.mrf.mxu0
        %v6917 = vadd.f32 %v6868, %v6916
        %6918 = vmatmul.bf16.gmra.mxu0 %v2911
        %v6919 = vpop.f32.mrf.mxu0
        %v6920 = vadd.f32 %v6871, %v6919
        %v6921 = vpop.f32.mrf.mxu0
        %v6922 = vadd.f32 %v6873, %v6921
        %6923 = vmatmul.bf16.gmra.mxu0 %v2959
        %v6924 = vpop.f32.mrf.mxu0
        %v6925 = vadd.f32 %v6876, %v6924
        %v6926 = vpop.f32.mrf.mxu0
        %v6927 = vadd.f32 %v6878, %v6926
        %6928 = vmatmul.bf16.gmra.mxu0 %v3007
        %v6929 = vpop.f32.mrf.mxu0
        %v6930 = vadd.f32 %v6881, %v6929
        %v6931 = vpop.f32.mrf.mxu0
        %v6932 = vadd.f32 %v6883, %v6931
        %6933 = vmatmul.bf16.gmra.mxu0 %v3055
        %v6934 = vpop.f32.mrf.mxu0
        %v6935 = vadd.f32 %v6886, %v6934
        %v6936 = vpop.f32.mrf.mxu0
        %v6937 = vadd.f32 %v6888, %v6936
        %6938 = vmatmul.bf16.gmra.mxu0 %v3103
        %v6939 = vpop.f32.mrf.mxu0
        %v6940 = vadd.f32 %v6891, %v6939
        %v6941 = vpop.f32.mrf.mxu0
        %v6942 = vadd.f32 %v6893, %v6941
        %6943 = vdwg.mxu0
        %6944 = vmatpush.bf16.msra.mxu0 %v5240
        %6945 = vmatpush.bf16.msra.mxu0 %v5239
        %6946 = vmatpush.bf16.msra.mxu0 %v5238
        %6947 = vmatpush.bf16.msra.mxu0 %v5237
        %6948 = vmatpush.bf16.msra.mxu0 %v5236
        %6949 = vmatpush.bf16.msra.mxu0 %v5235
        %6950 = vmatpush.bf16.msra.mxu0 %v5234
        %6951 = vmatpush.bf16.msra.mxu0 %v5233
        %6952 = vmatmul.bf16.gmra.mxu0 %v2768
        %v6953 = vpop.f32.mrf.mxu0
        %v6954 = vadd.f32 %v6905, %v6953
        %v6955 = vpop.f32.mrf.mxu0
        %v6956 = vadd.f32 %v6907, %v6955
        %6957 = vmatmul.bf16.gmra.mxu0 %v2816
        %v6958 = vpop.f32.mrf.mxu0
        %v6959 = vadd.f32 %v6910, %v6958
        %v6960 = vpop.f32.mrf.mxu0
        %v6961 = vadd.f32 %v6912, %v6960
        %6962 = vmatmul.bf16.gmra.mxu0 %v2864
        %v6963 = vpop.f32.mrf.mxu0
        %v6964 = vadd.f32 %v6915, %v6963
        %v6965 = vpop.f32.mrf.mxu0
        %v6966 = vadd.f32 %v6917, %v6965
        %6967 = vmatmul.bf16.gmra.mxu0 %v2912
        %v6968 = vpop.f32.mrf.mxu0
        %v6969 = vadd.f32 %v6920, %v6968
        %v6970 = vpop.f32.mrf.mxu0
        %v6971 = vadd.f32 %v6922, %v6970
        %6972 = vmatmul.bf16.gmra.mxu0 %v2960
        %v6973 = vpop.f32.mrf.mxu0
        %v6974 = vadd.f32 %v6925, %v6973
        %v6975 = vpop.f32.mrf.mxu0
        %v6976 = vadd.f32 %v6927, %v6975
        %6977 = vmatmul.bf16.gmra.mxu0 %v3008
        %v6978 = vpop.f32.mrf.mxu0
        %v6979 = vadd.f32 %v6930, %v6978
        %v6980 = vpop.f32.mrf.mxu0
        %v6981 = vadd.f32 %v6932, %v6980
        %6982 = vmatmul.bf16.gmra.mxu0 %v3056
        %v6983 = vpop.f32.mrf.mxu0
        %v6984 = vadd.f32 %v6935, %v6983
        %v6985 = vpop.f32.mrf.mxu0
        %v6986 = vadd.f32 %v6937, %v6985
        %6987 = vmatmul.bf16.gmra.mxu0 %v3104
        %v6988 = vpop.f32.mrf.mxu0
        %v6989 = vadd.f32 %v6940, %v6988
        %v6990 = vpop.f32.mrf.mxu0
        %v6991 = vadd.f32 %v6942, %v6990
        %6992 = vdwg.mxu0
        %6993 = vmatpush.bf16.msra.mxu0 %v5248
        %6994 = vmatpush.bf16.msra.mxu0 %v5247
        %6995 = vmatpush.bf16.msra.mxu0 %v5246
        %6996 = vmatpush.bf16.msra.mxu0 %v5245
        %6997 = vmatpush.bf16.msra.mxu0 %v5244
        %6998 = vmatpush.bf16.msra.mxu0 %v5243
        %6999 = vmatpush.bf16.msra.mxu0 %v5242
        %7000 = vmatpush.bf16.msra.mxu0 %v5241
        %7001 = vmatmul.bf16.gmra.mxu0 %v2769
        %v7002 = vpop.f32.mrf.mxu0
        %v7003 = vadd.f32 %v6954, %v7002
        %v7004 = vpop.f32.mrf.mxu0
        %v7005 = vadd.f32 %v6956, %v7004
        %7006 = vmatmul.bf16.gmra.mxu0 %v2817
        %v7007 = vpop.f32.mrf.mxu0
        %v7008 = vadd.f32 %v6959, %v7007
        %v7009 = vpop.f32.mrf.mxu0
        %v7010 = vadd.f32 %v6961, %v7009
        %7011 = vmatmul.bf16.gmra.mxu0 %v2865
        %v7012 = vpop.f32.mrf.mxu0
        %v7013 = vadd.f32 %v6964, %v7012
        %v7014 = vpop.f32.mrf.mxu0
        %v7015 = vadd.f32 %v6966, %v7014
        %7016 = vmatmul.bf16.gmra.mxu0 %v2913
        %v7017 = vpop.f32.mrf.mxu0
        %v7018 = vadd.f32 %v6969, %v7017
        %v7019 = vpop.f32.mrf.mxu0
        %v7020 = vadd.f32 %v6971, %v7019
        %7021 = vmatmul.bf16.gmra.mxu0 %v2961
        %v7022 = vpop.f32.mrf.mxu0
        %v7023 = vadd.f32 %v6974, %v7022
        %v7024 = vpop.f32.mrf.mxu0
        %v7025 = vadd.f32 %v6976, %v7024
        %7026 = vmatmul.bf16.gmra.mxu0 %v3009
        %v7027 = vpop.f32.mrf.mxu0
        %v7028 = vadd.f32 %v6979, %v7027
        %v7029 = vpop.f32.mrf.mxu0
        %v7030 = vadd.f32 %v6981, %v7029
        %7031 = vmatmul.bf16.gmra.mxu0 %v3057
        %v7032 = vpop.f32.mrf.mxu0
        %v7033 = vadd.f32 %v6984, %v7032
        %v7034 = vpop.f32.mrf.mxu0
        %v7035 = vadd.f32 %v6986, %v7034
        %7036 = vmatmul.bf16.gmra.mxu0 %v3105
        %v7037 = vpop.f32.mrf.mxu0
        %v7038 = vadd.f32 %v6989, %v7037
        %v7039 = vpop.f32.mrf.mxu0
        %v7040 = vadd.f32 %v6991, %v7039
        %7041 = vdwg.mxu0
        %7042 = vmatpush.bf16.msra.mxu0 %v5256
        %7043 = vmatpush.bf16.msra.mxu0 %v5255
        %7044 = vmatpush.bf16.msra.mxu0 %v5254
        %7045 = vmatpush.bf16.msra.mxu0 %v5253
        %7046 = vmatpush.bf16.msra.mxu0 %v5252
        %7047 = vmatpush.bf16.msra.mxu0 %v5251
        %7048 = vmatpush.bf16.msra.mxu0 %v5250
        %7049 = vmatpush.bf16.msra.mxu0 %v5249
        %7050 = vmatmul.bf16.gmra.mxu0 %v2770
        %v7051 = vpop.f32.mrf.mxu0
        %v7052 = vadd.f32 %v7003, %v7051
        %v7053 = vpop.f32.mrf.mxu0
        %v7054 = vadd.f32 %v7005, %v7053
        %7055 = vmatmul.bf16.gmra.mxu0 %v2818
        %v7056 = vpop.f32.mrf.mxu0
        %v7057 = vadd.f32 %v7008, %v7056
        %v7058 = vpop.f32.mrf.mxu0
        %v7059 = vadd.f32 %v7010, %v7058
        %7060 = vmatmul.bf16.gmra.mxu0 %v2866
        %v7061 = vpop.f32.mrf.mxu0
        %v7062 = vadd.f32 %v7013, %v7061
        %v7063 = vpop.f32.mrf.mxu0
        %v7064 = vadd.f32 %v7015, %v7063
        %7065 = vmatmul.bf16.gmra.mxu0 %v2914
        %v7066 = vpop.f32.mrf.mxu0
        %v7067 = vadd.f32 %v7018, %v7066
        %v7068 = vpop.f32.mrf.mxu0
        %v7069 = vadd.f32 %v7020, %v7068
        %7070 = vmatmul.bf16.gmra.mxu0 %v2962
        %v7071 = vpop.f32.mrf.mxu0
        %v7072 = vadd.f32 %v7023, %v7071
        %v7073 = vpop.f32.mrf.mxu0
        %v7074 = vadd.f32 %v7025, %v7073
        %7075 = vmatmul.bf16.gmra.mxu0 %v3010
        %v7076 = vpop.f32.mrf.mxu0
        %v7077 = vadd.f32 %v7028, %v7076
        %v7078 = vpop.f32.mrf.mxu0
        %v7079 = vadd.f32 %v7030, %v7078
        %7080 = vmatmul.bf16.gmra.mxu0 %v3058
        %v7081 = vpop.f32.mrf.mxu0
        %v7082 = vadd.f32 %v7033, %v7081
        %v7083 = vpop.f32.mrf.mxu0
        %v7084 = vadd.f32 %v7035, %v7083
        %7085 = vmatmul.bf16.gmra.mxu0 %v3106
        %v7086 = vpop.f32.mrf.mxu0
        %v7087 = vadd.f32 %v7038, %v7086
        %v7088 = vpop.f32.mrf.mxu0
        %v7089 = vadd.f32 %v7040, %v7088
        %7090 = vdwg.mxu0
        %7091 = vmatpush.bf16.msra.mxu0 %v5264
        %7092 = vmatpush.bf16.msra.mxu0 %v5263
        %7093 = vmatpush.bf16.msra.mxu0 %v5262
        %7094 = vmatpush.bf16.msra.mxu0 %v5261
        %7095 = vmatpush.bf16.msra.mxu0 %v5260
        %7096 = vmatpush.bf16.msra.mxu0 %v5259
        %7097 = vmatpush.bf16.msra.mxu0 %v5258
        %7098 = vmatpush.bf16.msra.mxu0 %v5257
        %7099 = vmatmul.bf16.gmra.mxu0 %v2771
        %v7100 = vpop.f32.mrf.mxu0
        %v7101 = vadd.f32 %v7052, %v7100
        %v7102 = vpop.f32.mrf.mxu0
        %v7103 = vadd.f32 %v7054, %v7102
        %7104 = vmatmul.bf16.gmra.mxu0 %v2819
        %v7105 = vpop.f32.mrf.mxu0
        %v7106 = vadd.f32 %v7057, %v7105
        %v7107 = vpop.f32.mrf.mxu0
        %v7108 = vadd.f32 %v7059, %v7107
        %7109 = vmatmul.bf16.gmra.mxu0 %v2867
        %v7110 = vpop.f32.mrf.mxu0
        %v7111 = vadd.f32 %v7062, %v7110
        %v7112 = vpop.f32.mrf.mxu0
        %v7113 = vadd.f32 %v7064, %v7112
        %7114 = vmatmul.bf16.gmra.mxu0 %v2915
        %v7115 = vpop.f32.mrf.mxu0
        %v7116 = vadd.f32 %v7067, %v7115
        %v7117 = vpop.f32.mrf.mxu0
        %v7118 = vadd.f32 %v7069, %v7117
        %7119 = vmatmul.bf16.gmra.mxu0 %v2963
        %v7120 = vpop.f32.mrf.mxu0
        %v7121 = vadd.f32 %v7072, %v7120
        %v7122 = vpop.f32.mrf.mxu0
        %v7123 = vadd.f32 %v7074, %v7122
        %7124 = vmatmul.bf16.gmra.mxu0 %v3011
        %v7125 = vpop.f32.mrf.mxu0
        %v7126 = vadd.f32 %v7077, %v7125
        %v7127 = vpop.f32.mrf.mxu0
        %v7128 = vadd.f32 %v7079, %v7127
        %7129 = vmatmul.bf16.gmra.mxu0 %v3059
        %v7130 = vpop.f32.mrf.mxu0
        %v7131 = vadd.f32 %v7082, %v7130
        %v7132 = vpop.f32.mrf.mxu0
        %v7133 = vadd.f32 %v7084, %v7132
        %7134 = vmatmul.bf16.gmra.mxu0 %v3107
        %v7135 = vpop.f32.mrf.mxu0
        %v7136 = vadd.f32 %v7087, %v7135
        %v7137 = vpop.f32.mrf.mxu0
        %v7138 = vadd.f32 %v7089, %v7137
        %7139 = vdwg.mxu0
        %7140 = vmatpush.bf16.msra.mxu0 %v5272
        %7141 = vmatpush.bf16.msra.mxu0 %v5271
        %7142 = vmatpush.bf16.msra.mxu0 %v5270
        %7143 = vmatpush.bf16.msra.mxu0 %v5269
        %7144 = vmatpush.bf16.msra.mxu0 %v5268
        %7145 = vmatpush.bf16.msra.mxu0 %v5267
        %7146 = vmatpush.bf16.msra.mxu0 %v5266
        %7147 = vmatpush.bf16.msra.mxu0 %v5265
        %7148 = vmatmul.bf16.gmra.mxu0 %v2772
        %v7149 = vpop.f32.mrf.mxu0
        %v7150 = vadd.f32 %v7101, %v7149
        %v7151 = vpop.f32.mrf.mxu0
        %v7152 = vadd.f32 %v7103, %v7151
        %7153 = vmatmul.bf16.gmra.mxu0 %v2820
        %v7154 = vpop.f32.mrf.mxu0
        %v7155 = vadd.f32 %v7106, %v7154
        %v7156 = vpop.f32.mrf.mxu0
        %v7157 = vadd.f32 %v7108, %v7156
        %7158 = vmatmul.bf16.gmra.mxu0 %v2868
        %v7159 = vpop.f32.mrf.mxu0
        %v7160 = vadd.f32 %v7111, %v7159
        %v7161 = vpop.f32.mrf.mxu0
        %v7162 = vadd.f32 %v7113, %v7161
        %7163 = vmatmul.bf16.gmra.mxu0 %v2916
        %v7164 = vpop.f32.mrf.mxu0
        %v7165 = vadd.f32 %v7116, %v7164
        %v7166 = vpop.f32.mrf.mxu0
        %v7167 = vadd.f32 %v7118, %v7166
        %7168 = vmatmul.bf16.gmra.mxu0 %v2964
        %v7169 = vpop.f32.mrf.mxu0
        %v7170 = vadd.f32 %v7121, %v7169
        %v7171 = vpop.f32.mrf.mxu0
        %v7172 = vadd.f32 %v7123, %v7171
        %7173 = vmatmul.bf16.gmra.mxu0 %v3012
        %v7174 = vpop.f32.mrf.mxu0
        %v7175 = vadd.f32 %v7126, %v7174
        %v7176 = vpop.f32.mrf.mxu0
        %v7177 = vadd.f32 %v7128, %v7176
        %7178 = vmatmul.bf16.gmra.mxu0 %v3060
        %v7179 = vpop.f32.mrf.mxu0
        %v7180 = vadd.f32 %v7131, %v7179
        %v7181 = vpop.f32.mrf.mxu0
        %v7182 = vadd.f32 %v7133, %v7181
        %7183 = vmatmul.bf16.gmra.mxu0 %v3108
        %v7184 = vpop.f32.mrf.mxu0
        %v7185 = vadd.f32 %v7136, %v7184
        %v7186 = vpop.f32.mrf.mxu0
        %v7187 = vadd.f32 %v7138, %v7186
        %7188 = vdwg.mxu0
        %7189 = vmatpush.bf16.msra.mxu0 %v5280
        %7190 = vmatpush.bf16.msra.mxu0 %v5279
        %7191 = vmatpush.bf16.msra.mxu0 %v5278
        %7192 = vmatpush.bf16.msra.mxu0 %v5277
        %7193 = vmatpush.bf16.msra.mxu0 %v5276
        %7194 = vmatpush.bf16.msra.mxu0 %v5275
        %7195 = vmatpush.bf16.msra.mxu0 %v5274
        %7196 = vmatpush.bf16.msra.mxu0 %v5273
        %7197 = vmatmul.bf16.gmra.mxu0 %v2773
        %v7198 = vpop.f32.mrf.mxu0
        %v7199 = vadd.f32 %v7150, %v7198
        %v7200 = vpop.f32.mrf.mxu0
        %v7201 = vadd.f32 %v7152, %v7200
        %7202 = vmatmul.bf16.gmra.mxu0 %v2821
        %v7203 = vpop.f32.mrf.mxu0
        %v7204 = vadd.f32 %v7155, %v7203
        %v7205 = vpop.f32.mrf.mxu0
        %v7206 = vadd.f32 %v7157, %v7205
        %7207 = vmatmul.bf16.gmra.mxu0 %v2869
        %v7208 = vpop.f32.mrf.mxu0
        %v7209 = vadd.f32 %v7160, %v7208
        %v7210 = vpop.f32.mrf.mxu0
        %v7211 = vadd.f32 %v7162, %v7210
        %7212 = vmatmul.bf16.gmra.mxu0 %v2917
        %v7213 = vpop.f32.mrf.mxu0
        %v7214 = vadd.f32 %v7165, %v7213
        %v7215 = vpop.f32.mrf.mxu0
        %v7216 = vadd.f32 %v7167, %v7215
        %7217 = vmatmul.bf16.gmra.mxu0 %v2965
        %v7218 = vpop.f32.mrf.mxu0
        %v7219 = vadd.f32 %v7170, %v7218
        %v7220 = vpop.f32.mrf.mxu0
        %v7221 = vadd.f32 %v7172, %v7220
        %7222 = vmatmul.bf16.gmra.mxu0 %v3013
        %v7223 = vpop.f32.mrf.mxu0
        %v7224 = vadd.f32 %v7175, %v7223
        %v7225 = vpop.f32.mrf.mxu0
        %v7226 = vadd.f32 %v7177, %v7225
        %7227 = vmatmul.bf16.gmra.mxu0 %v3061
        %v7228 = vpop.f32.mrf.mxu0
        %v7229 = vadd.f32 %v7180, %v7228
        %v7230 = vpop.f32.mrf.mxu0
        %v7231 = vadd.f32 %v7182, %v7230
        %7232 = vmatmul.bf16.gmra.mxu0 %v3109
        %v7233 = vpop.f32.mrf.mxu0
        %v7234 = vadd.f32 %v7185, %v7233
        %v7235 = vpop.f32.mrf.mxu0
        %v7236 = vadd.f32 %v7187, %v7235
        %7237 = vdwg.mxu0
        %7238 = vmatpush.bf16.msra.mxu0 %v5288
        %7239 = vmatpush.bf16.msra.mxu0 %v5287
        %7240 = vmatpush.bf16.msra.mxu0 %v5286
        %7241 = vmatpush.bf16.msra.mxu0 %v5285
        %7242 = vmatpush.bf16.msra.mxu0 %v5284
        %7243 = vmatpush.bf16.msra.mxu0 %v5283
        %7244 = vmatpush.bf16.msra.mxu0 %v5282
        %7245 = vmatpush.bf16.msra.mxu0 %v5281
        %7246 = vmatmul.bf16.gmra.mxu0 %v2774
        %v7247 = vpop.f32.mrf.mxu0
        %v7248 = vadd.f32 %v7199, %v7247
        %v7249 = vpop.f32.mrf.mxu0
        %v7250 = vadd.f32 %v7201, %v7249
        %7251 = vmatmul.bf16.gmra.mxu0 %v2822
        %v7252 = vpop.f32.mrf.mxu0
        %v7253 = vadd.f32 %v7204, %v7252
        %v7254 = vpop.f32.mrf.mxu0
        %v7255 = vadd.f32 %v7206, %v7254
        %7256 = vmatmul.bf16.gmra.mxu0 %v2870
        %v7257 = vpop.f32.mrf.mxu0
        %v7258 = vadd.f32 %v7209, %v7257
        %v7259 = vpop.f32.mrf.mxu0
        %v7260 = vadd.f32 %v7211, %v7259
        %7261 = vmatmul.bf16.gmra.mxu0 %v2918
        %v7262 = vpop.f32.mrf.mxu0
        %v7263 = vadd.f32 %v7214, %v7262
        %v7264 = vpop.f32.mrf.mxu0
        %v7265 = vadd.f32 %v7216, %v7264
        %7266 = vmatmul.bf16.gmra.mxu0 %v2966
        %v7267 = vpop.f32.mrf.mxu0
        %v7268 = vadd.f32 %v7219, %v7267
        %v7269 = vpop.f32.mrf.mxu0
        %v7270 = vadd.f32 %v7221, %v7269
        %7271 = vmatmul.bf16.gmra.mxu0 %v3014
        %v7272 = vpop.f32.mrf.mxu0
        %v7273 = vadd.f32 %v7224, %v7272
        %v7274 = vpop.f32.mrf.mxu0
        %v7275 = vadd.f32 %v7226, %v7274
        %7276 = vmatmul.bf16.gmra.mxu0 %v3062
        %v7277 = vpop.f32.mrf.mxu0
        %v7278 = vadd.f32 %v7229, %v7277
        %v7279 = vpop.f32.mrf.mxu0
        %v7280 = vadd.f32 %v7231, %v7279
        %7281 = vmatmul.bf16.gmra.mxu0 %v3110
        %v7282 = vpop.f32.mrf.mxu0
        %v7283 = vadd.f32 %v7234, %v7282
        %v7284 = vpop.f32.mrf.mxu0
        %v7285 = vadd.f32 %v7236, %v7284
        %7286 = vdwg.mxu0
        %7287 = vmatpush.bf16.msra.mxu0 %v5296
        %7288 = vmatpush.bf16.msra.mxu0 %v5295
        %7289 = vmatpush.bf16.msra.mxu0 %v5294
        %7290 = vmatpush.bf16.msra.mxu0 %v5293
        %7291 = vmatpush.bf16.msra.mxu0 %v5292
        %7292 = vmatpush.bf16.msra.mxu0 %v5291
        %7293 = vmatpush.bf16.msra.mxu0 %v5290
        %7294 = vmatpush.bf16.msra.mxu0 %v5289
        %7295 = vmatmul.bf16.gmra.mxu0 %v2775
        %v7296 = vpop.f32.mrf.mxu0
        %v7297 = vadd.f32 %v7248, %v7296
        %v7298 = vpop.f32.mrf.mxu0
        %v7299 = vadd.f32 %v7250, %v7298
        %7300 = vmatmul.bf16.gmra.mxu0 %v2823
        %v7301 = vpop.f32.mrf.mxu0
        %v7302 = vadd.f32 %v7253, %v7301
        %v7303 = vpop.f32.mrf.mxu0
        %v7304 = vadd.f32 %v7255, %v7303
        %7305 = vmatmul.bf16.gmra.mxu0 %v2871
        %v7306 = vpop.f32.mrf.mxu0
        %v7307 = vadd.f32 %v7258, %v7306
        %v7308 = vpop.f32.mrf.mxu0
        %v7309 = vadd.f32 %v7260, %v7308
        %7310 = vmatmul.bf16.gmra.mxu0 %v2919
        %v7311 = vpop.f32.mrf.mxu0
        %v7312 = vadd.f32 %v7263, %v7311
        %v7313 = vpop.f32.mrf.mxu0
        %v7314 = vadd.f32 %v7265, %v7313
        %7315 = vmatmul.bf16.gmra.mxu0 %v2967
        %v7316 = vpop.f32.mrf.mxu0
        %v7317 = vadd.f32 %v7268, %v7316
        %v7318 = vpop.f32.mrf.mxu0
        %v7319 = vadd.f32 %v7270, %v7318
        %7320 = vmatmul.bf16.gmra.mxu0 %v3015
        %v7321 = vpop.f32.mrf.mxu0
        %v7322 = vadd.f32 %v7273, %v7321
        %v7323 = vpop.f32.mrf.mxu0
        %v7324 = vadd.f32 %v7275, %v7323
        %7325 = vmatmul.bf16.gmra.mxu0 %v3063
        %v7326 = vpop.f32.mrf.mxu0
        %v7327 = vadd.f32 %v7278, %v7326
        %v7328 = vpop.f32.mrf.mxu0
        %v7329 = vadd.f32 %v7280, %v7328
        %7330 = vmatmul.bf16.gmra.mxu0 %v3111
        %v7331 = vpop.f32.mrf.mxu0
        %v7332 = vadd.f32 %v7283, %v7331
        %v7333 = vpop.f32.mrf.mxu0
        %v7334 = vadd.f32 %v7285, %v7333
        %7335 = vdwg.mxu0
        %7336 = vmatpush.bf16.msra.mxu0 %v5304
        %7337 = vmatpush.bf16.msra.mxu0 %v5303
        %7338 = vmatpush.bf16.msra.mxu0 %v5302
        %7339 = vmatpush.bf16.msra.mxu0 %v5301
        %7340 = vmatpush.bf16.msra.mxu0 %v5300
        %7341 = vmatpush.bf16.msra.mxu0 %v5299
        %7342 = vmatpush.bf16.msra.mxu0 %v5298
        %7343 = vmatpush.bf16.msra.mxu0 %v5297
        %7344 = vmatmul.bf16.gmra.mxu0 %v2776
        %v7345 = vpop.f32.mrf.mxu0
        %v7346 = vadd.f32 %v7297, %v7345
        %v7347 = vpop.f32.mrf.mxu0
        %v7348 = vadd.f32 %v7299, %v7347
        %7349 = vmatmul.bf16.gmra.mxu0 %v2824
        %v7350 = vpop.f32.mrf.mxu0
        %v7351 = vadd.f32 %v7302, %v7350
        %v7352 = vpop.f32.mrf.mxu0
        %v7353 = vadd.f32 %v7304, %v7352
        %7354 = vmatmul.bf16.gmra.mxu0 %v2872
        %v7355 = vpop.f32.mrf.mxu0
        %v7356 = vadd.f32 %v7307, %v7355
        %v7357 = vpop.f32.mrf.mxu0
        %v7358 = vadd.f32 %v7309, %v7357
        %7359 = vmatmul.bf16.gmra.mxu0 %v2920
        %v7360 = vpop.f32.mrf.mxu0
        %v7361 = vadd.f32 %v7312, %v7360
        %v7362 = vpop.f32.mrf.mxu0
        %v7363 = vadd.f32 %v7314, %v7362
        %7364 = vmatmul.bf16.gmra.mxu0 %v2968
        %v7365 = vpop.f32.mrf.mxu0
        %v7366 = vadd.f32 %v7317, %v7365
        %v7367 = vpop.f32.mrf.mxu0
        %v7368 = vadd.f32 %v7319, %v7367
        %7369 = vmatmul.bf16.gmra.mxu0 %v3016
        %v7370 = vpop.f32.mrf.mxu0
        %v7371 = vadd.f32 %v7322, %v7370
        %v7372 = vpop.f32.mrf.mxu0
        %v7373 = vadd.f32 %v7324, %v7372
        %7374 = vmatmul.bf16.gmra.mxu0 %v3064
        %v7375 = vpop.f32.mrf.mxu0
        %v7376 = vadd.f32 %v7327, %v7375
        %v7377 = vpop.f32.mrf.mxu0
        %v7378 = vadd.f32 %v7329, %v7377
        %7379 = vmatmul.bf16.gmra.mxu0 %v3112
        %v7380 = vpop.f32.mrf.mxu0
        %v7381 = vadd.f32 %v7332, %v7380
        %v7382 = vpop.f32.mrf.mxu0
        %v7383 = vadd.f32 %v7334, %v7382
        %7384 = vdwg.mxu0
        %7385 = vmatpush.bf16.msra.mxu0 %v5312
        %7386 = vmatpush.bf16.msra.mxu0 %v5311
        %7387 = vmatpush.bf16.msra.mxu0 %v5310
        %7388 = vmatpush.bf16.msra.mxu0 %v5309
        %7389 = vmatpush.bf16.msra.mxu0 %v5308
        %7390 = vmatpush.bf16.msra.mxu0 %v5307
        %7391 = vmatpush.bf16.msra.mxu0 %v5306
        %7392 = vmatpush.bf16.msra.mxu0 %v5305
        %7393 = vmatmul.bf16.gmra.mxu0 %v2777
        %v7394 = vpop.f32.mrf.mxu0
        %v7395 = vadd.f32 %v7346, %v7394
        %v7396 = vpop.f32.mrf.mxu0
        %v7397 = vadd.f32 %v7348, %v7396
        %7398 = vmatmul.bf16.gmra.mxu0 %v2825
        %v7399 = vpop.f32.mrf.mxu0
        %v7400 = vadd.f32 %v7351, %v7399
        %v7401 = vpop.f32.mrf.mxu0
        %v7402 = vadd.f32 %v7353, %v7401
        %7403 = vmatmul.bf16.gmra.mxu0 %v2873
        %v7404 = vpop.f32.mrf.mxu0
        %v7405 = vadd.f32 %v7356, %v7404
        %v7406 = vpop.f32.mrf.mxu0
        %v7407 = vadd.f32 %v7358, %v7406
        %7408 = vmatmul.bf16.gmra.mxu0 %v2921
        %v7409 = vpop.f32.mrf.mxu0
        %v7410 = vadd.f32 %v7361, %v7409
        %v7411 = vpop.f32.mrf.mxu0
        %v7412 = vadd.f32 %v7363, %v7411
        %7413 = vmatmul.bf16.gmra.mxu0 %v2969
        %v7414 = vpop.f32.mrf.mxu0
        %v7415 = vadd.f32 %v7366, %v7414
        %v7416 = vpop.f32.mrf.mxu0
        %v7417 = vadd.f32 %v7368, %v7416
        %7418 = vmatmul.bf16.gmra.mxu0 %v3017
        %v7419 = vpop.f32.mrf.mxu0
        %v7420 = vadd.f32 %v7371, %v7419
        %v7421 = vpop.f32.mrf.mxu0
        %v7422 = vadd.f32 %v7373, %v7421
        %7423 = vmatmul.bf16.gmra.mxu0 %v3065
        %v7424 = vpop.f32.mrf.mxu0
        %v7425 = vadd.f32 %v7376, %v7424
        %v7426 = vpop.f32.mrf.mxu0
        %v7427 = vadd.f32 %v7378, %v7426
        %7428 = vmatmul.bf16.gmra.mxu0 %v3113
        %v7429 = vpop.f32.mrf.mxu0
        %v7430 = vadd.f32 %v7381, %v7429
        %v7431 = vpop.f32.mrf.mxu0
        %v7432 = vadd.f32 %v7383, %v7431
        %7433 = vdwg.mxu0
        %7434 = vmatpush.bf16.msra.mxu0 %v5320
        %7435 = vmatpush.bf16.msra.mxu0 %v5319
        %7436 = vmatpush.bf16.msra.mxu0 %v5318
        %7437 = vmatpush.bf16.msra.mxu0 %v5317
        %7438 = vmatpush.bf16.msra.mxu0 %v5316
        %7439 = vmatpush.bf16.msra.mxu0 %v5315
        %7440 = vmatpush.bf16.msra.mxu0 %v5314
        %7441 = vmatpush.bf16.msra.mxu0 %v5313
        %7442 = vmatmul.bf16.gmra.mxu0 %v2778
        %v7443 = vpop.f32.mrf.mxu0
        %v7444 = vadd.f32 %v7395, %v7443
        %v7445 = vpop.f32.mrf.mxu0
        %v7446 = vadd.f32 %v7397, %v7445
        %7447 = vmatmul.bf16.gmra.mxu0 %v2826
        %v7448 = vpop.f32.mrf.mxu0
        %v7449 = vadd.f32 %v7400, %v7448
        %v7450 = vpop.f32.mrf.mxu0
        %v7451 = vadd.f32 %v7402, %v7450
        %7452 = vmatmul.bf16.gmra.mxu0 %v2874
        %v7453 = vpop.f32.mrf.mxu0
        %v7454 = vadd.f32 %v7405, %v7453
        %v7455 = vpop.f32.mrf.mxu0
        %v7456 = vadd.f32 %v7407, %v7455
        %7457 = vmatmul.bf16.gmra.mxu0 %v2922
        %v7458 = vpop.f32.mrf.mxu0
        %v7459 = vadd.f32 %v7410, %v7458
        %v7460 = vpop.f32.mrf.mxu0
        %v7461 = vadd.f32 %v7412, %v7460
        %7462 = vmatmul.bf16.gmra.mxu0 %v2970
        %v7463 = vpop.f32.mrf.mxu0
        %v7464 = vadd.f32 %v7415, %v7463
        %v7465 = vpop.f32.mrf.mxu0
        %v7466 = vadd.f32 %v7417, %v7465
        %7467 = vmatmul.bf16.gmra.mxu0 %v3018
        %v7468 = vpop.f32.mrf.mxu0
        %v7469 = vadd.f32 %v7420, %v7468
        %v7470 = vpop.f32.mrf.mxu0
        %v7471 = vadd.f32 %v7422, %v7470
        %7472 = vmatmul.bf16.gmra.mxu0 %v3066
        %v7473 = vpop.f32.mrf.mxu0
        %v7474 = vadd.f32 %v7425, %v7473
        %v7475 = vpop.f32.mrf.mxu0
        %v7476 = vadd.f32 %v7427, %v7475
        %7477 = vmatmul.bf16.gmra.mxu0 %v3114
        %v7478 = vpop.f32.mrf.mxu0
        %v7479 = vadd.f32 %v7430, %v7478
        %v7480 = vpop.f32.mrf.mxu0
        %v7481 = vadd.f32 %v7432, %v7480
        %7482 = vdwg.mxu0
        %7483 = vmatpush.bf16.msra.mxu0 %v5328
        %7484 = vmatpush.bf16.msra.mxu0 %v5327
        %7485 = vmatpush.bf16.msra.mxu0 %v5326
        %7486 = vmatpush.bf16.msra.mxu0 %v5325
        %7487 = vmatpush.bf16.msra.mxu0 %v5324
        %7488 = vmatpush.bf16.msra.mxu0 %v5323
        %7489 = vmatpush.bf16.msra.mxu0 %v5322
        %7490 = vmatpush.bf16.msra.mxu0 %v5321
        %7491 = vmatmul.bf16.gmra.mxu0 %v2779
        %v7492 = vpop.f32.mrf.mxu0
        %v7493 = vadd.f32 %v7444, %v7492
        %v7494 = vpop.f32.mrf.mxu0
        %v7495 = vadd.f32 %v7446, %v7494
        %7496 = vmatmul.bf16.gmra.mxu0 %v2827
        %v7497 = vpop.f32.mrf.mxu0
        %v7498 = vadd.f32 %v7449, %v7497
        %v7499 = vpop.f32.mrf.mxu0
        %v7500 = vadd.f32 %v7451, %v7499
        %7501 = vmatmul.bf16.gmra.mxu0 %v2875
        %v7502 = vpop.f32.mrf.mxu0
        %v7503 = vadd.f32 %v7454, %v7502
        %v7504 = vpop.f32.mrf.mxu0
        %v7505 = vadd.f32 %v7456, %v7504
        %7506 = vmatmul.bf16.gmra.mxu0 %v2923
        %v7507 = vpop.f32.mrf.mxu0
        %v7508 = vadd.f32 %v7459, %v7507
        %v7509 = vpop.f32.mrf.mxu0
        %v7510 = vadd.f32 %v7461, %v7509
        %7511 = vmatmul.bf16.gmra.mxu0 %v2971
        %v7512 = vpop.f32.mrf.mxu0
        %v7513 = vadd.f32 %v7464, %v7512
        %v7514 = vpop.f32.mrf.mxu0
        %v7515 = vadd.f32 %v7466, %v7514
        %7516 = vmatmul.bf16.gmra.mxu0 %v3019
        %v7517 = vpop.f32.mrf.mxu0
        %v7518 = vadd.f32 %v7469, %v7517
        %v7519 = vpop.f32.mrf.mxu0
        %v7520 = vadd.f32 %v7471, %v7519
        %7521 = vmatmul.bf16.gmra.mxu0 %v3067
        %v7522 = vpop.f32.mrf.mxu0
        %v7523 = vadd.f32 %v7474, %v7522
        %v7524 = vpop.f32.mrf.mxu0
        %v7525 = vadd.f32 %v7476, %v7524
        %7526 = vmatmul.bf16.gmra.mxu0 %v3115
        %v7527 = vpop.f32.mrf.mxu0
        %v7528 = vadd.f32 %v7479, %v7527
        %v7529 = vpop.f32.mrf.mxu0
        %v7530 = vadd.f32 %v7481, %v7529
        %7531 = vdwg.mxu0
        %7532 = vmatpush.bf16.msra.mxu0 %v5336
        %7533 = vmatpush.bf16.msra.mxu0 %v5335
        %7534 = vmatpush.bf16.msra.mxu0 %v5334
        %7535 = vmatpush.bf16.msra.mxu0 %v5333
        %7536 = vmatpush.bf16.msra.mxu0 %v5332
        %7537 = vmatpush.bf16.msra.mxu0 %v5331
        %7538 = vmatpush.bf16.msra.mxu0 %v5330
        %7539 = vmatpush.bf16.msra.mxu0 %v5329
        %7540 = vmatmul.bf16.gmra.mxu0 %v2780
        %v7541 = vpop.f32.mrf.mxu0
        %v7542 = vadd.f32 %v7493, %v7541
        %v7543 = vpop.f32.mrf.mxu0
        %v7544 = vadd.f32 %v7495, %v7543
        %7545 = vmatmul.bf16.gmra.mxu0 %v2828
        %v7546 = vpop.f32.mrf.mxu0
        %v7547 = vadd.f32 %v7498, %v7546
        %v7548 = vpop.f32.mrf.mxu0
        %v7549 = vadd.f32 %v7500, %v7548
        %7550 = vmatmul.bf16.gmra.mxu0 %v2876
        %v7551 = vpop.f32.mrf.mxu0
        %v7552 = vadd.f32 %v7503, %v7551
        %v7553 = vpop.f32.mrf.mxu0
        %v7554 = vadd.f32 %v7505, %v7553
        %7555 = vmatmul.bf16.gmra.mxu0 %v2924
        %v7556 = vpop.f32.mrf.mxu0
        %v7557 = vadd.f32 %v7508, %v7556
        %v7558 = vpop.f32.mrf.mxu0
        %v7559 = vadd.f32 %v7510, %v7558
        %7560 = vmatmul.bf16.gmra.mxu0 %v2972
        %v7561 = vpop.f32.mrf.mxu0
        %v7562 = vadd.f32 %v7513, %v7561
        %v7563 = vpop.f32.mrf.mxu0
        %v7564 = vadd.f32 %v7515, %v7563
        %7565 = vmatmul.bf16.gmra.mxu0 %v3020
        %v7566 = vpop.f32.mrf.mxu0
        %v7567 = vadd.f32 %v7518, %v7566
        %v7568 = vpop.f32.mrf.mxu0
        %v7569 = vadd.f32 %v7520, %v7568
        %7570 = vmatmul.bf16.gmra.mxu0 %v3068
        %v7571 = vpop.f32.mrf.mxu0
        %v7572 = vadd.f32 %v7523, %v7571
        %v7573 = vpop.f32.mrf.mxu0
        %v7574 = vadd.f32 %v7525, %v7573
        %7575 = vmatmul.bf16.gmra.mxu0 %v3116
        %v7576 = vpop.f32.mrf.mxu0
        %v7577 = vadd.f32 %v7528, %v7576
        %v7578 = vpop.f32.mrf.mxu0
        %v7579 = vadd.f32 %v7530, %v7578
        %7580 = vdwg.mxu0
        %7581 = vmatpush.bf16.msra.mxu0 %v5344
        %7582 = vmatpush.bf16.msra.mxu0 %v5343
        %7583 = vmatpush.bf16.msra.mxu0 %v5342
        %7584 = vmatpush.bf16.msra.mxu0 %v5341
        %7585 = vmatpush.bf16.msra.mxu0 %v5340
        %7586 = vmatpush.bf16.msra.mxu0 %v5339
        %7587 = vmatpush.bf16.msra.mxu0 %v5338
        %7588 = vmatpush.bf16.msra.mxu0 %v5337
        %7589 = vmatmul.bf16.gmra.mxu0 %v2781
        %v7590 = vpop.f32.mrf.mxu0
        %v7591 = vadd.f32 %v7542, %v7590
        %v7592 = vpop.f32.mrf.mxu0
        %v7593 = vadd.f32 %v7544, %v7592
        %7594 = vmatmul.bf16.gmra.mxu0 %v2829
        %v7595 = vpop.f32.mrf.mxu0
        %v7596 = vadd.f32 %v7547, %v7595
        %v7597 = vpop.f32.mrf.mxu0
        %v7598 = vadd.f32 %v7549, %v7597
        %7599 = vmatmul.bf16.gmra.mxu0 %v2877
        %v7600 = vpop.f32.mrf.mxu0
        %v7601 = vadd.f32 %v7552, %v7600
        %v7602 = vpop.f32.mrf.mxu0
        %v7603 = vadd.f32 %v7554, %v7602
        %7604 = vmatmul.bf16.gmra.mxu0 %v2925
        %v7605 = vpop.f32.mrf.mxu0
        %v7606 = vadd.f32 %v7557, %v7605
        %v7607 = vpop.f32.mrf.mxu0
        %v7608 = vadd.f32 %v7559, %v7607
        %7609 = vmatmul.bf16.gmra.mxu0 %v2973
        %v7610 = vpop.f32.mrf.mxu0
        %v7611 = vadd.f32 %v7562, %v7610
        %v7612 = vpop.f32.mrf.mxu0
        %v7613 = vadd.f32 %v7564, %v7612
        %7614 = vmatmul.bf16.gmra.mxu0 %v3021
        %v7615 = vpop.f32.mrf.mxu0
        %v7616 = vadd.f32 %v7567, %v7615
        %v7617 = vpop.f32.mrf.mxu0
        %v7618 = vadd.f32 %v7569, %v7617
        %7619 = vmatmul.bf16.gmra.mxu0 %v3069
        %v7620 = vpop.f32.mrf.mxu0
        %v7621 = vadd.f32 %v7572, %v7620
        %v7622 = vpop.f32.mrf.mxu0
        %v7623 = vadd.f32 %v7574, %v7622
        %7624 = vmatmul.bf16.gmra.mxu0 %v3117
        %v7625 = vpop.f32.mrf.mxu0
        %v7626 = vadd.f32 %v7577, %v7625
        %v7627 = vpop.f32.mrf.mxu0
        %v7628 = vadd.f32 %v7579, %v7627
        %7629 = vdwg.mxu0
        %7630 = vmatpush.bf16.msra.mxu0 %v5352
        %7631 = vmatpush.bf16.msra.mxu0 %v5351
        %7632 = vmatpush.bf16.msra.mxu0 %v5350
        %7633 = vmatpush.bf16.msra.mxu0 %v5349
        %7634 = vmatpush.bf16.msra.mxu0 %v5348
        %7635 = vmatpush.bf16.msra.mxu0 %v5347
        %7636 = vmatpush.bf16.msra.mxu0 %v5346
        %7637 = vmatpush.bf16.msra.mxu0 %v5345
        %7638 = vmatmul.bf16.gmra.mxu0 %v2782
        %v7639 = vpop.f32.mrf.mxu0
        %v7640 = vadd.f32 %v7591, %v7639
        %v7641 = vpop.f32.mrf.mxu0
        %v7642 = vadd.f32 %v7593, %v7641
        %7643 = vmatmul.bf16.gmra.mxu0 %v2830
        %v7644 = vpop.f32.mrf.mxu0
        %v7645 = vadd.f32 %v7596, %v7644
        %v7646 = vpop.f32.mrf.mxu0
        %v7647 = vadd.f32 %v7598, %v7646
        %7648 = vmatmul.bf16.gmra.mxu0 %v2878
        %v7649 = vpop.f32.mrf.mxu0
        %v7650 = vadd.f32 %v7601, %v7649
        %v7651 = vpop.f32.mrf.mxu0
        %v7652 = vadd.f32 %v7603, %v7651
        %7653 = vmatmul.bf16.gmra.mxu0 %v2926
        %v7654 = vpop.f32.mrf.mxu0
        %v7655 = vadd.f32 %v7606, %v7654
        %v7656 = vpop.f32.mrf.mxu0
        %v7657 = vadd.f32 %v7608, %v7656
        %7658 = vmatmul.bf16.gmra.mxu0 %v2974
        %v7659 = vpop.f32.mrf.mxu0
        %v7660 = vadd.f32 %v7611, %v7659
        %v7661 = vpop.f32.mrf.mxu0
        %v7662 = vadd.f32 %v7613, %v7661
        %7663 = vmatmul.bf16.gmra.mxu0 %v3022
        %v7664 = vpop.f32.mrf.mxu0
        %v7665 = vadd.f32 %v7616, %v7664
        %v7666 = vpop.f32.mrf.mxu0
        %v7667 = vadd.f32 %v7618, %v7666
        %7668 = vmatmul.bf16.gmra.mxu0 %v3070
        %v7669 = vpop.f32.mrf.mxu0
        %v7670 = vadd.f32 %v7621, %v7669
        %v7671 = vpop.f32.mrf.mxu0
        %v7672 = vadd.f32 %v7623, %v7671
        %7673 = vmatmul.bf16.gmra.mxu0 %v3118
        %v7674 = vpop.f32.mrf.mxu0
        %v7675 = vadd.f32 %v7626, %v7674
        %v7676 = vpop.f32.mrf.mxu0
        %v7677 = vadd.f32 %v7628, %v7676
        %7678 = vdwg.mxu0
        %7679 = vmatpush.bf16.msra.mxu0 %v5360
        %7680 = vmatpush.bf16.msra.mxu0 %v5359
        %7681 = vmatpush.bf16.msra.mxu0 %v5358
        %7682 = vmatpush.bf16.msra.mxu0 %v5357
        %7683 = vmatpush.bf16.msra.mxu0 %v5356
        %7684 = vmatpush.bf16.msra.mxu0 %v5355
        %7685 = vmatpush.bf16.msra.mxu0 %v5354
        %7686 = vmatpush.bf16.msra.mxu0 %v5353
        %7687 = vmatmul.bf16.gmra.mxu0 %v2783
        %v7688 = vpop.f32.mrf.mxu0
        %v7689 = vadd.f32 %v7640, %v7688
        %v7690 = vpop.f32.mrf.mxu0
        %v7691 = vadd.f32 %v7642, %v7690
        %7692 = vmatmul.bf16.gmra.mxu0 %v2831
        %v7693 = vpop.f32.mrf.mxu0
        %v7694 = vadd.f32 %v7645, %v7693
        %v7695 = vpop.f32.mrf.mxu0
        %v7696 = vadd.f32 %v7647, %v7695
        %7697 = vmatmul.bf16.gmra.mxu0 %v2879
        %v7698 = vpop.f32.mrf.mxu0
        %v7699 = vadd.f32 %v7650, %v7698
        %v7700 = vpop.f32.mrf.mxu0
        %v7701 = vadd.f32 %v7652, %v7700
        %7702 = vmatmul.bf16.gmra.mxu0 %v2927
        %v7703 = vpop.f32.mrf.mxu0
        %v7704 = vadd.f32 %v7655, %v7703
        %v7705 = vpop.f32.mrf.mxu0
        %v7706 = vadd.f32 %v7657, %v7705
        %7707 = vmatmul.bf16.gmra.mxu0 %v2975
        %v7708 = vpop.f32.mrf.mxu0
        %v7709 = vadd.f32 %v7660, %v7708
        %v7710 = vpop.f32.mrf.mxu0
        %v7711 = vadd.f32 %v7662, %v7710
        %7712 = vmatmul.bf16.gmra.mxu0 %v3023
        %v7713 = vpop.f32.mrf.mxu0
        %v7714 = vadd.f32 %v7665, %v7713
        %v7715 = vpop.f32.mrf.mxu0
        %v7716 = vadd.f32 %v7667, %v7715
        %7717 = vmatmul.bf16.gmra.mxu0 %v3071
        %v7718 = vpop.f32.mrf.mxu0
        %v7719 = vadd.f32 %v7670, %v7718
        %v7720 = vpop.f32.mrf.mxu0
        %v7721 = vadd.f32 %v7672, %v7720
        %7722 = vmatmul.bf16.gmra.mxu0 %v3119
        %v7723 = vpop.f32.mrf.mxu0
        %v7724 = vadd.f32 %v7675, %v7723
        %v7725 = vpop.f32.mrf.mxu0
        %v7726 = vadd.f32 %v7677, %v7725
        %7727 = vdwg.mxu0
        %7728 = vmatpush.bf16.msra.mxu0 %v5368
        %7729 = vmatpush.bf16.msra.mxu0 %v5367
        %7730 = vmatpush.bf16.msra.mxu0 %v5366
        %7731 = vmatpush.bf16.msra.mxu0 %v5365
        %7732 = vmatpush.bf16.msra.mxu0 %v5364
        %7733 = vmatpush.bf16.msra.mxu0 %v5363
        %7734 = vmatpush.bf16.msra.mxu0 %v5362
        %7735 = vmatpush.bf16.msra.mxu0 %v5361
        %7736 = vmatmul.bf16.gmra.mxu0 %v2784
        %v7737 = vpop.f32.mrf.mxu0
        %v7738 = vadd.f32 %v7689, %v7737
        %v7739 = vpop.f32.mrf.mxu0
        %v7740 = vadd.f32 %v7691, %v7739
        %7741 = vmatmul.bf16.gmra.mxu0 %v2832
        %v7742 = vpop.f32.mrf.mxu0
        %v7743 = vadd.f32 %v7694, %v7742
        %v7744 = vpop.f32.mrf.mxu0
        %v7745 = vadd.f32 %v7696, %v7744
        %7746 = vmatmul.bf16.gmra.mxu0 %v2880
        %v7747 = vpop.f32.mrf.mxu0
        %v7748 = vadd.f32 %v7699, %v7747
        %v7749 = vpop.f32.mrf.mxu0
        %v7750 = vadd.f32 %v7701, %v7749
        %7751 = vmatmul.bf16.gmra.mxu0 %v2928
        %v7752 = vpop.f32.mrf.mxu0
        %v7753 = vadd.f32 %v7704, %v7752
        %v7754 = vpop.f32.mrf.mxu0
        %v7755 = vadd.f32 %v7706, %v7754
        %7756 = vmatmul.bf16.gmra.mxu0 %v2976
        %v7757 = vpop.f32.mrf.mxu0
        %v7758 = vadd.f32 %v7709, %v7757
        %v7759 = vpop.f32.mrf.mxu0
        %v7760 = vadd.f32 %v7711, %v7759
        %7761 = vmatmul.bf16.gmra.mxu0 %v3024
        %v7762 = vpop.f32.mrf.mxu0
        %v7763 = vadd.f32 %v7714, %v7762
        %v7764 = vpop.f32.mrf.mxu0
        %v7765 = vadd.f32 %v7716, %v7764
        %7766 = vmatmul.bf16.gmra.mxu0 %v3072
        %v7767 = vpop.f32.mrf.mxu0
        %v7768 = vadd.f32 %v7719, %v7767
        %v7769 = vpop.f32.mrf.mxu0
        %v7770 = vadd.f32 %v7721, %v7769
        %7771 = vmatmul.bf16.gmra.mxu0 %v3120
        %v7772 = vpop.f32.mrf.mxu0
        %v7773 = vadd.f32 %v7724, %v7772
        %v7774 = vpop.f32.mrf.mxu0
        %v7775 = vadd.f32 %v7726, %v7774
        %7776 = vdwg.mxu0
        %7777 = vmatpush.bf16.msra.mxu0 %v5376
        %7778 = vmatpush.bf16.msra.mxu0 %v5375
        %7779 = vmatpush.bf16.msra.mxu0 %v5374
        %7780 = vmatpush.bf16.msra.mxu0 %v5373
        %7781 = vmatpush.bf16.msra.mxu0 %v5372
        %7782 = vmatpush.bf16.msra.mxu0 %v5371
        %7783 = vmatpush.bf16.msra.mxu0 %v5370
        %7784 = vmatpush.bf16.msra.mxu0 %v5369
        %7785 = vmatmul.bf16.gmra.mxu0 %v2785
        %v7786 = vpop.f32.mrf.mxu0
        %v7787 = vadd.f32 %v7738, %v7786
        %v7788 = vpop.f32.mrf.mxu0
        %v7789 = vadd.f32 %v7740, %v7788
        %7790 = vmatmul.bf16.gmra.mxu0 %v2833
        %v7791 = vpop.f32.mrf.mxu0
        %v7792 = vadd.f32 %v7743, %v7791
        %v7793 = vpop.f32.mrf.mxu0
        %v7794 = vadd.f32 %v7745, %v7793
        %7795 = vmatmul.bf16.gmra.mxu0 %v2881
        %v7796 = vpop.f32.mrf.mxu0
        %v7797 = vadd.f32 %v7748, %v7796
        %v7798 = vpop.f32.mrf.mxu0
        %v7799 = vadd.f32 %v7750, %v7798
        %7800 = vmatmul.bf16.gmra.mxu0 %v2929
        %v7801 = vpop.f32.mrf.mxu0
        %v7802 = vadd.f32 %v7753, %v7801
        %v7803 = vpop.f32.mrf.mxu0
        %v7804 = vadd.f32 %v7755, %v7803
        %7805 = vmatmul.bf16.gmra.mxu0 %v2977
        %v7806 = vpop.f32.mrf.mxu0
        %v7807 = vadd.f32 %v7758, %v7806
        %v7808 = vpop.f32.mrf.mxu0
        %v7809 = vadd.f32 %v7760, %v7808
        %7810 = vmatmul.bf16.gmra.mxu0 %v3025
        %v7811 = vpop.f32.mrf.mxu0
        %v7812 = vadd.f32 %v7763, %v7811
        %v7813 = vpop.f32.mrf.mxu0
        %v7814 = vadd.f32 %v7765, %v7813
        %7815 = vmatmul.bf16.gmra.mxu0 %v3073
        %v7816 = vpop.f32.mrf.mxu0
        %v7817 = vadd.f32 %v7768, %v7816
        %v7818 = vpop.f32.mrf.mxu0
        %v7819 = vadd.f32 %v7770, %v7818
        %7820 = vmatmul.bf16.gmra.mxu0 %v3121
        %v7821 = vpop.f32.mrf.mxu0
        %v7822 = vadd.f32 %v7773, %v7821
        %v7823 = vpop.f32.mrf.mxu0
        %v7824 = vadd.f32 %v7775, %v7823
        %7825 = vdwg.mxu0
        %7826 = vmatpush.bf16.msra.mxu0 %v5384
        %7827 = vmatpush.bf16.msra.mxu0 %v5383
        %7828 = vmatpush.bf16.msra.mxu0 %v5382
        %7829 = vmatpush.bf16.msra.mxu0 %v5381
        %7830 = vmatpush.bf16.msra.mxu0 %v5380
        %7831 = vmatpush.bf16.msra.mxu0 %v5379
        %7832 = vmatpush.bf16.msra.mxu0 %v5378
        %7833 = vmatpush.bf16.msra.mxu0 %v5377
        %7834 = vmatmul.bf16.gmra.mxu0 %v2786
        %v7835 = vpop.f32.mrf.mxu0
        %v7836 = vadd.f32 %v7787, %v7835
        %v7837 = vpop.f32.mrf.mxu0
        %v7838 = vadd.f32 %v7789, %v7837
        %7839 = vmatmul.bf16.gmra.mxu0 %v2834
        %v7840 = vpop.f32.mrf.mxu0
        %v7841 = vadd.f32 %v7792, %v7840
        %v7842 = vpop.f32.mrf.mxu0
        %v7843 = vadd.f32 %v7794, %v7842
        %7844 = vmatmul.bf16.gmra.mxu0 %v2882
        %v7845 = vpop.f32.mrf.mxu0
        %v7846 = vadd.f32 %v7797, %v7845
        %v7847 = vpop.f32.mrf.mxu0
        %v7848 = vadd.f32 %v7799, %v7847
        %7849 = vmatmul.bf16.gmra.mxu0 %v2930
        %v7850 = vpop.f32.mrf.mxu0
        %v7851 = vadd.f32 %v7802, %v7850
        %v7852 = vpop.f32.mrf.mxu0
        %v7853 = vadd.f32 %v7804, %v7852
        %7854 = vmatmul.bf16.gmra.mxu0 %v2978
        %v7855 = vpop.f32.mrf.mxu0
        %v7856 = vadd.f32 %v7807, %v7855
        %v7857 = vpop.f32.mrf.mxu0
        %v7858 = vadd.f32 %v7809, %v7857
        %7859 = vmatmul.bf16.gmra.mxu0 %v3026
        %v7860 = vpop.f32.mrf.mxu0
        %v7861 = vadd.f32 %v7812, %v7860
        %v7862 = vpop.f32.mrf.mxu0
        %v7863 = vadd.f32 %v7814, %v7862
        %7864 = vmatmul.bf16.gmra.mxu0 %v3074
        %v7865 = vpop.f32.mrf.mxu0
        %v7866 = vadd.f32 %v7817, %v7865
        %v7867 = vpop.f32.mrf.mxu0
        %v7868 = vadd.f32 %v7819, %v7867
        %7869 = vmatmul.bf16.gmra.mxu0 %v3122
        %v7870 = vpop.f32.mrf.mxu0
        %v7871 = vadd.f32 %v7822, %v7870
        %v7872 = vpop.f32.mrf.mxu0
        %v7873 = vadd.f32 %v7824, %v7872
        %7874 = vdwg.mxu0
        %7875 = vmatpush.bf16.msra.mxu0 %v5392
        %7876 = vmatpush.bf16.msra.mxu0 %v5391
        %7877 = vmatpush.bf16.msra.mxu0 %v5390
        %7878 = vmatpush.bf16.msra.mxu0 %v5389
        %7879 = vmatpush.bf16.msra.mxu0 %v5388
        %7880 = vmatpush.bf16.msra.mxu0 %v5387
        %7881 = vmatpush.bf16.msra.mxu0 %v5386
        %7882 = vmatpush.bf16.msra.mxu0 %v5385
        %7883 = vmatmul.bf16.gmra.mxu0 %v2787
        %v7884 = vpop.f32.mrf.mxu0
        %v7885 = vadd.f32 %v7836, %v7884
        %v7886 = vpop.f32.mrf.mxu0
        %v7887 = vadd.f32 %v7838, %v7886
        %7888 = vmatmul.bf16.gmra.mxu0 %v2835
        %v7889 = vpop.f32.mrf.mxu0
        %v7890 = vadd.f32 %v7841, %v7889
        %v7891 = vpop.f32.mrf.mxu0
        %v7892 = vadd.f32 %v7843, %v7891
        %7893 = vmatmul.bf16.gmra.mxu0 %v2883
        %v7894 = vpop.f32.mrf.mxu0
        %v7895 = vadd.f32 %v7846, %v7894
        %v7896 = vpop.f32.mrf.mxu0
        %v7897 = vadd.f32 %v7848, %v7896
        %7898 = vmatmul.bf16.gmra.mxu0 %v2931
        %v7899 = vpop.f32.mrf.mxu0
        %v7900 = vadd.f32 %v7851, %v7899
        %v7901 = vpop.f32.mrf.mxu0
        %v7902 = vadd.f32 %v7853, %v7901
        %7903 = vmatmul.bf16.gmra.mxu0 %v2979
        %v7904 = vpop.f32.mrf.mxu0
        %v7905 = vadd.f32 %v7856, %v7904
        %v7906 = vpop.f32.mrf.mxu0
        %v7907 = vadd.f32 %v7858, %v7906
        %7908 = vmatmul.bf16.gmra.mxu0 %v3027
        %v7909 = vpop.f32.mrf.mxu0
        %v7910 = vadd.f32 %v7861, %v7909
        %v7911 = vpop.f32.mrf.mxu0
        %v7912 = vadd.f32 %v7863, %v7911
        %7913 = vmatmul.bf16.gmra.mxu0 %v3075
        %v7914 = vpop.f32.mrf.mxu0
        %v7915 = vadd.f32 %v7866, %v7914
        %v7916 = vpop.f32.mrf.mxu0
        %v7917 = vadd.f32 %v7868, %v7916
        %7918 = vmatmul.bf16.gmra.mxu0 %v3123
        %v7919 = vpop.f32.mrf.mxu0
        %v7920 = vadd.f32 %v7871, %v7919
        %v7921 = vpop.f32.mrf.mxu0
        %v7922 = vadd.f32 %v7873, %v7921
        %7923 = vdwg.mxu0
        %7924 = vmatpush.bf16.msra.mxu0 %v5400
        %7925 = vmatpush.bf16.msra.mxu0 %v5399
        %7926 = vmatpush.bf16.msra.mxu0 %v5398
        %7927 = vmatpush.bf16.msra.mxu0 %v5397
        %7928 = vmatpush.bf16.msra.mxu0 %v5396
        %7929 = vmatpush.bf16.msra.mxu0 %v5395
        %7930 = vmatpush.bf16.msra.mxu0 %v5394
        %7931 = vmatpush.bf16.msra.mxu0 %v5393
        %7932 = vmatmul.bf16.gmra.mxu0 %v2788
        %v7933 = vpop.f32.mrf.mxu0
        %v7934 = vadd.f32 %v7885, %v7933
        %v7935 = vpop.f32.mrf.mxu0
        %v7936 = vadd.f32 %v7887, %v7935
        %7937 = vmatmul.bf16.gmra.mxu0 %v2836
        %v7938 = vpop.f32.mrf.mxu0
        %v7939 = vadd.f32 %v7890, %v7938
        %v7940 = vpop.f32.mrf.mxu0
        %v7941 = vadd.f32 %v7892, %v7940
        %7942 = vmatmul.bf16.gmra.mxu0 %v2884
        %v7943 = vpop.f32.mrf.mxu0
        %v7944 = vadd.f32 %v7895, %v7943
        %v7945 = vpop.f32.mrf.mxu0
        %v7946 = vadd.f32 %v7897, %v7945
        %7947 = vmatmul.bf16.gmra.mxu0 %v2932
        %v7948 = vpop.f32.mrf.mxu0
        %v7949 = vadd.f32 %v7900, %v7948
        %v7950 = vpop.f32.mrf.mxu0
        %v7951 = vadd.f32 %v7902, %v7950
        %7952 = vmatmul.bf16.gmra.mxu0 %v2980
        %v7953 = vpop.f32.mrf.mxu0
        %v7954 = vadd.f32 %v7905, %v7953
        %v7955 = vpop.f32.mrf.mxu0
        %v7956 = vadd.f32 %v7907, %v7955
        %7957 = vmatmul.bf16.gmra.mxu0 %v3028
        %v7958 = vpop.f32.mrf.mxu0
        %v7959 = vadd.f32 %v7910, %v7958
        %v7960 = vpop.f32.mrf.mxu0
        %v7961 = vadd.f32 %v7912, %v7960
        %7962 = vmatmul.bf16.gmra.mxu0 %v3076
        %v7963 = vpop.f32.mrf.mxu0
        %v7964 = vadd.f32 %v7915, %v7963
        %v7965 = vpop.f32.mrf.mxu0
        %v7966 = vadd.f32 %v7917, %v7965
        %7967 = vmatmul.bf16.gmra.mxu0 %v3124
        %v7968 = vpop.f32.mrf.mxu0
        %v7969 = vadd.f32 %v7920, %v7968
        %v7970 = vpop.f32.mrf.mxu0
        %v7971 = vadd.f32 %v7922, %v7970
        %7972 = vdwg.mxu0
        %7973 = vmatpush.bf16.msra.mxu0 %v5408
        %7974 = vmatpush.bf16.msra.mxu0 %v5407
        %7975 = vmatpush.bf16.msra.mxu0 %v5406
        %7976 = vmatpush.bf16.msra.mxu0 %v5405
        %7977 = vmatpush.bf16.msra.mxu0 %v5404
        %7978 = vmatpush.bf16.msra.mxu0 %v5403
        %7979 = vmatpush.bf16.msra.mxu0 %v5402
        %7980 = vmatpush.bf16.msra.mxu0 %v5401
        %7981 = vmatmul.bf16.gmra.mxu0 %v2789
        %v7982 = vpop.f32.mrf.mxu0
        %v7983 = vadd.f32 %v7934, %v7982
        %v7984 = vpop.f32.mrf.mxu0
        %v7985 = vadd.f32 %v7936, %v7984
        %7986 = vmatmul.bf16.gmra.mxu0 %v2837
        %v7987 = vpop.f32.mrf.mxu0
        %v7988 = vadd.f32 %v7939, %v7987
        %v7989 = vpop.f32.mrf.mxu0
        %v7990 = vadd.f32 %v7941, %v7989
        %7991 = vmatmul.bf16.gmra.mxu0 %v2885
        %v7992 = vpop.f32.mrf.mxu0
        %v7993 = vadd.f32 %v7944, %v7992
        %v7994 = vpop.f32.mrf.mxu0
        %v7995 = vadd.f32 %v7946, %v7994
        %7996 = vmatmul.bf16.gmra.mxu0 %v2933
        %v7997 = vpop.f32.mrf.mxu0
        %v7998 = vadd.f32 %v7949, %v7997
        %v7999 = vpop.f32.mrf.mxu0
        %v8000 = vadd.f32 %v7951, %v7999
        %8001 = vmatmul.bf16.gmra.mxu0 %v2981
        %v8002 = vpop.f32.mrf.mxu0
        %v8003 = vadd.f32 %v7954, %v8002
        %v8004 = vpop.f32.mrf.mxu0
        %v8005 = vadd.f32 %v7956, %v8004
        %8006 = vmatmul.bf16.gmra.mxu0 %v3029
        %v8007 = vpop.f32.mrf.mxu0
        %v8008 = vadd.f32 %v7959, %v8007
        %v8009 = vpop.f32.mrf.mxu0
        %v8010 = vadd.f32 %v7961, %v8009
        %8011 = vmatmul.bf16.gmra.mxu0 %v3077
        %v8012 = vpop.f32.mrf.mxu0
        %v8013 = vadd.f32 %v7964, %v8012
        %v8014 = vpop.f32.mrf.mxu0
        %v8015 = vadd.f32 %v7966, %v8014
        %8016 = vmatmul.bf16.gmra.mxu0 %v3125
        %v8017 = vpop.f32.mrf.mxu0
        %v8018 = vadd.f32 %v7969, %v8017
        %v8019 = vpop.f32.mrf.mxu0
        %v8020 = vadd.f32 %v7971, %v8019
        %8021 = vdwg.mxu0
        %8022 = vmatpush.bf16.msra.mxu0 %v5416
        %8023 = vmatpush.bf16.msra.mxu0 %v5415
        %8024 = vmatpush.bf16.msra.mxu0 %v5414
        %8025 = vmatpush.bf16.msra.mxu0 %v5413
        %8026 = vmatpush.bf16.msra.mxu0 %v5412
        %8027 = vmatpush.bf16.msra.mxu0 %v5411
        %8028 = vmatpush.bf16.msra.mxu0 %v5410
        %8029 = vmatpush.bf16.msra.mxu0 %v5409
        %8030 = vmatmul.bf16.gmra.mxu0 %v2790
        %v8031 = vpop.f32.mrf.mxu0
        %v8032 = vadd.f32 %v7983, %v8031
        %v8033 = vpop.f32.mrf.mxu0
        %v8034 = vadd.f32 %v7985, %v8033
        %8035 = vmatmul.bf16.gmra.mxu0 %v2838
        %v8036 = vpop.f32.mrf.mxu0
        %v8037 = vadd.f32 %v7988, %v8036
        %v8038 = vpop.f32.mrf.mxu0
        %v8039 = vadd.f32 %v7990, %v8038
        %8040 = vmatmul.bf16.gmra.mxu0 %v2886
        %v8041 = vpop.f32.mrf.mxu0
        %v8042 = vadd.f32 %v7993, %v8041
        %v8043 = vpop.f32.mrf.mxu0
        %v8044 = vadd.f32 %v7995, %v8043
        %8045 = vmatmul.bf16.gmra.mxu0 %v2934
        %v8046 = vpop.f32.mrf.mxu0
        %v8047 = vadd.f32 %v7998, %v8046
        %v8048 = vpop.f32.mrf.mxu0
        %v8049 = vadd.f32 %v8000, %v8048
        %8050 = vmatmul.bf16.gmra.mxu0 %v2982
        %v8051 = vpop.f32.mrf.mxu0
        %v8052 = vadd.f32 %v8003, %v8051
        %v8053 = vpop.f32.mrf.mxu0
        %v8054 = vadd.f32 %v8005, %v8053
        %8055 = vmatmul.bf16.gmra.mxu0 %v3030
        %v8056 = vpop.f32.mrf.mxu0
        %v8057 = vadd.f32 %v8008, %v8056
        %v8058 = vpop.f32.mrf.mxu0
        %v8059 = vadd.f32 %v8010, %v8058
        %8060 = vmatmul.bf16.gmra.mxu0 %v3078
        %v8061 = vpop.f32.mrf.mxu0
        %v8062 = vadd.f32 %v8013, %v8061
        %v8063 = vpop.f32.mrf.mxu0
        %v8064 = vadd.f32 %v8015, %v8063
        %8065 = vmatmul.bf16.gmra.mxu0 %v3126
        %v8066 = vpop.f32.mrf.mxu0
        %v8067 = vadd.f32 %v8018, %v8066
        %v8068 = vpop.f32.mrf.mxu0
        %v8069 = vadd.f32 %v8020, %v8068
        %8070 = vdwg.mxu0
        %8071 = vmatpush.bf16.msra.mxu0 %v5424
        %8072 = vmatpush.bf16.msra.mxu0 %v5423
        %8073 = vmatpush.bf16.msra.mxu0 %v5422
        %8074 = vmatpush.bf16.msra.mxu0 %v5421
        %8075 = vmatpush.bf16.msra.mxu0 %v5420
        %8076 = vmatpush.bf16.msra.mxu0 %v5419
        %8077 = vmatpush.bf16.msra.mxu0 %v5418
        %8078 = vmatpush.bf16.msra.mxu0 %v5417
        %8079 = vmatmul.bf16.gmra.mxu0 %v2791
        %v8080 = vpop.f32.mrf.mxu0
        %v8081 = vadd.f32 %v8032, %v8080
        %v8082 = vpop.f32.mrf.mxu0
        %v8083 = vadd.f32 %v8034, %v8082
        %8084 = vmatmul.bf16.gmra.mxu0 %v2839
        %v8085 = vpop.f32.mrf.mxu0
        %v8086 = vadd.f32 %v8037, %v8085
        %v8087 = vpop.f32.mrf.mxu0
        %v8088 = vadd.f32 %v8039, %v8087
        %8089 = vmatmul.bf16.gmra.mxu0 %v2887
        %v8090 = vpop.f32.mrf.mxu0
        %v8091 = vadd.f32 %v8042, %v8090
        %v8092 = vpop.f32.mrf.mxu0
        %v8093 = vadd.f32 %v8044, %v8092
        %8094 = vmatmul.bf16.gmra.mxu0 %v2935
        %v8095 = vpop.f32.mrf.mxu0
        %v8096 = vadd.f32 %v8047, %v8095
        %v8097 = vpop.f32.mrf.mxu0
        %v8098 = vadd.f32 %v8049, %v8097
        %8099 = vmatmul.bf16.gmra.mxu0 %v2983
        %v8100 = vpop.f32.mrf.mxu0
        %v8101 = vadd.f32 %v8052, %v8100
        %v8102 = vpop.f32.mrf.mxu0
        %v8103 = vadd.f32 %v8054, %v8102
        %8104 = vmatmul.bf16.gmra.mxu0 %v3031
        %v8105 = vpop.f32.mrf.mxu0
        %v8106 = vadd.f32 %v8057, %v8105
        %v8107 = vpop.f32.mrf.mxu0
        %v8108 = vadd.f32 %v8059, %v8107
        %8109 = vmatmul.bf16.gmra.mxu0 %v3079
        %v8110 = vpop.f32.mrf.mxu0
        %v8111 = vadd.f32 %v8062, %v8110
        %v8112 = vpop.f32.mrf.mxu0
        %v8113 = vadd.f32 %v8064, %v8112
        %8114 = vmatmul.bf16.gmra.mxu0 %v3127
        %v8115 = vpop.f32.mrf.mxu0
        %v8116 = vadd.f32 %v8067, %v8115
        %v8117 = vpop.f32.mrf.mxu0
        %v8118 = vadd.f32 %v8069, %v8117
        %8119 = vdwg.mxu0
        %8120 = vmatpush.bf16.msra.mxu0 %v5432
        %8121 = vmatpush.bf16.msra.mxu0 %v5431
        %8122 = vmatpush.bf16.msra.mxu0 %v5430
        %8123 = vmatpush.bf16.msra.mxu0 %v5429
        %8124 = vmatpush.bf16.msra.mxu0 %v5428
        %8125 = vmatpush.bf16.msra.mxu0 %v5427
        %8126 = vmatpush.bf16.msra.mxu0 %v5426
        %8127 = vmatpush.bf16.msra.mxu0 %v5425
        %8128 = vmatmul.bf16.gmra.mxu0 %v2792
        %v8129 = vpop.f32.mrf.mxu0
        %v8130 = vadd.f32 %v8081, %v8129
        %v8131 = vpop.f32.mrf.mxu0
        %v8132 = vadd.f32 %v8083, %v8131
        %8133 = vmatmul.bf16.gmra.mxu0 %v2840
        %v8134 = vpop.f32.mrf.mxu0
        %v8135 = vadd.f32 %v8086, %v8134
        %v8136 = vpop.f32.mrf.mxu0
        %v8137 = vadd.f32 %v8088, %v8136
        %8138 = vmatmul.bf16.gmra.mxu0 %v2888
        %v8139 = vpop.f32.mrf.mxu0
        %v8140 = vadd.f32 %v8091, %v8139
        %v8141 = vpop.f32.mrf.mxu0
        %v8142 = vadd.f32 %v8093, %v8141
        %8143 = vmatmul.bf16.gmra.mxu0 %v2936
        %v8144 = vpop.f32.mrf.mxu0
        %v8145 = vadd.f32 %v8096, %v8144
        %v8146 = vpop.f32.mrf.mxu0
        %v8147 = vadd.f32 %v8098, %v8146
        %8148 = vmatmul.bf16.gmra.mxu0 %v2984
        %v8149 = vpop.f32.mrf.mxu0
        %v8150 = vadd.f32 %v8101, %v8149
        %v8151 = vpop.f32.mrf.mxu0
        %v8152 = vadd.f32 %v8103, %v8151
        %8153 = vmatmul.bf16.gmra.mxu0 %v3032
        %v8154 = vpop.f32.mrf.mxu0
        %v8155 = vadd.f32 %v8106, %v8154
        %v8156 = vpop.f32.mrf.mxu0
        %v8157 = vadd.f32 %v8108, %v8156
        %8158 = vmatmul.bf16.gmra.mxu0 %v3080
        %v8159 = vpop.f32.mrf.mxu0
        %v8160 = vadd.f32 %v8111, %v8159
        %v8161 = vpop.f32.mrf.mxu0
        %v8162 = vadd.f32 %v8113, %v8161
        %8163 = vmatmul.bf16.gmra.mxu0 %v3128
        %v8164 = vpop.f32.mrf.mxu0
        %v8165 = vadd.f32 %v8116, %v8164
        %v8166 = vpop.f32.mrf.mxu0
        %v8167 = vadd.f32 %v8118, %v8166
        %8168 = vdwg.mxu0
        %v8169 = vmax.f32 %v8130, 0.0
        %v8170 = vmax.f32 %v8132, 0.0
        %v8171 = vmax.f32 %v8135, 0.0
        %v8172 = vmax.f32 %v8137, 0.0
        %v8173 = vmax.f32 %v8140, 0.0
        %v8174 = vmax.f32 %v8142, 0.0
        %v8175 = vmax.f32 %v8145, 0.0
        %v8176 = vmax.f32 %v8147, 0.0
        %v8177 = vmax.f32 %v8150, 0.0
        %v8178 = vmax.f32 %v8152, 0.0
        %v8179 = vmax.f32 %v8155, 0.0
        %v8180 = vmax.f32 %v8157, 0.0
        %v8181 = vmax.f32 %v8160, 0.0
        %v8182 = vmax.f32 %v8162, 0.0
        %v8183 = vmax.f32 %v8165, 0.0
        %v8184 = vmax.f32 %v8167, 0.0
        %v8185 = vld [vmem:[#allocation7] sm:$0xff]
        %v8186 = vld [vmem:[#allocation7 + $0x8] sm:$0xff]
        %v8187 = vld [vmem:[#allocation7 + $0x10] sm:$0xf]
        %v8188 = vld [vmem:[#allocation8] sm:$0x1]
        %v8190 = vperm.slane %v8188, 0
        %vm8192 = vcmask 162816
        %v8194 = vsel %vm8192, %v8169, 0
        %v8197 = vsel %vm8192, %v8170, 0
        %v8200 = vsel %vm8192, %v8171, 0
        %v8203 = vsel %vm8192, %v8172, 0
        %v8206 = vsel %vm8192, %v8173, 0
        %v8209 = vsel %vm8192, %v8174, 0
        %v8212 = vsel %vm8192, %v8175, 0
        %v8215 = vsel %vm8192, %v8176, 0
        %v8218 = vsel %vm8192, %v8177, 0
        %v8221 = vsel %vm8192, %v8178, 0
        %v8224 = vsel %vm8192, %v8179, 0
        %v8227 = vsel %vm8192, %v8180, 0
        %v8230 = vsel %vm8192, %v8181, 0
        %v8233 = vsel %vm8192, %v8182, 0
        %v8236 = vsel %vm8192, %v8183, 0
        %v8239 = vsel %vm8192, %v8184, 0
        %vm8241 = vcmask 1043456
        %v8243 = vsel %vm8241, %v8187, 0
        %8245 = vmatpush.msra.mxu0 0.0
        %8246 = vmatpush.msra.mxu0 0.0
        %8247 = vmatpush.msra.mxu0 0.0
        %8248 = vmatpush.msra.mxu0 0.0
        %8249 = vmatpush.msra.mxu0 0.0
        %8250 = vmatpush.msra.mxu0 0.0
        %8251 = vmatpush.msra.mxu0 0.0
        %8252 = vmatpush.msra.mxu0 0.0
        %8253 = vmatpush.msra.mxu0 0.0
        %8254 = vmatpush.msra.mxu0 0.0
        %8255 = vmatpush.msra.mxu0 0.0
        %8256 = vmatpush.msra.mxu0 0.0
        %8257 = vmatpush.msra.mxu0 0.0
        %8258 = vmatpush.msra.mxu0 %v8243
        %8259 = vmatpush.msra.mxu0 %v8186
        %8260 = vmatpush.msra.mxu0 %v8185
        %8261 = vmatmul.f32.gmra.mxu0 %v8194
        %v8262 = vpop.f32.mrf.mxu0
        %v8263 = vadd.f32 %v8190, %v8262
        %8264 = vmatmul.f32.gmra.mxu0 %v8197
        %v8265 = vpop.f32.mrf.mxu0
        %v8266 = vadd.f32 %v8190, %v8265
        %8267 = vmatmul.f32.gmra.mxu0 %v8200
        %v8268 = vpop.f32.mrf.mxu0
        %v8269 = vadd.f32 %v8190, %v8268
        %8270 = vmatmul.f32.gmra.mxu0 %v8203
        %v8271 = vpop.f32.mrf.mxu0
        %v8272 = vadd.f32 %v8190, %v8271
        %8273 = vmatmul.f32.gmra.mxu0 %v8206
        %v8274 = vpop.f32.mrf.mxu0
        %v8275 = vadd.f32 %v8190, %v8274
        %8276 = vmatmul.f32.gmra.mxu0 %v8209
        %v8277 = vpop.f32.mrf.mxu0
        %v8278 = vadd.f32 %v8190, %v8277
        %8279 = vmatmul.f32.gmra.mxu0 %v8212
        %v8280 = vpop.f32.mrf.mxu0
        %v8281 = vadd.f32 %v8190, %v8280
        %8282 = vmatmul.f32.gmra.mxu0 %v8215
        %v8283 = vpop.f32.mrf.mxu0
        %v8284 = vadd.f32 %v8190, %v8283
        %8285 = vmatmul.f32.gmra.mxu0 %v8218
        %v8286 = vpop.f32.mrf.mxu0
        %v8287 = vadd.f32 %v8190, %v8286
        %8288 = vmatmul.f32.gmra.mxu0 %v8221
        %v8289 = vpop.f32.mrf.mxu0
        %v8290 = vadd.f32 %v8190, %v8289
        %8291 = vmatmul.f32.gmra.mxu0 %v8224
        %v8292 = vpop.f32.mrf.mxu0
        %v8293 = vadd.f32 %v8190, %v8292
        %8294 = vmatmul.f32.gmra.mxu0 %v8227
        %v8295 = vpop.f32.mrf.mxu0
        %v8296 = vadd.f32 %v8190, %v8295
        %8297 = vmatmul.f32.gmra.mxu0 %v8230
        %v8298 = vpop.f32.mrf.mxu0
        %v8299 = vadd.f32 %v8190, %v8298
        %8300 = vmatmul.f32.gmra.mxu0 %v8233
        %v8301 = vpop.f32.mrf.mxu0
        %v8302 = vadd.f32 %v8190, %v8301
        %8303 = vmatmul.f32.gmra.mxu0 %v8236
        %v8304 = vpop.f32.mrf.mxu0
        %v8305 = vadd.f32 %v8190, %v8304
        %8306 = vmatmul.f32.gmra.mxu0 %v8239
        %v8307 = vpop.f32.mrf.mxu0
        %v8308 = vadd.f32 %v8190, %v8307
        %8309 = vdwg.mxu0
        %v8310 = vmax.f32 %v8263, 0.0
        %v8311 = vmax.f32 %v8266, 0.0
        %v8312 = vmax.f32 %v8269, 0.0
        %v8313 = vmax.f32 %v8272, 0.0
        %v8314 = vmax.f32 %v8275, 0.0
        %v8315 = vmax.f32 %v8278, 0.0
        %v8316 = vmax.f32 %v8281, 0.0
        %v8317 = vmax.f32 %v8284, 0.0
        %v8318 = vmax.f32 %v8287, 0.0
        %v8319 = vmax.f32 %v8290, 0.0
        %v8320 = vmax.f32 %v8293, 0.0
        %v8321 = vmax.f32 %v8296, 0.0
        %v8322 = vmax.f32 %v8299, 0.0
        %v8323 = vmax.f32 %v8302, 0.0
        %v8324 = vmax.f32 %v8305, 0.0
        %v8325 = vmax.f32 %v8308, 0.0
        %v8326 = vld [vmem:[#allocation10] sm:$0xff]
        %v8327 = vld [vmem:[#allocation10 + $0x8] sm:$0xff]
        %v8328 = vld [vmem:[#allocation10 + $0x10] sm:$0xf]
        %v8329 = vld [vmem:[#allocation11] sm:$0x1]
        %v8331 = vperm.slane %v8329, 0
        %v8334 = vsel %vm8192, %v8310, 0
        %v8337 = vsel %vm8192, %v8311, 0
        %v8340 = vsel %vm8192, %v8312, 0
        %v8343 = vsel %vm8192, %v8313, 0
        %v8346 = vsel %vm8192, %v8314, 0
        %v8349 = vsel %vm8192, %v8315, 0
        %v8352 = vsel %vm8192, %v8316, 0
        %v8355 = vsel %vm8192, %v8317, 0
        %v8358 = vsel %vm8192, %v8318, 0
        %v8361 = vsel %vm8192, %v8319, 0
        %v8364 = vsel %vm8192, %v8320, 0
        %v8367 = vsel %vm8192, %v8321, 0
        %v8370 = vsel %vm8192, %v8322, 0
        %v8373 = vsel %vm8192, %v8323, 0
        %v8376 = vsel %vm8192, %v8324, 0
        %v8379 = vsel %vm8192, %v8325, 0
        %v8382 = vsel %vm8241, %v8328, 0
        %8384 = vmatpush.msra.mxu0 0.0
        %8385 = vmatpush.msra.mxu0 0.0
        %8386 = vmatpush.msra.mxu0 0.0
        %8387 = vmatpush.msra.mxu0 0.0
        %8388 = vmatpush.msra.mxu0 0.0
        %8389 = vmatpush.msra.mxu0 0.0
        %8390 = vmatpush.msra.mxu0 0.0
        %8391 = vmatpush.msra.mxu0 0.0
        %8392 = vmatpush.msra.mxu0 0.0
        %8393 = vmatpush.msra.mxu0 0.0
        %8394 = vmatpush.msra.mxu0 0.0
        %8395 = vmatpush.msra.mxu0 0.0
        %8396 = vmatpush.msra.mxu0 0.0
        %8397 = vmatpush.msra.mxu0 %v8382
        %8398 = vmatpush.msra.mxu0 %v8327
        %8399 = vmatpush.msra.mxu0 %v8326
        %8400 = vmatmul.f32.gmra.mxu0 %v8334
        %v8401 = vpop.f32.mrf.mxu0
        %v8402 = vadd.f32 %v8331, %v8401
        %8403 = vmatmul.f32.gmra.mxu0 %v8337
        %v8404 = vpop.f32.mrf.mxu0
        %v8405 = vadd.f32 %v8331, %v8404
        %8406 = vmatmul.f32.gmra.mxu0 %v8340
        %v8407 = vpop.f32.mrf.mxu0
        %v8408 = vadd.f32 %v8331, %v8407
        %8409 = vmatmul.f32.gmra.mxu0 %v8343
        %v8410 = vpop.f32.mrf.mxu0
        %v8411 = vadd.f32 %v8331, %v8410
        %8412 = vmatmul.f32.gmra.mxu0 %v8346
        %v8413 = vpop.f32.mrf.mxu0
        %v8414 = vadd.f32 %v8331, %v8413
        %8415 = vmatmul.f32.gmra.mxu0 %v8349
        %v8416 = vpop.f32.mrf.mxu0
        %v8417 = vadd.f32 %v8331, %v8416
        %8418 = vmatmul.f32.gmra.mxu0 %v8352
        %v8419 = vpop.f32.mrf.mxu0
        %v8420 = vadd.f32 %v8331, %v8419
        %8421 = vmatmul.f32.gmra.mxu0 %v8355
        %v8422 = vpop.f32.mrf.mxu0
        %v8423 = vadd.f32 %v8331, %v8422
        %8424 = vmatmul.f32.gmra.mxu0 %v8358
        %v8425 = vpop.f32.mrf.mxu0
        %v8426 = vadd.f32 %v8331, %v8425
        %8427 = vmatmul.f32.gmra.mxu0 %v8361
        %v8428 = vpop.f32.mrf.mxu0
        %v8429 = vadd.f32 %v8331, %v8428
        %8430 = vmatmul.f32.gmra.mxu0 %v8364
        %v8431 = vpop.f32.mrf.mxu0
        %v8432 = vadd.f32 %v8331, %v8431
        %8433 = vmatmul.f32.gmra.mxu0 %v8367
        %v8434 = vpop.f32.mrf.mxu0
        %v8435 = vadd.f32 %v8331, %v8434
        %8436 = vmatmul.f32.gmra.mxu0 %v8370
        %v8437 = vpop.f32.mrf.mxu0
        %v8438 = vadd.f32 %v8331, %v8437
        %8439 = vmatmul.f32.gmra.mxu0 %v8373
        %v8440 = vpop.f32.mrf.mxu0
        %v8441 = vadd.f32 %v8331, %v8440
        %8442 = vmatmul.f32.gmra.mxu0 %v8376
        %v8443 = vpop.f32.mrf.mxu0
        %v8444 = vadd.f32 %v8331, %v8443
        %8445 = vmatmul.f32.gmra.mxu0 %v8379
        %v8446 = vpop.f32.mrf.mxu0
        %v8447 = vadd.f32 %v8331, %v8446
        %8448 = vdwg.mxu0
        %v8449 = vmax.f32 %v8402, 0.0
        %v8450 = vmax.f32 %v8405, 0.0
        %v8451 = vmax.f32 %v8408, 0.0
        %v8452 = vmax.f32 %v8411, 0.0
        %v8453 = vmax.f32 %v8414, 0.0
        %v8454 = vmax.f32 %v8417, 0.0
        %v8455 = vmax.f32 %v8420, 0.0
        %v8456 = vmax.f32 %v8423, 0.0
        %v8457 = vmax.f32 %v8426, 0.0
        %v8458 = vmax.f32 %v8429, 0.0
        %v8459 = vmax.f32 %v8432, 0.0
        %v8460 = vmax.f32 %v8435, 0.0
        %v8461 = vmax.f32 %v8438, 0.0
        %v8462 = vmax.f32 %v8441, 0.0
        %v8463 = vmax.f32 %v8444, 0.0
        %v8464 = vmax.f32 %v8447, 0.0
        %v8465 = vld [vmem:[%s7] sm:$0xff]
        %v8466 = vld [vmem:[%s7 + $0x8] sm:$0xff]
        %v8467 = vld [vmem:[%s7 + $0x10] sm:$0xf]
        %v8468 = vld [vmem:[#allocation2] sm:$0x1]
        %v8470 = vperm.slane %v8468, 0
        %v8473 = vsel %vm8192, %v8449, 0
        %v8476 = vsel %vm8192, %v8450, 0
        %v8479 = vsel %vm8192, %v8451, 0
        %v8482 = vsel %vm8192, %v8452, 0
        %v8485 = vsel %vm8192, %v8453, 0
        %v8488 = vsel %vm8192, %v8454, 0
        %v8491 = vsel %vm8192, %v8455, 0
        %v8494 = vsel %vm8192, %v8456, 0
        %v8497 = vsel %vm8192, %v8457, 0
        %v8500 = vsel %vm8192, %v8458, 0
        %v8503 = vsel %vm8192, %v8459, 0
        %v8506 = vsel %vm8192, %v8460, 0
        %v8509 = vsel %vm8192, %v8461, 0
        %v8512 = vsel %vm8192, %v8462, 0
        %v8515 = vsel %vm8192, %v8463, 0
        %v8518 = vsel %vm8192, %v8464, 0
        %v8521 = vsel %vm8241, %v8467, 0
        %8523 = vmatpush.msra.mxu0 0.0
        %8524 = vmatpush.msra.mxu0 0.0
        %8525 = vmatpush.msra.mxu0 0.0
        %8526 = vmatpush.msra.mxu0 0.0
        %8527 = vmatpush.msra.mxu0 0.0
        %8528 = vmatpush.msra.mxu0 0.0
        %8529 = vmatpush.msra.mxu0 0.0
        %8530 = vmatpush.msra.mxu0 0.0
        %8531 = vmatpush.msra.mxu0 0.0
        %8532 = vmatpush.msra.mxu0 0.0
        %8533 = vmatpush.msra.mxu0 0.0
        %8534 = vmatpush.msra.mxu0 0.0
        %8535 = vmatpush.msra.mxu0 0.0
        %8536 = vmatpush.msra.mxu0 %v8521
        %8537 = vmatpush.msra.mxu0 %v8466
        %8538 = vmatpush.msra.mxu0 %v8465
        %8539 = vmatmul.f32.gmra.mxu0 %v8473
        %v8540 = vpop.f32.mrf.mxu0
        %v8541 = vadd.f32 %v8470, %v8540
        %8542 = vmatmul.f32.gmra.mxu0 %v8476
        %v8543 = vpop.f32.mrf.mxu0
        %v8544 = vadd.f32 %v8470, %v8543
        %8545 = vmatmul.f32.gmra.mxu0 %v8479
        %v8546 = vpop.f32.mrf.mxu0
        %v8547 = vadd.f32 %v8470, %v8546
        %8548 = vmatmul.f32.gmra.mxu0 %v8482
        %v8549 = vpop.f32.mrf.mxu0
        %v8550 = vadd.f32 %v8470, %v8549
        %8551 = vmatmul.f32.gmra.mxu0 %v8485
        %v8552 = vpop.f32.mrf.mxu0
        %v8553 = vadd.f32 %v8470, %v8552
        %8554 = vmatmul.f32.gmra.mxu0 %v8488
        %v8555 = vpop.f32.mrf.mxu0
        %v8556 = vadd.f32 %v8470, %v8555
        %8557 = vmatmul.f32.gmra.mxu0 %v8491
        %v8558 = vpop.f32.mrf.mxu0
        %v8559 = vadd.f32 %v8470, %v8558
        %8560 = vmatmul.f32.gmra.mxu0 %v8494
        %v8561 = vpop.f32.mrf.mxu0
        %v8562 = vadd.f32 %v8470, %v8561
        %8563 = vmatmul.f32.gmra.mxu0 %v8497
        %v8564 = vpop.f32.mrf.mxu0
        %v8565 = vadd.f32 %v8470, %v8564
        %8566 = vmatmul.f32.gmra.mxu0 %v8500
        %v8567 = vpop.f32.mrf.mxu0
        %v8568 = vadd.f32 %v8470, %v8567
        %8569 = vmatmul.f32.gmra.mxu0 %v8503
        %v8570 = vpop.f32.mrf.mxu0
        %v8571 = vadd.f32 %v8470, %v8570
        %8572 = vmatmul.f32.gmra.mxu0 %v8506
        %v8573 = vpop.f32.mrf.mxu0
        %v8574 = vadd.f32 %v8470, %v8573
        %8575 = vmatmul.f32.gmra.mxu0 %v8509
        %v8576 = vpop.f32.mrf.mxu0
        %v8577 = vadd.f32 %v8470, %v8576
        %8578 = vmatmul.f32.gmra.mxu0 %v8512
        %v8579 = vpop.f32.mrf.mxu0
        %v8580 = vadd.f32 %v8470, %v8579
        %8581 = vmatmul.f32.gmra.mxu0 %v8515
        %v8582 = vpop.f32.mrf.mxu0
        %v8583 = vadd.f32 %v8470, %v8582
        %8584 = vmatmul.f32.gmra.mxu0 %v8518
        %v8585 = vpop.f32.mrf.mxu0
        %v8586 = vadd.f32 %v8470, %v8585
        %8587 = vdwg.mxu0
        %v8588 = vsub.f32 0.0, %v8541
        %v8589 = vsub.f32 0.0, %v8544
        %v8590 = vsub.f32 0.0, %v8547
        %v8591 = vsub.f32 0.0, %v8550
        %v8592 = vsub.f32 0.0, %v8553
        %v8593 = vsub.f32 0.0, %v8556
        %v8594 = vsub.f32 0.0, %v8559
        %v8595 = vsub.f32 0.0, %v8562
        %v8596 = vsub.f32 0.0, %v8565
        %v8597 = vsub.f32 0.0, %v8568
        %v8598 = vsub.f32 0.0, %v8571
        %v8599 = vsub.f32 0.0, %v8574
        %v8600 = vsub.f32 0.0, %v8577
        %v8601 = vsub.f32 0.0, %v8580
        %v8602 = vsub.f32 0.0, %v8583
        %v8603 = vsub.f32 0.0, %v8586
        %v8604 = vmul.f32 %v8588, 1.442695
        %v8605 = vpow.pop %v8604
        %v8606 = vmul.f32 %v8589, 1.442695
        %v8607 = vpow.pop %v8606
        %v8608 = vmul.f32 %v8590, 1.442695
        %v8609 = vpow.pop %v8608
        %v8610 = vmul.f32 %v8591, 1.442695
        %v8611 = vpow.pop %v8610
        %v8612 = vmul.f32 %v8592, 1.442695
        %v8613 = vpow.pop %v8612
        %v8614 = vmul.f32 %v8593, 1.442695
        %v8615 = vpow.pop %v8614
        %v8616 = vmul.f32 %v8594, 1.442695
        %v8617 = vpow.pop %v8616
        %v8618 = vmul.f32 %v8595, 1.442695
        %v8619 = vpow.pop %v8618
        %v8620 = vmul.f32 %v8596, 1.442695
        %v8621 = vpow.pop %v8620
        %v8622 = vmul.f32 %v8597, 1.442695
        %v8623 = vpow.pop %v8622
        %v8624 = vmul.f32 %v8598, 1.442695
        %v8625 = vpow.pop %v8624
        %v8626 = vmul.f32 %v8599, 1.442695
        %v8627 = vpow.pop %v8626
        %v8628 = vmul.f32 %v8600, 1.442695
        %v8629 = vpow.pop %v8628
        %v8630 = vmul.f32 %v8601, 1.442695
        %v8631 = vpow.pop %v8630
        %v8632 = vmul.f32 %v8602, 1.442695
        %v8633 = vpow.pop %v8632
        %v8634 = vmul.f32 %v8603, 1.442695
        %v8635 = vpow.pop %v8634
        %v8636 = vadd.f32 %v8605, 1.0
        %v8637 = vadd.f32 %v8607, 1.0
        %v8638 = vadd.f32 %v8609, 1.0
        %v8639 = vadd.f32 %v8611, 1.0
        %v8640 = vadd.f32 %v8613, 1.0
        %v8641 = vadd.f32 %v8615, 1.0
        %v8642 = vadd.f32 %v8617, 1.0
        %v8643 = vadd.f32 %v8619, 1.0
        %v8644 = vadd.f32 %v8621, 1.0
        %v8645 = vadd.f32 %v8623, 1.0
        %v8646 = vadd.f32 %v8625, 1.0
        %v8647 = vadd.f32 %v8627, 1.0
        %v8648 = vadd.f32 %v8629, 1.0
        %v8649 = vadd.f32 %v8631, 1.0
        %v8650 = vadd.f32 %v8633, 1.0
        %v8651 = vadd.f32 %v8635, 1.0
        %v8652 = vrcp.pop %v8636
        %v8653 = vmul.f32 %v8636, %v8652
        %v8654 = vsub.f32 1.0, %v8653
        %v8655 = vmul.f32 %v8652, %v8654
        %v8656 = vadd.f32 %v8652, %v8655
        %vm8657 = vweird.f32 %v8636
        %vm8658 = vweird.f32 %v8652
        %vm8659 = vmor %vm8657, %vm8658
        %v8660 = vsel %vm8659, %v8652, %v8656
        %v8661 = vand.u32 2147483647, %v8636
        %vm8662 = vcmp.eq.f32.partialorder %v8661, 8.507059e+37
        %v8663 = vand.u32 %v8636, 2147483648
        %v8664 = vor.u32 1.1754944e-38, %v8663
        %v8665 = vsel %vm8662, %v8664, %v8660
        %v8666 = vmul.f32 1.0, %v8665
        %v8667 = vrcp.pop %v8637
        %v8668 = vmul.f32 %v8637, %v8667
        %v8669 = vsub.f32 1.0, %v8668
        %v8670 = vmul.f32 %v8667, %v8669
        %v8671 = vadd.f32 %v8667, %v8670
        %vm8672 = vweird.f32 %v8637
        %vm8673 = vweird.f32 %v8667
        %vm8674 = vmor %vm8672, %vm8673
        %v8675 = vsel %vm8674, %v8667, %v8671
        %v8676 = vand.u32 2147483647, %v8637
        %vm8677 = vcmp.eq.f32.partialorder %v8676, 8.507059e+37
        %v8678 = vand.u32 %v8637, 2147483648
        %v8679 = vor.u32 1.1754944e-38, %v8678
        %v8680 = vsel %vm8677, %v8679, %v8675
        %v8681 = vmul.f32 1.0, %v8680
        %v8682 = vrcp.pop %v8638
        %v8683 = vmul.f32 %v8638, %v8682
        %v8684 = vsub.f32 1.0, %v8683
        %v8685 = vmul.f32 %v8682, %v8684
        %v8686 = vadd.f32 %v8682, %v8685
        %vm8687 = vweird.f32 %v8638
        %vm8688 = vweird.f32 %v8682
        %vm8689 = vmor %vm8687, %vm8688
        %v8690 = vsel %vm8689, %v8682, %v8686
        %v8691 = vand.u32 2147483647, %v8638
        %vm8692 = vcmp.eq.f32.partialorder %v8691, 8.507059e+37
        %v8693 = vand.u32 %v8638, 2147483648
        %v8694 = vor.u32 1.1754944e-38, %v8693
        %v8695 = vsel %vm8692, %v8694, %v8690
        %v8696 = vmul.f32 1.0, %v8695
        %v8697 = vrcp.pop %v8639
        %v8698 = vmul.f32 %v8639, %v8697
        %v8699 = vsub.f32 1.0, %v8698
        %v8700 = vmul.f32 %v8697, %v8699
        %v8701 = vadd.f32 %v8697, %v8700
        %vm8702 = vweird.f32 %v8639
        %vm8703 = vweird.f32 %v8697
        %vm8704 = vmor %vm8702, %vm8703
        %v8705 = vsel %vm8704, %v8697, %v8701
        %v8706 = vand.u32 2147483647, %v8639
        %vm8707 = vcmp.eq.f32.partialorder %v8706, 8.507059e+37
        %v8708 = vand.u32 %v8639, 2147483648
        %v8709 = vor.u32 1.1754944e-38, %v8708
        %v8710 = vsel %vm8707, %v8709, %v8705
        %v8711 = vmul.f32 1.0, %v8710
        %v8712 = vrcp.pop %v8640
        %v8713 = vmul.f32 %v8640, %v8712
        %v8714 = vsub.f32 1.0, %v8713
        %v8715 = vmul.f32 %v8712, %v8714
        %v8716 = vadd.f32 %v8712, %v8715
        %vm8717 = vweird.f32 %v8640
        %vm8718 = vweird.f32 %v8712
        %vm8719 = vmor %vm8717, %vm8718
        %v8720 = vsel %vm8719, %v8712, %v8716
        %v8721 = vand.u32 2147483647, %v8640
        %vm8722 = vcmp.eq.f32.partialorder %v8721, 8.507059e+37
        %v8723 = vand.u32 %v8640, 2147483648
        %v8724 = vor.u32 1.1754944e-38, %v8723
        %v8725 = vsel %vm8722, %v8724, %v8720
        %v8726 = vmul.f32 1.0, %v8725
        %v8727 = vrcp.pop %v8641
        %v8728 = vmul.f32 %v8641, %v8727
        %v8729 = vsub.f32 1.0, %v8728
        %v8730 = vmul.f32 %v8727, %v8729
        %v8731 = vadd.f32 %v8727, %v8730
        %vm8732 = vweird.f32 %v8641
        %vm8733 = vweird.f32 %v8727
        %vm8734 = vmor %vm8732, %vm8733
        %v8735 = vsel %vm8734, %v8727, %v8731
        %v8736 = vand.u32 2147483647, %v8641
        %vm8737 = vcmp.eq.f32.partialorder %v8736, 8.507059e+37
        %v8738 = vand.u32 %v8641, 2147483648
        %v8739 = vor.u32 1.1754944e-38, %v8738
        %v8740 = vsel %vm8737, %v8739, %v8735
        %v8741 = vmul.f32 1.0, %v8740
        %v8742 = vrcp.pop %v8642
        %v8743 = vmul.f32 %v8642, %v8742
        %v8744 = vsub.f32 1.0, %v8743
        %v8745 = vmul.f32 %v8742, %v8744
        %v8746 = vadd.f32 %v8742, %v8745
        %vm8747 = vweird.f32 %v8642
        %vm8748 = vweird.f32 %v8742
        %vm8749 = vmor %vm8747, %vm8748
        %v8750 = vsel %vm8749, %v8742, %v8746
        %v8751 = vand.u32 2147483647, %v8642
        %vm8752 = vcmp.eq.f32.partialorder %v8751, 8.507059e+37
        %v8753 = vand.u32 %v8642, 2147483648
        %v8754 = vor.u32 1.1754944e-38, %v8753
        %v8755 = vsel %vm8752, %v8754, %v8750
        %v8756 = vmul.f32 1.0, %v8755
        %v8757 = vrcp.pop %v8643
        %v8758 = vmul.f32 %v8643, %v8757
        %v8759 = vsub.f32 1.0, %v8758
        %v8760 = vmul.f32 %v8757, %v8759
        %v8761 = vadd.f32 %v8757, %v8760
        %vm8762 = vweird.f32 %v8643
        %vm8763 = vweird.f32 %v8757
        %vm8764 = vmor %vm8762, %vm8763
        %v8765 = vsel %vm8764, %v8757, %v8761
        %v8766 = vand.u32 2147483647, %v8643
        %vm8767 = vcmp.eq.f32.partialorder %v8766, 8.507059e+37
        %v8768 = vand.u32 %v8643, 2147483648
        %v8769 = vor.u32 1.1754944e-38, %v8768
        %v8770 = vsel %vm8767, %v8769, %v8765
        %v8771 = vmul.f32 1.0, %v8770
        %v8772 = vrcp.pop %v8644
        %v8773 = vmul.f32 %v8644, %v8772
        %v8774 = vsub.f32 1.0, %v8773
        %v8775 = vmul.f32 %v8772, %v8774
        %v8776 = vadd.f32 %v8772, %v8775
        %vm8777 = vweird.f32 %v8644
        %vm8778 = vweird.f32 %v8772
        %vm8779 = vmor %vm8777, %vm8778
        %v8780 = vsel %vm8779, %v8772, %v8776
        %v8781 = vand.u32 2147483647, %v8644
        %vm8782 = vcmp.eq.f32.partialorder %v8781, 8.507059e+37
        %v8783 = vand.u32 %v8644, 2147483648
        %v8784 = vor.u32 1.1754944e-38, %v8783
        %v8785 = vsel %vm8782, %v8784, %v8780
        %v8786 = vmul.f32 1.0, %v8785
        %v8787 = vrcp.pop %v8645
        %v8788 = vmul.f32 %v8645, %v8787
        %v8789 = vsub.f32 1.0, %v8788
        %v8790 = vmul.f32 %v8787, %v8789
        %v8791 = vadd.f32 %v8787, %v8790
        %vm8792 = vweird.f32 %v8645
        %vm8793 = vweird.f32 %v8787
        %vm8794 = vmor %vm8792, %vm8793
        %v8795 = vsel %vm8794, %v8787, %v8791
        %v8796 = vand.u32 2147483647, %v8645
        %vm8797 = vcmp.eq.f32.partialorder %v8796, 8.507059e+37
        %v8798 = vand.u32 %v8645, 2147483648
        %v8799 = vor.u32 1.1754944e-38, %v8798
        %v8800 = vsel %vm8797, %v8799, %v8795
        %v8801 = vmul.f32 1.0, %v8800
        %v8802 = vrcp.pop %v8646
        %v8803 = vmul.f32 %v8646, %v8802
        %v8804 = vsub.f32 1.0, %v8803
        %v8805 = vmul.f32 %v8802, %v8804
        %v8806 = vadd.f32 %v8802, %v8805
        %vm8807 = vweird.f32 %v8646
        %vm8808 = vweird.f32 %v8802
        %vm8809 = vmor %vm8807, %vm8808
        %v8810 = vsel %vm8809, %v8802, %v8806
        %v8811 = vand.u32 2147483647, %v8646
        %vm8812 = vcmp.eq.f32.partialorder %v8811, 8.507059e+37
        %v8813 = vand.u32 %v8646, 2147483648
        %v8814 = vor.u32 1.1754944e-38, %v8813
        %v8815 = vsel %vm8812, %v8814, %v8810
        %v8816 = vmul.f32 1.0, %v8815
        %v8817 = vrcp.pop %v8647
        %v8818 = vmul.f32 %v8647, %v8817
        %v8819 = vsub.f32 1.0, %v8818
        %v8820 = vmul.f32 %v8817, %v8819
        %v8821 = vadd.f32 %v8817, %v8820
        %vm8822 = vweird.f32 %v8647
        %vm8823 = vweird.f32 %v8817
        %vm8824 = vmor %vm8822, %vm8823
        %v8825 = vsel %vm8824, %v8817, %v8821
        %v8826 = vand.u32 2147483647, %v8647
        %vm8827 = vcmp.eq.f32.partialorder %v8826, 8.507059e+37
        %v8828 = vand.u32 %v8647, 2147483648
        %v8829 = vor.u32 1.1754944e-38, %v8828
        %v8830 = vsel %vm8827, %v8829, %v8825
        %v8831 = vmul.f32 1.0, %v8830
        %v8832 = vrcp.pop %v8648
        %v8833 = vmul.f32 %v8648, %v8832
        %v8834 = vsub.f32 1.0, %v8833
        %v8835 = vmul.f32 %v8832, %v8834
        %v8836 = vadd.f32 %v8832, %v8835
        %vm8837 = vweird.f32 %v8648
        %vm8838 = vweird.f32 %v8832
        %vm8839 = vmor %vm8837, %vm8838
        %v8840 = vsel %vm8839, %v8832, %v8836
        %v8841 = vand.u32 2147483647, %v8648
        %vm8842 = vcmp.eq.f32.partialorder %v8841, 8.507059e+37
        %v8843 = vand.u32 %v8648, 2147483648
        %v8844 = vor.u32 1.1754944e-38, %v8843
        %v8845 = vsel %vm8842, %v8844, %v8840
        %v8846 = vmul.f32 1.0, %v8845
        %v8847 = vrcp.pop %v8649
        %v8848 = vmul.f32 %v8649, %v8847
        %v8849 = vsub.f32 1.0, %v8848
        %v8850 = vmul.f32 %v8847, %v8849
        %v8851 = vadd.f32 %v8847, %v8850
        %vm8852 = vweird.f32 %v8649
        %vm8853 = vweird.f32 %v8847
        %vm8854 = vmor %vm8852, %vm8853
        %v8855 = vsel %vm8854, %v8847, %v8851
        %v8856 = vand.u32 2147483647, %v8649
        %vm8857 = vcmp.eq.f32.partialorder %v8856, 8.507059e+37
        %v8858 = vand.u32 %v8649, 2147483648
        %v8859 = vor.u32 1.1754944e-38, %v8858
        %v8860 = vsel %vm8857, %v8859, %v8855
        %v8861 = vmul.f32 1.0, %v8860
        %v8862 = vrcp.pop %v8650
        %v8863 = vmul.f32 %v8650, %v8862
        %v8864 = vsub.f32 1.0, %v8863
        %v8865 = vmul.f32 %v8862, %v8864
        %v8866 = vadd.f32 %v8862, %v8865
        %vm8867 = vweird.f32 %v8650
        %vm8868 = vweird.f32 %v8862
        %vm8869 = vmor %vm8867, %vm8868
        %v8870 = vsel %vm8869, %v8862, %v8866
        %v8871 = vand.u32 2147483647, %v8650
        %vm8872 = vcmp.eq.f32.partialorder %v8871, 8.507059e+37
        %v8873 = vand.u32 %v8650, 2147483648
        %v8874 = vor.u32 1.1754944e-38, %v8873
        %v8875 = vsel %vm8872, %v8874, %v8870
        %v8876 = vmul.f32 1.0, %v8875
        %v8877 = vrcp.pop %v8651
        %v8878 = vmul.f32 %v8651, %v8877
        %v8879 = vsub.f32 1.0, %v8878
        %v8880 = vmul.f32 %v8877, %v8879
        %v8881 = vadd.f32 %v8877, %v8880
        %vm8882 = vweird.f32 %v8651
        %vm8883 = vweird.f32 %v8877
        %vm8884 = vmor %vm8882, %vm8883
        %v8885 = vsel %vm8884, %v8877, %v8881
        %v8886 = vand.u32 2147483647, %v8651
        %vm8887 = vcmp.eq.f32.partialorder %v8886, 8.507059e+37
        %v8888 = vand.u32 %v8651, 2147483648
        %v8889 = vor.u32 1.1754944e-38, %v8888
        %v8890 = vsel %vm8887, %v8889, %v8885
        %v8891 = vmul.f32 1.0, %v8890
        %vm8892 = vcmask 7168
        %8893 = vst.msk [vmem:[%s435] sm:$0xff] %vm8892, %v8666
        %8894 = vst.msk [vmem:[%s435 + $0x8] sm:$0xff] %vm8892, %v8681
        %8895 = vst.msk [vmem:[%s435 + $0x10] sm:$0xff] %vm8892, %v8696
        %8896 = vst.msk [vmem:[%s435 + $0x18] sm:$0xff] %vm8892, %v8711
        %8897 = vst.msk [vmem:[%s435 + $0x20] sm:$0xff] %vm8892, %v8726
        %8898 = vst.msk [vmem:[%s435 + $0x28] sm:$0xff] %vm8892, %v8741
        %8899 = vst.msk [vmem:[%s435 + $0x30] sm:$0xff] %vm8892, %v8756
        %8900 = vst.msk [vmem:[%s435 + $0x38] sm:$0xff] %vm8892, %v8771
        %8901 = vst.msk [vmem:[%s435 + $0x40] sm:$0xff] %vm8892, %v8786
        %8902 = vst.msk [vmem:[%s435 + $0x48] sm:$0xff] %vm8892, %v8801
        %8903 = vst.msk [vmem:[%s435 + $0x50] sm:$0xff] %vm8892, %v8816
        %8904 = vst.msk [vmem:[%s435 + $0x58] sm:$0xff] %vm8892, %v8831
        %8905 = vst.msk [vmem:[%s435 + $0x60] sm:$0xff] %vm8892, %v8846
        %8906 = vst.msk [vmem:[%s435 + $0x68] sm:$0xff] %vm8892, %v8861
        %8907 = vst.msk [vmem:[%s435 + $0x70] sm:$0xff] %vm8892, %v8876
        %8908 = vst.msk [vmem:[%s435 + $0x78] sm:$0xff] %vm8892, %v8891
        %s8909 = smul.u32 16, %s28
        %p8910 = scmp.lt.s32.totalorder %s8909, 31
        %s8911 = scalar_select %p8910, %s8909, 31
        %s8912 = smul.addr %s8911, 8
        %s8913 = scalar_lea.vmem %s9, %s8912
        // Predicated region
        $region81: #{tpu_custom_call.1} parent=55 // pred_check
          %p8914 = pneg %p240
        $region82: #{tpu_custom_call.1} parent=55 // pred_check_branch
          %8916 = sbr.rel (%p8914) target = $region84
        $region83: #{tpu_custom_call.1} parent=55 // pred_region
          %s8917 = smul.u32 16, %s28
        $region84: #{tpu_custom_call.1} parent=55 // pred_fallthru
          _
      $region56: #{tpu_custom_call.1} parent=5 // pred_fallthru
        _
      %p8918 = scmp.le.s32.totalorder 2, %s23
      // Predicated region
      $region85: #{tpu_custom_call.1} parent=5 // pred_check
        %p8919 = pneg %p8918
      $region86: #{tpu_custom_call.1} parent=5 // pred_check_branch
        %8921 = sbr.rel (%p8919) target = $region88
      $region87: #{tpu_custom_call.1} parent=5 // pred_region
        %s8922 = ssub.s32 %s23, 2
        // Predicated region
        $region89: #{tpu_custom_call.1} parent=87 // pred_check
          %p8923 = pneg %p246
        $region90: #{tpu_custom_call.1} parent=87 // pred_check_branch
          %8925 = sbr.rel (%p8923) target = $region92
        $region91: #{tpu_custom_call.1} parent=87 // pred_region
          %s8926 = smul.u32 16, %s29
          %p8927 = scmp.lt.s32.totalorder %s8926, 31
          %s8928 = scalar_select %p8927, %s8926, 31
          %s8929 = smul.addr %s8928, 8
          %s8930 = scalar_lea.vmem %s9, %s8929
        $region92: #{tpu_custom_call.1} parent=87 // pred_fallthru
          _
      $region88: #{tpu_custom_call.1} parent=5 // pred_fallthru
        _
    $region6: #{tpu_custom_call.1} parent=1 // loop_footer
      %s27 = sadd.s32 1, %s23
    $region7: #{tpu_custom_call.1} parent=1 // loop_footer_branch
      %22 = sbr.rel target = $region3
    $region8: #{tpu_custom_call.1} parent=1 // loop_exit
      _
    %8931 = vsyncpa [#allocation4], 1
    %s8932 = scalar_lea.sflag [#allocation4], 1
    %8933 = vsyncpa %s8932, 1
    %8934 = vsyncpa [#allocation6], 1
    %8935 = vsyncpa [#allocation9], 1
    %8936 = vsyncpa [#allocation12], 1

</llo_original>
